<compile_context>
chip_gen: v7x
topology: tpu7x:2x2x1
jax: 0.10.0
libtpu: 0.0.40
codegen_flags: <defaults>
</compile_context>

<pallas_src>
import jax
import jax.numpy as jnp
from jax.experimental import pallas as pl
from jax.experimental.pallas import tpu as pltpu

NEG_SLOPE = 0.1   # MixMatch WideResNet uses LeakyReLU(negative_slope=0.1)
BN_EPS = 1e-5


# ----------------------------- in-kernel helpers ------------------------------

def _lrelu(y):
    return jnp.where(y > 0, y, NEG_SLOPE * y)


def _bn_lrelu(v_fl, s_ref, b_ref):
    """Eval-mode BN (folded scale/shift) + LeakyReLU.  v_fl: (C, P); s/b: (C, 1)."""
    return _lrelu(v_fl * s_ref[...] + b_ref[...])


def _im2col_3x3(v):
    """v: (C, H, W) f32 -> (9*C, H*W) im2col slab (tap-major, zero padding 1)."""
    C, H, W = v.shape
    zr = jnp.zeros((C, 1, W), v.dtype)
    vp = jnp.concatenate([zr, v, zr], axis=1)            # (C, H+2, W)
    zc = jnp.zeros((C, H + 2, 1), v.dtype)
    vp = jnp.concatenate([zc, vp, zc], axis=2)           # (C, H+2, W+2)
    taps = [vp[:, dy:dy + H, dx:dx + W].reshape(C, H * W)
            for dy in range(3) for dx in range(3)]
    return jnp.concatenate(taps, axis=0)                 # (9C, H*W)


def _basic_block_body(x_fl, s1, b1, w1, s2, b2, w2, sel, m):
    """One MixMatch BasicBlock (eval mode) on a VMEM-resident (Cin, H*W) image."""
    Cin, Cout = m["Cin"], m["Cout"]
    H, W, stride = m["H"], m["W"], m["stride"]
    Ho, Wo = H // stride, W // stride
    equal, abr = m["equal"], m["abr"]

    if equal or abr:
        act_fl = _bn_lrelu(x_fl, s1, b1)                 # relu1(bn1(x))
    if equal:
        conv1_in, short_in = act_fl, None
        res_fl = x_fl                                    # identity residual (raw x)
    elif abr:
        conv1_in = short_in = act_fl                     # x was reassigned in torch fwd
    else:
        # reference computes relu1(bn1(x)) here but never uses it -> skip entirely
        conv1_in = short_in = x_fl

    # ---- conv1: single im2col matmul (stride 1) --------------------------------
    slab1 = _im2col_3x3(conv1_in.reshape(Cin, H, W))     # (9Cin, H*W)
    c1 = jnp.dot(w1[...], slab1, preferred_element_type=jnp.float32)   # (Cout, H*W)

    # exact stride subsample via a tiny selection matmul (shared w/ shortcut input)
    if stride != 1:
        S = sel[...]                                     # (H*W, Ho*Wo), 0/1
        c1 = jnp.dot(c1, S, preferred_element_type=jnp.float32)
        if not equal:
            short_in = jnp.dot(short_in, S, preferred_element_type=jnp.float32)

    # ---- bn2 / relu2 ------------------------------------------------------------
    h = _bn_lrelu(c1, s2, b2)                            # (Cout, Ho*Wo)
    # TODO(synk): dropout (drop_rate > 0, training mode) not implemented; default 0.0.

    # ---- conv2 (+ fused 1x1 shortcut / residual) --------------------------------
    slab2 = _im2col_3x3(h.reshape(Cout, Ho, Wo))         # (9Cout, Ho*Wo)
    if equal:
        out = jnp.dot(w2[...], slab2, preferred_element_type=jnp.float32) + res_fl
    else:
        # w2 is [conv2_im2col | shortcut^T] along K -> one dot gives out + residual
        slab_aug = jnp.concatenate([slab2, short_in], axis=0)   # (9Cout+Cin, Ho*Wo)
        out = jnp.dot(w2[...], slab_aug, preferred_element_type=jnp.float32)
    return out                                           # (Cout, Ho*Wo) f32


# ----------------------------- fused NetworkBlock call ------------------------

def network_block_forward(x_nchw, params_list, configs):
    """x_nchw: (N, C, H, W) f32.  Returns (N, Cout, Ho, Wo) f32 (NCHW)."""
    N, C0, H0, W0 = x_nchw.shape
    inputs = [x_nchw.reshape(N, C0, H0 * W0).astype(jnp.float32)]
    in_specs = [pl.BlockSpec((1, C0, H0 * W0), lambda n: (n, 0, 0))]
    metas = []
    Cin, H, W = C0, H0, W0

    def resident(a):                                     # small weight, fetched once
        return pl.BlockSpec(a.shape, lambda n: (0,) * a.ndim)

    for p, (stride, equal, abr) in zip(params_list, configs):
        Cout = p["conv1"].shape[-1]
        assert stride in (1, 2) and H % stride == 0 and W % stride == 0
        if equal:
            assert stride == 1 and Cin == Cout, "equal_in_out block requires stride 1"
        Ho, Wo = H // stride, W // stride

        s1, b1 = p["bn1"]
        s2, b2 = p["bn2"]
        # (Cout, 9*Cin) im2col weight, f32 (keep full precision on the MXU)
        w1m = p["conv1"].reshape(9 * Cin, Cout).T.astype(jnp.float32)
        w2m = p["conv2"].reshape(9 * Cout, Cout).T.astype(jnp.float32)
        if not equal:
            w2m = jnp.concatenate([w2m, p["conv_shortcut"].T.astype(jnp.float32)],
                                  axis=1)                # fused 1x1 shortcut along K

        blk = [s1.reshape(Cin, 1), b1.reshape(Cin, 1), w1m,
               s2.reshape(Cout, 1), b2.reshape(Cout, 1), w2m]
        has_sel = stride != 1
        if has_sel:
            # 0/1 selection matrix: picks positions (stride*oh, stride*ow)
            q = jnp.arange(Ho * Wo, dtype=jnp.int32)
            tgt = (q // Wo) * (stride * W) + (q % Wo) * stride
            sel = (jnp.arange(H * W, dtype=jnp.int32)[:, None]
                   == tgt[None, :]).astype(jnp.float32)  # (H*W, Ho*Wo)
            blk.append(sel)

        inputs.extend(blk)
        in_specs.extend(resident(a) for a in blk)
        metas.append(dict(Cin=Cin, Cout=Cout, H=H, W=W, stride=stride,
                          equal=equal, abr=abr, has_sel=has_sel))
        Cin, H, W = Cout, Ho, Wo

    def kernel(*refs):
        x_ref, o_ref, prefs = refs[0], refs[-1], refs[1:-1]
        cur = x_ref[0]                                   # (C0, H0*W0) f32
        i = 0
        for m in metas:                                  # both blocks fused, no HBM trips
            s1r, b1r, w1r, s2r, b2r, w2r = prefs[i:i + 6]
            i += 6
            selr = None
            if m["has_sel"]:
                selr = prefs[i]
                i += 1
            cur = _basic_block_body(cur, s1r, b1r, w1r, s2r, b2r, w2r, selr, m)
        o_ref[0] = cur.astype(o_ref.dtype)               # lane-dense (Cout, Ho*Wo) store

    out = pl.pallas_call(
        kernel,
        grid=(N,),
        out_shape=jax.ShapeDtypeStruct((N, Cin, H * W), jnp.float32),
        in_specs=in_specs,
        out_specs=pl.BlockSpec((1, Cin, H * W), lambda n: (n, 0, 0)),
        compiler_params=pltpu.CompilerParams(
            dimension_semantics=("parallel",),           # 2 blocks -> both v7x TCs busy
            vmem_limit_bytes=32 * 1024 * 1024),          # well under v7x's 64 MiB
    )(*inputs)
    return out.reshape(N, Cin, H, W)                     # back to NCHW


# ----------------------------- pure-JAX f32 reference -------------------------

def _conv2d_ref(x, w_hwio, stride, padding):
    return jax.lax.conv_general_dilated(
        x, w_hwio, window_strides=(stride, stride),
        padding=((padding, padding), (padding, padding)),
        dimension_numbers=("NCHW", "HWIO", "NCHW"),
        precision=jax.lax.Precision.HIGHEST)


def _basic_block_ref(x, params, stride, equal_in_out, activate_before_residual):
    def bnrelu(v, sb):
        s, b = sb
        y = v * s.reshape(1, -1, 1, 1) + b.reshape(1, -1, 1, 1)
        return jnp.where(y > 0, y, NEG_SLOPE * y)

    if (not equal_in_out) and activate_before_residual:
        x = bnrelu(x, params["bn1"])
        conv1_in = x
    else:
        act = bnrelu(x, params["bn1"])
        conv1_in = act if equal_in_out else x
    out = _conv2d_ref(conv1_in, params["conv1"], stride, 1)
    out = bnrelu(out, params["bn2"])
    out = _conv2d_ref(out, params["conv2"], 1, 1)
    if equal_in_out:
        res = x
    else:
        cin, cout = params["conv_shortcut"].shape
        res = _conv2d_ref(x, params["conv_shortcut"].reshape(1, 1, cin, cout),
                          stride, 0)
    return out + res


def network_block_ref(x_nchw, params_list, configs):
    x = x_nchw
    for p, (stride, equal, abr) in zip(params_list, configs):
        x = _basic_block_ref(x, p, stride, equal, abr)
    return x


# ----------------------------- deterministic param init ----------------------

def _bn_params(key, c):
    kg, kb, km, kv = jax.random.split(key, 4)
    gamma = 1.0 + 0.1 * jax.random.normal(kg, (c,))
    beta = 0.1 * jax.random.normal(kb, (c,))
    mean = 0.1 * jax.random.normal(km, (c,))
    var = jnp.abs(1.0 + 0.1 * jax.random.normal(kv, (c,)))
    scale = (gamma / jnp.sqrt(var + BN_EPS)).astype(jnp.float32)
    shift = (beta - mean * scale).astype(jnp.float32)
    return scale, shift


def _init_basic_block(key, in_p, out_p):
    ks = jax.random.split(key, 5)
    p = {}
    p["bn1"] = _bn_params(ks[0], in_p)
    p["conv1"] = (jax.random.normal(ks[1], (3, 3, in_p, out_p))
                  * jnp.sqrt(2.0 / (9 * out_p))).astype(jnp.float32)
    p["bn2"] = _bn_params(ks[2], out_p)
    p["conv2"] = (jax.random.normal(ks[3], (3, 3, out_p, out_p))
                  * jnp.sqrt(2.0 / (9 * out_p))).astype(jnp.float32)
    if in_p != out_p:
        p["conv_shortcut"] = (jax.random.normal(ks[4], (in_p, out_p))
                              * jnp.sqrt(2.0 / out_p)).astype(jnp.float32)
    return p


def init_network_block(key, nb_layers, in_planes, out_planes, stride,
                       activate_before_residual=False):
    params_list, configs = [], []
    keys = jax.random.split(key, int(nb_layers))
    for i in range(int(nb_layers)):
        in_p = in_planes if i == 0 else out_planes
        st = stride if i == 0 else 1
        params_list.append(_init_basic_block(keys[i], in_p, out_planes))
        configs.append((st, in_p == out_planes, activate_before_residual))
    return params_list, configs


# ----------------------------- main -------------------------------------------

if __name__ == "__main__":
    key = jax.random.PRNGKey(0)
    kx, kp = jax.random.split(key)

    # NetworkBlock(nb_layers=2, in_planes=4, out_planes=8, block=BasicBlock,
    #              stride=2, drop_rate=0.0, activate_before_residual=True)
    N, Cin, H, W = 2, 4, 16, 16
    out_planes, nb_layers, stride = 8, 2, 2

    x = jax.random.normal(kx, (N, Cin, H, W), dtype=jnp.float32)
    params_list, configs = init_network_block(kp, nb_layers, Cin, out_planes,
                                              stride, activate_before_residual=True)

    y = jax.block_until_ready(network_block_forward(x, params_list, configs))
    assert y.shape == (N, out_planes, H // stride, W // stride), y.shape
    assert bool(jnp.all(jnp.isfinite(y)))

    # Correctness vs pure-JAX f32 reference (all-f32 MXU math -> tight tolerance).
    y_ref = jax.block_until_ready(network_block_ref(x, params_list, configs))
    rel_err = float(jnp.max(jnp.abs(y - y_ref))
                    / jnp.maximum(1.0, jnp.max(jnp.abs(y_ref))))
    assert rel_err < 0.03, f"mismatch vs reference: rel_err={rel_err}"

    print("KERNEL_OK")
</pallas_src>

<mosaic_0001>
module attributes {stable_mosaic.version = 11 : i64} {
  func.func @kernel(%arg0: i32, %arg1: memref<1x4x256xf32, #tpu.memory_space<vmem>>, %arg2: memref<4x1xf32, #tpu.memory_space<vmem>>, %arg3: memref<4x1xf32, #tpu.memory_space<vmem>>, %arg4: memref<8x36xf32, #tpu.memory_space<vmem>>, %arg5: memref<8x1xf32, #tpu.memory_space<vmem>>, %arg6: memref<8x1xf32, #tpu.memory_space<vmem>>, %arg7: memref<8x76xf32, #tpu.memory_space<vmem>>, %arg8: memref<256x64xf32, #tpu.memory_space<vmem>>, %arg9: memref<8x1xf32, #tpu.memory_space<vmem>>, %arg10: memref<8x1xf32, #tpu.memory_space<vmem>>, %arg11: memref<8x72xf32, #tpu.memory_space<vmem>>, %arg12: memref<8x1xf32, #tpu.memory_space<vmem>>, %arg13: memref<8x1xf32, #tpu.memory_space<vmem>>, %arg14: memref<8x72xf32, #tpu.memory_space<vmem>>, %arg15: memref<1x8x64xf32, #tpu.memory_space<vmem>>) attributes {dimension_semantics = [#tpu.dimension_semantics<parallel>], iteration_bounds = array<i64: 2>, scalar_prefetch = 0 : i64, scratch_operands = 0 : i64, tpu.core_type = #tpu.core_type<tc>, window_params = [{transform_indices = @transform_0, window_bounds = array<i64: 1, 4, 256>}, {pipeline_mode = #tpu.pipeline_mode<synchronous>, transform_indices = @transform_1, window_bounds = array<i64: 4, 1>}, {pipeline_mode = #tpu.pipeline_mode<synchronous>, transform_indices = @transform_2, window_bounds = array<i64: 4, 1>}, {pipeline_mode = #tpu.pipeline_mode<synchronous>, transform_indices = @transform_3, window_bounds = array<i64: 8, 36>}, {pipeline_mode = #tpu.pipeline_mode<synchronous>, transform_indices = @transform_4, window_bounds = array<i64: 8, 1>}, {pipeline_mode = #tpu.pipeline_mode<synchronous>, transform_indices = @transform_5, window_bounds = array<i64: 8, 1>}, {pipeline_mode = #tpu.pipeline_mode<synchronous>, transform_indices = @transform_6, window_bounds = array<i64: 8, 76>}, {pipeline_mode = #tpu.pipeline_mode<synchronous>, transform_indices = @transform_7, window_bounds = array<i64: 256, 64>}, {pipeline_mode = #tpu.pipeline_mode<synchronous>, transform_indices = @transform_8, window_bounds = array<i64: 8, 1>}, {pipeline_mode = #tpu.pipeline_mode<synchronous>, transform_indices = @transform_9, window_bounds = array<i64: 8, 1>}, {pipeline_mode = #tpu.pipeline_mode<synchronous>, transform_indices = @transform_10, window_bounds = array<i64: 8, 72>}, {pipeline_mode = #tpu.pipeline_mode<synchronous>, transform_indices = @transform_11, window_bounds = array<i64: 8, 1>}, {pipeline_mode = #tpu.pipeline_mode<synchronous>, transform_indices = @transform_12, window_bounds = array<i64: 8, 1>}, {pipeline_mode = #tpu.pipeline_mode<synchronous>, transform_indices = @transform_13, window_bounds = array<i64: 8, 72>}, {transform_indices = @transform_14, window_bounds = array<i64: 1, 8, 64>}]} {
    %c0 = arith.constant 0 : index
    %c0_0 = arith.constant 0 : index
    %c0_1 = arith.constant 0 : index
    %0 = vector.load %arg1[%c0, %c0_0, %c0_1] : memref<1x4x256xf32, #tpu.memory_space<vmem>>, vector<1x4x256xf32>
    %1 = vector.shape_cast %0 : vector<1x4x256xf32> to vector<4x256xf32>
    %c0_2 = arith.constant 0 : index
    %c0_3 = arith.constant 0 : index
    %2 = vector.load %arg2[%c0_2, %c0_3] : memref<4x1xf32, #tpu.memory_space<vmem>>, vector<4x1xf32>
    %3 = vector.broadcast %2 : vector<4x1xf32> to vector<4x256xf32>
    %4 = arith.mulf %1, %3 : vector<4x256xf32>
    %c0_4 = arith.constant 0 : index
    %c0_5 = arith.constant 0 : index
    %5 = vector.load %arg3[%c0_4, %c0_5] : memref<4x1xf32, #tpu.memory_space<vmem>>, vector<4x1xf32>
    %6 = vector.broadcast %5 : vector<4x1xf32> to vector<4x256xf32>
    %7 = arith.addf %4, %6 : vector<4x256xf32>
    %cst = arith.constant 0.000000e+00 : f32
    %8 = vector.broadcast %cst : f32 to vector<4x256xf32>
    %9 = arith.cmpf ogt, %7, %8 : vector<4x256xf32>
    %cst_6 = arith.constant 1.000000e-01 : f32
    %10 = vector.broadcast %cst_6 : f32 to vector<4x256xf32>
    %11 = arith.mulf %10, %7 : vector<4x256xf32>
    %12 = arith.select %9, %7, %11 : vector<4x256xi1>, vector<4x256xf32>
    %13 = vector.shape_cast %12 : vector<4x256xf32> to vector<4x16x16xf32>
    %cst_7 = arith.constant 0.000000e+00 : f32
    %14 = vector.broadcast %cst_7 : f32 to vector<4x1x16xf32>
    %15 = tpu.concatenate %14, %13, %14 in 1 : vector<4x1x16xf32>, vector<4x16x16xf32>, vector<4x1x16xf32> -> vector<4x18x16xf32>
    %cst_8 = arith.constant 0.000000e+00 : f32
    %16 = vector.broadcast %cst_8 : f32 to vector<4x18x1xf32>
    %17 = tpu.concatenate %16, %15, %16 in 2 : vector<4x18x1xf32>, vector<4x18x16xf32>, vector<4x18x1xf32> -> vector<4x18x18xf32>
    %18 = vector.extract_strided_slice %17 {offsets = [0, 0, 0], sizes = [4, 16, 16], strides = [1, 1, 1]} : vector<4x18x18xf32> to vector<4x16x16xf32>
    %19 = vector.shape_cast %18 : vector<4x16x16xf32> to vector<4x256xf32>
    %20 = vector.extract_strided_slice %17 {offsets = [0, 0, 1], sizes = [4, 16, 16], strides = [1, 1, 1]} : vector<4x18x18xf32> to vector<4x16x16xf32>
    %21 = vector.shape_cast %20 : vector<4x16x16xf32> to vector<4x256xf32>
    %22 = vector.extract_strided_slice %17 {offsets = [0, 0, 2], sizes = [4, 16, 16], strides = [1, 1, 1]} : vector<4x18x18xf32> to vector<4x16x16xf32>
    %23 = vector.shape_cast %22 : vector<4x16x16xf32> to vector<4x256xf32>
    %24 = vector.extract_strided_slice %17 {offsets = [0, 1, 0], sizes = [4, 16, 16], strides = [1, 1, 1]} : vector<4x18x18xf32> to vector<4x16x16xf32>
    %25 = vector.shape_cast %24 : vector<4x16x16xf32> to vector<4x256xf32>
    %26 = vector.extract_strided_slice %17 {offsets = [0, 1, 1], sizes = [4, 16, 16], strides = [1, 1, 1]} : vector<4x18x18xf32> to vector<4x16x16xf32>
    %27 = vector.shape_cast %26 : vector<4x16x16xf32> to vector<4x256xf32>
    %28 = vector.extract_strided_slice %17 {offsets = [0, 1, 2], sizes = [4, 16, 16], strides = [1, 1, 1]} : vector<4x18x18xf32> to vector<4x16x16xf32>
    %29 = vector.shape_cast %28 : vector<4x16x16xf32> to vector<4x256xf32>
    %30 = vector.extract_strided_slice %17 {offsets = [0, 2, 0], sizes = [4, 16, 16], strides = [1, 1, 1]} : vector<4x18x18xf32> to vector<4x16x16xf32>
    %31 = vector.shape_cast %30 : vector<4x16x16xf32> to vector<4x256xf32>
    %32 = vector.extract_strided_slice %17 {offsets = [0, 2, 1], sizes = [4, 16, 16], strides = [1, 1, 1]} : vector<4x18x18xf32> to vector<4x16x16xf32>
    %33 = vector.shape_cast %32 : vector<4x16x16xf32> to vector<4x256xf32>
    %34 = vector.extract_strided_slice %17 {offsets = [0, 2, 2], sizes = [4, 16, 16], strides = [1, 1, 1]} : vector<4x18x18xf32> to vector<4x16x16xf32>
    %35 = vector.shape_cast %34 : vector<4x16x16xf32> to vector<4x256xf32>
    %36 = tpu.concatenate %19, %21, %23, %25, %27, %29, %31, %33, %35 in 0 : vector<4x256xf32>, vector<4x256xf32>, vector<4x256xf32>, vector<4x256xf32>, vector<4x256xf32>, vector<4x256xf32>, vector<4x256xf32>, vector<4x256xf32>, vector<4x256xf32> -> vector<36x256xf32>
    %c0_9 = arith.constant 0 : index
    %c0_10 = arith.constant 0 : index
    %37 = vector.load %arg4[%c0_9, %c0_10] : memref<8x36xf32, #tpu.memory_space<vmem>>, vector<8x36xf32>
    %cst_11 = arith.constant dense<0.000000e+00> : vector<8x256xf32>
    %38 = tpu.matmul %37, %36, %cst_11 {dimension_numbers = #tpu.dot_dimension_numbers<[1], [0], [0], [1], [0, 0, 1, 1], [], []>} : vector<8x36xf32>, vector<36x256xf32>, vector<8x256xf32> -> vector<8x256xf32>
    %c0_12 = arith.constant 0 : index
    %c0_13 = arith.constant 0 : index
    %39 = vector.load %arg8[%c0_12, %c0_13] : memref<256x64xf32, #tpu.memory_space<vmem>>, vector<256x64xf32>
    %cst_14 = arith.constant dense<0.000000e+00> : vector<8x64xf32>
    %40 = tpu.matmul %38, %39, %cst_14 {dimension_numbers = #tpu.dot_dimension_numbers<[1], [0], [0], [1], [0, 0, 1, 1], [], []>} : vector<8x256xf32>, vector<256x64xf32>, vector<8x64xf32> -> vector<8x64xf32>
    %cst_15 = arith.constant dense<0.000000e+00> : vector<4x64xf32>
    %41 = tpu.matmul %12, %39, %cst_15 {dimension_numbers = #tpu.dot_dimension_numbers<[1], [0], [0], [1], [0, 0, 1, 1], [], []>} : vector<4x256xf32>, vector<256x64xf32>, vector<4x64xf32> -> vector<4x64xf32>
    %c0_16 = arith.constant 0 : index
    %c0_17 = arith.constant 0 : index
    %42 = vector.load %arg5[%c0_16, %c0_17] : memref<8x1xf32, #tpu.memory_space<vmem>>, vector<8x1xf32>
    %43 = vector.broadcast %42 : vector<8x1xf32> to vector<8x64xf32>
    %44 = arith.mulf %40, %43 : vector<8x64xf32>
    %c0_18 = arith.constant 0 : index
    %c0_19 = arith.constant 0 : index
    %45 = vector.load %arg6[%c0_18, %c0_19] : memref<8x1xf32, #tpu.memory_space<vmem>>, vector<8x1xf32>
    %46 = vector.broadcast %45 : vector<8x1xf32> to vector<8x64xf32>
    %47 = arith.addf %44, %46 : vector<8x64xf32>
    %cst_20 = arith.constant 0.000000e+00 : f32
    %48 = vector.broadcast %cst_20 : f32 to vector<8x64xf32>
    %49 = arith.cmpf ogt, %47, %48 : vector<8x64xf32>
    %cst_21 = arith.constant 1.000000e-01 : f32
    %50 = vector.broadcast %cst_21 : f32 to vector<8x64xf32>
    %51 = arith.mulf %50, %47 : vector<8x64xf32>
    %52 = arith.select %49, %47, %51 : vector<8x64xi1>, vector<8x64xf32>
    %53 = vector.shape_cast %52 : vector<8x64xf32> to vector<8x8x8xf32>
    %cst_22 = arith.constant 0.000000e+00 : f32
    %54 = vector.broadcast %cst_22 : f32 to vector<8x1x8xf32>
    %55 = tpu.concatenate %54, %53, %54 in 1 : vector<8x1x8xf32>, vector<8x8x8xf32>, vector<8x1x8xf32> -> vector<8x10x8xf32>
    %cst_23 = arith.constant 0.000000e+00 : f32
    %56 = vector.broadcast %cst_23 : f32 to vector<8x10x1xf32>
    %57 = tpu.concatenate %56, %55, %56 in 2 : vector<8x10x1xf32>, vector<8x10x8xf32>, vector<8x10x1xf32> -> vector<8x10x10xf32>
    %58 = vector.extract_strided_slice %57 {offsets = [0, 0, 0], sizes = [8, 8, 8], strides = [1, 1, 1]} : vector<8x10x10xf32> to vector<8x8x8xf32>
    %59 = vector.shape_cast %58 : vector<8x8x8xf32> to vector<8x64xf32>
    %60 = vector.extract_strided_slice %57 {offsets = [0, 0, 1], sizes = [8, 8, 8], strides = [1, 1, 1]} : vector<8x10x10xf32> to vector<8x8x8xf32>
    %61 = vector.shape_cast %60 : vector<8x8x8xf32> to vector<8x64xf32>
    %62 = vector.extract_strided_slice %57 {offsets = [0, 0, 2], sizes = [8, 8, 8], strides = [1, 1, 1]} : vector<8x10x10xf32> to vector<8x8x8xf32>
    %63 = vector.shape_cast %62 : vector<8x8x8xf32> to vector<8x64xf32>
    %64 = vector.extract_strided_slice %57 {offsets = [0, 1, 0], sizes = [8, 8, 8], strides = [1, 1, 1]} : vector<8x10x10xf32> to vector<8x8x8xf32>
    %65 = vector.shape_cast %64 : vector<8x8x8xf32> to vector<8x64xf32>
    %66 = vector.extract_strided_slice %57 {offsets = [0, 1, 1], sizes = [8, 8, 8], strides = [1, 1, 1]} : vector<8x10x10xf32> to vector<8x8x8xf32>
    %67 = vector.shape_cast %66 : vector<8x8x8xf32> to vector<8x64xf32>
    %68 = vector.extract_strided_slice %57 {offsets = [0, 1, 2], sizes = [8, 8, 8], strides = [1, 1, 1]} : vector<8x10x10xf32> to vector<8x8x8xf32>
    %69 = vector.shape_cast %68 : vector<8x8x8xf32> to vector<8x64xf32>
    %70 = vector.extract_strided_slice %57 {offsets = [0, 2, 0], sizes = [8, 8, 8], strides = [1, 1, 1]} : vector<8x10x10xf32> to vector<8x8x8xf32>
    %71 = vector.shape_cast %70 : vector<8x8x8xf32> to vector<8x64xf32>
    %72 = vector.extract_strided_slice %57 {offsets = [0, 2, 1], sizes = [8, 8, 8], strides = [1, 1, 1]} : vector<8x10x10xf32> to vector<8x8x8xf32>
    %73 = vector.shape_cast %72 : vector<8x8x8xf32> to vector<8x64xf32>
    %74 = vector.extract_strided_slice %57 {offsets = [0, 2, 2], sizes = [8, 8, 8], strides = [1, 1, 1]} : vector<8x10x10xf32> to vector<8x8x8xf32>
    %75 = vector.shape_cast %74 : vector<8x8x8xf32> to vector<8x64xf32>
    %76 = tpu.concatenate %59, %61, %63, %65, %67, %69, %71, %73, %75 in 0 : vector<8x64xf32>, vector<8x64xf32>, vector<8x64xf32>, vector<8x64xf32>, vector<8x64xf32>, vector<8x64xf32>, vector<8x64xf32>, vector<8x64xf32>, vector<8x64xf32> -> vector<72x64xf32>
    %77 = tpu.concatenate %76, %41 in 0 : vector<72x64xf32>, vector<4x64xf32> -> vector<76x64xf32>
    %c0_24 = arith.constant 0 : index
    %c0_25 = arith.constant 0 : index
    %78 = vector.load %arg7[%c0_24, %c0_25] : memref<8x76xf32, #tpu.memory_space<vmem>>, vector<8x76xf32>
    %cst_26 = arith.constant dense<0.000000e+00> : vector<8x64xf32>
    %79 = tpu.matmul %78, %77, %cst_26 {dimension_numbers = #tpu.dot_dimension_numbers<[1], [0], [0], [1], [0, 0, 1, 1], [], []>} : vector<8x76xf32>, vector<76x64xf32>, vector<8x64xf32> -> vector<8x64xf32>
    %c0_27 = arith.constant 0 : index
    %c0_28 = arith.constant 0 : index
    %80 = vector.load %arg9[%c0_27, %c0_28] : memref<8x1xf32, #tpu.memory_space<vmem>>, vector<8x1xf32>
    %81 = vector.broadcast %80 : vector<8x1xf32> to vector<8x64xf32>
    %82 = arith.mulf %79, %81 : vector<8x64xf32>
    %c0_29 = arith.constant 0 : index
    %c0_30 = arith.constant 0 : index
    %83 = vector.load %arg10[%c0_29, %c0_30] : memref<8x1xf32, #tpu.memory_space<vmem>>, vector<8x1xf32>
    %84 = vector.broadcast %83 : vector<8x1xf32> to vector<8x64xf32>
    %85 = arith.addf %82, %84 : vector<8x64xf32>
    %cst_31 = arith.constant 0.000000e+00 : f32
    %86 = vector.broadcast %cst_31 : f32 to vector<8x64xf32>
    %87 = arith.cmpf ogt, %85, %86 : vector<8x64xf32>
    %cst_32 = arith.constant 1.000000e-01 : f32
    %88 = vector.broadcast %cst_32 : f32 to vector<8x64xf32>
    %89 = arith.mulf %88, %85 : vector<8x64xf32>
    %90 = arith.select %87, %85, %89 : vector<8x64xi1>, vector<8x64xf32>
    %91 = vector.shape_cast %90 : vector<8x64xf32> to vector<8x8x8xf32>
    %cst_33 = arith.constant 0.000000e+00 : f32
    %92 = vector.broadcast %cst_33 : f32 to vector<8x1x8xf32>
    %93 = tpu.concatenate %92, %91, %92 in 1 : vector<8x1x8xf32>, vector<8x8x8xf32>, vector<8x1x8xf32> -> vector<8x10x8xf32>
    %cst_34 = arith.constant 0.000000e+00 : f32
    %94 = vector.broadcast %cst_34 : f32 to vector<8x10x1xf32>
    %95 = tpu.concatenate %94, %93, %94 in 2 : vector<8x10x1xf32>, vector<8x10x8xf32>, vector<8x10x1xf32> -> vector<8x10x10xf32>
    %96 = vector.extract_strided_slice %95 {offsets = [0, 0, 0], sizes = [8, 8, 8], strides = [1, 1, 1]} : vector<8x10x10xf32> to vector<8x8x8xf32>
    %97 = vector.shape_cast %96 : vector<8x8x8xf32> to vector<8x64xf32>
    %98 = vector.extract_strided_slice %95 {offsets = [0, 0, 1], sizes = [8, 8, 8], strides = [1, 1, 1]} : vector<8x10x10xf32> to vector<8x8x8xf32>
    %99 = vector.shape_cast %98 : vector<8x8x8xf32> to vector<8x64xf32>
    %100 = vector.extract_strided_slice %95 {offsets = [0, 0, 2], sizes = [8, 8, 8], strides = [1, 1, 1]} : vector<8x10x10xf32> to vector<8x8x8xf32>
    %101 = vector.shape_cast %100 : vector<8x8x8xf32> to vector<8x64xf32>
    %102 = vector.extract_strided_slice %95 {offsets = [0, 1, 0], sizes = [8, 8, 8], strides = [1, 1, 1]} : vector<8x10x10xf32> to vector<8x8x8xf32>
    %103 = vector.shape_cast %102 : vector<8x8x8xf32> to vector<8x64xf32>
    %104 = vector.extract_strided_slice %95 {offsets = [0, 1, 1], sizes = [8, 8, 8], strides = [1, 1, 1]} : vector<8x10x10xf32> to vector<8x8x8xf32>
    %105 = vector.shape_cast %104 : vector<8x8x8xf32> to vector<8x64xf32>
    %106 = vector.extract_strided_slice %95 {offsets = [0, 1, 2], sizes = [8, 8, 8], strides = [1, 1, 1]} : vector<8x10x10xf32> to vector<8x8x8xf32>
    %107 = vector.shape_cast %106 : vector<8x8x8xf32> to vector<8x64xf32>
    %108 = vector.extract_strided_slice %95 {offsets = [0, 2, 0], sizes = [8, 8, 8], strides = [1, 1, 1]} : vector<8x10x10xf32> to vector<8x8x8xf32>
    %109 = vector.shape_cast %108 : vector<8x8x8xf32> to vector<8x64xf32>
    %110 = vector.extract_strided_slice %95 {offsets = [0, 2, 1], sizes = [8, 8, 8], strides = [1, 1, 1]} : vector<8x10x10xf32> to vector<8x8x8xf32>
    %111 = vector.shape_cast %110 : vector<8x8x8xf32> to vector<8x64xf32>
    %112 = vector.extract_strided_slice %95 {offsets = [0, 2, 2], sizes = [8, 8, 8], strides = [1, 1, 1]} : vector<8x10x10xf32> to vector<8x8x8xf32>
    %113 = vector.shape_cast %112 : vector<8x8x8xf32> to vector<8x64xf32>
    %114 = tpu.concatenate %97, %99, %101, %103, %105, %107, %109, %111, %113 in 0 : vector<8x64xf32>, vector<8x64xf32>, vector<8x64xf32>, vector<8x64xf32>, vector<8x64xf32>, vector<8x64xf32>, vector<8x64xf32>, vector<8x64xf32>, vector<8x64xf32> -> vector<72x64xf32>
    %c0_35 = arith.constant 0 : index
    %c0_36 = arith.constant 0 : index
    %115 = vector.load %arg11[%c0_35, %c0_36] : memref<8x72xf32, #tpu.memory_space<vmem>>, vector<8x72xf32>
    %cst_37 = arith.constant dense<0.000000e+00> : vector<8x64xf32>
    %116 = tpu.matmul %115, %114, %cst_37 {dimension_numbers = #tpu.dot_dimension_numbers<[1], [0], [0], [1], [0, 0, 1, 1], [], []>} : vector<8x72xf32>, vector<72x64xf32>, vector<8x64xf32> -> vector<8x64xf32>
    %c0_38 = arith.constant 0 : index
    %c0_39 = arith.constant 0 : index
    %117 = vector.load %arg12[%c0_38, %c0_39] : memref<8x1xf32, #tpu.memory_space<vmem>>, vector<8x1xf32>
    %118 = vector.broadcast %117 : vector<8x1xf32> to vector<8x64xf32>
    %119 = arith.mulf %116, %118 : vector<8x64xf32>
    %c0_40 = arith.constant 0 : index
    %c0_41 = arith.constant 0 : index
    %120 = vector.load %arg13[%c0_40, %c0_41] : memref<8x1xf32, #tpu.memory_space<vmem>>, vector<8x1xf32>
    %121 = vector.broadcast %120 : vector<8x1xf32> to vector<8x64xf32>
    %122 = arith.addf %119, %121 : vector<8x64xf32>
    %cst_42 = arith.constant 0.000000e+00 : f32
    %123 = vector.broadcast %cst_42 : f32 to vector<8x64xf32>
    %124 = arith.cmpf ogt, %122, %123 : vector<8x64xf32>
    %cst_43 = arith.constant 1.000000e-01 : f32
    %125 = vector.broadcast %cst_43 : f32 to vector<8x64xf32>
    %126 = arith.mulf %125, %122 : vector<8x64xf32>
    %127 = arith.select %124, %122, %126 : vector<8x64xi1>, vector<8x64xf32>
    %128 = vector.shape_cast %127 : vector<8x64xf32> to vector<8x8x8xf32>
    %cst_44 = arith.constant 0.000000e+00 : f32
    %129 = vector.broadcast %cst_44 : f32 to vector<8x1x8xf32>
    %130 = tpu.concatenate %129, %128, %129 in 1 : vector<8x1x8xf32>, vector<8x8x8xf32>, vector<8x1x8xf32> -> vector<8x10x8xf32>
    %cst_45 = arith.constant 0.000000e+00 : f32
    %131 = vector.broadcast %cst_45 : f32 to vector<8x10x1xf32>
    %132 = tpu.concatenate %131, %130, %131 in 2 : vector<8x10x1xf32>, vector<8x10x8xf32>, vector<8x10x1xf32> -> vector<8x10x10xf32>
    %133 = vector.extract_strided_slice %132 {offsets = [0, 0, 0], sizes = [8, 8, 8], strides = [1, 1, 1]} : vector<8x10x10xf32> to vector<8x8x8xf32>
    %134 = vector.shape_cast %133 : vector<8x8x8xf32> to vector<8x64xf32>
    %135 = vector.extract_strided_slice %132 {offsets = [0, 0, 1], sizes = [8, 8, 8], strides = [1, 1, 1]} : vector<8x10x10xf32> to vector<8x8x8xf32>
    %136 = vector.shape_cast %135 : vector<8x8x8xf32> to vector<8x64xf32>
    %137 = vector.extract_strided_slice %132 {offsets = [0, 0, 2], sizes = [8, 8, 8], strides = [1, 1, 1]} : vector<8x10x10xf32> to vector<8x8x8xf32>
    %138 = vector.shape_cast %137 : vector<8x8x8xf32> to vector<8x64xf32>
    %139 = vector.extract_strided_slice %132 {offsets = [0, 1, 0], sizes = [8, 8, 8], strides = [1, 1, 1]} : vector<8x10x10xf32> to vector<8x8x8xf32>
    %140 = vector.shape_cast %139 : vector<8x8x8xf32> to vector<8x64xf32>
    %141 = vector.extract_strided_slice %132 {offsets = [0, 1, 1], sizes = [8, 8, 8], strides = [1, 1, 1]} : vector<8x10x10xf32> to vector<8x8x8xf32>
    %142 = vector.shape_cast %141 : vector<8x8x8xf32> to vector<8x64xf32>
    %143 = vector.extract_strided_slice %132 {offsets = [0, 1, 2], sizes = [8, 8, 8], strides = [1, 1, 1]} : vector<8x10x10xf32> to vector<8x8x8xf32>
    %144 = vector.shape_cast %143 : vector<8x8x8xf32> to vector<8x64xf32>
    %145 = vector.extract_strided_slice %132 {offsets = [0, 2, 0], sizes = [8, 8, 8], strides = [1, 1, 1]} : vector<8x10x10xf32> to vector<8x8x8xf32>
    %146 = vector.shape_cast %145 : vector<8x8x8xf32> to vector<8x64xf32>
    %147 = vector.extract_strided_slice %132 {offsets = [0, 2, 1], sizes = [8, 8, 8], strides = [1, 1, 1]} : vector<8x10x10xf32> to vector<8x8x8xf32>
    %148 = vector.shape_cast %147 : vector<8x8x8xf32> to vector<8x64xf32>
    %149 = vector.extract_strided_slice %132 {offsets = [0, 2, 2], sizes = [8, 8, 8], strides = [1, 1, 1]} : vector<8x10x10xf32> to vector<8x8x8xf32>
    %150 = vector.shape_cast %149 : vector<8x8x8xf32> to vector<8x64xf32>
    %151 = tpu.concatenate %134, %136, %138, %140, %142, %144, %146, %148, %150 in 0 : vector<8x64xf32>, vector<8x64xf32>, vector<8x64xf32>, vector<8x64xf32>, vector<8x64xf32>, vector<8x64xf32>, vector<8x64xf32>, vector<8x64xf32>, vector<8x64xf32> -> vector<72x64xf32>
    %c0_46 = arith.constant 0 : index
    %c0_47 = arith.constant 0 : index
    %152 = vector.load %arg14[%c0_46, %c0_47] : memref<8x72xf32, #tpu.memory_space<vmem>>, vector<8x72xf32>
    %cst_48 = arith.constant dense<0.000000e+00> : vector<8x64xf32>
    %153 = tpu.matmul %152, %151, %cst_48 {dimension_numbers = #tpu.dot_dimension_numbers<[1], [0], [0], [1], [0, 0, 1, 1], [], []>} : vector<8x72xf32>, vector<72x64xf32>, vector<8x64xf32> -> vector<8x64xf32>
    %154 = arith.addf %153, %79 : vector<8x64xf32>
    %c0_49 = arith.constant 0 : index
    %c0_50 = arith.constant 0 : index
    %c0_51 = arith.constant 0 : index
    %155 = vector.load %arg15[%c0_49, %c0_50, %c0_51] : memref<1x8x64xf32, #tpu.memory_space<vmem>>, vector<1x8x64xf32>
    %156 = vector.shape_cast %155 : vector<1x8x64xf32> to vector<8x64xf32>
    %157 = vector.shape_cast %154 : vector<8x64xf32> to vector<1x8x64xf32>
    tpu.vector_store %arg15[%c0_49, %c0_50, %c0_51], %157 {strides = array<i32>} : memref<1x8x64xf32, #tpu.memory_space<vmem>>, vector<1x8x64xf32>,
    return
  }
  func.func @transform_0(%arg0: i32) -> (i32, i32, i32) {
    %c0_i32 = arith.constant 0 : i32
    %c0_i32_0 = arith.constant 0 : i32
    %c0_i32_1 = arith.constant 0 : i32
    return %arg0, %c0_i32, %c0_i32_0 : i32, i32, i32
  }
  func.func @transform_1(%arg0: i32) -> (i32, i32) {
    %c0_i32 = arith.constant 0 : i32
    %c0_i32_0 = arith.constant 0 : i32
    %c0_i32_1 = arith.constant 0 : i32
    return %c0_i32, %c0_i32_0 : i32, i32
  }
  func.func @transform_2(%arg0: i32) -> (i32, i32) {
    %c0_i32 = arith.constant 0 : i32
    %c0_i32_0 = arith.constant 0 : i32
    %c0_i32_1 = arith.constant 0 : i32
    return %c0_i32, %c0_i32_0 : i32, i32
  }
  func.func @transform_3(%arg0: i32) -> (i32, i32) {
    %c0_i32 = arith.constant 0 : i32
    %c0_i32_0 = arith.constant 0 : i32
    %c0_i32_1 = arith.constant 0 : i32
    return %c0_i32, %c0_i32_0 : i32, i32
  }
  func.func @transform_4(%arg0: i32) -> (i32, i32) {
    %c0_i32 = arith.constant 0 : i32
    %c0_i32_0 = arith.constant 0 : i32
    %c0_i32_1 = arith.constant 0 : i32
    return %c0_i32, %c0_i32_0 : i32, i32
  }
  func.func @transform_5(%arg0: i32) -> (i32, i32) {
    %c0_i32 = arith.constant 0 : i32
    %c0_i32_0 = arith.constant 0 : i32
    %c0_i32_1 = arith.constant 0 : i32
    return %c0_i32, %c0_i32_0 : i32, i32
  }
  func.func @transform_6(%arg0: i32) -> (i32, i32) {
    %c0_i32 = arith.constant 0 : i32
    %c0_i32_0 = arith.constant 0 : i32
    %c0_i32_1 = arith.constant 0 : i32
    return %c0_i32, %c0_i32_0 : i32, i32
  }
  func.func @transform_7(%arg0: i32) -> (i32, i32) {
    %c0_i32 = arith.constant 0 : i32
    %c0_i32_0 = arith.constant 0 : i32
    %c0_i32_1 = arith.constant 0 : i32
    return %c0_i32, %c0_i32_0 : i32, i32
  }
  func.func @transform_8(%arg0: i32) -> (i32, i32) {
    %c0_i32 = arith.constant 0 : i32
    %c0_i32_0 = arith.constant 0 : i32
    %c0_i32_1 = arith.constant 0 : i32
    return %c0_i32, %c0_i32_0 : i32, i32
  }
  func.func @transform_9(%arg0: i32) -> (i32, i32) {
    %c0_i32 = arith.constant 0 : i32
    %c0_i32_0 = arith.constant 0 : i32
    %c0_i32_1 = arith.constant 0 : i32
    return %c0_i32, %c0_i32_0 : i32, i32
  }
  func.func @transform_10(%arg0: i32) -> (i32, i32) {
    %c0_i32 = arith.constant 0 : i32
    %c0_i32_0 = arith.constant 0 : i32
    %c0_i32_1 = arith.constant 0 : i32
    return %c0_i32, %c0_i32_0 : i32, i32
  }
  func.func @transform_11(%arg0: i32) -> (i32, i32) {
    %c0_i32 = arith.constant 0 : i32
    %c0_i32_0 = arith.constant 0 : i32
    %c0_i32_1 = arith.constant 0 : i32
    return %c0_i32, %c0_i32_0 : i32, i32
  }
  func.func @transform_12(%arg0: i32) -> (i32, i32) {
    %c0_i32 = arith.constant 0 : i32
    %c0_i32_0 = arith.constant 0 : i32
    %c0_i32_1 = arith.constant 0 : i32
    return %c0_i32, %c0_i32_0 : i32, i32
  }
  func.func @transform_13(%arg0: i32) -> (i32, i32) {
    %c0_i32 = arith.constant 0 : i32
    %c0_i32_0 = arith.constant 0 : i32
    %c0_i32_1 = arith.constant 0 : i32
    return %c0_i32, %c0_i32_0 : i32, i32
  }
  func.func @transform_14(%arg0: i32) -> (i32, i32, i32) {
    %c0_i32 = arith.constant 0 : i32
    %c0_i32_0 = arith.constant 0 : i32
    %c0_i32_1 = arith.constant 0 : i32
    return %arg0, %c0_i32, %c0_i32_0 : i32, i32, i32
  }
}

</mosaic_0001>

<llo_original>
// kernel: tpu_custom_call.1
$region0: #{tpu_custom_call.1}
  #allocation0 [shape = 'u32[]', space=smem, size = 0x4, offset = 0x4, fixed_abs, tag = 'smem constant byte address 0x4 - core index']
  #allocation1 [shape = 'u32[144,128]{1,0:T(1,128)}', space=vmem, size = 0x12000, scoped, tag = 'internal scratch']
  %s0 = inlined_call_operand.vmem [shape: f32[2,4,256], index: 0, kind: input, shape index: {}]
  %s1 = inlined_call_operand.vmem [shape: f32[4,1], index: 1, kind: input, shape index: {}]
  %s2 = inlined_call_operand.vmem [shape: f32[4,1], index: 2, kind: input, shape index: {}]
  %s3 = inlined_call_operand.vmem [shape: f32[8,36], index: 3, kind: input, shape index: {}]
  %s4 = inlined_call_operand.vmem [shape: f32[8,1], index: 4, kind: input, shape index: {}]
  %s5 = inlined_call_operand.vmem [shape: f32[8,1], index: 5, kind: input, shape index: {}]
  %s6 = inlined_call_operand.vmem [shape: f32[8,76], index: 6, kind: input, shape index: {}]
  %s7 = inlined_call_operand.vmem [shape: f32[256,64], index: 7, kind: input, shape index: {}]
  %s8 = inlined_call_operand.vmem [shape: f32[8,1], index: 8, kind: input, shape index: {}]
  %s9 = inlined_call_operand.vmem [shape: f32[8,1], index: 9, kind: input, shape index: {}]
  %s10 = inlined_call_operand.vmem [shape: f32[8,72], index: 10, kind: input, shape index: {}]
  %s11 = inlined_call_operand.vmem [shape: f32[8,1], index: 11, kind: input, shape index: {}]
  %s12 = inlined_call_operand.vmem [shape: f32[8,1], index: 12, kind: input, shape index: {}]
  %s13 = inlined_call_operand.vmem [shape: f32[8,72], index: 13, kind: input, shape index: {}]
  %s14 = inlined_call_operand.hbm [shape: f32[2,8,64], index: 14, kind: output, shape index: {}]
  %s15 = sld [smem:[#allocation0]]
  $region89: #{tpu_custom_call.1} parent=0
    _
  %s17 = ssub.s32 1, %s15
  %s18 = scalar_select 0, %s17, %s15
  $region1: #{tpu_custom_call.1} parent=0
    #allocation2 [shape = 'u8[8192]{0}', space=vmem, size = 0x2000, scoped, tag = 'output window, operand 0']
    #allocation3 [shape = 's32[2]{0}', space=sflag, size = 0x8, scoped, tag = 'scoped memory for tpu_custom_call.1']
    %19 = vsyncpa [#allocation3], 0
    %s20 = scalar_lea.sflag [#allocation3], 1
    %21 = vsyncpa %s20, 0
    loop: start=0, step=1, limit=4
    $region2: #{tpu_custom_call.1} parent=1 // loop_pre_header
      _
    $region3: #{tpu_custom_call.1} parent=1 // loop_header
      %s23 = sphi 0, %s27
      %p24 = scmp.ge.s32.totalorder %s23, 4
      %s33 = sphi 0, %s35
      %s36 = sphi 0, %s33
      %s37 = sphi 0, %s36
      %s53 = sphi 0, %s37
      %s57 = sphi 0, %s57
      %s59 = sphi 0, %s57
      %s60 = sphi 0, %s59
      %s74 = sphi 0, %s60
      %s78 = sphi 0, %s78
      %s80 = sphi 0, %s78
      %s81 = sphi 0, %s80
      %s95 = sphi 0, %s81
      %s99 = sphi 0, %s99
      %s101 = sphi 0, %s99
      %s102 = sphi 0, %s101
      %s116 = sphi 0, %s102
      %s120 = sphi 0, %s120
      %s122 = sphi 0, %s120
      %s123 = sphi 0, %s122
      %s137 = sphi 0, %s123
      %s141 = sphi 0, %s141
      %s143 = sphi 0, %s141
      %s144 = sphi 0, %s143
      %s158 = sphi 0, %s144
      %s162 = sphi 0, %s162
      %s164 = sphi 0, %s162
      %s165 = sphi 0, %s164
      %s179 = sphi 0, %s165
      %s183 = sphi 0, %s183
      %s185 = sphi 0, %s183
      %s186 = sphi 0, %s185
      %s200 = sphi 0, %s186
      %s204 = sphi 0, %s204
      %s206 = sphi 0, %s204
      %s207 = sphi 0, %s206
      %s221 = sphi 0, %s207
      %s225 = sphi 0, %s225
      %s227 = sphi 0, %s225
      %s228 = sphi 0, %s227
      %s242 = sphi 0, %s228
      %s246 = sphi 0, %s246
      %s248 = sphi 0, %s246
      %s249 = sphi 0, %s248
      %s263 = sphi 0, %s249
      %s267 = sphi 0, %s267
      %s269 = sphi 0, %s267
      %s270 = sphi 0, %s269
      %s284 = sphi 0, %s270
      %s288 = sphi 0, %s288
      %s290 = sphi 0, %s288
      %s291 = sphi 0, %s290
      %s305 = sphi 0, %s291
      %s309 = sphi 0, %s309
      %s311 = sphi 0, %s309
      %s312 = sphi 0, %s311
      %s326 = sphi 0, %s312
      %s332 = sphi 0, %s334
      %s335 = sphi 0, %s332
      %s336 = sphi 0, %s335
      %s352 = sphi 0, %s336
    $region4: #{tpu_custom_call.1} parent=1 // loop_header_branch
      %26 = sbr.rel (%p24) target = $region8
    $region5: #{tpu_custom_call.1} parent=1 // loop_body
      %s28 = ssub.s32 %s23, 1
      %s29 = ssub.s32 %s23, 2
      %s30 = sadd.s32 %s23, 1
      %s31 = ssub.s32 %s23, %s30
      %p32 = scmp.eq.s32.totalorder %s31, 0
      %s34 = sadd.s32 %s33, 1
      %s35 = scalar_select %p32, %s33, %s34
      %p38 = pneg %p32
      %p39 = scmp.eq.s32.totalorder %s23, 1
      %p40 = por %p38, %p39
      %p41 = scmp.ne.s32.totalorder %s33, %s36
      %p42 = scmp.eq.s32.totalorder %s23, 0
      %p43 = por %p41, %p42
      %p44 = scmp.ne.s32.totalorder %s33, %s36
      %p45 = scmp.eq.s32.totalorder %s28, 1
      %p46 = por %p44, %p45
      %p47 = scmp.ne.s32.totalorder %s36, %s37
      %p48 = scmp.eq.s32.totalorder %s28, 0
      %p49 = por %p47, %p48
      %p50 = scmp.ne.s32.totalorder %s36, %s37
      %p51 = scmp.eq.s32.totalorder %s29, 1
      %p52 = por %p50, %p51
      %p54 = scmp.ne.s32.totalorder %s37, %s53
      %p55 = scmp.eq.s32.totalorder %s29, 0
      %p56 = por %p54, %p55
      %s58 = sadd.s32 %s57, 1
      %p61 = scmp.eq.s32.totalorder %s23, 1
      %p62 = scmp.ne.s32.totalorder %s57, %s59
      %p63 = scmp.eq.s32.totalorder %s23, 0
      %p64 = por %p62, %p63
      %p65 = scmp.ne.s32.totalorder %s57, %s59
      %p66 = scmp.eq.s32.totalorder %s28, 1
      %p67 = por %p65, %p66
      %p68 = scmp.ne.s32.totalorder %s59, %s60
      %p69 = scmp.eq.s32.totalorder %s28, 0
      %p70 = por %p68, %p69
      %p71 = scmp.ne.s32.totalorder %s59, %s60
      %p72 = scmp.eq.s32.totalorder %s29, 1
      %p73 = por %p71, %p72
      %p75 = scmp.ne.s32.totalorder %s60, %s74
      %p76 = scmp.eq.s32.totalorder %s29, 0
      %p77 = por %p75, %p76
      %s79 = sadd.s32 %s78, 1
      %p82 = scmp.eq.s32.totalorder %s23, 1
      %p83 = scmp.ne.s32.totalorder %s78, %s80
      %p84 = scmp.eq.s32.totalorder %s23, 0
      %p85 = por %p83, %p84
      %p86 = scmp.ne.s32.totalorder %s78, %s80
      %p87 = scmp.eq.s32.totalorder %s28, 1
      %p88 = por %p86, %p87
      %p89 = scmp.ne.s32.totalorder %s80, %s81
      %p90 = scmp.eq.s32.totalorder %s28, 0
      %p91 = por %p89, %p90
      %p92 = scmp.ne.s32.totalorder %s80, %s81
      %p93 = scmp.eq.s32.totalorder %s29, 1
      %p94 = por %p92, %p93
      %p96 = scmp.ne.s32.totalorder %s81, %s95
      %p97 = scmp.eq.s32.totalorder %s29, 0
      %p98 = por %p96, %p97
      %s100 = sadd.s32 %s99, 1
      %p103 = scmp.eq.s32.totalorder %s23, 1
      %p104 = scmp.ne.s32.totalorder %s99, %s101
      %p105 = scmp.eq.s32.totalorder %s23, 0
      %p106 = por %p104, %p105
      %p107 = scmp.ne.s32.totalorder %s99, %s101
      %p108 = scmp.eq.s32.totalorder %s28, 1
      %p109 = por %p107, %p108
      %p110 = scmp.ne.s32.totalorder %s101, %s102
      %p111 = scmp.eq.s32.totalorder %s28, 0
      %p112 = por %p110, %p111
      %p113 = scmp.ne.s32.totalorder %s101, %s102
      %p114 = scmp.eq.s32.totalorder %s29, 1
      %p115 = por %p113, %p114
      %p117 = scmp.ne.s32.totalorder %s102, %s116
      %p118 = scmp.eq.s32.totalorder %s29, 0
      %p119 = por %p117, %p118
      %s121 = sadd.s32 %s120, 1
      %p124 = scmp.eq.s32.totalorder %s23, 1
      %p125 = scmp.ne.s32.totalorder %s120, %s122
      %p126 = scmp.eq.s32.totalorder %s23, 0
      %p127 = por %p125, %p126
      %p128 = scmp.ne.s32.totalorder %s120, %s122
      %p129 = scmp.eq.s32.totalorder %s28, 1
      %p130 = por %p128, %p129
      %p131 = scmp.ne.s32.totalorder %s122, %s123
      %p132 = scmp.eq.s32.totalorder %s28, 0
      %p133 = por %p131, %p132
      %p134 = scmp.ne.s32.totalorder %s122, %s123
      %p135 = scmp.eq.s32.totalorder %s29, 1
      %p136 = por %p134, %p135
      %p138 = scmp.ne.s32.totalorder %s123, %s137
      %p139 = scmp.eq.s32.totalorder %s29, 0
      %p140 = por %p138, %p139
      %s142 = sadd.s32 %s141, 1
      %p145 = scmp.eq.s32.totalorder %s23, 1
      %p146 = scmp.ne.s32.totalorder %s141, %s143
      %p147 = scmp.eq.s32.totalorder %s23, 0
      %p148 = por %p146, %p147
      %p149 = scmp.ne.s32.totalorder %s141, %s143
      %p150 = scmp.eq.s32.totalorder %s28, 1
      %p151 = por %p149, %p150
      %p152 = scmp.ne.s32.totalorder %s143, %s144
      %p153 = scmp.eq.s32.totalorder %s28, 0
      %p154 = por %p152, %p153
      %p155 = scmp.ne.s32.totalorder %s143, %s144
      %p156 = scmp.eq.s32.totalorder %s29, 1
      %p157 = por %p155, %p156
      %p159 = scmp.ne.s32.totalorder %s144, %s158
      %p160 = scmp.eq.s32.totalorder %s29, 0
      %p161 = por %p159, %p160
      %s163 = sadd.s32 %s162, 1
      %p166 = scmp.eq.s32.totalorder %s23, 1
      %p167 = scmp.ne.s32.totalorder %s162, %s164
      %p168 = scmp.eq.s32.totalorder %s23, 0
      %p169 = por %p167, %p168
      %p170 = scmp.ne.s32.totalorder %s162, %s164
      %p171 = scmp.eq.s32.totalorder %s28, 1
      %p172 = por %p170, %p171
      %p173 = scmp.ne.s32.totalorder %s164, %s165
      %p174 = scmp.eq.s32.totalorder %s28, 0
      %p175 = por %p173, %p174
      %p176 = scmp.ne.s32.totalorder %s164, %s165
      %p177 = scmp.eq.s32.totalorder %s29, 1
      %p178 = por %p176, %p177
      %p180 = scmp.ne.s32.totalorder %s165, %s179
      %p181 = scmp.eq.s32.totalorder %s29, 0
      %p182 = por %p180, %p181
      %s184 = sadd.s32 %s183, 1
      %p187 = scmp.eq.s32.totalorder %s23, 1
      %p188 = scmp.ne.s32.totalorder %s183, %s185
      %p189 = scmp.eq.s32.totalorder %s23, 0
      %p190 = por %p188, %p189
      %p191 = scmp.ne.s32.totalorder %s183, %s185
      %p192 = scmp.eq.s32.totalorder %s28, 1
      %p193 = por %p191, %p192
      %p194 = scmp.ne.s32.totalorder %s185, %s186
      %p195 = scmp.eq.s32.totalorder %s28, 0
      %p196 = por %p194, %p195
      %p197 = scmp.ne.s32.totalorder %s185, %s186
      %p198 = scmp.eq.s32.totalorder %s29, 1
      %p199 = por %p197, %p198
      %p201 = scmp.ne.s32.totalorder %s186, %s200
      %p202 = scmp.eq.s32.totalorder %s29, 0
      %p203 = por %p201, %p202
      %s205 = sadd.s32 %s204, 1
      %p208 = scmp.eq.s32.totalorder %s23, 1
      %p209 = scmp.ne.s32.totalorder %s204, %s206
      %p210 = scmp.eq.s32.totalorder %s23, 0
      %p211 = por %p209, %p210
      %p212 = scmp.ne.s32.totalorder %s204, %s206
      %p213 = scmp.eq.s32.totalorder %s28, 1
      %p214 = por %p212, %p213
      %p215 = scmp.ne.s32.totalorder %s206, %s207
      %p216 = scmp.eq.s32.totalorder %s28, 0
      %p217 = por %p215, %p216
      %p218 = scmp.ne.s32.totalorder %s206, %s207
      %p219 = scmp.eq.s32.totalorder %s29, 1
      %p220 = por %p218, %p219
      %p222 = scmp.ne.s32.totalorder %s207, %s221
      %p223 = scmp.eq.s32.totalorder %s29, 0
      %p224 = por %p222, %p223
      %s226 = sadd.s32 %s225, 1
      %p229 = scmp.eq.s32.totalorder %s23, 1
      %p230 = scmp.ne.s32.totalorder %s225, %s227
      %p231 = scmp.eq.s32.totalorder %s23, 0
      %p232 = por %p230, %p231
      %p233 = scmp.ne.s32.totalorder %s225, %s227
      %p234 = scmp.eq.s32.totalorder %s28, 1
      %p235 = por %p233, %p234
      %p236 = scmp.ne.s32.totalorder %s227, %s228
      %p237 = scmp.eq.s32.totalorder %s28, 0
      %p238 = por %p236, %p237
      %p239 = scmp.ne.s32.totalorder %s227, %s228
      %p240 = scmp.eq.s32.totalorder %s29, 1
      %p241 = por %p239, %p240
      %p243 = scmp.ne.s32.totalorder %s228, %s242
      %p244 = scmp.eq.s32.totalorder %s29, 0
      %p245 = por %p243, %p244
      %s247 = sadd.s32 %s246, 1
      %p250 = scmp.eq.s32.totalorder %s23, 1
      %p251 = scmp.ne.s32.totalorder %s246, %s248
      %p252 = scmp.eq.s32.totalorder %s23, 0
      %p253 = por %p251, %p252
      %p254 = scmp.ne.s32.totalorder %s246, %s248
      %p255 = scmp.eq.s32.totalorder %s28, 1
      %p256 = por %p254, %p255
      %p257 = scmp.ne.s32.totalorder %s248, %s249
      %p258 = scmp.eq.s32.totalorder %s28, 0
      %p259 = por %p257, %p258
      %p260 = scmp.ne.s32.totalorder %s248, %s249
      %p261 = scmp.eq.s32.totalorder %s29, 1
      %p262 = por %p260, %p261
      %p264 = scmp.ne.s32.totalorder %s249, %s263
      %p265 = scmp.eq.s32.totalorder %s29, 0
      %p266 = por %p264, %p265
      %s268 = sadd.s32 %s267, 1
      %p271 = scmp.eq.s32.totalorder %s23, 1
      %p272 = scmp.ne.s32.totalorder %s267, %s269
      %p273 = scmp.eq.s32.totalorder %s23, 0
      %p274 = por %p272, %p273
      %p275 = scmp.ne.s32.totalorder %s267, %s269
      %p276 = scmp.eq.s32.totalorder %s28, 1
      %p277 = por %p275, %p276
      %p278 = scmp.ne.s32.totalorder %s269, %s270
      %p279 = scmp.eq.s32.totalorder %s28, 0
      %p280 = por %p278, %p279
      %p281 = scmp.ne.s32.totalorder %s269, %s270
      %p282 = scmp.eq.s32.totalorder %s29, 1
      %p283 = por %p281, %p282
      %p285 = scmp.ne.s32.totalorder %s270, %s284
      %p286 = scmp.eq.s32.totalorder %s29, 0
      %p287 = por %p285, %p286
      %s289 = sadd.s32 %s288, 1
      %p292 = scmp.eq.s32.totalorder %s23, 1
      %p293 = scmp.ne.s32.totalorder %s288, %s290
      %p294 = scmp.eq.s32.totalorder %s23, 0
      %p295 = por %p293, %p294
      %p296 = scmp.ne.s32.totalorder %s288, %s290
      %p297 = scmp.eq.s32.totalorder %s28, 1
      %p298 = por %p296, %p297
      %p299 = scmp.ne.s32.totalorder %s290, %s291
      %p300 = scmp.eq.s32.totalorder %s28, 0
      %p301 = por %p299, %p300
      %p302 = scmp.ne.s32.totalorder %s290, %s291
      %p303 = scmp.eq.s32.totalorder %s29, 1
      %p304 = por %p302, %p303
      %p306 = scmp.ne.s32.totalorder %s291, %s305
      %p307 = scmp.eq.s32.totalorder %s29, 0
      %p308 = por %p306, %p307
      %s310 = sadd.s32 %s309, 1
      %p313 = scmp.eq.s32.totalorder %s23, 1
      %p314 = scmp.ne.s32.totalorder %s309, %s311
      %p315 = scmp.eq.s32.totalorder %s23, 0
      %p316 = por %p314, %p315
      %p317 = scmp.ne.s32.totalorder %s309, %s311
      %p318 = scmp.eq.s32.totalorder %s28, 1
      %p319 = por %p317, %p318
      %p320 = scmp.ne.s32.totalorder %s311, %s312
      %p321 = scmp.eq.s32.totalorder %s28, 0
      %p322 = por %p320, %p321
      %p323 = scmp.ne.s32.totalorder %s311, %s312
      %p324 = scmp.eq.s32.totalorder %s29, 1
      %p325 = por %p323, %p324
      %p327 = scmp.ne.s32.totalorder %s312, %s326
      %p328 = scmp.eq.s32.totalorder %s29, 0
      %p329 = por %p327, %p328
      %s330 = ssub.s32 %s23, %s30
      %p331 = scmp.eq.s32.totalorder %s330, 0
      %s333 = sadd.s32 %s332, 1
      %s334 = scalar_select %p331, %s332, %s333
      %p337 = pneg %p331
      %p338 = scmp.eq.s32.totalorder %s23, 1
      %p339 = por %p337, %p338
      %p340 = scmp.ne.s32.totalorder %s332, %s335
      %p341 = scmp.eq.s32.totalorder %s23, 0
      %p342 = por %p340, %p341
      %p343 = scmp.ne.s32.totalorder %s332, %s335
      %p344 = scmp.eq.s32.totalorder %s28, 1
      %p345 = por %p343, %p344
      %p346 = scmp.ne.s32.totalorder %s335, %s336
      %p347 = scmp.eq.s32.totalorder %s28, 0
      %p348 = por %p346, %p347
      %p349 = scmp.ne.s32.totalorder %s335, %s336
      %p350 = scmp.eq.s32.totalorder %s29, 1
      %p351 = por %p349, %p350
      %p353 = scmp.ne.s32.totalorder %s336, %s352
      %p354 = scmp.eq.s32.totalorder %s29, 0
      %p355 = por %p353, %p354
      %p356 = scmp.le.s32.totalorder 1, %s23
      %p357 = scmp.lt.s32.totalorder %s23, 3
      %p358 = pnand %p356, %p357
      %p359 = pneg %p358
      // Predicated region
      $region9: #{tpu_custom_call.1} parent=5 // pred_check
        _
      $region10: #{tpu_custom_call.1} parent=5 // pred_check_branch
        %361 = sbr.rel (%p358) target = $region12
      $region11: #{tpu_custom_call.1} parent=5 // pred_region
        %s362 = ssub.s32 %s23, 1
        // Predicated region
        $region13: #{tpu_custom_call.1} parent=11 // pred_check
          %p363 = pneg %p70
        $region14: #{tpu_custom_call.1} parent=11 // pred_check_branch
          %365 = sbr.rel (%p363) target = $region16
        $region15: #{tpu_custom_call.1} parent=11 // pred_region
          _
        $region16: #{tpu_custom_call.1} parent=11 // pred_fallthru
          _
        // Predicated region
        $region17: #{tpu_custom_call.1} parent=11 // pred_check
          %p366 = pneg %p91
        $region18: #{tpu_custom_call.1} parent=11 // pred_check_branch
          %368 = sbr.rel (%p366) target = $region20
        $region19: #{tpu_custom_call.1} parent=11 // pred_region
          _
        $region20: #{tpu_custom_call.1} parent=11 // pred_fallthru
          _
        // Predicated region
        $region21: #{tpu_custom_call.1} parent=11 // pred_check
          %p369 = pneg %p112
        $region22: #{tpu_custom_call.1} parent=11 // pred_check_branch
          %371 = sbr.rel (%p369) target = $region24
        $region23: #{tpu_custom_call.1} parent=11 // pred_region
          _
        $region24: #{tpu_custom_call.1} parent=11 // pred_fallthru
          _
        // Predicated region
        $region25: #{tpu_custom_call.1} parent=11 // pred_check
          %p372 = pneg %p133
        $region26: #{tpu_custom_call.1} parent=11 // pred_check_branch
          %374 = sbr.rel (%p372) target = $region28
        $region27: #{tpu_custom_call.1} parent=11 // pred_region
          _
        $region28: #{tpu_custom_call.1} parent=11 // pred_fallthru
          _
        // Predicated region
        $region29: #{tpu_custom_call.1} parent=11 // pred_check
          %p375 = pneg %p154
        $region30: #{tpu_custom_call.1} parent=11 // pred_check_branch
          %377 = sbr.rel (%p375) target = $region32
        $region31: #{tpu_custom_call.1} parent=11 // pred_region
          _
        $region32: #{tpu_custom_call.1} parent=11 // pred_fallthru
          _
        // Predicated region
        $region33: #{tpu_custom_call.1} parent=11 // pred_check
          %p378 = pneg %p175
        $region34: #{tpu_custom_call.1} parent=11 // pred_check_branch
          %380 = sbr.rel (%p378) target = $region36
        $region35: #{tpu_custom_call.1} parent=11 // pred_region
          _
        $region36: #{tpu_custom_call.1} parent=11 // pred_fallthru
          _
        // Predicated region
        $region37: #{tpu_custom_call.1} parent=11 // pred_check
          %p381 = pneg %p196
        $region38: #{tpu_custom_call.1} parent=11 // pred_check_branch
          %383 = sbr.rel (%p381) target = $region40
        $region39: #{tpu_custom_call.1} parent=11 // pred_region
          _
        $region40: #{tpu_custom_call.1} parent=11 // pred_fallthru
          _
        // Predicated region
        $region41: #{tpu_custom_call.1} parent=11 // pred_check
          %p384 = pneg %p217
        $region42: #{tpu_custom_call.1} parent=11 // pred_check_branch
          %386 = sbr.rel (%p384) target = $region44
        $region43: #{tpu_custom_call.1} parent=11 // pred_region
          _
        $region44: #{tpu_custom_call.1} parent=11 // pred_fallthru
          _
        // Predicated region
        $region45: #{tpu_custom_call.1} parent=11 // pred_check
          %p387 = pneg %p238
        $region46: #{tpu_custom_call.1} parent=11 // pred_check_branch
          %389 = sbr.rel (%p387) target = $region48
        $region47: #{tpu_custom_call.1} parent=11 // pred_region
          _
        $region48: #{tpu_custom_call.1} parent=11 // pred_fallthru
          _
        // Predicated region
        $region49: #{tpu_custom_call.1} parent=11 // pred_check
          %p390 = pneg %p259
        $region50: #{tpu_custom_call.1} parent=11 // pred_check_branch
          %392 = sbr.rel (%p390) target = $region52
        $region51: #{tpu_custom_call.1} parent=11 // pred_region
          _
        $region52: #{tpu_custom_call.1} parent=11 // pred_fallthru
          _
        // Predicated region
        $region53: #{tpu_custom_call.1} parent=11 // pred_check
          %p393 = pneg %p280
        $region54: #{tpu_custom_call.1} parent=11 // pred_check_branch
          %395 = sbr.rel (%p393) target = $region56
        $region55: #{tpu_custom_call.1} parent=11 // pred_region
          _
        $region56: #{tpu_custom_call.1} parent=11 // pred_fallthru
          _
        // Predicated region
        $region57: #{tpu_custom_call.1} parent=11 // pred_check
          %p396 = pneg %p301
        $region58: #{tpu_custom_call.1} parent=11 // pred_check_branch
          %398 = sbr.rel (%p396) target = $region60
        $region59: #{tpu_custom_call.1} parent=11 // pred_region
          _
        $region60: #{tpu_custom_call.1} parent=11 // pred_fallthru
          _
        // Predicated region
        $region61: #{tpu_custom_call.1} parent=11 // pred_check
          %p399 = pneg %p322
        $region62: #{tpu_custom_call.1} parent=11 // pred_check_branch
          %401 = sbr.rel (%p399) target = $region64
        $region63: #{tpu_custom_call.1} parent=11 // pred_region
          _
        $region64: #{tpu_custom_call.1} parent=11 // pred_fallthru
          _
      $region12: #{tpu_custom_call.1} parent=5 // pred_fallthru
        _
      %p402 = scmp.lt.s32.totalorder %s23, 2
      // Predicated region
      $region65: #{tpu_custom_call.1} parent=5 // pred_check
        %p403 = pneg %p402
      $region66: #{tpu_custom_call.1} parent=5 // pred_check_branch
        %405 = sbr.rel (%p403) target = $region68
      $region67: #{tpu_custom_call.1} parent=5 // pred_region
        // Predicated region
        $region69: #{tpu_custom_call.1} parent=67 // pred_check
          %p406 = pneg %p43
        $region70: #{tpu_custom_call.1} parent=67 // pred_check_branch
          %408 = sbr.rel (%p406) target = $region72
        $region71: #{tpu_custom_call.1} parent=67 // pred_region
          %p409 = scmp.lt.s32.totalorder %s23, 1
          %s410 = scalar_select %p409, %s23, 1
          %s411 = smul.addr %s410, 2
          %s412 = smul.addr %s411, 4
          %s413 = scalar_lea.vmem %s0, %s412
        $region72: #{tpu_custom_call.1} parent=67 // pred_fallthru
          _
      $region68: #{tpu_custom_call.1} parent=5 // pred_fallthru
        _
      %p414 = scmp.le.s32.totalorder 1, %s23
      %p415 = scmp.lt.s32.totalorder %s23, 3
      %p416 = pnand %p414, %p415
      %p417 = pneg %p416
      // Predicated region
      $region73: #{tpu_custom_call.1} parent=5 // pred_check
        _
      $region74: #{tpu_custom_call.1} parent=5 // pred_check_branch
        %419 = sbr.rel (%p416) target = $region76
      $region75: #{tpu_custom_call.1} parent=5 // pred_region
        %s420 = ssub.s32 %s23, 1
        %p421 = scmp.lt.s32.totalorder %s28, 1
        %s422 = scalar_select %p421, %s28, 1
        %s423 = smul.addr %s422, 2
        %s424 = smul.addr %s423, 4
        %s425 = scalar_lea.vmem %s0, %s424
        %p426 = pneg %p49
        %p427 = pneg %p46
        %p428 = pneg %p70
        %p429 = pneg %p67
        %p430 = pneg %p91
        %p431 = pneg %p88
        %p432 = pneg %p112
        %p433 = pneg %p109
        %p434 = pneg %p133
        %p435 = pneg %p130
        %p436 = pneg %p154
        %p437 = pneg %p151
        %p438 = pneg %p175
        %p439 = pneg %p172
        %p440 = pneg %p196
        %p441 = pneg %p193
        %p442 = pneg %p217
        %p443 = pneg %p214
        %p444 = pneg %p238
        %p445 = pneg %p235
        %p446 = pneg %p259
        %p447 = pneg %p256
        %p448 = pneg %p280
        %p449 = pneg %p277
        %p450 = pneg %p301
        %p451 = pneg %p298
        %p452 = pneg %p322
        %p453 = pneg %p319
        %p454 = pneg %p348
        %p455 = pneg %p345
        %s456 = sand.u32 %s335, 1
        %s457 = scalar_lea.sflag [#allocation3], %s456
        %s458 = sand.u32 %s335, 1
        %s459 = smul.addr %s458, 8
        %s460 = scalar_lea.vmem [#allocation2], %s459
        %p461 = scmp.lt.s32.totalorder %s28, 1
        %s462 = scalar_select %p461, %s28, 1
        %s463 = smul.addr %s462, 2
        %s464 = smul.addr %s463, 4
        %s465 = scalar_lea.vmem %s0, %s464
        %v466 = vld [vmem:[%s465] sm:$0xff]
        %v467 = vld [vmem:[%s1] sm:$0xf]
        %469 = vset.pattern.permute.xlu0 0
        %470 = vperm.xlu0 %469, %v467
        %v471 = vpop.permute.xlu0 %470
        %v473 = vunpack.c.l.s4 839922192
        %v474 = vunpack.c.0.s8 %v473
        %v475 = vlaneseq
        %v476 = vshrl.u32 %v475, 7
        %v477 = vsub.s32 %v474, %v476
        %v478 = vrot.slane %v471, %v477
        %v480 = vmul.f32 %v466, %v478
        %v481 = vld [vmem:[%s2] sm:$0xf]
        %483 = vset.pattern.permute.xlu0 0
        %484 = vperm.xlu0 %483, %v481
        %v485 = vpop.permute.xlu0 %484
        %v487 = vunpack.c.l.s4 839922192
        %v488 = vunpack.c.0.s8 %v487
        %v489 = vlaneseq
        %v490 = vshrl.u32 %v489, 7
        %v491 = vsub.s32 %v488, %v490
        %v492 = vrot.slane %v485, %v491
        %v494 = vadd.f32 %v480, %v492
        %vm495 = vcmp.gt.f32.partialorder %v494, 0.0
        %v496 = vmul.f32 %v494, 0.1
        %v497 = vsel %vm495, %v494, %v496
        %v499 = vrot.slane %v497, 4
        %501 = vrot.lane.b32.xlu0 %v497, 112
        %v502 = vpop.permute.xlu0 %501
        %v503 = vrot.slane %v502, 4
        %505 = vrot.lane.b32.xlu0 %v497, 96
        %v506 = vpop.permute.xlu0 %505
        %v507 = vrot.slane %v506, 4
        %509 = vrot.lane.b32.xlu0 %v497, 80
        %v510 = vpop.permute.xlu0 %509
        %v511 = vrot.slane %v510, 4
        %513 = vrot.lane.b32.xlu0 %v497, 64
        %v514 = vpop.permute.xlu0 %513
        %v515 = vrot.slane %v514, 4
        %517 = vrot.lane.b32.xlu0 %v497, 48
        %v518 = vpop.permute.xlu0 %517
        %v519 = vrot.slane %v518, 4
        %521 = vrot.lane.b32.xlu0 %v497, 32
        %v522 = vpop.permute.xlu0 %521
        %v523 = vrot.slane %v522, 4
        %525 = vrot.lane.b32.xlu0 %v497, 16
        %v526 = vpop.permute.xlu0 %525
        %v527 = vrot.slane %v526, 4
        %v536 = vcombine.low %v497, %v506
        %v538 = vunpack.c.l.s4 1983009808
        %v539 = vunpack.c.0.s8 %v538
        %v540 = vlaneseq
        %v541 = vshrl.u32 %v540, 7
        %v542 = vsub.s32 %v539, %v541
        %v543 = vrot.slane %v536, %v542
        %v544 = vcombine.low %v502, %v510
        %v546 = vunpack.c.l.s4 1983009808
        %v547 = vunpack.c.0.s8 %v546
        %v548 = vlaneseq
        %v549 = vshrl.u32 %v548, 7
        %v550 = vsub.s32 %v547, %v549
        %v551 = vrot.slane %v544, %v550
        %v552 = vcombine.low %v543, %v551
        %v553 = vcombine.high %v543, %v551
        %v555 = vunpack.c.l.s4 1934713408
        %v556 = vunpack.c.0.s8 %v555
        %v557 = vlaneseq
        %v558 = vshrl.u32 %v557, 7
        %v559 = vsub.s32 %v556, %v558
        %v560 = vrot.slane %v552, %v559
        %v562 = vunpack.c.l.s4 1934713408
        %v563 = vunpack.c.0.s8 %v562
        %v564 = vlaneseq
        %v565 = vshrl.u32 %v564, 7
        %v566 = vsub.s32 %v563, %v565
        %v567 = vrot.slane %v553, %v566
        %v568 = vcombine.high %v560, 0.0
        %v569 = vcombine.high %v567, 0.0
        %v570 = vcombine.low %v514, %v522
        %v572 = vunpack.c.l.s4 1983009808
        %v573 = vunpack.c.0.s8 %v572
        %v574 = vlaneseq
        %v575 = vshrl.u32 %v574, 7
        %v576 = vsub.s32 %v573, %v575
        %v577 = vrot.slane %v570, %v576
        %v578 = vcombine.low %v518, %v526
        %v580 = vunpack.c.l.s4 1983009808
        %v581 = vunpack.c.0.s8 %v580
        %v582 = vlaneseq
        %v583 = vshrl.u32 %v582, 7
        %v584 = vsub.s32 %v581, %v583
        %v585 = vrot.slane %v578, %v584
        %v586 = vcombine.low %v577, %v585
        %v587 = vcombine.high %v577, %v585
        %v589 = vunpack.c.l.s4 1934713408
        %v590 = vunpack.c.0.s8 %v589
        %v591 = vlaneseq
        %v592 = vshrl.u32 %v591, 7
        %v593 = vsub.s32 %v590, %v592
        %v594 = vrot.slane %v586, %v593
        %v596 = vunpack.c.l.s4 1934713408
        %v597 = vunpack.c.0.s8 %v596
        %v598 = vlaneseq
        %v599 = vshrl.u32 %v598, 7
        %v600 = vsub.s32 %v597, %v599
        %v601 = vrot.slane %v587, %v600
        %v602 = vcombine.high %v594, 0.0
        %v603 = vcombine.high %v601, 0.0
        %v604 = vcombine.low %v499, %v507
        %v606 = vunpack.c.l.s4 1983009808
        %v607 = vunpack.c.0.s8 %v606
        %v608 = vlaneseq
        %v609 = vshrl.u32 %v608, 7
        %v610 = vsub.s32 %v607, %v609
        %v611 = vrot.slane %v604, %v610
        %v612 = vcombine.low %v503, %v511
        %v614 = vunpack.c.l.s4 1983009808
        %v615 = vunpack.c.0.s8 %v614
        %v616 = vlaneseq
        %v617 = vshrl.u32 %v616, 7
        %v618 = vsub.s32 %v615, %v617
        %v619 = vrot.slane %v612, %v618
        %v620 = vcombine.low %v611, %v619
        %v621 = vcombine.high %v611, %v619
        %v623 = vunpack.c.l.s4 1934713408
        %v624 = vunpack.c.0.s8 %v623
        %v625 = vlaneseq
        %v626 = vshrl.u32 %v625, 7
        %v627 = vsub.s32 %v624, %v626
        %v628 = vrot.slane %v620, %v627
        %v630 = vunpack.c.l.s4 1934713408
        %v631 = vunpack.c.0.s8 %v630
        %v632 = vlaneseq
        %v633 = vshrl.u32 %v632, 7
        %v634 = vsub.s32 %v631, %v633
        %v635 = vrot.slane %v621, %v634
        %v636 = vcombine.high %v628, 0.0
        %v637 = vcombine.high %v635, 0.0
        %v638 = vcombine.low %v515, %v523
        %v640 = vunpack.c.l.s4 1983009808
        %v641 = vunpack.c.0.s8 %v640
        %v642 = vlaneseq
        %v643 = vshrl.u32 %v642, 7
        %v644 = vsub.s32 %v641, %v643
        %v645 = vrot.slane %v638, %v644
        %v646 = vcombine.low %v519, %v527
        %v648 = vunpack.c.l.s4 1983009808
        %v649 = vunpack.c.0.s8 %v648
        %v650 = vlaneseq
        %v651 = vshrl.u32 %v650, 7
        %v652 = vsub.s32 %v649, %v651
        %v653 = vrot.slane %v646, %v652
        %v654 = vcombine.low %v645, %v653
        %v655 = vcombine.high %v645, %v653
        %v657 = vunpack.c.l.s4 1934713408
        %v658 = vunpack.c.0.s8 %v657
        %v659 = vlaneseq
        %v660 = vshrl.u32 %v659, 7
        %v661 = vsub.s32 %v658, %v660
        %v662 = vrot.slane %v654, %v661
        %v664 = vunpack.c.l.s4 1934713408
        %v665 = vunpack.c.0.s8 %v664
        %v666 = vlaneseq
        %v667 = vshrl.u32 %v666, 7
        %v668 = vsub.s32 %v665, %v667
        %v669 = vrot.slane %v655, %v668
        %v670 = vcombine.high %v662, 0.0
        %v671 = vcombine.high %v669, 0.0
        %v688 = vcombine.low %v560, %v594
        %v689 = vcombine.low %v628, %v662
        %v690 = vcombine.low %v568, %v602
        %v691 = vcombine.low %v636, %v670
        %v692 = vcombine.low %v567, %v601
        %v693 = vcombine.low %v635, %v669
        %v694 = vcombine.low %v569, %v603
        %v695 = vcombine.low %v637, %v671
        %vm696 = vcmask 1040384
        %v697 = vrot.slane %v688, 7
        %v698 = vrot.slane %v689, 7
        %v699 = vsel %vm696, %v697, %v698
        %v700 = vrot.slane %v690, 7
        %v701 = vrot.slane %v691, 7
        %v702 = vsel %vm696, %v700, %v701
        %v703 = vrot.slane %v692, 7
        %v704 = vrot.slane %v693, 7
        %v705 = vsel %vm696, %v703, %v704
        %v706 = vrot.slane %v694, 7
        %v707 = vrot.slane %v695, 7
        %v708 = vsel %vm696, %v706, %v707
        %v717 = vsel %vm696, 0.0, %v697
        %v718 = vsel %vm696, 0.0, %v700
        %v719 = vsel %vm696, 0.0, %v703
        %v720 = vsel %vm696, 0.0, %v706
        %v721 = vsel %vm696, %v698, 0.0
        %v722 = vsel %vm696, %v701, 0.0
        %v723 = vsel %vm696, %v704, 0.0
        %v724 = vsel %vm696, %v707, 0.0
        %733 = vrot.lane.b32.xlu0 %v717, 1
        %v734 = vpop.permute.xlu0 %733
        %735 = vrot.lane.b32.xlu0 %v699, 1
        %v736 = vpop.permute.xlu0 %735
        %737 = vrot.lane.b32.xlu0 %v721, 1
        %v738 = vpop.permute.xlu0 %737
        %739 = vrot.lane.b32.xlu0 %v718, 1
        %v740 = vpop.permute.xlu0 %739
        %741 = vrot.lane.b32.xlu0 %v702, 1
        %v742 = vpop.permute.xlu0 %741
        %743 = vrot.lane.b32.xlu0 %v722, 1
        %v744 = vpop.permute.xlu0 %743
        %745 = vrot.lane.b32.xlu0 %v719, 1
        %v746 = vpop.permute.xlu0 %745
        %747 = vrot.lane.b32.xlu0 %v705, 1
        %v748 = vpop.permute.xlu0 %747
        %749 = vrot.lane.b32.xlu0 %v723, 1
        %v750 = vpop.permute.xlu0 %749
        %751 = vrot.lane.b32.xlu0 %v720, 1
        %v752 = vpop.permute.xlu0 %751
        %753 = vrot.lane.b32.xlu0 %v708, 1
        %v754 = vpop.permute.xlu0 %753
        %755 = vrot.lane.b32.xlu0 %v724, 1
        %v756 = vpop.permute.xlu0 %755
        %vm769 = vcmask 7168
        %v770 = vsel %vm769, 0.0, %v734
        %v771 = vsel %vm769, 0.0, %v736
        %v772 = vsel %vm769, 0.0, %v738
        %v773 = vsel %vm769, 0.0, %v740
        %v774 = vsel %vm769, 0.0, %v742
        %v775 = vsel %vm769, 0.0, %v744
        %v776 = vsel %vm769, 0.0, %v746
        %v777 = vsel %vm769, 0.0, %v748
        %v778 = vsel %vm769, 0.0, %v750
        %v779 = vsel %vm769, 0.0, %v752
        %v780 = vsel %vm769, 0.0, %v754
        %v781 = vsel %vm769, 0.0, %v756
        %vm782 = vcmask 138240
        %v783 = vsel %vm782, %v770, 0.0
        %v784 = vsel %vm782, %v771, 0.0
        %v785 = vsel %vm782, %v772, 0.0
        %v786 = vsel %vm782, %v773, 0.0
        %v787 = vsel %vm782, %v774, 0.0
        %v788 = vsel %vm782, %v775, 0.0
        %v789 = vsel %vm782, %v776, 0.0
        %v790 = vsel %vm782, %v777, 0.0
        %v791 = vsel %vm782, %v778, 0.0
        %v792 = vsel %vm782, %v779, 0.0
        %v793 = vsel %vm782, %v780, 0.0
        %v794 = vsel %vm782, %v781, 0.0
        %v795 = vcombine.low %v783, %v789
        %v796 = vcombine.high %v783, %v789
        %v798 = vunpack.c.l.s4 1983009808
        %v799 = vunpack.c.0.s8 %v798
        %v800 = vlaneseq
        %v801 = vshrl.u32 %v800, 7
        %v802 = vsub.s32 %v799, %v801
        %v803 = vrot.slane %v795, %v802
        %v805 = vunpack.c.l.s4 1983009808
        %v806 = vunpack.c.0.s8 %v805
        %v807 = vlaneseq
        %v808 = vshrl.u32 %v807, 7
        %v809 = vsub.s32 %v806, %v808
        %v810 = vrot.slane %v796, %v809
        %v811 = vcombine.low %v786, %v792
        %v812 = vcombine.high %v786, %v792
        %v814 = vunpack.c.l.s4 1983009808
        %v815 = vunpack.c.0.s8 %v814
        %v816 = vlaneseq
        %v817 = vshrl.u32 %v816, 7
        %v818 = vsub.s32 %v815, %v817
        %v819 = vrot.slane %v811, %v818
        %v821 = vunpack.c.l.s4 1983009808
        %v822 = vunpack.c.0.s8 %v821
        %v823 = vlaneseq
        %v824 = vshrl.u32 %v823, 7
        %v825 = vsub.s32 %v822, %v824
        %v826 = vrot.slane %v812, %v825
        %v827 = vcombine.low %v803, %v819
        %v828 = vcombine.high %v803, %v819
        %v830 = vunpack.c.l.s4 1934713408
        %v831 = vunpack.c.0.s8 %v830
        %v832 = vlaneseq
        %v833 = vshrl.u32 %v832, 7
        %v834 = vsub.s32 %v831, %v833
        %v835 = vrot.slane %v827, %v834
        %v837 = vunpack.c.l.s4 1934713408
        %v838 = vunpack.c.0.s8 %v837
        %v839 = vlaneseq
        %v840 = vshrl.u32 %v839, 7
        %v841 = vsub.s32 %v838, %v840
        %v842 = vrot.slane %v828, %v841
        %v843 = vcombine.low %v810, %v826
        %v844 = vcombine.high %v810, %v826
        %v846 = vunpack.c.l.s4 1934713408
        %v847 = vunpack.c.0.s8 %v846
        %v848 = vlaneseq
        %v849 = vshrl.u32 %v848, 7
        %v850 = vsub.s32 %v847, %v849
        %v851 = vrot.slane %v843, %v850
        %v853 = vunpack.c.l.s4 1934713408
        %v854 = vunpack.c.0.s8 %v853
        %v855 = vlaneseq
        %v856 = vshrl.u32 %v855, 7
        %v857 = vsub.s32 %v854, %v856
        %v858 = vrot.slane %v844, %v857
        %v859 = vcombine.high %v835, 0.0
        %v860 = vcombine.high %v842, 0.0
        %v861 = vcombine.high %v851, 0.0
        %v862 = vcombine.high %v858, 0.0
        %v863 = vcombine.low %v784, %v790
        %v864 = vcombine.high %v784, %v790
        %v866 = vunpack.c.l.s4 1983009808
        %v867 = vunpack.c.0.s8 %v866
        %v868 = vlaneseq
        %v869 = vshrl.u32 %v868, 7
        %v870 = vsub.s32 %v867, %v869
        %v871 = vrot.slane %v863, %v870
        %v873 = vunpack.c.l.s4 1983009808
        %v874 = vunpack.c.0.s8 %v873
        %v875 = vlaneseq
        %v876 = vshrl.u32 %v875, 7
        %v877 = vsub.s32 %v874, %v876
        %v878 = vrot.slane %v864, %v877
        %v879 = vcombine.low %v787, %v793
        %v880 = vcombine.high %v787, %v793
        %v882 = vunpack.c.l.s4 1983009808
        %v883 = vunpack.c.0.s8 %v882
        %v884 = vlaneseq
        %v885 = vshrl.u32 %v884, 7
        %v886 = vsub.s32 %v883, %v885
        %v887 = vrot.slane %v879, %v886
        %v889 = vunpack.c.l.s4 1983009808
        %v890 = vunpack.c.0.s8 %v889
        %v891 = vlaneseq
        %v892 = vshrl.u32 %v891, 7
        %v893 = vsub.s32 %v890, %v892
        %v894 = vrot.slane %v880, %v893
        %v895 = vcombine.low %v871, %v887
        %v896 = vcombine.high %v871, %v887
        %v898 = vunpack.c.l.s4 1934713408
        %v899 = vunpack.c.0.s8 %v898
        %v900 = vlaneseq
        %v901 = vshrl.u32 %v900, 7
        %v902 = vsub.s32 %v899, %v901
        %v903 = vrot.slane %v895, %v902
        %v905 = vunpack.c.l.s4 1934713408
        %v906 = vunpack.c.0.s8 %v905
        %v907 = vlaneseq
        %v908 = vshrl.u32 %v907, 7
        %v909 = vsub.s32 %v906, %v908
        %v910 = vrot.slane %v896, %v909
        %v911 = vcombine.low %v878, %v894
        %v912 = vcombine.high %v878, %v894
        %v914 = vunpack.c.l.s4 1934713408
        %v915 = vunpack.c.0.s8 %v914
        %v916 = vlaneseq
        %v917 = vshrl.u32 %v916, 7
        %v918 = vsub.s32 %v915, %v917
        %v919 = vrot.slane %v911, %v918
        %v921 = vunpack.c.l.s4 1934713408
        %v922 = vunpack.c.0.s8 %v921
        %v923 = vlaneseq
        %v924 = vshrl.u32 %v923, 7
        %v925 = vsub.s32 %v922, %v924
        %v926 = vrot.slane %v912, %v925
        %v927 = vcombine.high %v903, 0.0
        %v928 = vcombine.high %v910, 0.0
        %v929 = vcombine.high %v919, 0.0
        %v930 = vcombine.high %v926, 0.0
        %932 = vrot.lane.b32.xlu0 %v859, 16
        %v933 = vpop.permute.xlu0 %932
        %936 = vrot.lane.b32.xlu0 %v842, 32
        %v937 = vpop.permute.xlu0 %936
        %940 = vrot.lane.b32.xlu0 %v860, 48
        %v941 = vpop.permute.xlu0 %940
        %944 = vrot.lane.b32.xlu0 %v851, 64
        %v945 = vpop.permute.xlu0 %944
        %948 = vrot.lane.b32.xlu0 %v861, 80
        %v949 = vpop.permute.xlu0 %948
        %952 = vrot.lane.b32.xlu0 %v858, 96
        %v953 = vpop.permute.xlu0 %952
        %956 = vrot.lane.b32.xlu0 %v862, 112
        %v957 = vpop.permute.xlu0 %956
        %960 = vrot.lane.b32.xlu0 %v927, 16
        %v961 = vpop.permute.xlu0 %960
        %964 = vrot.lane.b32.xlu0 %v910, 32
        %v965 = vpop.permute.xlu0 %964
        %968 = vrot.lane.b32.xlu0 %v928, 48
        %v969 = vpop.permute.xlu0 %968
        %972 = vrot.lane.b32.xlu0 %v919, 64
        %v973 = vpop.permute.xlu0 %972
        %976 = vrot.lane.b32.xlu0 %v929, 80
        %v977 = vpop.permute.xlu0 %976
        %980 = vrot.lane.b32.xlu0 %v926, 96
        %v981 = vpop.permute.xlu0 %980
        %984 = vrot.lane.b32.xlu0 %v930, 112
        %v985 = vpop.permute.xlu0 %984
        %vm987 = vcmask 130048
        %v988 = vsel %vm987, %v835, %v933
        %vm989 = vcmask 261120
        %v990 = vsel %vm989, %v988, %v937
        %vm991 = vcmask 392192
        %v992 = vsel %vm991, %v990, %v941
        %vm993 = vcmask 523264
        %v994 = vsel %vm993, %v992, %v945
        %vm995 = vcmask 654336
        %v996 = vsel %vm995, %v994, %v949
        %vm997 = vcmask 785408
        %v998 = vsel %vm997, %v996, %v953
        %vm999 = vcmask 916480
        %v1000 = vsel %vm999, %v998, %v957
        %v1001 = vsel %vm987, %v903, %v961
        %v1002 = vsel %vm989, %v1001, %v965
        %v1003 = vsel %vm991, %v1002, %v969
        %v1004 = vsel %vm993, %v1003, %v973
        %v1005 = vsel %vm995, %v1004, %v977
        %v1006 = vsel %vm997, %v1005, %v981
        %v1007 = vsel %vm999, %v1006, %v985
        %1016 = vrot.lane.b32.xlu0 %v783, 127
        %v1017 = vpop.permute.xlu0 %1016
        %1018 = vrot.lane.b32.xlu0 %v784, 127
        %v1019 = vpop.permute.xlu0 %1018
        %1020 = vrot.lane.b32.xlu0 %v786, 127
        %v1021 = vpop.permute.xlu0 %1020
        %1022 = vrot.lane.b32.xlu0 %v787, 127
        %v1023 = vpop.permute.xlu0 %1022
        %1024 = vrot.lane.b32.xlu0 %v789, 127
        %v1025 = vpop.permute.xlu0 %1024
        %1026 = vrot.lane.b32.xlu0 %v790, 127
        %v1027 = vpop.permute.xlu0 %1026
        %1028 = vrot.lane.b32.xlu0 %v792, 127
        %v1029 = vpop.permute.xlu0 %1028
        %1030 = vrot.lane.b32.xlu0 %v793, 127
        %v1031 = vpop.permute.xlu0 %1030
        %v1040 = vcombine.low %v1017, %v1025
        %v1041 = vcombine.high %v1017, %v1025
        %v1043 = vunpack.c.l.s4 1983009808
        %v1044 = vunpack.c.0.s8 %v1043
        %v1045 = vlaneseq
        %v1046 = vshrl.u32 %v1045, 7
        %v1047 = vsub.s32 %v1044, %v1046
        %v1048 = vrot.slane %v1040, %v1047
        %v1050 = vunpack.c.l.s4 1983009808
        %v1051 = vunpack.c.0.s8 %v1050
        %v1052 = vlaneseq
        %v1053 = vshrl.u32 %v1052, 7
        %v1054 = vsub.s32 %v1051, %v1053
        %v1055 = vrot.slane %v1041, %v1054
        %v1056 = vcombine.low %v1021, %v1029
        %v1057 = vcombine.high %v1021, %v1029
        %v1059 = vunpack.c.l.s4 1983009808
        %v1060 = vunpack.c.0.s8 %v1059
        %v1061 = vlaneseq
        %v1062 = vshrl.u32 %v1061, 7
        %v1063 = vsub.s32 %v1060, %v1062
        %v1064 = vrot.slane %v1056, %v1063
        %v1066 = vunpack.c.l.s4 1983009808
        %v1067 = vunpack.c.0.s8 %v1066
        %v1068 = vlaneseq
        %v1069 = vshrl.u32 %v1068, 7
        %v1070 = vsub.s32 %v1067, %v1069
        %v1071 = vrot.slane %v1057, %v1070
        %v1072 = vcombine.low %v1048, %v1064
        %v1073 = vcombine.high %v1048, %v1064
        %v1075 = vunpack.c.l.s4 1934713408
        %v1076 = vunpack.c.0.s8 %v1075
        %v1077 = vlaneseq
        %v1078 = vshrl.u32 %v1077, 7
        %v1079 = vsub.s32 %v1076, %v1078
        %v1080 = vrot.slane %v1072, %v1079
        %v1082 = vunpack.c.l.s4 1934713408
        %v1083 = vunpack.c.0.s8 %v1082
        %v1084 = vlaneseq
        %v1085 = vshrl.u32 %v1084, 7
        %v1086 = vsub.s32 %v1083, %v1085
        %v1087 = vrot.slane %v1073, %v1086
        %v1088 = vcombine.low %v1055, %v1071
        %v1089 = vcombine.high %v1055, %v1071
        %v1091 = vunpack.c.l.s4 1934713408
        %v1092 = vunpack.c.0.s8 %v1091
        %v1093 = vlaneseq
        %v1094 = vshrl.u32 %v1093, 7
        %v1095 = vsub.s32 %v1092, %v1094
        %v1096 = vrot.slane %v1088, %v1095
        %v1098 = vunpack.c.l.s4 1934713408
        %v1099 = vunpack.c.0.s8 %v1098
        %v1100 = vlaneseq
        %v1101 = vshrl.u32 %v1100, 7
        %v1102 = vsub.s32 %v1099, %v1101
        %v1103 = vrot.slane %v1089, %v1102
        %v1104 = vcombine.high %v1080, 0.0
        %v1105 = vcombine.high %v1087, 0.0
        %v1106 = vcombine.high %v1096, 0.0
        %v1107 = vcombine.high %v1103, 0.0
        %v1108 = vcombine.low %v1019, %v1027
        %v1109 = vcombine.high %v1019, %v1027
        %v1111 = vunpack.c.l.s4 1983009808
        %v1112 = vunpack.c.0.s8 %v1111
        %v1113 = vlaneseq
        %v1114 = vshrl.u32 %v1113, 7
        %v1115 = vsub.s32 %v1112, %v1114
        %v1116 = vrot.slane %v1108, %v1115
        %v1118 = vunpack.c.l.s4 1983009808
        %v1119 = vunpack.c.0.s8 %v1118
        %v1120 = vlaneseq
        %v1121 = vshrl.u32 %v1120, 7
        %v1122 = vsub.s32 %v1119, %v1121
        %v1123 = vrot.slane %v1109, %v1122
        %v1124 = vcombine.low %v1023, %v1031
        %v1125 = vcombine.high %v1023, %v1031
        %v1127 = vunpack.c.l.s4 1983009808
        %v1128 = vunpack.c.0.s8 %v1127
        %v1129 = vlaneseq
        %v1130 = vshrl.u32 %v1129, 7
        %v1131 = vsub.s32 %v1128, %v1130
        %v1132 = vrot.slane %v1124, %v1131
        %v1134 = vunpack.c.l.s4 1983009808
        %v1135 = vunpack.c.0.s8 %v1134
        %v1136 = vlaneseq
        %v1137 = vshrl.u32 %v1136, 7
        %v1138 = vsub.s32 %v1135, %v1137
        %v1139 = vrot.slane %v1125, %v1138
        %v1140 = vcombine.low %v1116, %v1132
        %v1141 = vcombine.high %v1116, %v1132
        %v1143 = vunpack.c.l.s4 1934713408
        %v1144 = vunpack.c.0.s8 %v1143
        %v1145 = vlaneseq
        %v1146 = vshrl.u32 %v1145, 7
        %v1147 = vsub.s32 %v1144, %v1146
        %v1148 = vrot.slane %v1140, %v1147
        %v1150 = vunpack.c.l.s4 1934713408
        %v1151 = vunpack.c.0.s8 %v1150
        %v1152 = vlaneseq
        %v1153 = vshrl.u32 %v1152, 7
        %v1154 = vsub.s32 %v1151, %v1153
        %v1155 = vrot.slane %v1141, %v1154
        %v1156 = vcombine.low %v1123, %v1139
        %v1157 = vcombine.high %v1123, %v1139
        %v1159 = vunpack.c.l.s4 1934713408
        %v1160 = vunpack.c.0.s8 %v1159
        %v1161 = vlaneseq
        %v1162 = vshrl.u32 %v1161, 7
        %v1163 = vsub.s32 %v1160, %v1162
        %v1164 = vrot.slane %v1156, %v1163
        %v1166 = vunpack.c.l.s4 1934713408
        %v1167 = vunpack.c.0.s8 %v1166
        %v1168 = vlaneseq
        %v1169 = vshrl.u32 %v1168, 7
        %v1170 = vsub.s32 %v1167, %v1169
        %v1171 = vrot.slane %v1157, %v1170
        %v1172 = vcombine.high %v1148, 0.0
        %v1173 = vcombine.high %v1155, 0.0
        %v1174 = vcombine.high %v1164, 0.0
        %v1175 = vcombine.high %v1171, 0.0
        %1177 = vrot.lane.b32.xlu0 %v1104, 16
        %v1178 = vpop.permute.xlu0 %1177
        %1181 = vrot.lane.b32.xlu0 %v1087, 32
        %v1182 = vpop.permute.xlu0 %1181
        %1185 = vrot.lane.b32.xlu0 %v1105, 48
        %v1186 = vpop.permute.xlu0 %1185
        %1189 = vrot.lane.b32.xlu0 %v1096, 64
        %v1190 = vpop.permute.xlu0 %1189
        %1193 = vrot.lane.b32.xlu0 %v1106, 80
        %v1194 = vpop.permute.xlu0 %1193
        %1197 = vrot.lane.b32.xlu0 %v1103, 96
        %v1198 = vpop.permute.xlu0 %1197
        %1201 = vrot.lane.b32.xlu0 %v1107, 112
        %v1202 = vpop.permute.xlu0 %1201
        %1205 = vrot.lane.b32.xlu0 %v1172, 16
        %v1206 = vpop.permute.xlu0 %1205
        %1209 = vrot.lane.b32.xlu0 %v1155, 32
        %v1210 = vpop.permute.xlu0 %1209
        %1213 = vrot.lane.b32.xlu0 %v1173, 48
        %v1214 = vpop.permute.xlu0 %1213
        %1217 = vrot.lane.b32.xlu0 %v1164, 64
        %v1218 = vpop.permute.xlu0 %1217
        %1221 = vrot.lane.b32.xlu0 %v1174, 80
        %v1222 = vpop.permute.xlu0 %1221
        %1225 = vrot.lane.b32.xlu0 %v1171, 96
        %v1226 = vpop.permute.xlu0 %1225
        %1229 = vrot.lane.b32.xlu0 %v1175, 112
        %v1230 = vpop.permute.xlu0 %1229
        %v1232 = vsel %vm987, %v1080, %v1178
        %v1233 = vsel %vm989, %v1232, %v1182
        %v1234 = vsel %vm991, %v1233, %v1186
        %v1235 = vsel %vm993, %v1234, %v1190
        %v1236 = vsel %vm995, %v1235, %v1194
        %v1237 = vsel %vm997, %v1236, %v1198
        %v1238 = vsel %vm999, %v1237, %v1202
        %v1239 = vsel %vm987, %v1148, %v1206
        %v1240 = vsel %vm989, %v1239, %v1210
        %v1241 = vsel %vm991, %v1240, %v1214
        %v1242 = vsel %vm993, %v1241, %v1218
        %v1243 = vsel %vm995, %v1242, %v1222
        %v1244 = vsel %vm997, %v1243, %v1226
        %v1245 = vsel %vm999, %v1244, %v1230
        %1246 = vrot.lane.b32.xlu0 %v783, 126
        %v1247 = vpop.permute.xlu0 %1246
        %1248 = vrot.lane.b32.xlu0 %v784, 126
        %v1249 = vpop.permute.xlu0 %1248
        %1250 = vrot.lane.b32.xlu0 %v786, 126
        %v1251 = vpop.permute.xlu0 %1250
        %1252 = vrot.lane.b32.xlu0 %v787, 126
        %v1253 = vpop.permute.xlu0 %1252
        %1254 = vrot.lane.b32.xlu0 %v789, 126
        %v1255 = vpop.permute.xlu0 %1254
        %1256 = vrot.lane.b32.xlu0 %v790, 126
        %v1257 = vpop.permute.xlu0 %1256
        %1258 = vrot.lane.b32.xlu0 %v792, 126
        %v1259 = vpop.permute.xlu0 %1258
        %1260 = vrot.lane.b32.xlu0 %v793, 126
        %v1261 = vpop.permute.xlu0 %1260
        %v1270 = vcombine.low %v1247, %v1255
        %v1271 = vcombine.high %v1247, %v1255
        %v1273 = vunpack.c.l.s4 1983009808
        %v1274 = vunpack.c.0.s8 %v1273
        %v1275 = vlaneseq
        %v1276 = vshrl.u32 %v1275, 7
        %v1277 = vsub.s32 %v1274, %v1276
        %v1278 = vrot.slane %v1270, %v1277
        %v1280 = vunpack.c.l.s4 1983009808
        %v1281 = vunpack.c.0.s8 %v1280
        %v1282 = vlaneseq
        %v1283 = vshrl.u32 %v1282, 7
        %v1284 = vsub.s32 %v1281, %v1283
        %v1285 = vrot.slane %v1271, %v1284
        %v1286 = vcombine.low %v1251, %v1259
        %v1287 = vcombine.high %v1251, %v1259
        %v1289 = vunpack.c.l.s4 1983009808
        %v1290 = vunpack.c.0.s8 %v1289
        %v1291 = vlaneseq
        %v1292 = vshrl.u32 %v1291, 7
        %v1293 = vsub.s32 %v1290, %v1292
        %v1294 = vrot.slane %v1286, %v1293
        %v1296 = vunpack.c.l.s4 1983009808
        %v1297 = vunpack.c.0.s8 %v1296
        %v1298 = vlaneseq
        %v1299 = vshrl.u32 %v1298, 7
        %v1300 = vsub.s32 %v1297, %v1299
        %v1301 = vrot.slane %v1287, %v1300
        %v1302 = vcombine.low %v1278, %v1294
        %v1303 = vcombine.high %v1278, %v1294
        %v1305 = vunpack.c.l.s4 1934713408
        %v1306 = vunpack.c.0.s8 %v1305
        %v1307 = vlaneseq
        %v1308 = vshrl.u32 %v1307, 7
        %v1309 = vsub.s32 %v1306, %v1308
        %v1310 = vrot.slane %v1302, %v1309
        %v1312 = vunpack.c.l.s4 1934713408
        %v1313 = vunpack.c.0.s8 %v1312
        %v1314 = vlaneseq
        %v1315 = vshrl.u32 %v1314, 7
        %v1316 = vsub.s32 %v1313, %v1315
        %v1317 = vrot.slane %v1303, %v1316
        %v1318 = vcombine.low %v1285, %v1301
        %v1319 = vcombine.high %v1285, %v1301
        %v1321 = vunpack.c.l.s4 1934713408
        %v1322 = vunpack.c.0.s8 %v1321
        %v1323 = vlaneseq
        %v1324 = vshrl.u32 %v1323, 7
        %v1325 = vsub.s32 %v1322, %v1324
        %v1326 = vrot.slane %v1318, %v1325
        %v1328 = vunpack.c.l.s4 1934713408
        %v1329 = vunpack.c.0.s8 %v1328
        %v1330 = vlaneseq
        %v1331 = vshrl.u32 %v1330, 7
        %v1332 = vsub.s32 %v1329, %v1331
        %v1333 = vrot.slane %v1319, %v1332
        %v1334 = vcombine.high %v1310, 0.0
        %v1335 = vcombine.high %v1317, 0.0
        %v1336 = vcombine.high %v1326, 0.0
        %v1337 = vcombine.high %v1333, 0.0
        %v1338 = vcombine.low %v1249, %v1257
        %v1339 = vcombine.high %v1249, %v1257
        %v1341 = vunpack.c.l.s4 1983009808
        %v1342 = vunpack.c.0.s8 %v1341
        %v1343 = vlaneseq
        %v1344 = vshrl.u32 %v1343, 7
        %v1345 = vsub.s32 %v1342, %v1344
        %v1346 = vrot.slane %v1338, %v1345
        %v1348 = vunpack.c.l.s4 1983009808
        %v1349 = vunpack.c.0.s8 %v1348
        %v1350 = vlaneseq
        %v1351 = vshrl.u32 %v1350, 7
        %v1352 = vsub.s32 %v1349, %v1351
        %v1353 = vrot.slane %v1339, %v1352
        %v1354 = vcombine.low %v1253, %v1261
        %v1355 = vcombine.high %v1253, %v1261
        %v1357 = vunpack.c.l.s4 1983009808
        %v1358 = vunpack.c.0.s8 %v1357
        %v1359 = vlaneseq
        %v1360 = vshrl.u32 %v1359, 7
        %v1361 = vsub.s32 %v1358, %v1360
        %v1362 = vrot.slane %v1354, %v1361
        %v1364 = vunpack.c.l.s4 1983009808
        %v1365 = vunpack.c.0.s8 %v1364
        %v1366 = vlaneseq
        %v1367 = vshrl.u32 %v1366, 7
        %v1368 = vsub.s32 %v1365, %v1367
        %v1369 = vrot.slane %v1355, %v1368
        %v1370 = vcombine.low %v1346, %v1362
        %v1371 = vcombine.high %v1346, %v1362
        %v1373 = vunpack.c.l.s4 1934713408
        %v1374 = vunpack.c.0.s8 %v1373
        %v1375 = vlaneseq
        %v1376 = vshrl.u32 %v1375, 7
        %v1377 = vsub.s32 %v1374, %v1376
        %v1378 = vrot.slane %v1370, %v1377
        %v1380 = vunpack.c.l.s4 1934713408
        %v1381 = vunpack.c.0.s8 %v1380
        %v1382 = vlaneseq
        %v1383 = vshrl.u32 %v1382, 7
        %v1384 = vsub.s32 %v1381, %v1383
        %v1385 = vrot.slane %v1371, %v1384
        %v1386 = vcombine.low %v1353, %v1369
        %v1387 = vcombine.high %v1353, %v1369
        %v1389 = vunpack.c.l.s4 1934713408
        %v1390 = vunpack.c.0.s8 %v1389
        %v1391 = vlaneseq
        %v1392 = vshrl.u32 %v1391, 7
        %v1393 = vsub.s32 %v1390, %v1392
        %v1394 = vrot.slane %v1386, %v1393
        %v1396 = vunpack.c.l.s4 1934713408
        %v1397 = vunpack.c.0.s8 %v1396
        %v1398 = vlaneseq
        %v1399 = vshrl.u32 %v1398, 7
        %v1400 = vsub.s32 %v1397, %v1399
        %v1401 = vrot.slane %v1387, %v1400
        %v1402 = vcombine.high %v1378, 0.0
        %v1403 = vcombine.high %v1385, 0.0
        %v1404 = vcombine.high %v1394, 0.0
        %v1405 = vcombine.high %v1401, 0.0
        %1407 = vrot.lane.b32.xlu0 %v1334, 16
        %v1408 = vpop.permute.xlu0 %1407
        %1411 = vrot.lane.b32.xlu0 %v1317, 32
        %v1412 = vpop.permute.xlu0 %1411
        %1415 = vrot.lane.b32.xlu0 %v1335, 48
        %v1416 = vpop.permute.xlu0 %1415
        %1419 = vrot.lane.b32.xlu0 %v1326, 64
        %v1420 = vpop.permute.xlu0 %1419
        %1423 = vrot.lane.b32.xlu0 %v1336, 80
        %v1424 = vpop.permute.xlu0 %1423
        %1427 = vrot.lane.b32.xlu0 %v1333, 96
        %v1428 = vpop.permute.xlu0 %1427
        %1431 = vrot.lane.b32.xlu0 %v1337, 112
        %v1432 = vpop.permute.xlu0 %1431
        %1435 = vrot.lane.b32.xlu0 %v1402, 16
        %v1436 = vpop.permute.xlu0 %1435
        %1439 = vrot.lane.b32.xlu0 %v1385, 32
        %v1440 = vpop.permute.xlu0 %1439
        %1443 = vrot.lane.b32.xlu0 %v1403, 48
        %v1444 = vpop.permute.xlu0 %1443
        %1447 = vrot.lane.b32.xlu0 %v1394, 64
        %v1448 = vpop.permute.xlu0 %1447
        %1451 = vrot.lane.b32.xlu0 %v1404, 80
        %v1452 = vpop.permute.xlu0 %1451
        %1455 = vrot.lane.b32.xlu0 %v1401, 96
        %v1456 = vpop.permute.xlu0 %1455
        %1459 = vrot.lane.b32.xlu0 %v1405, 112
        %v1460 = vpop.permute.xlu0 %1459
        %v1462 = vsel %vm987, %v1310, %v1408
        %v1463 = vsel %vm989, %v1462, %v1412
        %v1464 = vsel %vm991, %v1463, %v1416
        %v1465 = vsel %vm993, %v1464, %v1420
        %v1466 = vsel %vm995, %v1465, %v1424
        %v1467 = vsel %vm997, %v1466, %v1428
        %v1468 = vsel %vm999, %v1467, %v1432
        %v1469 = vsel %vm987, %v1378, %v1436
        %v1470 = vsel %vm989, %v1469, %v1440
        %v1471 = vsel %vm991, %v1470, %v1444
        %v1472 = vsel %vm993, %v1471, %v1448
        %v1473 = vsel %vm995, %v1472, %v1452
        %v1474 = vsel %vm997, %v1473, %v1456
        %v1475 = vsel %vm999, %v1474, %v1460
        %vm1480 = vcmask 1046528
        %v1481 = vrot.slane %v783, 1
        %v1482 = vrot.slane %v784, 1
        %v1483 = vsel %vm1480, %v1481, %v1482
        %v1484 = vrot.slane %v785, 1
        %v1485 = vsel %vm1480, %v1482, %v1484
        %v1486 = vrot.slane %v786, 1
        %v1487 = vrot.slane %v787, 1
        %v1488 = vsel %vm1480, %v1486, %v1487
        %v1489 = vrot.slane %v788, 1
        %v1490 = vsel %vm1480, %v1487, %v1489
        %v1491 = vrot.slane %v789, 1
        %v1492 = vrot.slane %v790, 1
        %v1493 = vsel %vm1480, %v1491, %v1492
        %v1494 = vrot.slane %v791, 1
        %v1495 = vsel %vm1480, %v1492, %v1494
        %v1496 = vrot.slane %v792, 1
        %v1497 = vrot.slane %v793, 1
        %v1498 = vsel %vm1480, %v1496, %v1497
        %v1499 = vrot.slane %v794, 1
        %v1500 = vsel %vm1480, %v1497, %v1499
        %v1509 = vcombine.low %v1483, %v1493
        %v1510 = vcombine.high %v1483, %v1493
        %v1512 = vunpack.c.l.s4 1983009808
        %v1513 = vunpack.c.0.s8 %v1512
        %v1514 = vlaneseq
        %v1515 = vshrl.u32 %v1514, 7
        %v1516 = vsub.s32 %v1513, %v1515
        %v1517 = vrot.slane %v1509, %v1516
        %v1519 = vunpack.c.l.s4 1983009808
        %v1520 = vunpack.c.0.s8 %v1519
        %v1521 = vlaneseq
        %v1522 = vshrl.u32 %v1521, 7
        %v1523 = vsub.s32 %v1520, %v1522
        %v1524 = vrot.slane %v1510, %v1523
        %v1525 = vcombine.low %v1488, %v1498
        %v1526 = vcombine.high %v1488, %v1498
        %v1528 = vunpack.c.l.s4 1983009808
        %v1529 = vunpack.c.0.s8 %v1528
        %v1530 = vlaneseq
        %v1531 = vshrl.u32 %v1530, 7
        %v1532 = vsub.s32 %v1529, %v1531
        %v1533 = vrot.slane %v1525, %v1532
        %v1535 = vunpack.c.l.s4 1983009808
        %v1536 = vunpack.c.0.s8 %v1535
        %v1537 = vlaneseq
        %v1538 = vshrl.u32 %v1537, 7
        %v1539 = vsub.s32 %v1536, %v1538
        %v1540 = vrot.slane %v1526, %v1539
        %v1541 = vcombine.low %v1517, %v1533
        %v1542 = vcombine.high %v1517, %v1533
        %v1544 = vunpack.c.l.s4 1934713408
        %v1545 = vunpack.c.0.s8 %v1544
        %v1546 = vlaneseq
        %v1547 = vshrl.u32 %v1546, 7
        %v1548 = vsub.s32 %v1545, %v1547
        %v1549 = vrot.slane %v1541, %v1548
        %v1551 = vunpack.c.l.s4 1934713408
        %v1552 = vunpack.c.0.s8 %v1551
        %v1553 = vlaneseq
        %v1554 = vshrl.u32 %v1553, 7
        %v1555 = vsub.s32 %v1552, %v1554
        %v1556 = vrot.slane %v1542, %v1555
        %v1557 = vcombine.low %v1524, %v1540
        %v1558 = vcombine.high %v1524, %v1540
        %v1560 = vunpack.c.l.s4 1934713408
        %v1561 = vunpack.c.0.s8 %v1560
        %v1562 = vlaneseq
        %v1563 = vshrl.u32 %v1562, 7
        %v1564 = vsub.s32 %v1561, %v1563
        %v1565 = vrot.slane %v1557, %v1564
        %v1567 = vunpack.c.l.s4 1934713408
        %v1568 = vunpack.c.0.s8 %v1567
        %v1569 = vlaneseq
        %v1570 = vshrl.u32 %v1569, 7
        %v1571 = vsub.s32 %v1568, %v1570
        %v1572 = vrot.slane %v1558, %v1571
        %v1573 = vcombine.high %v1549, 0.0
        %v1574 = vcombine.high %v1556, 0.0
        %v1575 = vcombine.high %v1565, 0.0
        %v1576 = vcombine.high %v1572, 0.0
        %v1577 = vcombine.low %v1485, %v1495
        %v1578 = vcombine.high %v1485, %v1495
        %v1580 = vunpack.c.l.s4 1983009808
        %v1581 = vunpack.c.0.s8 %v1580
        %v1582 = vlaneseq
        %v1583 = vshrl.u32 %v1582, 7
        %v1584 = vsub.s32 %v1581, %v1583
        %v1585 = vrot.slane %v1577, %v1584
        %v1587 = vunpack.c.l.s4 1983009808
        %v1588 = vunpack.c.0.s8 %v1587
        %v1589 = vlaneseq
        %v1590 = vshrl.u32 %v1589, 7
        %v1591 = vsub.s32 %v1588, %v1590
        %v1592 = vrot.slane %v1578, %v1591
        %v1593 = vcombine.low %v1490, %v1500
        %v1594 = vcombine.high %v1490, %v1500
        %v1596 = vunpack.c.l.s4 1983009808
        %v1597 = vunpack.c.0.s8 %v1596
        %v1598 = vlaneseq
        %v1599 = vshrl.u32 %v1598, 7
        %v1600 = vsub.s32 %v1597, %v1599
        %v1601 = vrot.slane %v1593, %v1600
        %v1603 = vunpack.c.l.s4 1983009808
        %v1604 = vunpack.c.0.s8 %v1603
        %v1605 = vlaneseq
        %v1606 = vshrl.u32 %v1605, 7
        %v1607 = vsub.s32 %v1604, %v1606
        %v1608 = vrot.slane %v1594, %v1607
        %v1609 = vcombine.low %v1585, %v1601
        %v1610 = vcombine.high %v1585, %v1601
        %v1612 = vunpack.c.l.s4 1934713408
        %v1613 = vunpack.c.0.s8 %v1612
        %v1614 = vlaneseq
        %v1615 = vshrl.u32 %v1614, 7
        %v1616 = vsub.s32 %v1613, %v1615
        %v1617 = vrot.slane %v1609, %v1616
        %v1619 = vunpack.c.l.s4 1934713408
        %v1620 = vunpack.c.0.s8 %v1619
        %v1621 = vlaneseq
        %v1622 = vshrl.u32 %v1621, 7
        %v1623 = vsub.s32 %v1620, %v1622
        %v1624 = vrot.slane %v1610, %v1623
        %v1625 = vcombine.low %v1592, %v1608
        %v1626 = vcombine.high %v1592, %v1608
        %v1628 = vunpack.c.l.s4 1934713408
        %v1629 = vunpack.c.0.s8 %v1628
        %v1630 = vlaneseq
        %v1631 = vshrl.u32 %v1630, 7
        %v1632 = vsub.s32 %v1629, %v1631
        %v1633 = vrot.slane %v1625, %v1632
        %v1635 = vunpack.c.l.s4 1934713408
        %v1636 = vunpack.c.0.s8 %v1635
        %v1637 = vlaneseq
        %v1638 = vshrl.u32 %v1637, 7
        %v1639 = vsub.s32 %v1636, %v1638
        %v1640 = vrot.slane %v1626, %v1639
        %v1641 = vcombine.high %v1617, 0.0
        %v1642 = vcombine.high %v1624, 0.0
        %v1643 = vcombine.high %v1633, 0.0
        %v1644 = vcombine.high %v1640, 0.0
        %1646 = vrot.lane.b32.xlu0 %v1573, 16
        %v1647 = vpop.permute.xlu0 %1646
        %1650 = vrot.lane.b32.xlu0 %v1556, 32
        %v1651 = vpop.permute.xlu0 %1650
        %1654 = vrot.lane.b32.xlu0 %v1574, 48
        %v1655 = vpop.permute.xlu0 %1654
        %1658 = vrot.lane.b32.xlu0 %v1565, 64
        %v1659 = vpop.permute.xlu0 %1658
        %1662 = vrot.lane.b32.xlu0 %v1575, 80
        %v1663 = vpop.permute.xlu0 %1662
        %1666 = vrot.lane.b32.xlu0 %v1572, 96
        %v1667 = vpop.permute.xlu0 %1666
        %1670 = vrot.lane.b32.xlu0 %v1576, 112
        %v1671 = vpop.permute.xlu0 %1670
        %1674 = vrot.lane.b32.xlu0 %v1641, 16
        %v1675 = vpop.permute.xlu0 %1674
        %1678 = vrot.lane.b32.xlu0 %v1624, 32
        %v1679 = vpop.permute.xlu0 %1678
        %1682 = vrot.lane.b32.xlu0 %v1642, 48
        %v1683 = vpop.permute.xlu0 %1682
        %1686 = vrot.lane.b32.xlu0 %v1633, 64
        %v1687 = vpop.permute.xlu0 %1686
        %1690 = vrot.lane.b32.xlu0 %v1643, 80
        %v1691 = vpop.permute.xlu0 %1690
        %1694 = vrot.lane.b32.xlu0 %v1640, 96
        %v1695 = vpop.permute.xlu0 %1694
        %1698 = vrot.lane.b32.xlu0 %v1644, 112
        %v1699 = vpop.permute.xlu0 %1698
        %v1701 = vsel %vm987, %v1549, %v1647
        %v1702 = vsel %vm989, %v1701, %v1651
        %v1703 = vsel %vm991, %v1702, %v1655
        %v1704 = vsel %vm993, %v1703, %v1659
        %v1705 = vsel %vm995, %v1704, %v1663
        %v1706 = vsel %vm997, %v1705, %v1667
        %v1707 = vsel %vm999, %v1706, %v1671
        %v1708 = vsel %vm987, %v1617, %v1675
        %v1709 = vsel %vm989, %v1708, %v1679
        %v1710 = vsel %vm991, %v1709, %v1683
        %v1711 = vsel %vm993, %v1710, %v1687
        %v1712 = vsel %vm995, %v1711, %v1691
        %v1713 = vsel %vm997, %v1712, %v1695
        %v1714 = vsel %vm999, %v1713, %v1699
        %1715 = vrot.lane.b32.xlu0 %v1483, 127
        %v1716 = vpop.permute.xlu0 %1715
        %1717 = vrot.lane.b32.xlu0 %v1485, 127
        %v1718 = vpop.permute.xlu0 %1717
        %1719 = vrot.lane.b32.xlu0 %v1488, 127
        %v1720 = vpop.permute.xlu0 %1719
        %1721 = vrot.lane.b32.xlu0 %v1490, 127
        %v1722 = vpop.permute.xlu0 %1721
        %1723 = vrot.lane.b32.xlu0 %v1493, 127
        %v1724 = vpop.permute.xlu0 %1723
        %1725 = vrot.lane.b32.xlu0 %v1495, 127
        %v1726 = vpop.permute.xlu0 %1725
        %1727 = vrot.lane.b32.xlu0 %v1498, 127
        %v1728 = vpop.permute.xlu0 %1727
        %1729 = vrot.lane.b32.xlu0 %v1500, 127
        %v1730 = vpop.permute.xlu0 %1729
        %v1739 = vcombine.low %v1716, %v1724
        %v1740 = vcombine.high %v1716, %v1724
        %v1742 = vunpack.c.l.s4 1983009808
        %v1743 = vunpack.c.0.s8 %v1742
        %v1744 = vlaneseq
        %v1745 = vshrl.u32 %v1744, 7
        %v1746 = vsub.s32 %v1743, %v1745
        %v1747 = vrot.slane %v1739, %v1746
        %v1749 = vunpack.c.l.s4 1983009808
        %v1750 = vunpack.c.0.s8 %v1749
        %v1751 = vlaneseq
        %v1752 = vshrl.u32 %v1751, 7
        %v1753 = vsub.s32 %v1750, %v1752
        %v1754 = vrot.slane %v1740, %v1753
        %v1755 = vcombine.low %v1720, %v1728
        %v1756 = vcombine.high %v1720, %v1728
        %v1758 = vunpack.c.l.s4 1983009808
        %v1759 = vunpack.c.0.s8 %v1758
        %v1760 = vlaneseq
        %v1761 = vshrl.u32 %v1760, 7
        %v1762 = vsub.s32 %v1759, %v1761
        %v1763 = vrot.slane %v1755, %v1762
        %v1765 = vunpack.c.l.s4 1983009808
        %v1766 = vunpack.c.0.s8 %v1765
        %v1767 = vlaneseq
        %v1768 = vshrl.u32 %v1767, 7
        %v1769 = vsub.s32 %v1766, %v1768
        %v1770 = vrot.slane %v1756, %v1769
        %v1771 = vcombine.low %v1747, %v1763
        %v1772 = vcombine.high %v1747, %v1763
        %v1774 = vunpack.c.l.s4 1934713408
        %v1775 = vunpack.c.0.s8 %v1774
        %v1776 = vlaneseq
        %v1777 = vshrl.u32 %v1776, 7
        %v1778 = vsub.s32 %v1775, %v1777
        %v1779 = vrot.slane %v1771, %v1778
        %v1781 = vunpack.c.l.s4 1934713408
        %v1782 = vunpack.c.0.s8 %v1781
        %v1783 = vlaneseq
        %v1784 = vshrl.u32 %v1783, 7
        %v1785 = vsub.s32 %v1782, %v1784
        %v1786 = vrot.slane %v1772, %v1785
        %v1787 = vcombine.low %v1754, %v1770
        %v1788 = vcombine.high %v1754, %v1770
        %v1790 = vunpack.c.l.s4 1934713408
        %v1791 = vunpack.c.0.s8 %v1790
        %v1792 = vlaneseq
        %v1793 = vshrl.u32 %v1792, 7
        %v1794 = vsub.s32 %v1791, %v1793
        %v1795 = vrot.slane %v1787, %v1794
        %v1797 = vunpack.c.l.s4 1934713408
        %v1798 = vunpack.c.0.s8 %v1797
        %v1799 = vlaneseq
        %v1800 = vshrl.u32 %v1799, 7
        %v1801 = vsub.s32 %v1798, %v1800
        %v1802 = vrot.slane %v1788, %v1801
        %v1803 = vcombine.high %v1779, 0.0
        %v1804 = vcombine.high %v1786, 0.0
        %v1805 = vcombine.high %v1795, 0.0
        %v1806 = vcombine.high %v1802, 0.0
        %v1807 = vcombine.low %v1718, %v1726
        %v1808 = vcombine.high %v1718, %v1726
        %v1810 = vunpack.c.l.s4 1983009808
        %v1811 = vunpack.c.0.s8 %v1810
        %v1812 = vlaneseq
        %v1813 = vshrl.u32 %v1812, 7
        %v1814 = vsub.s32 %v1811, %v1813
        %v1815 = vrot.slane %v1807, %v1814
        %v1817 = vunpack.c.l.s4 1983009808
        %v1818 = vunpack.c.0.s8 %v1817
        %v1819 = vlaneseq
        %v1820 = vshrl.u32 %v1819, 7
        %v1821 = vsub.s32 %v1818, %v1820
        %v1822 = vrot.slane %v1808, %v1821
        %v1823 = vcombine.low %v1722, %v1730
        %v1824 = vcombine.high %v1722, %v1730
        %v1826 = vunpack.c.l.s4 1983009808
        %v1827 = vunpack.c.0.s8 %v1826
        %v1828 = vlaneseq
        %v1829 = vshrl.u32 %v1828, 7
        %v1830 = vsub.s32 %v1827, %v1829
        %v1831 = vrot.slane %v1823, %v1830
        %v1833 = vunpack.c.l.s4 1983009808
        %v1834 = vunpack.c.0.s8 %v1833
        %v1835 = vlaneseq
        %v1836 = vshrl.u32 %v1835, 7
        %v1837 = vsub.s32 %v1834, %v1836
        %v1838 = vrot.slane %v1824, %v1837
        %v1839 = vcombine.low %v1815, %v1831
        %v1840 = vcombine.high %v1815, %v1831
        %v1842 = vunpack.c.l.s4 1934713408
        %v1843 = vunpack.c.0.s8 %v1842
        %v1844 = vlaneseq
        %v1845 = vshrl.u32 %v1844, 7
        %v1846 = vsub.s32 %v1843, %v1845
        %v1847 = vrot.slane %v1839, %v1846
        %v1849 = vunpack.c.l.s4 1934713408
        %v1850 = vunpack.c.0.s8 %v1849
        %v1851 = vlaneseq
        %v1852 = vshrl.u32 %v1851, 7
        %v1853 = vsub.s32 %v1850, %v1852
        %v1854 = vrot.slane %v1840, %v1853
        %v1855 = vcombine.low %v1822, %v1838
        %v1856 = vcombine.high %v1822, %v1838
        %v1858 = vunpack.c.l.s4 1934713408
        %v1859 = vunpack.c.0.s8 %v1858
        %v1860 = vlaneseq
        %v1861 = vshrl.u32 %v1860, 7
        %v1862 = vsub.s32 %v1859, %v1861
        %v1863 = vrot.slane %v1855, %v1862
        %v1865 = vunpack.c.l.s4 1934713408
        %v1866 = vunpack.c.0.s8 %v1865
        %v1867 = vlaneseq
        %v1868 = vshrl.u32 %v1867, 7
        %v1869 = vsub.s32 %v1866, %v1868
        %v1870 = vrot.slane %v1856, %v1869
        %v1871 = vcombine.high %v1847, 0.0
        %v1872 = vcombine.high %v1854, 0.0
        %v1873 = vcombine.high %v1863, 0.0
        %v1874 = vcombine.high %v1870, 0.0
        %1876 = vrot.lane.b32.xlu0 %v1803, 16
        %v1877 = vpop.permute.xlu0 %1876
        %1880 = vrot.lane.b32.xlu0 %v1786, 32
        %v1881 = vpop.permute.xlu0 %1880
        %1884 = vrot.lane.b32.xlu0 %v1804, 48
        %v1885 = vpop.permute.xlu0 %1884
        %1888 = vrot.lane.b32.xlu0 %v1795, 64
        %v1889 = vpop.permute.xlu0 %1888
        %1892 = vrot.lane.b32.xlu0 %v1805, 80
        %v1893 = vpop.permute.xlu0 %1892
        %1896 = vrot.lane.b32.xlu0 %v1802, 96
        %v1897 = vpop.permute.xlu0 %1896
        %1900 = vrot.lane.b32.xlu0 %v1806, 112
        %v1901 = vpop.permute.xlu0 %1900
        %1904 = vrot.lane.b32.xlu0 %v1871, 16
        %v1905 = vpop.permute.xlu0 %1904
        %1908 = vrot.lane.b32.xlu0 %v1854, 32
        %v1909 = vpop.permute.xlu0 %1908
        %1912 = vrot.lane.b32.xlu0 %v1872, 48
        %v1913 = vpop.permute.xlu0 %1912
        %1916 = vrot.lane.b32.xlu0 %v1863, 64
        %v1917 = vpop.permute.xlu0 %1916
        %1920 = vrot.lane.b32.xlu0 %v1873, 80
        %v1921 = vpop.permute.xlu0 %1920
        %1924 = vrot.lane.b32.xlu0 %v1870, 96
        %v1925 = vpop.permute.xlu0 %1924
        %1928 = vrot.lane.b32.xlu0 %v1874, 112
        %v1929 = vpop.permute.xlu0 %1928
        %v1931 = vsel %vm987, %v1779, %v1877
        %v1932 = vsel %vm989, %v1931, %v1881
        %v1933 = vsel %vm991, %v1932, %v1885
        %v1934 = vsel %vm993, %v1933, %v1889
        %v1935 = vsel %vm995, %v1934, %v1893
        %v1936 = vsel %vm997, %v1935, %v1897
        %v1937 = vsel %vm999, %v1936, %v1901
        %v1938 = vsel %vm987, %v1847, %v1905
        %v1939 = vsel %vm989, %v1938, %v1909
        %v1940 = vsel %vm991, %v1939, %v1913
        %v1941 = vsel %vm993, %v1940, %v1917
        %v1942 = vsel %vm995, %v1941, %v1921
        %v1943 = vsel %vm997, %v1942, %v1925
        %v1944 = vsel %vm999, %v1943, %v1929
        %1945 = vrot.lane.b32.xlu0 %v1483, 126
        %v1946 = vpop.permute.xlu0 %1945
        %1947 = vrot.lane.b32.xlu0 %v1485, 126
        %v1948 = vpop.permute.xlu0 %1947
        %1949 = vrot.lane.b32.xlu0 %v1488, 126
        %v1950 = vpop.permute.xlu0 %1949
        %1951 = vrot.lane.b32.xlu0 %v1490, 126
        %v1952 = vpop.permute.xlu0 %1951
        %1953 = vrot.lane.b32.xlu0 %v1493, 126
        %v1954 = vpop.permute.xlu0 %1953
        %1955 = vrot.lane.b32.xlu0 %v1495, 126
        %v1956 = vpop.permute.xlu0 %1955
        %1957 = vrot.lane.b32.xlu0 %v1498, 126
        %v1958 = vpop.permute.xlu0 %1957
        %1959 = vrot.lane.b32.xlu0 %v1500, 126
        %v1960 = vpop.permute.xlu0 %1959
        %v1969 = vcombine.low %v1946, %v1954
        %v1970 = vcombine.high %v1946, %v1954
        %v1972 = vunpack.c.l.s4 1983009808
        %v1973 = vunpack.c.0.s8 %v1972
        %v1974 = vlaneseq
        %v1975 = vshrl.u32 %v1974, 7
        %v1976 = vsub.s32 %v1973, %v1975
        %v1977 = vrot.slane %v1969, %v1976
        %v1979 = vunpack.c.l.s4 1983009808
        %v1980 = vunpack.c.0.s8 %v1979
        %v1981 = vlaneseq
        %v1982 = vshrl.u32 %v1981, 7
        %v1983 = vsub.s32 %v1980, %v1982
        %v1984 = vrot.slane %v1970, %v1983
        %v1985 = vcombine.low %v1950, %v1958
        %v1986 = vcombine.high %v1950, %v1958
        %v1988 = vunpack.c.l.s4 1983009808
        %v1989 = vunpack.c.0.s8 %v1988
        %v1990 = vlaneseq
        %v1991 = vshrl.u32 %v1990, 7
        %v1992 = vsub.s32 %v1989, %v1991
        %v1993 = vrot.slane %v1985, %v1992
        %v1995 = vunpack.c.l.s4 1983009808
        %v1996 = vunpack.c.0.s8 %v1995
        %v1997 = vlaneseq
        %v1998 = vshrl.u32 %v1997, 7
        %v1999 = vsub.s32 %v1996, %v1998
        %v2000 = vrot.slane %v1986, %v1999
        %v2001 = vcombine.low %v1977, %v1993
        %v2002 = vcombine.high %v1977, %v1993
        %v2004 = vunpack.c.l.s4 1934713408
        %v2005 = vunpack.c.0.s8 %v2004
        %v2006 = vlaneseq
        %v2007 = vshrl.u32 %v2006, 7
        %v2008 = vsub.s32 %v2005, %v2007
        %v2009 = vrot.slane %v2001, %v2008
        %v2011 = vunpack.c.l.s4 1934713408
        %v2012 = vunpack.c.0.s8 %v2011
        %v2013 = vlaneseq
        %v2014 = vshrl.u32 %v2013, 7
        %v2015 = vsub.s32 %v2012, %v2014
        %v2016 = vrot.slane %v2002, %v2015
        %v2017 = vcombine.low %v1984, %v2000
        %v2018 = vcombine.high %v1984, %v2000
        %v2020 = vunpack.c.l.s4 1934713408
        %v2021 = vunpack.c.0.s8 %v2020
        %v2022 = vlaneseq
        %v2023 = vshrl.u32 %v2022, 7
        %v2024 = vsub.s32 %v2021, %v2023
        %v2025 = vrot.slane %v2017, %v2024
        %v2027 = vunpack.c.l.s4 1934713408
        %v2028 = vunpack.c.0.s8 %v2027
        %v2029 = vlaneseq
        %v2030 = vshrl.u32 %v2029, 7
        %v2031 = vsub.s32 %v2028, %v2030
        %v2032 = vrot.slane %v2018, %v2031
        %v2033 = vcombine.high %v2009, 0.0
        %v2034 = vcombine.high %v2016, 0.0
        %v2035 = vcombine.high %v2025, 0.0
        %v2036 = vcombine.high %v2032, 0.0
        %v2037 = vcombine.low %v1948, %v1956
        %v2038 = vcombine.high %v1948, %v1956
        %v2040 = vunpack.c.l.s4 1983009808
        %v2041 = vunpack.c.0.s8 %v2040
        %v2042 = vlaneseq
        %v2043 = vshrl.u32 %v2042, 7
        %v2044 = vsub.s32 %v2041, %v2043
        %v2045 = vrot.slane %v2037, %v2044
        %v2047 = vunpack.c.l.s4 1983009808
        %v2048 = vunpack.c.0.s8 %v2047
        %v2049 = vlaneseq
        %v2050 = vshrl.u32 %v2049, 7
        %v2051 = vsub.s32 %v2048, %v2050
        %v2052 = vrot.slane %v2038, %v2051
        %v2053 = vcombine.low %v1952, %v1960
        %v2054 = vcombine.high %v1952, %v1960
        %v2056 = vunpack.c.l.s4 1983009808
        %v2057 = vunpack.c.0.s8 %v2056
        %v2058 = vlaneseq
        %v2059 = vshrl.u32 %v2058, 7
        %v2060 = vsub.s32 %v2057, %v2059
        %v2061 = vrot.slane %v2053, %v2060
        %v2063 = vunpack.c.l.s4 1983009808
        %v2064 = vunpack.c.0.s8 %v2063
        %v2065 = vlaneseq
        %v2066 = vshrl.u32 %v2065, 7
        %v2067 = vsub.s32 %v2064, %v2066
        %v2068 = vrot.slane %v2054, %v2067
        %v2069 = vcombine.low %v2045, %v2061
        %v2070 = vcombine.high %v2045, %v2061
        %v2072 = vunpack.c.l.s4 1934713408
        %v2073 = vunpack.c.0.s8 %v2072
        %v2074 = vlaneseq
        %v2075 = vshrl.u32 %v2074, 7
        %v2076 = vsub.s32 %v2073, %v2075
        %v2077 = vrot.slane %v2069, %v2076
        %v2079 = vunpack.c.l.s4 1934713408
        %v2080 = vunpack.c.0.s8 %v2079
        %v2081 = vlaneseq
        %v2082 = vshrl.u32 %v2081, 7
        %v2083 = vsub.s32 %v2080, %v2082
        %v2084 = vrot.slane %v2070, %v2083
        %v2085 = vcombine.low %v2052, %v2068
        %v2086 = vcombine.high %v2052, %v2068
        %v2088 = vunpack.c.l.s4 1934713408
        %v2089 = vunpack.c.0.s8 %v2088
        %v2090 = vlaneseq
        %v2091 = vshrl.u32 %v2090, 7
        %v2092 = vsub.s32 %v2089, %v2091
        %v2093 = vrot.slane %v2085, %v2092
        %v2095 = vunpack.c.l.s4 1934713408
        %v2096 = vunpack.c.0.s8 %v2095
        %v2097 = vlaneseq
        %v2098 = vshrl.u32 %v2097, 7
        %v2099 = vsub.s32 %v2096, %v2098
        %v2100 = vrot.slane %v2086, %v2099
        %v2101 = vcombine.high %v2077, 0.0
        %v2102 = vcombine.high %v2084, 0.0
        %v2103 = vcombine.high %v2093, 0.0
        %v2104 = vcombine.high %v2100, 0.0
        %2106 = vrot.lane.b32.xlu0 %v2033, 16
        %v2107 = vpop.permute.xlu0 %2106
        %2110 = vrot.lane.b32.xlu0 %v2016, 32
        %v2111 = vpop.permute.xlu0 %2110
        %2114 = vrot.lane.b32.xlu0 %v2034, 48
        %v2115 = vpop.permute.xlu0 %2114
        %2118 = vrot.lane.b32.xlu0 %v2025, 64
        %v2119 = vpop.permute.xlu0 %2118
        %2122 = vrot.lane.b32.xlu0 %v2035, 80
        %v2123 = vpop.permute.xlu0 %2122
        %2126 = vrot.lane.b32.xlu0 %v2032, 96
        %v2127 = vpop.permute.xlu0 %2126
        %2130 = vrot.lane.b32.xlu0 %v2036, 112
        %v2131 = vpop.permute.xlu0 %2130
        %2134 = vrot.lane.b32.xlu0 %v2101, 16
        %v2135 = vpop.permute.xlu0 %2134
        %2138 = vrot.lane.b32.xlu0 %v2084, 32
        %v2139 = vpop.permute.xlu0 %2138
        %2142 = vrot.lane.b32.xlu0 %v2102, 48
        %v2143 = vpop.permute.xlu0 %2142
        %2146 = vrot.lane.b32.xlu0 %v2093, 64
        %v2147 = vpop.permute.xlu0 %2146
        %2150 = vrot.lane.b32.xlu0 %v2103, 80
        %v2151 = vpop.permute.xlu0 %2150
        %2154 = vrot.lane.b32.xlu0 %v2100, 96
        %v2155 = vpop.permute.xlu0 %2154
        %2158 = vrot.lane.b32.xlu0 %v2104, 112
        %v2159 = vpop.permute.xlu0 %2158
        %v2161 = vsel %vm987, %v2009, %v2107
        %v2162 = vsel %vm989, %v2161, %v2111
        %v2163 = vsel %vm991, %v2162, %v2115
        %v2164 = vsel %vm993, %v2163, %v2119
        %v2165 = vsel %vm995, %v2164, %v2123
        %v2166 = vsel %vm997, %v2165, %v2127
        %v2167 = vsel %vm999, %v2166, %v2131
        %v2168 = vsel %vm987, %v2077, %v2135
        %v2169 = vsel %vm989, %v2168, %v2139
        %v2170 = vsel %vm991, %v2169, %v2143
        %v2171 = vsel %vm993, %v2170, %v2147
        %v2172 = vsel %vm995, %v2171, %v2151
        %v2173 = vsel %vm997, %v2172, %v2155
        %v2174 = vsel %vm999, %v2173, %v2159
        %vm2175 = vcmask 1045504
        %v2176 = vrot.slane %v783, 2
        %v2177 = vrot.slane %v784, 2
        %v2178 = vsel %vm2175, %v2176, %v2177
        %v2179 = vrot.slane %v785, 2
        %v2180 = vsel %vm2175, %v2177, %v2179
        %v2181 = vrot.slane %v786, 2
        %v2182 = vrot.slane %v787, 2
        %v2183 = vsel %vm2175, %v2181, %v2182
        %v2184 = vrot.slane %v788, 2
        %v2185 = vsel %vm2175, %v2182, %v2184
        %v2186 = vrot.slane %v789, 2
        %v2187 = vrot.slane %v790, 2
        %v2188 = vsel %vm2175, %v2186, %v2187
        %v2189 = vrot.slane %v791, 2
        %v2190 = vsel %vm2175, %v2187, %v2189
        %v2191 = vrot.slane %v792, 2
        %v2192 = vrot.slane %v793, 2
        %v2193 = vsel %vm2175, %v2191, %v2192
        %v2194 = vrot.slane %v794, 2
        %v2195 = vsel %vm2175, %v2192, %v2194
        %v2204 = vcombine.low %v2178, %v2188
        %v2205 = vcombine.high %v2178, %v2188
        %v2207 = vunpack.c.l.s4 1983009808
        %v2208 = vunpack.c.0.s8 %v2207
        %v2209 = vlaneseq
        %v2210 = vshrl.u32 %v2209, 7
        %v2211 = vsub.s32 %v2208, %v2210
        %v2212 = vrot.slane %v2204, %v2211
        %v2214 = vunpack.c.l.s4 1983009808
        %v2215 = vunpack.c.0.s8 %v2214
        %v2216 = vlaneseq
        %v2217 = vshrl.u32 %v2216, 7
        %v2218 = vsub.s32 %v2215, %v2217
        %v2219 = vrot.slane %v2205, %v2218
        %v2220 = vcombine.low %v2183, %v2193
        %v2221 = vcombine.high %v2183, %v2193
        %v2223 = vunpack.c.l.s4 1983009808
        %v2224 = vunpack.c.0.s8 %v2223
        %v2225 = vlaneseq
        %v2226 = vshrl.u32 %v2225, 7
        %v2227 = vsub.s32 %v2224, %v2226
        %v2228 = vrot.slane %v2220, %v2227
        %v2230 = vunpack.c.l.s4 1983009808
        %v2231 = vunpack.c.0.s8 %v2230
        %v2232 = vlaneseq
        %v2233 = vshrl.u32 %v2232, 7
        %v2234 = vsub.s32 %v2231, %v2233
        %v2235 = vrot.slane %v2221, %v2234
        %v2236 = vcombine.low %v2212, %v2228
        %v2237 = vcombine.high %v2212, %v2228
        %v2239 = vunpack.c.l.s4 1934713408
        %v2240 = vunpack.c.0.s8 %v2239
        %v2241 = vlaneseq
        %v2242 = vshrl.u32 %v2241, 7
        %v2243 = vsub.s32 %v2240, %v2242
        %v2244 = vrot.slane %v2236, %v2243
        %v2246 = vunpack.c.l.s4 1934713408
        %v2247 = vunpack.c.0.s8 %v2246
        %v2248 = vlaneseq
        %v2249 = vshrl.u32 %v2248, 7
        %v2250 = vsub.s32 %v2247, %v2249
        %v2251 = vrot.slane %v2237, %v2250
        %v2252 = vcombine.low %v2219, %v2235
        %v2253 = vcombine.high %v2219, %v2235
        %v2255 = vunpack.c.l.s4 1934713408
        %v2256 = vunpack.c.0.s8 %v2255
        %v2257 = vlaneseq
        %v2258 = vshrl.u32 %v2257, 7
        %v2259 = vsub.s32 %v2256, %v2258
        %v2260 = vrot.slane %v2252, %v2259
        %v2262 = vunpack.c.l.s4 1934713408
        %v2263 = vunpack.c.0.s8 %v2262
        %v2264 = vlaneseq
        %v2265 = vshrl.u32 %v2264, 7
        %v2266 = vsub.s32 %v2263, %v2265
        %v2267 = vrot.slane %v2253, %v2266
        %v2268 = vcombine.high %v2244, 0.0
        %v2269 = vcombine.high %v2251, 0.0
        %v2270 = vcombine.high %v2260, 0.0
        %v2271 = vcombine.high %v2267, 0.0
        %v2272 = vcombine.low %v2180, %v2190
        %v2273 = vcombine.high %v2180, %v2190
        %v2275 = vunpack.c.l.s4 1983009808
        %v2276 = vunpack.c.0.s8 %v2275
        %v2277 = vlaneseq
        %v2278 = vshrl.u32 %v2277, 7
        %v2279 = vsub.s32 %v2276, %v2278
        %v2280 = vrot.slane %v2272, %v2279
        %v2282 = vunpack.c.l.s4 1983009808
        %v2283 = vunpack.c.0.s8 %v2282
        %v2284 = vlaneseq
        %v2285 = vshrl.u32 %v2284, 7
        %v2286 = vsub.s32 %v2283, %v2285
        %v2287 = vrot.slane %v2273, %v2286
        %v2288 = vcombine.low %v2185, %v2195
        %v2289 = vcombine.high %v2185, %v2195
        %v2291 = vunpack.c.l.s4 1983009808
        %v2292 = vunpack.c.0.s8 %v2291
        %v2293 = vlaneseq
        %v2294 = vshrl.u32 %v2293, 7
        %v2295 = vsub.s32 %v2292, %v2294
        %v2296 = vrot.slane %v2288, %v2295
        %v2298 = vunpack.c.l.s4 1983009808
        %v2299 = vunpack.c.0.s8 %v2298
        %v2300 = vlaneseq
        %v2301 = vshrl.u32 %v2300, 7
        %v2302 = vsub.s32 %v2299, %v2301
        %v2303 = vrot.slane %v2289, %v2302
        %v2304 = vcombine.low %v2280, %v2296
        %v2305 = vcombine.high %v2280, %v2296
        %v2307 = vunpack.c.l.s4 1934713408
        %v2308 = vunpack.c.0.s8 %v2307
        %v2309 = vlaneseq
        %v2310 = vshrl.u32 %v2309, 7
        %v2311 = vsub.s32 %v2308, %v2310
        %v2312 = vrot.slane %v2304, %v2311
        %v2314 = vunpack.c.l.s4 1934713408
        %v2315 = vunpack.c.0.s8 %v2314
        %v2316 = vlaneseq
        %v2317 = vshrl.u32 %v2316, 7
        %v2318 = vsub.s32 %v2315, %v2317
        %v2319 = vrot.slane %v2305, %v2318
        %v2320 = vcombine.low %v2287, %v2303
        %v2321 = vcombine.high %v2287, %v2303
        %v2323 = vunpack.c.l.s4 1934713408
        %v2324 = vunpack.c.0.s8 %v2323
        %v2325 = vlaneseq
        %v2326 = vshrl.u32 %v2325, 7
        %v2327 = vsub.s32 %v2324, %v2326
        %v2328 = vrot.slane %v2320, %v2327
        %v2330 = vunpack.c.l.s4 1934713408
        %v2331 = vunpack.c.0.s8 %v2330
        %v2332 = vlaneseq
        %v2333 = vshrl.u32 %v2332, 7
        %v2334 = vsub.s32 %v2331, %v2333
        %v2335 = vrot.slane %v2321, %v2334
        %v2336 = vcombine.high %v2312, 0.0
        %v2337 = vcombine.high %v2319, 0.0
        %v2338 = vcombine.high %v2328, 0.0
        %v2339 = vcombine.high %v2335, 0.0
        %2341 = vrot.lane.b32.xlu0 %v2268, 16
        %v2342 = vpop.permute.xlu0 %2341
        %2345 = vrot.lane.b32.xlu0 %v2251, 32
        %v2346 = vpop.permute.xlu0 %2345
        %2349 = vrot.lane.b32.xlu0 %v2269, 48
        %v2350 = vpop.permute.xlu0 %2349
        %2353 = vrot.lane.b32.xlu0 %v2260, 64
        %v2354 = vpop.permute.xlu0 %2353
        %2357 = vrot.lane.b32.xlu0 %v2270, 80
        %v2358 = vpop.permute.xlu0 %2357
        %2361 = vrot.lane.b32.xlu0 %v2267, 96
        %v2362 = vpop.permute.xlu0 %2361
        %2365 = vrot.lane.b32.xlu0 %v2271, 112
        %v2366 = vpop.permute.xlu0 %2365
        %2369 = vrot.lane.b32.xlu0 %v2336, 16
        %v2370 = vpop.permute.xlu0 %2369
        %2373 = vrot.lane.b32.xlu0 %v2319, 32
        %v2374 = vpop.permute.xlu0 %2373
        %2377 = vrot.lane.b32.xlu0 %v2337, 48
        %v2378 = vpop.permute.xlu0 %2377
        %2381 = vrot.lane.b32.xlu0 %v2328, 64
        %v2382 = vpop.permute.xlu0 %2381
        %2385 = vrot.lane.b32.xlu0 %v2338, 80
        %v2386 = vpop.permute.xlu0 %2385
        %2389 = vrot.lane.b32.xlu0 %v2335, 96
        %v2390 = vpop.permute.xlu0 %2389
        %2393 = vrot.lane.b32.xlu0 %v2339, 112
        %v2394 = vpop.permute.xlu0 %2393
        %v2396 = vsel %vm987, %v2244, %v2342
        %v2397 = vsel %vm989, %v2396, %v2346
        %v2398 = vsel %vm991, %v2397, %v2350
        %v2399 = vsel %vm993, %v2398, %v2354
        %v2400 = vsel %vm995, %v2399, %v2358
        %v2401 = vsel %vm997, %v2400, %v2362
        %v2402 = vsel %vm999, %v2401, %v2366
        %v2403 = vsel %vm987, %v2312, %v2370
        %v2404 = vsel %vm989, %v2403, %v2374
        %v2405 = vsel %vm991, %v2404, %v2378
        %v2406 = vsel %vm993, %v2405, %v2382
        %v2407 = vsel %vm995, %v2406, %v2386
        %v2408 = vsel %vm997, %v2407, %v2390
        %v2409 = vsel %vm999, %v2408, %v2394
        %2410 = vrot.lane.b32.xlu0 %v2178, 127
        %v2411 = vpop.permute.xlu0 %2410
        %2412 = vrot.lane.b32.xlu0 %v2180, 127
        %v2413 = vpop.permute.xlu0 %2412
        %2414 = vrot.lane.b32.xlu0 %v2183, 127
        %v2415 = vpop.permute.xlu0 %2414
        %2416 = vrot.lane.b32.xlu0 %v2185, 127
        %v2417 = vpop.permute.xlu0 %2416
        %2418 = vrot.lane.b32.xlu0 %v2188, 127
        %v2419 = vpop.permute.xlu0 %2418
        %2420 = vrot.lane.b32.xlu0 %v2190, 127
        %v2421 = vpop.permute.xlu0 %2420
        %2422 = vrot.lane.b32.xlu0 %v2193, 127
        %v2423 = vpop.permute.xlu0 %2422
        %2424 = vrot.lane.b32.xlu0 %v2195, 127
        %v2425 = vpop.permute.xlu0 %2424
        %v2434 = vcombine.low %v2411, %v2419
        %v2435 = vcombine.high %v2411, %v2419
        %v2437 = vunpack.c.l.s4 1983009808
        %v2438 = vunpack.c.0.s8 %v2437
        %v2439 = vlaneseq
        %v2440 = vshrl.u32 %v2439, 7
        %v2441 = vsub.s32 %v2438, %v2440
        %v2442 = vrot.slane %v2434, %v2441
        %v2444 = vunpack.c.l.s4 1983009808
        %v2445 = vunpack.c.0.s8 %v2444
        %v2446 = vlaneseq
        %v2447 = vshrl.u32 %v2446, 7
        %v2448 = vsub.s32 %v2445, %v2447
        %v2449 = vrot.slane %v2435, %v2448
        %v2450 = vcombine.low %v2415, %v2423
        %v2451 = vcombine.high %v2415, %v2423
        %v2453 = vunpack.c.l.s4 1983009808
        %v2454 = vunpack.c.0.s8 %v2453
        %v2455 = vlaneseq
        %v2456 = vshrl.u32 %v2455, 7
        %v2457 = vsub.s32 %v2454, %v2456
        %v2458 = vrot.slane %v2450, %v2457
        %v2460 = vunpack.c.l.s4 1983009808
        %v2461 = vunpack.c.0.s8 %v2460
        %v2462 = vlaneseq
        %v2463 = vshrl.u32 %v2462, 7
        %v2464 = vsub.s32 %v2461, %v2463
        %v2465 = vrot.slane %v2451, %v2464
        %v2466 = vcombine.low %v2442, %v2458
        %v2467 = vcombine.high %v2442, %v2458
        %v2469 = vunpack.c.l.s4 1934713408
        %v2470 = vunpack.c.0.s8 %v2469
        %v2471 = vlaneseq
        %v2472 = vshrl.u32 %v2471, 7
        %v2473 = vsub.s32 %v2470, %v2472
        %v2474 = vrot.slane %v2466, %v2473
        %v2476 = vunpack.c.l.s4 1934713408
        %v2477 = vunpack.c.0.s8 %v2476
        %v2478 = vlaneseq
        %v2479 = vshrl.u32 %v2478, 7
        %v2480 = vsub.s32 %v2477, %v2479
        %v2481 = vrot.slane %v2467, %v2480
        %v2482 = vcombine.low %v2449, %v2465
        %v2483 = vcombine.high %v2449, %v2465
        %v2485 = vunpack.c.l.s4 1934713408
        %v2486 = vunpack.c.0.s8 %v2485
        %v2487 = vlaneseq
        %v2488 = vshrl.u32 %v2487, 7
        %v2489 = vsub.s32 %v2486, %v2488
        %v2490 = vrot.slane %v2482, %v2489
        %v2492 = vunpack.c.l.s4 1934713408
        %v2493 = vunpack.c.0.s8 %v2492
        %v2494 = vlaneseq
        %v2495 = vshrl.u32 %v2494, 7
        %v2496 = vsub.s32 %v2493, %v2495
        %v2497 = vrot.slane %v2483, %v2496
        %v2498 = vcombine.high %v2474, 0.0
        %v2499 = vcombine.high %v2481, 0.0
        %v2500 = vcombine.high %v2490, 0.0
        %v2501 = vcombine.high %v2497, 0.0
        %v2502 = vcombine.low %v2413, %v2421
        %v2503 = vcombine.high %v2413, %v2421
        %v2505 = vunpack.c.l.s4 1983009808
        %v2506 = vunpack.c.0.s8 %v2505
        %v2507 = vlaneseq
        %v2508 = vshrl.u32 %v2507, 7
        %v2509 = vsub.s32 %v2506, %v2508
        %v2510 = vrot.slane %v2502, %v2509
        %v2512 = vunpack.c.l.s4 1983009808
        %v2513 = vunpack.c.0.s8 %v2512
        %v2514 = vlaneseq
        %v2515 = vshrl.u32 %v2514, 7
        %v2516 = vsub.s32 %v2513, %v2515
        %v2517 = vrot.slane %v2503, %v2516
        %v2518 = vcombine.low %v2417, %v2425
        %v2519 = vcombine.high %v2417, %v2425
        %v2521 = vunpack.c.l.s4 1983009808
        %v2522 = vunpack.c.0.s8 %v2521
        %v2523 = vlaneseq
        %v2524 = vshrl.u32 %v2523, 7
        %v2525 = vsub.s32 %v2522, %v2524
        %v2526 = vrot.slane %v2518, %v2525
        %v2528 = vunpack.c.l.s4 1983009808
        %v2529 = vunpack.c.0.s8 %v2528
        %v2530 = vlaneseq
        %v2531 = vshrl.u32 %v2530, 7
        %v2532 = vsub.s32 %v2529, %v2531
        %v2533 = vrot.slane %v2519, %v2532
        %v2534 = vcombine.low %v2510, %v2526
        %v2535 = vcombine.high %v2510, %v2526
        %v2537 = vunpack.c.l.s4 1934713408
        %v2538 = vunpack.c.0.s8 %v2537
        %v2539 = vlaneseq
        %v2540 = vshrl.u32 %v2539, 7
        %v2541 = vsub.s32 %v2538, %v2540
        %v2542 = vrot.slane %v2534, %v2541
        %v2544 = vunpack.c.l.s4 1934713408
        %v2545 = vunpack.c.0.s8 %v2544
        %v2546 = vlaneseq
        %v2547 = vshrl.u32 %v2546, 7
        %v2548 = vsub.s32 %v2545, %v2547
        %v2549 = vrot.slane %v2535, %v2548
        %v2550 = vcombine.low %v2517, %v2533
        %v2551 = vcombine.high %v2517, %v2533
        %v2553 = vunpack.c.l.s4 1934713408
        %v2554 = vunpack.c.0.s8 %v2553
        %v2555 = vlaneseq
        %v2556 = vshrl.u32 %v2555, 7
        %v2557 = vsub.s32 %v2554, %v2556
        %v2558 = vrot.slane %v2550, %v2557
        %v2560 = vunpack.c.l.s4 1934713408
        %v2561 = vunpack.c.0.s8 %v2560
        %v2562 = vlaneseq
        %v2563 = vshrl.u32 %v2562, 7
        %v2564 = vsub.s32 %v2561, %v2563
        %v2565 = vrot.slane %v2551, %v2564
        %v2566 = vcombine.high %v2542, 0.0
        %v2567 = vcombine.high %v2549, 0.0
        %v2568 = vcombine.high %v2558, 0.0
        %v2569 = vcombine.high %v2565, 0.0
        %2571 = vrot.lane.b32.xlu0 %v2498, 16
        %v2572 = vpop.permute.xlu0 %2571
        %2575 = vrot.lane.b32.xlu0 %v2481, 32
        %v2576 = vpop.permute.xlu0 %2575
        %2579 = vrot.lane.b32.xlu0 %v2499, 48
        %v2580 = vpop.permute.xlu0 %2579
        %2583 = vrot.lane.b32.xlu0 %v2490, 64
        %v2584 = vpop.permute.xlu0 %2583
        %2587 = vrot.lane.b32.xlu0 %v2500, 80
        %v2588 = vpop.permute.xlu0 %2587
        %2591 = vrot.lane.b32.xlu0 %v2497, 96
        %v2592 = vpop.permute.xlu0 %2591
        %2595 = vrot.lane.b32.xlu0 %v2501, 112
        %v2596 = vpop.permute.xlu0 %2595
        %2599 = vrot.lane.b32.xlu0 %v2566, 16
        %v2600 = vpop.permute.xlu0 %2599
        %2603 = vrot.lane.b32.xlu0 %v2549, 32
        %v2604 = vpop.permute.xlu0 %2603
        %2607 = vrot.lane.b32.xlu0 %v2567, 48
        %v2608 = vpop.permute.xlu0 %2607
        %2611 = vrot.lane.b32.xlu0 %v2558, 64
        %v2612 = vpop.permute.xlu0 %2611
        %2615 = vrot.lane.b32.xlu0 %v2568, 80
        %v2616 = vpop.permute.xlu0 %2615
        %2619 = vrot.lane.b32.xlu0 %v2565, 96
        %v2620 = vpop.permute.xlu0 %2619
        %2623 = vrot.lane.b32.xlu0 %v2569, 112
        %v2624 = vpop.permute.xlu0 %2623
        %v2626 = vsel %vm987, %v2474, %v2572
        %v2627 = vsel %vm989, %v2626, %v2576
        %v2628 = vsel %vm991, %v2627, %v2580
        %v2629 = vsel %vm993, %v2628, %v2584
        %v2630 = vsel %vm995, %v2629, %v2588
        %v2631 = vsel %vm997, %v2630, %v2592
        %v2632 = vsel %vm999, %v2631, %v2596
        %v2633 = vsel %vm987, %v2542, %v2600
        %v2634 = vsel %vm989, %v2633, %v2604
        %v2635 = vsel %vm991, %v2634, %v2608
        %v2636 = vsel %vm993, %v2635, %v2612
        %v2637 = vsel %vm995, %v2636, %v2616
        %v2638 = vsel %vm997, %v2637, %v2620
        %v2639 = vsel %vm999, %v2638, %v2624
        %2640 = vrot.lane.b32.xlu0 %v2178, 126
        %v2641 = vpop.permute.xlu0 %2640
        %2642 = vrot.lane.b32.xlu0 %v2180, 126
        %v2643 = vpop.permute.xlu0 %2642
        %2644 = vrot.lane.b32.xlu0 %v2183, 126
        %v2645 = vpop.permute.xlu0 %2644
        %2646 = vrot.lane.b32.xlu0 %v2185, 126
        %v2647 = vpop.permute.xlu0 %2646
        %2648 = vrot.lane.b32.xlu0 %v2188, 126
        %v2649 = vpop.permute.xlu0 %2648
        %2650 = vrot.lane.b32.xlu0 %v2190, 126
        %v2651 = vpop.permute.xlu0 %2650
        %2652 = vrot.lane.b32.xlu0 %v2193, 126
        %v2653 = vpop.permute.xlu0 %2652
        %2654 = vrot.lane.b32.xlu0 %v2195, 126
        %v2655 = vpop.permute.xlu0 %2654
        %v2664 = vcombine.low %v2641, %v2649
        %v2665 = vcombine.high %v2641, %v2649
        %v2667 = vunpack.c.l.s4 1983009808
        %v2668 = vunpack.c.0.s8 %v2667
        %v2669 = vlaneseq
        %v2670 = vshrl.u32 %v2669, 7
        %v2671 = vsub.s32 %v2668, %v2670
        %v2672 = vrot.slane %v2664, %v2671
        %v2674 = vunpack.c.l.s4 1983009808
        %v2675 = vunpack.c.0.s8 %v2674
        %v2676 = vlaneseq
        %v2677 = vshrl.u32 %v2676, 7
        %v2678 = vsub.s32 %v2675, %v2677
        %v2679 = vrot.slane %v2665, %v2678
        %v2680 = vcombine.low %v2645, %v2653
        %v2681 = vcombine.high %v2645, %v2653
        %v2683 = vunpack.c.l.s4 1983009808
        %v2684 = vunpack.c.0.s8 %v2683
        %v2685 = vlaneseq
        %v2686 = vshrl.u32 %v2685, 7
        %v2687 = vsub.s32 %v2684, %v2686
        %v2688 = vrot.slane %v2680, %v2687
        %v2690 = vunpack.c.l.s4 1983009808
        %v2691 = vunpack.c.0.s8 %v2690
        %v2692 = vlaneseq
        %v2693 = vshrl.u32 %v2692, 7
        %v2694 = vsub.s32 %v2691, %v2693
        %v2695 = vrot.slane %v2681, %v2694
        %v2696 = vcombine.low %v2672, %v2688
        %v2697 = vcombine.high %v2672, %v2688
        %v2699 = vunpack.c.l.s4 1934713408
        %v2700 = vunpack.c.0.s8 %v2699
        %v2701 = vlaneseq
        %v2702 = vshrl.u32 %v2701, 7
        %v2703 = vsub.s32 %v2700, %v2702
        %v2704 = vrot.slane %v2696, %v2703
        %v2706 = vunpack.c.l.s4 1934713408
        %v2707 = vunpack.c.0.s8 %v2706
        %v2708 = vlaneseq
        %v2709 = vshrl.u32 %v2708, 7
        %v2710 = vsub.s32 %v2707, %v2709
        %v2711 = vrot.slane %v2697, %v2710
        %v2712 = vcombine.low %v2679, %v2695
        %v2713 = vcombine.high %v2679, %v2695
        %v2715 = vunpack.c.l.s4 1934713408
        %v2716 = vunpack.c.0.s8 %v2715
        %v2717 = vlaneseq
        %v2718 = vshrl.u32 %v2717, 7
        %v2719 = vsub.s32 %v2716, %v2718
        %v2720 = vrot.slane %v2712, %v2719
        %v2722 = vunpack.c.l.s4 1934713408
        %v2723 = vunpack.c.0.s8 %v2722
        %v2724 = vlaneseq
        %v2725 = vshrl.u32 %v2724, 7
        %v2726 = vsub.s32 %v2723, %v2725
        %v2727 = vrot.slane %v2713, %v2726
        %v2728 = vcombine.high %v2704, 0.0
        %v2729 = vcombine.high %v2711, 0.0
        %v2730 = vcombine.high %v2720, 0.0
        %v2731 = vcombine.high %v2727, 0.0
        %v2732 = vcombine.low %v2643, %v2651
        %v2733 = vcombine.high %v2643, %v2651
        %v2735 = vunpack.c.l.s4 1983009808
        %v2736 = vunpack.c.0.s8 %v2735
        %v2737 = vlaneseq
        %v2738 = vshrl.u32 %v2737, 7
        %v2739 = vsub.s32 %v2736, %v2738
        %v2740 = vrot.slane %v2732, %v2739
        %v2742 = vunpack.c.l.s4 1983009808
        %v2743 = vunpack.c.0.s8 %v2742
        %v2744 = vlaneseq
        %v2745 = vshrl.u32 %v2744, 7
        %v2746 = vsub.s32 %v2743, %v2745
        %v2747 = vrot.slane %v2733, %v2746
        %v2748 = vcombine.low %v2647, %v2655
        %v2749 = vcombine.high %v2647, %v2655
        %v2751 = vunpack.c.l.s4 1983009808
        %v2752 = vunpack.c.0.s8 %v2751
        %v2753 = vlaneseq
        %v2754 = vshrl.u32 %v2753, 7
        %v2755 = vsub.s32 %v2752, %v2754
        %v2756 = vrot.slane %v2748, %v2755
        %v2758 = vunpack.c.l.s4 1983009808
        %v2759 = vunpack.c.0.s8 %v2758
        %v2760 = vlaneseq
        %v2761 = vshrl.u32 %v2760, 7
        %v2762 = vsub.s32 %v2759, %v2761
        %v2763 = vrot.slane %v2749, %v2762
        %v2764 = vcombine.low %v2740, %v2756
        %v2765 = vcombine.high %v2740, %v2756
        %v2767 = vunpack.c.l.s4 1934713408
        %v2768 = vunpack.c.0.s8 %v2767
        %v2769 = vlaneseq
        %v2770 = vshrl.u32 %v2769, 7
        %v2771 = vsub.s32 %v2768, %v2770
        %v2772 = vrot.slane %v2764, %v2771
        %v2774 = vunpack.c.l.s4 1934713408
        %v2775 = vunpack.c.0.s8 %v2774
        %v2776 = vlaneseq
        %v2777 = vshrl.u32 %v2776, 7
        %v2778 = vsub.s32 %v2775, %v2777
        %v2779 = vrot.slane %v2765, %v2778
        %v2780 = vcombine.low %v2747, %v2763
        %v2781 = vcombine.high %v2747, %v2763
        %v2783 = vunpack.c.l.s4 1934713408
        %v2784 = vunpack.c.0.s8 %v2783
        %v2785 = vlaneseq
        %v2786 = vshrl.u32 %v2785, 7
        %v2787 = vsub.s32 %v2784, %v2786
        %v2788 = vrot.slane %v2780, %v2787
        %v2790 = vunpack.c.l.s4 1934713408
        %v2791 = vunpack.c.0.s8 %v2790
        %v2792 = vlaneseq
        %v2793 = vshrl.u32 %v2792, 7
        %v2794 = vsub.s32 %v2791, %v2793
        %v2795 = vrot.slane %v2781, %v2794
        %v2796 = vcombine.high %v2772, 0.0
        %v2797 = vcombine.high %v2779, 0.0
        %v2798 = vcombine.high %v2788, 0.0
        %v2799 = vcombine.high %v2795, 0.0
        %2801 = vrot.lane.b32.xlu0 %v2728, 16
        %v2802 = vpop.permute.xlu0 %2801
        %2805 = vrot.lane.b32.xlu0 %v2711, 32
        %v2806 = vpop.permute.xlu0 %2805
        %2809 = vrot.lane.b32.xlu0 %v2729, 48
        %v2810 = vpop.permute.xlu0 %2809
        %2813 = vrot.lane.b32.xlu0 %v2720, 64
        %v2814 = vpop.permute.xlu0 %2813
        %2817 = vrot.lane.b32.xlu0 %v2730, 80
        %v2818 = vpop.permute.xlu0 %2817
        %2821 = vrot.lane.b32.xlu0 %v2727, 96
        %v2822 = vpop.permute.xlu0 %2821
        %2825 = vrot.lane.b32.xlu0 %v2731, 112
        %v2826 = vpop.permute.xlu0 %2825
        %2829 = vrot.lane.b32.xlu0 %v2796, 16
        %v2830 = vpop.permute.xlu0 %2829
        %2833 = vrot.lane.b32.xlu0 %v2779, 32
        %v2834 = vpop.permute.xlu0 %2833
        %2837 = vrot.lane.b32.xlu0 %v2797, 48
        %v2838 = vpop.permute.xlu0 %2837
        %2841 = vrot.lane.b32.xlu0 %v2788, 64
        %v2842 = vpop.permute.xlu0 %2841
        %2845 = vrot.lane.b32.xlu0 %v2798, 80
        %v2846 = vpop.permute.xlu0 %2845
        %2849 = vrot.lane.b32.xlu0 %v2795, 96
        %v2850 = vpop.permute.xlu0 %2849
        %2853 = vrot.lane.b32.xlu0 %v2799, 112
        %v2854 = vpop.permute.xlu0 %2853
        %v2856 = vsel %vm987, %v2704, %v2802
        %v2857 = vsel %vm989, %v2856, %v2806
        %v2858 = vsel %vm991, %v2857, %v2810
        %v2859 = vsel %vm993, %v2858, %v2814
        %v2860 = vsel %vm995, %v2859, %v2818
        %v2861 = vsel %vm997, %v2860, %v2822
        %v2862 = vsel %vm999, %v2861, %v2826
        %v2863 = vsel %vm987, %v2772, %v2830
        %v2864 = vsel %vm989, %v2863, %v2834
        %v2865 = vsel %vm991, %v2864, %v2838
        %v2866 = vsel %vm993, %v2865, %v2842
        %v2867 = vsel %vm995, %v2866, %v2846
        %v2868 = vsel %vm997, %v2867, %v2850
        %v2869 = vsel %vm999, %v2868, %v2854
        %v2872 = vrot.slane %v1238, 4
        %v2873 = vrot.slane %v1245, 4
        %v2878 = vrot.slane %v1707, 4
        %v2879 = vrot.slane %v1714, 4
        %v2884 = vrot.slane %v2167, 4
        %v2885 = vrot.slane %v2174, 4
        %v2890 = vrot.slane %v2632, 4
        %v2891 = vrot.slane %v2639, 4
        %vm2894 = vcmask 1043456
        %v2895 = vsel %vm2894, %v1000, %v2872
        %v2896 = vsel %vm2894, %v1007, %v2873
        %v2897 = vsel %vm2894, %v1468, %v2878
        %v2898 = vsel %vm2894, %v1475, %v2879
        %v2899 = vsel %vm2894, %v1937, %v2884
        %v2900 = vsel %vm2894, %v1944, %v2885
        %v2901 = vsel %vm2894, %v2402, %v2890
        %v2902 = vsel %vm2894, %v2409, %v2891
        %v2903 = vld [vmem:[%s3] sm:$0xff]
        %vm2904 = vcmask 293888
        %v2906 = vsel %vm2904, %v2903, 0
        %v2909 = vsel %vm2894, %v2862, 0
        %v2912 = vsel %vm2894, %v2869, 0
        %2914 = vmatprep.subr.mxu0 %v2896
        %2915 = vmatpush1.msra.mxu0 %v2895
        %2916 = vmatprep.subr.mxu0 %v2898
        %2917 = vmatpush1.msra.mxu0 %v2897
        %2918 = vmatprep.subr.mxu0 %v2900
        %2919 = vmatpush1.msra.mxu0 %v2899
        %2920 = vmatprep.subr.mxu0 %v2902
        %2921 = vmatpush1.msra.mxu0 %v2901
        %2922 = vmatprep.subr.mxu0 %v2912
        %2923 = vmatpush1.msra.mxu0 %v2909
        %2924 = vmatprep.subr.mxu0 0.0
        %2925 = vmatpush1.msra.mxu0 0.0
        %2926 = vmatprep.subr.mxu0 0.0
        %2927 = vmatpush1.msra.mxu0 0.0
        %2928 = vmatprep.subr.mxu0 0.0
        %2929 = vmatpush1.msra.mxu0 0.0
        %2930 = vmatprep.subr.mxu0 0.0
        %2931 = vmatpush1.msra.mxu0 0.0
        %2932 = vmatprep.subr.mxu0 0.0
        %2933 = vmatpush1.msra.mxu0 0.0
        %2934 = vmatprep.subr.mxu0 0.0
        %2935 = vmatpush1.msra.mxu0 0.0
        %2936 = vmatprep.subr.mxu0 0.0
        %2937 = vmatpush1.msra.mxu0 0.0
        %2938 = vmatprep.subr.mxu0 0.0
        %2939 = vmatpush1.msra.mxu0 0.0
        %2940 = vmatprep.subr.mxu0 0.0
        %2941 = vmatpush1.msra.mxu0 0.0
        %2942 = vmatprep.subr.mxu0 0.0
        %2943 = vmatpush1.msra.mxu0 0.0
        %2944 = vmatprep.subr.mxu0 0.0
        %2945 = vmatpush1.msra.mxu0 0.0
        %2946 = vmatprep.subr.mxu0 0.0
        %2947 = vmatpush1.msra.mxu0 0.0
        %2948 = vmatprep.subr.mxu0 0.0
        %2949 = vmatpush1.msra.mxu0 0.0
        %2950 = vmatprep.subr.mxu0 0.0
        %2951 = vmatpush1.msra.mxu0 0.0
        %2952 = vmatprep.subr.mxu0 0.0
        %2953 = vmatpush1.msra.mxu0 0.0
        %2954 = vmatprep.subr.mxu0 0.0
        %2955 = vmatpush1.msra.mxu0 0.0
        %2956 = vmatprep.subr.mxu0 0.0
        %2957 = vmatpush1.msra.mxu0 0.0
        %2958 = vmatprep.subr.mxu0 0.0
        %2959 = vmatpush1.msra.mxu0 0.0
        %2960 = vmatprep.subr.mxu0 0.0
        %2961 = vmatpush1.msra.mxu0 0.0
        %2962 = vmatprep.subr.mxu0 0.0
        %2963 = vmatpush1.msra.mxu0 0.0
        %2964 = vmatprep.subr.mxu0 0.0
        %2965 = vmatpush1.msra.mxu0 0.0
        %2966 = vmatprep.subr.mxu0 0.0
        %2967 = vmatpush1.msra.mxu0 0.0
        %2968 = vmatprep.subr.mxu0 0.0
        %2969 = vmatpush1.msra.mxu0 0.0
        %2970 = vmatprep.subr.mxu0 0.0
        %2971 = vmatpush1.msra.mxu0 0.0
        %2972 = vmatprep.subr.mxu0 0.0
        %2973 = vmatpush1.msra.mxu0 0.0
        %2974 = vmatprep.subr.mxu0 0.0
        %2975 = vmatpush1.msra.mxu0 0.0
        %2976 = vmatprep.subr.mxu0 0.0
        %2977 = vmatpush1.msra.mxu0 0.0
        %2978 = vmatprep.mubr.f32.mxu0 0.0
        %2979 = vmatmul.mubr.f32.gmra.mrb[0].mxu0 %v2906
        %v2980 = vpop.f32.mrb[0].mxu0
        %v2981 = vadd.f32 0.0, %v2980
        %v2982 = vpop.f32.mrb[0].mxu0
        %v2983 = vadd.f32 0.0, %v2982
        %2984 = vdwg.mxu0
        %v2985 = vld [vmem:[%s7] sm:$0xff]
        %v2986 = vld [vmem:[%s7 + $0x8] sm:$0xff]
        %v2987 = vld [vmem:[%s7 + $0x10] sm:$0xff]
        %v2988 = vld [vmem:[%s7 + $0x18] sm:$0xff]
        %v2989 = vld [vmem:[%s7 + $0x20] sm:$0xff]
        %v2990 = vld [vmem:[%s7 + $0x28] sm:$0xff]
        %v2991 = vld [vmem:[%s7 + $0x30] sm:$0xff]
        %v2992 = vld [vmem:[%s7 + $0x38] sm:$0xff]
        %v2993 = vld [vmem:[%s7 + $0x40] sm:$0xff]
        %v2994 = vld [vmem:[%s7 + $0x48] sm:$0xff]
        %v2995 = vld [vmem:[%s7 + $0x50] sm:$0xff]
        %v2996 = vld [vmem:[%s7 + $0x58] sm:$0xff]
        %v2997 = vld [vmem:[%s7 + $0x60] sm:$0xff]
        %v2998 = vld [vmem:[%s7 + $0x68] sm:$0xff]
        %v2999 = vld [vmem:[%s7 + $0x70] sm:$0xff]
        %v3000 = vld [vmem:[%s7 + $0x78] sm:$0xff]
        %v3001 = vld [vmem:[%s7 + $0x80] sm:$0xff]
        %v3002 = vld [vmem:[%s7 + $0x88] sm:$0xff]
        %v3003 = vld [vmem:[%s7 + $0x90] sm:$0xff]
        %v3004 = vld [vmem:[%s7 + $0x98] sm:$0xff]
        %v3005 = vld [vmem:[%s7 + $0xa0] sm:$0xff]
        %v3006 = vld [vmem:[%s7 + $0xa8] sm:$0xff]
        %v3007 = vld [vmem:[%s7 + $0xb0] sm:$0xff]
        %v3008 = vld [vmem:[%s7 + $0xb8] sm:$0xff]
        %v3009 = vld [vmem:[%s7 + $0xc0] sm:$0xff]
        %v3010 = vld [vmem:[%s7 + $0xc8] sm:$0xff]
        %v3011 = vld [vmem:[%s7 + $0xd0] sm:$0xff]
        %v3012 = vld [vmem:[%s7 + $0xd8] sm:$0xff]
        %v3013 = vld [vmem:[%s7 + $0xe0] sm:$0xff]
        %v3014 = vld [vmem:[%s7 + $0xe8] sm:$0xff]
        %v3015 = vld [vmem:[%s7 + $0xf0] sm:$0xff]
        %v3016 = vld [vmem:[%s7 + $0xf8] sm:$0xff]
        %3017 = vmatprep.subr.mxu0 0.0
        %3018 = vmatpush1.msra.mxu0 %v2985
        %3019 = vmatprep.subr.mxu0 0.0
        %3020 = vmatpush1.msra.mxu0 %v2986
        %3021 = vmatprep.subr.mxu0 0.0
        %3022 = vmatpush1.msra.mxu0 %v2987
        %3023 = vmatprep.subr.mxu0 0.0
        %3024 = vmatpush1.msra.mxu0 %v2988
        %3025 = vmatprep.subr.mxu0 0.0
        %3026 = vmatpush1.msra.mxu0 %v2989
        %3027 = vmatprep.subr.mxu0 0.0
        %3028 = vmatpush1.msra.mxu0 %v2990
        %3029 = vmatprep.subr.mxu0 0.0
        %3030 = vmatpush1.msra.mxu0 %v2991
        %3031 = vmatprep.subr.mxu0 0.0
        %3032 = vmatpush1.msra.mxu0 %v2992
        %3033 = vmatprep.subr.mxu0 0.0
        %3034 = vmatpush1.msra.mxu0 %v2993
        %3035 = vmatprep.subr.mxu0 0.0
        %3036 = vmatpush1.msra.mxu0 %v2994
        %3037 = vmatprep.subr.mxu0 0.0
        %3038 = vmatpush1.msra.mxu0 %v2995
        %3039 = vmatprep.subr.mxu0 0.0
        %3040 = vmatpush1.msra.mxu0 %v2996
        %3041 = vmatprep.subr.mxu0 0.0
        %3042 = vmatpush1.msra.mxu0 %v2997
        %3043 = vmatprep.subr.mxu0 0.0
        %3044 = vmatpush1.msra.mxu0 %v2998
        %3045 = vmatprep.subr.mxu0 0.0
        %3046 = vmatpush1.msra.mxu0 %v2999
        %3047 = vmatprep.subr.mxu0 0.0
        %3048 = vmatpush1.msra.mxu0 %v3000
        %3049 = vmatprep.subr.mxu0 0.0
        %3050 = vmatpush1.msra.mxu0 %v3001
        %3051 = vmatprep.subr.mxu0 0.0
        %3052 = vmatpush1.msra.mxu0 %v3002
        %3053 = vmatprep.subr.mxu0 0.0
        %3054 = vmatpush1.msra.mxu0 %v3003
        %3055 = vmatprep.subr.mxu0 0.0
        %3056 = vmatpush1.msra.mxu0 %v3004
        %3057 = vmatprep.subr.mxu0 0.0
        %3058 = vmatpush1.msra.mxu0 %v3005
        %3059 = vmatprep.subr.mxu0 0.0
        %3060 = vmatpush1.msra.mxu0 %v3006
        %3061 = vmatprep.subr.mxu0 0.0
        %3062 = vmatpush1.msra.mxu0 %v3007
        %3063 = vmatprep.subr.mxu0 0.0
        %3064 = vmatpush1.msra.mxu0 %v3008
        %3065 = vmatprep.subr.mxu0 0.0
        %3066 = vmatpush1.msra.mxu0 %v3009
        %3067 = vmatprep.subr.mxu0 0.0
        %3068 = vmatpush1.msra.mxu0 %v3010
        %3069 = vmatprep.subr.mxu0 0.0
        %3070 = vmatpush1.msra.mxu0 %v3011
        %3071 = vmatprep.subr.mxu0 0.0
        %3072 = vmatpush1.msra.mxu0 %v3012
        %3073 = vmatprep.subr.mxu0 0.0
        %3074 = vmatpush1.msra.mxu0 %v3013
        %3075 = vmatprep.subr.mxu0 0.0
        %3076 = vmatpush1.msra.mxu0 %v3014
        %3077 = vmatprep.subr.mxu0 0.0
        %3078 = vmatpush1.msra.mxu0 %v3015
        %3079 = vmatprep.subr.mxu0 0.0
        %3080 = vmatpush1.msra.mxu0 %v3016
        %3081 = vmatprep.mubr.f32.mxu0 %v2983
        %3082 = vmatmul.mubr.f32.gmra.mrb[0].mxu0 %v2981
        %v3083 = vpop.f32.mrb[0].mxu0
        %v3084 = vadd.f32 0.0, %v3083
        %v3085 = vpop.f32.mrb[0].mxu0
        %3086 = vdwg.mxu0
        %v3087 = vcombine.high %v497, %v497
        %3089 = vmatprep.subr.mxu0 0.0
        %3090 = vmatpush1.msra.mxu0 %v2985
        %3091 = vmatprep.subr.mxu0 0.0
        %3092 = vmatpush1.msra.mxu0 %v2986
        %3093 = vmatprep.subr.mxu0 0.0
        %3094 = vmatpush1.msra.mxu0 %v2987
        %3095 = vmatprep.subr.mxu0 0.0
        %3096 = vmatpush1.msra.mxu0 %v2988
        %3097 = vmatprep.subr.mxu0 0.0
        %3098 = vmatpush1.msra.mxu0 %v2989
        %3099 = vmatprep.subr.mxu0 0.0
        %3100 = vmatpush1.msra.mxu0 %v2990
        %3101 = vmatprep.subr.mxu0 0.0
        %3102 = vmatpush1.msra.mxu0 %v2991
        %3103 = vmatprep.subr.mxu0 0.0
        %3104 = vmatpush1.msra.mxu0 %v2992
        %3105 = vmatprep.subr.mxu0 0.0
        %3106 = vmatpush1.msra.mxu0 %v2993
        %3107 = vmatprep.subr.mxu0 0.0
        %3108 = vmatpush1.msra.mxu0 %v2994
        %3109 = vmatprep.subr.mxu0 0.0
        %3110 = vmatpush1.msra.mxu0 %v2995
        %3111 = vmatprep.subr.mxu0 0.0
        %3112 = vmatpush1.msra.mxu0 %v2996
        %3113 = vmatprep.subr.mxu0 0.0
        %3114 = vmatpush1.msra.mxu0 %v2997
        %3115 = vmatprep.subr.mxu0 0.0
        %3116 = vmatpush1.msra.mxu0 %v2998
        %3117 = vmatprep.subr.mxu0 0.0
        %3118 = vmatpush1.msra.mxu0 %v2999
        %3119 = vmatprep.subr.mxu0 0.0
        %3120 = vmatpush1.msra.mxu0 %v3000
        %3121 = vmatprep.subr.mxu0 0.0
        %3122 = vmatpush1.msra.mxu0 %v3001
        %3123 = vmatprep.subr.mxu0 0.0
        %3124 = vmatpush1.msra.mxu0 %v3002
        %3125 = vmatprep.subr.mxu0 0.0
        %3126 = vmatpush1.msra.mxu0 %v3003
        %3127 = vmatprep.subr.mxu0 0.0
        %3128 = vmatpush1.msra.mxu0 %v3004
        %3129 = vmatprep.subr.mxu0 0.0
        %3130 = vmatpush1.msra.mxu0 %v3005
        %3131 = vmatprep.subr.mxu0 0.0
        %3132 = vmatpush1.msra.mxu0 %v3006
        %3133 = vmatprep.subr.mxu0 0.0
        %3134 = vmatpush1.msra.mxu0 %v3007
        %3135 = vmatprep.subr.mxu0 0.0
        %3136 = vmatpush1.msra.mxu0 %v3008
        %3137 = vmatprep.subr.mxu0 0.0
        %3138 = vmatpush1.msra.mxu0 %v3009
        %3139 = vmatprep.subr.mxu0 0.0
        %3140 = vmatpush1.msra.mxu0 %v3010
        %3141 = vmatprep.subr.mxu0 0.0
        %3142 = vmatpush1.msra.mxu0 %v3011
        %3143 = vmatprep.subr.mxu0 0.0
        %3144 = vmatpush1.msra.mxu0 %v3012
        %3145 = vmatprep.subr.mxu0 0.0
        %3146 = vmatpush1.msra.mxu0 %v3013
        %3147 = vmatprep.subr.mxu0 0.0
        %3148 = vmatpush1.msra.mxu0 %v3014
        %3149 = vmatprep.subr.mxu0 0.0
        %3150 = vmatpush1.msra.mxu0 %v3015
        %3151 = vmatprep.subr.mxu0 0.0
        %3152 = vmatpush1.msra.mxu0 %v3016
        %3153 = vmatprep.mubr.f32.mxu0 %v3087
        %3154 = vmatmul.mubr.f32.gmra.mrb[0].mxu0 %v497
        %v3155 = vpop.f32.mrb[0].mxu0
        %v3156 = vadd.f32 0.0, %v3155
        %v3157 = vpop.f32.mrb[0].mxu0
        %3158 = vdwg.mxu0
        %v3159 = vld [vmem:[%s4] sm:$0xff]
        %3161 = vset.pattern.permute.xlu0 0
        %3162 = vperm.xlu0 %3161, %v3159
        %v3163 = vpop.permute.xlu0 %3162
        %v3165 = vmul.f32 %v3084, %v3163
        %v3166 = vld [vmem:[%s5] sm:$0xff]
        %3168 = vset.pattern.permute.xlu0 0
        %3169 = vperm.xlu0 %3168, %v3166
        %v3170 = vpop.permute.xlu0 %3169
        %v3172 = vadd.f32 %v3165, %v3170
        %vm3173 = vcmp.gt.f32.partialorder %v3172, 0.0
        %v3174 = vmul.f32 %v3172, 0.1
        %v3175 = vsel %vm3173, %v3172, %v3174
        %3177 = vrot.lane.b32.xlu0 %v3175, 120
        %v3178 = vpop.permute.xlu0 %3177
        %3180 = vrot.lane.b32.xlu0 %v3175, 112
        %v3181 = vpop.permute.xlu0 %3180
        %3183 = vrot.lane.b32.xlu0 %v3175, 104
        %v3184 = vpop.permute.xlu0 %3183
        %3186 = vrot.lane.b32.xlu0 %v3175, 96
        %v3187 = vpop.permute.xlu0 %3186
        %3189 = vrot.lane.b32.xlu0 %v3175, 88
        %v3190 = vpop.permute.xlu0 %3189
        %3192 = vrot.lane.b32.xlu0 %v3175, 80
        %v3193 = vpop.permute.xlu0 %3192
        %3195 = vrot.lane.b32.xlu0 %v3175, 72
        %v3196 = vpop.permute.xlu0 %3195
        %v3198 = vcombine.low %v3175, %v3181
        %v3199 = vcombine.high %v3175, %v3181
        %v3201 = vunpack.c.l.s4 1983009808
        %v3202 = vunpack.c.0.s8 %v3201
        %v3203 = vlaneseq
        %v3204 = vshrl.u32 %v3203, 7
        %v3205 = vsub.s32 %v3202, %v3204
        %v3206 = vrot.slane %v3198, %v3205
        %v3208 = vunpack.c.l.s4 1983009808
        %v3209 = vunpack.c.0.s8 %v3208
        %v3210 = vlaneseq
        %v3211 = vshrl.u32 %v3210, 7
        %v3212 = vsub.s32 %v3209, %v3211
        %v3213 = vrot.slane %v3199, %v3212
        %v3214 = vcombine.low %v3178, %v3184
        %v3215 = vcombine.high %v3178, %v3184
        %v3217 = vunpack.c.l.s4 1983009808
        %v3218 = vunpack.c.0.s8 %v3217
        %v3219 = vlaneseq
        %v3220 = vshrl.u32 %v3219, 7
        %v3221 = vsub.s32 %v3218, %v3220
        %v3222 = vrot.slane %v3214, %v3221
        %v3224 = vunpack.c.l.s4 1983009808
        %v3225 = vunpack.c.0.s8 %v3224
        %v3226 = vlaneseq
        %v3227 = vshrl.u32 %v3226, 7
        %v3228 = vsub.s32 %v3225, %v3227
        %v3229 = vrot.slane %v3215, %v3228
        %v3230 = vcombine.low %v3187, %v3193
        %v3231 = vcombine.high %v3187, %v3193
        %v3233 = vunpack.c.l.s4 1983009808
        %v3234 = vunpack.c.0.s8 %v3233
        %v3235 = vlaneseq
        %v3236 = vshrl.u32 %v3235, 7
        %v3237 = vsub.s32 %v3234, %v3236
        %v3238 = vrot.slane %v3230, %v3237
        %v3240 = vunpack.c.l.s4 1983009808
        %v3241 = vunpack.c.0.s8 %v3240
        %v3242 = vlaneseq
        %v3243 = vshrl.u32 %v3242, 7
        %v3244 = vsub.s32 %v3241, %v3243
        %v3245 = vrot.slane %v3231, %v3244
        %v3246 = vcombine.low %v3190, %v3196
        %v3247 = vcombine.high %v3190, %v3196
        %v3249 = vunpack.c.l.s4 1983009808
        %v3250 = vunpack.c.0.s8 %v3249
        %v3251 = vlaneseq
        %v3252 = vshrl.u32 %v3251, 7
        %v3253 = vsub.s32 %v3250, %v3252
        %v3254 = vrot.slane %v3246, %v3253
        %v3256 = vunpack.c.l.s4 1983009808
        %v3257 = vunpack.c.0.s8 %v3256
        %v3258 = vlaneseq
        %v3259 = vshrl.u32 %v3258, 7
        %v3260 = vsub.s32 %v3257, %v3259
        %v3261 = vrot.slane %v3247, %v3260
        %v3262 = vcombine.low %v3206, %v3222
        %v3263 = vcombine.high %v3206, %v3222
        %v3265 = vunpack.c.l.s4 1934713408
        %v3266 = vunpack.c.0.s8 %v3265
        %v3267 = vlaneseq
        %v3268 = vshrl.u32 %v3267, 7
        %v3269 = vsub.s32 %v3266, %v3268
        %v3270 = vrot.slane %v3262, %v3269
        %v3272 = vunpack.c.l.s4 1934713408
        %v3273 = vunpack.c.0.s8 %v3272
        %v3274 = vlaneseq
        %v3275 = vshrl.u32 %v3274, 7
        %v3276 = vsub.s32 %v3273, %v3275
        %v3277 = vrot.slane %v3263, %v3276
        %v3278 = vcombine.low %v3213, %v3229
        %v3279 = vcombine.high %v3213, %v3229
        %v3281 = vunpack.c.l.s4 1934713408
        %v3282 = vunpack.c.0.s8 %v3281
        %v3283 = vlaneseq
        %v3284 = vshrl.u32 %v3283, 7
        %v3285 = vsub.s32 %v3282, %v3284
        %v3286 = vrot.slane %v3278, %v3285
        %v3288 = vunpack.c.l.s4 1934713408
        %v3289 = vunpack.c.0.s8 %v3288
        %v3290 = vlaneseq
        %v3291 = vshrl.u32 %v3290, 7
        %v3292 = vsub.s32 %v3289, %v3291
        %v3293 = vrot.slane %v3279, %v3292
        %v3294 = vcombine.low %v3238, %v3254
        %v3295 = vcombine.high %v3238, %v3254
        %v3297 = vunpack.c.l.s4 1934713408
        %v3298 = vunpack.c.0.s8 %v3297
        %v3299 = vlaneseq
        %v3300 = vshrl.u32 %v3299, 7
        %v3301 = vsub.s32 %v3298, %v3300
        %v3302 = vrot.slane %v3294, %v3301
        %v3304 = vunpack.c.l.s4 1934713408
        %v3305 = vunpack.c.0.s8 %v3304
        %v3306 = vlaneseq
        %v3307 = vshrl.u32 %v3306, 7
        %v3308 = vsub.s32 %v3305, %v3307
        %v3309 = vrot.slane %v3295, %v3308
        %v3310 = vcombine.low %v3245, %v3261
        %v3311 = vcombine.high %v3245, %v3261
        %v3313 = vunpack.c.l.s4 1934713408
        %v3314 = vunpack.c.0.s8 %v3313
        %v3315 = vlaneseq
        %v3316 = vshrl.u32 %v3315, 7
        %v3317 = vsub.s32 %v3314, %v3316
        %v3318 = vrot.slane %v3310, %v3317
        %v3320 = vunpack.c.l.s4 1934713408
        %v3321 = vunpack.c.0.s8 %v3320
        %v3322 = vlaneseq
        %v3323 = vshrl.u32 %v3322, 7
        %v3324 = vsub.s32 %v3321, %v3323
        %v3325 = vrot.slane %v3311, %v3324
        %v3326 = vcombine.low %v3270, %v3302
        %v3327 = vcombine.high %v3270, %v3302
        %v3328 = vcombine.low %v3277, %v3309
        %v3329 = vcombine.high %v3277, %v3309
        %v3330 = vcombine.low %v3286, %v3318
        %v3331 = vcombine.high %v3286, %v3318
        %v3332 = vcombine.low %v3293, %v3325
        %v3333 = vcombine.high %v3293, %v3325
        %v3342 = vrot.slane %v3326, 7
        %v3343 = vrot.slane %v3327, 7
        %v3344 = vrot.slane %v3328, 7
        %v3345 = vrot.slane %v3329, 7
        %v3346 = vrot.slane %v3330, 7
        %v3347 = vrot.slane %v3331, 7
        %v3348 = vrot.slane %v3332, 7
        %v3349 = vrot.slane %v3333, 7
        %v3358 = vsel %vm696, 0.0, %v3342
        %v3359 = vsel %vm696, 0.0, %v3343
        %v3360 = vsel %vm696, 0.0, %v3344
        %v3361 = vsel %vm696, 0.0, %v3345
        %v3362 = vsel %vm696, 0.0, %v3346
        %v3363 = vsel %vm696, 0.0, %v3347
        %v3364 = vsel %vm696, 0.0, %v3348
        %v3365 = vsel %vm696, 0.0, %v3349
        %v3366 = vsel %vm696, %v3342, 0.0
        %v3367 = vsel %vm696, %v3343, 0.0
        %v3368 = vsel %vm696, %v3344, 0.0
        %v3369 = vsel %vm696, %v3345, 0.0
        %v3370 = vsel %vm696, %v3346, 0.0
        %v3371 = vsel %vm696, %v3347, 0.0
        %v3372 = vsel %vm696, %v3348, 0.0
        %v3373 = vsel %vm696, %v3349, 0.0
        %3390 = vrot.lane.b32.xlu0 %v3358, 1
        %v3391 = vpop.permute.xlu0 %3390
        %3392 = vrot.lane.b32.xlu0 %v3366, 1
        %v3393 = vpop.permute.xlu0 %3392
        %3394 = vrot.lane.b32.xlu0 %v3359, 1
        %v3395 = vpop.permute.xlu0 %3394
        %3396 = vrot.lane.b32.xlu0 %v3367, 1
        %v3397 = vpop.permute.xlu0 %3396
        %3398 = vrot.lane.b32.xlu0 %v3360, 1
        %v3399 = vpop.permute.xlu0 %3398
        %3400 = vrot.lane.b32.xlu0 %v3368, 1
        %v3401 = vpop.permute.xlu0 %3400
        %3402 = vrot.lane.b32.xlu0 %v3361, 1
        %v3403 = vpop.permute.xlu0 %3402
        %3404 = vrot.lane.b32.xlu0 %v3369, 1
        %v3405 = vpop.permute.xlu0 %3404
        %3406 = vrot.lane.b32.xlu0 %v3362, 1
        %v3407 = vpop.permute.xlu0 %3406
        %3408 = vrot.lane.b32.xlu0 %v3370, 1
        %v3409 = vpop.permute.xlu0 %3408
        %3410 = vrot.lane.b32.xlu0 %v3363, 1
        %v3411 = vpop.permute.xlu0 %3410
        %3412 = vrot.lane.b32.xlu0 %v3371, 1
        %v3413 = vpop.permute.xlu0 %3412
        %3414 = vrot.lane.b32.xlu0 %v3364, 1
        %v3415 = vpop.permute.xlu0 %3414
        %3416 = vrot.lane.b32.xlu0 %v3372, 1
        %v3417 = vpop.permute.xlu0 %3416
        %3418 = vrot.lane.b32.xlu0 %v3365, 1
        %v3419 = vpop.permute.xlu0 %3418
        %3420 = vrot.lane.b32.xlu0 %v3373, 1
        %v3421 = vpop.permute.xlu0 %3420
        %v3438 = vsel %vm769, 0.0, %v3391
        %v3439 = vsel %vm769, 0.0, %v3393
        %v3440 = vsel %vm769, 0.0, %v3395
        %v3441 = vsel %vm769, 0.0, %v3397
        %v3442 = vsel %vm769, 0.0, %v3399
        %v3443 = vsel %vm769, 0.0, %v3401
        %v3444 = vsel %vm769, 0.0, %v3403
        %v3445 = vsel %vm769, 0.0, %v3405
        %v3446 = vsel %vm769, 0.0, %v3407
        %v3447 = vsel %vm769, 0.0, %v3409
        %v3448 = vsel %vm769, 0.0, %v3411
        %v3449 = vsel %vm769, 0.0, %v3413
        %v3450 = vsel %vm769, 0.0, %v3415
        %v3451 = vsel %vm769, 0.0, %v3417
        %v3452 = vsel %vm769, 0.0, %v3419
        %v3453 = vsel %vm769, 0.0, %v3421
        %vm3454 = vcmask 72704
        %v3455 = vsel %vm3454, %v3438, 0.0
        %v3456 = vsel %vm3454, %v3439, 0.0
        %v3457 = vsel %vm3454, %v3440, 0.0
        %v3458 = vsel %vm3454, %v3441, 0.0
        %v3459 = vsel %vm3454, %v3442, 0.0
        %v3460 = vsel %vm3454, %v3443, 0.0
        %v3461 = vsel %vm3454, %v3444, 0.0
        %v3462 = vsel %vm3454, %v3445, 0.0
        %v3463 = vsel %vm3454, %v3446, 0.0
        %v3464 = vsel %vm3454, %v3447, 0.0
        %v3465 = vsel %vm3454, %v3448, 0.0
        %v3466 = vsel %vm3454, %v3449, 0.0
        %v3467 = vsel %vm3454, %v3450, 0.0
        %v3468 = vsel %vm3454, %v3451, 0.0
        %v3469 = vsel %vm3454, %v3452, 0.0
        %v3470 = vsel %vm3454, %v3453, 0.0
        %v3471 = vcombine.low %v3455, %v3459
        %v3472 = vcombine.high %v3455, %v3459
        %v3474 = vunpack.c.l.s4 1983009808
        %v3475 = vunpack.c.0.s8 %v3474
        %v3476 = vlaneseq
        %v3477 = vshrl.u32 %v3476, 7
        %v3478 = vsub.s32 %v3475, %v3477
        %v3479 = vrot.slane %v3471, %v3478
        %v3481 = vunpack.c.l.s4 1983009808
        %v3482 = vunpack.c.0.s8 %v3481
        %v3483 = vlaneseq
        %v3484 = vshrl.u32 %v3483, 7
        %v3485 = vsub.s32 %v3482, %v3484
        %v3486 = vrot.slane %v3472, %v3485
        %v3487 = vcombine.low %v3457, %v3461
        %v3488 = vcombine.high %v3457, %v3461
        %v3490 = vunpack.c.l.s4 1983009808
        %v3491 = vunpack.c.0.s8 %v3490
        %v3492 = vlaneseq
        %v3493 = vshrl.u32 %v3492, 7
        %v3494 = vsub.s32 %v3491, %v3493
        %v3495 = vrot.slane %v3487, %v3494
        %v3497 = vunpack.c.l.s4 1983009808
        %v3498 = vunpack.c.0.s8 %v3497
        %v3499 = vlaneseq
        %v3500 = vshrl.u32 %v3499, 7
        %v3501 = vsub.s32 %v3498, %v3500
        %v3502 = vrot.slane %v3488, %v3501
        %v3503 = vcombine.low %v3463, %v3467
        %v3504 = vcombine.high %v3463, %v3467
        %v3506 = vunpack.c.l.s4 1983009808
        %v3507 = vunpack.c.0.s8 %v3506
        %v3508 = vlaneseq
        %v3509 = vshrl.u32 %v3508, 7
        %v3510 = vsub.s32 %v3507, %v3509
        %v3511 = vrot.slane %v3503, %v3510
        %v3513 = vunpack.c.l.s4 1983009808
        %v3514 = vunpack.c.0.s8 %v3513
        %v3515 = vlaneseq
        %v3516 = vshrl.u32 %v3515, 7
        %v3517 = vsub.s32 %v3514, %v3516
        %v3518 = vrot.slane %v3504, %v3517
        %v3519 = vcombine.low %v3465, %v3469
        %v3520 = vcombine.high %v3465, %v3469
        %v3522 = vunpack.c.l.s4 1983009808
        %v3523 = vunpack.c.0.s8 %v3522
        %v3524 = vlaneseq
        %v3525 = vshrl.u32 %v3524, 7
        %v3526 = vsub.s32 %v3523, %v3525
        %v3527 = vrot.slane %v3519, %v3526
        %v3529 = vunpack.c.l.s4 1983009808
        %v3530 = vunpack.c.0.s8 %v3529
        %v3531 = vlaneseq
        %v3532 = vshrl.u32 %v3531, 7
        %v3533 = vsub.s32 %v3530, %v3532
        %v3534 = vrot.slane %v3520, %v3533
        %v3535 = vcombine.low %v3479, %v3495
        %v3536 = vcombine.high %v3479, %v3495
        %v3538 = vunpack.c.l.s4 1934713408
        %v3539 = vunpack.c.0.s8 %v3538
        %v3540 = vlaneseq
        %v3541 = vshrl.u32 %v3540, 7
        %v3542 = vsub.s32 %v3539, %v3541
        %v3543 = vrot.slane %v3535, %v3542
        %v3545 = vunpack.c.l.s4 1934713408
        %v3546 = vunpack.c.0.s8 %v3545
        %v3547 = vlaneseq
        %v3548 = vshrl.u32 %v3547, 7
        %v3549 = vsub.s32 %v3546, %v3548
        %v3550 = vrot.slane %v3536, %v3549
        %v3551 = vcombine.low %v3486, %v3502
        %v3552 = vcombine.high %v3486, %v3502
        %v3554 = vunpack.c.l.s4 1934713408
        %v3555 = vunpack.c.0.s8 %v3554
        %v3556 = vlaneseq
        %v3557 = vshrl.u32 %v3556, 7
        %v3558 = vsub.s32 %v3555, %v3557
        %v3559 = vrot.slane %v3551, %v3558
        %v3561 = vunpack.c.l.s4 1934713408
        %v3562 = vunpack.c.0.s8 %v3561
        %v3563 = vlaneseq
        %v3564 = vshrl.u32 %v3563, 7
        %v3565 = vsub.s32 %v3562, %v3564
        %v3566 = vrot.slane %v3552, %v3565
        %v3567 = vcombine.low %v3511, %v3527
        %v3568 = vcombine.high %v3511, %v3527
        %v3570 = vunpack.c.l.s4 1934713408
        %v3571 = vunpack.c.0.s8 %v3570
        %v3572 = vlaneseq
        %v3573 = vshrl.u32 %v3572, 7
        %v3574 = vsub.s32 %v3571, %v3573
        %v3575 = vrot.slane %v3567, %v3574
        %v3577 = vunpack.c.l.s4 1934713408
        %v3578 = vunpack.c.0.s8 %v3577
        %v3579 = vlaneseq
        %v3580 = vshrl.u32 %v3579, 7
        %v3581 = vsub.s32 %v3578, %v3580
        %v3582 = vrot.slane %v3568, %v3581
        %v3583 = vcombine.low %v3518, %v3534
        %v3584 = vcombine.high %v3518, %v3534
        %v3586 = vunpack.c.l.s4 1934713408
        %v3587 = vunpack.c.0.s8 %v3586
        %v3588 = vlaneseq
        %v3589 = vshrl.u32 %v3588, 7
        %v3590 = vsub.s32 %v3587, %v3589
        %v3591 = vrot.slane %v3583, %v3590
        %v3593 = vunpack.c.l.s4 1934713408
        %v3594 = vunpack.c.0.s8 %v3593
        %v3595 = vlaneseq
        %v3596 = vshrl.u32 %v3595, 7
        %v3597 = vsub.s32 %v3594, %v3596
        %v3598 = vrot.slane %v3584, %v3597
        %v3599 = vcombine.low %v3543, %v3575
        %v3600 = vcombine.high %v3543, %v3575
        %v3601 = vcombine.low %v3550, %v3582
        %v3602 = vcombine.high %v3550, %v3582
        %v3603 = vcombine.low %v3559, %v3591
        %v3604 = vcombine.high %v3559, %v3591
        %v3605 = vcombine.low %v3566, %v3598
        %v3606 = vcombine.high %v3566, %v3598
        %3608 = vrot.lane.b32.xlu0 %v3600, 8
        %v3609 = vpop.permute.xlu0 %3608
        %3612 = vrot.lane.b32.xlu0 %v3601, 16
        %v3613 = vpop.permute.xlu0 %3612
        %3616 = vrot.lane.b32.xlu0 %v3602, 24
        %v3617 = vpop.permute.xlu0 %3616
        %3620 = vrot.lane.b32.xlu0 %v3603, 32
        %v3621 = vpop.permute.xlu0 %3620
        %3624 = vrot.lane.b32.xlu0 %v3604, 40
        %v3625 = vpop.permute.xlu0 %3624
        %3628 = vrot.lane.b32.xlu0 %v3605, 48
        %v3629 = vpop.permute.xlu0 %3628
        %3632 = vrot.lane.b32.xlu0 %v3606, 56
        %v3633 = vpop.permute.xlu0 %3632
        %vm3635 = vcmask 64512
        %v3636 = vsel %vm3635, %v3599, %v3609
        %v3637 = vsel %vm987, %v3636, %v3613
        %vm3638 = vcmask 195584
        %v3639 = vsel %vm3638, %v3637, %v3617
        %v3640 = vsel %vm989, %v3639, %v3621
        %vm3641 = vcmask 326656
        %v3642 = vsel %vm3641, %v3640, %v3625
        %v3643 = vsel %vm991, %v3642, %v3629
        %vm3644 = vcmask 457728
        %v3645 = vsel %vm3644, %v3643, %v3633
        %3654 = vrot.lane.b32.xlu0 %v3455, 127
        %v3655 = vpop.permute.xlu0 %3654
        %3656 = vrot.lane.b32.xlu0 %v3457, 127
        %v3657 = vpop.permute.xlu0 %3656
        %3658 = vrot.lane.b32.xlu0 %v3459, 127
        %v3659 = vpop.permute.xlu0 %3658
        %3660 = vrot.lane.b32.xlu0 %v3461, 127
        %v3661 = vpop.permute.xlu0 %3660
        %3662 = vrot.lane.b32.xlu0 %v3463, 127
        %v3663 = vpop.permute.xlu0 %3662
        %3664 = vrot.lane.b32.xlu0 %v3465, 127
        %v3665 = vpop.permute.xlu0 %3664
        %3666 = vrot.lane.b32.xlu0 %v3467, 127
        %v3667 = vpop.permute.xlu0 %3666
        %3668 = vrot.lane.b32.xlu0 %v3469, 127
        %v3669 = vpop.permute.xlu0 %3668
        %v3678 = vcombine.low %v3655, %v3659
        %v3679 = vcombine.high %v3655, %v3659
        %v3681 = vunpack.c.l.s4 1983009808
        %v3682 = vunpack.c.0.s8 %v3681
        %v3683 = vlaneseq
        %v3684 = vshrl.u32 %v3683, 7
        %v3685 = vsub.s32 %v3682, %v3684
        %v3686 = vrot.slane %v3678, %v3685
        %v3688 = vunpack.c.l.s4 1983009808
        %v3689 = vunpack.c.0.s8 %v3688
        %v3690 = vlaneseq
        %v3691 = vshrl.u32 %v3690, 7
        %v3692 = vsub.s32 %v3689, %v3691
        %v3693 = vrot.slane %v3679, %v3692
        %v3694 = vcombine.low %v3657, %v3661
        %v3695 = vcombine.high %v3657, %v3661
        %v3697 = vunpack.c.l.s4 1983009808
        %v3698 = vunpack.c.0.s8 %v3697
        %v3699 = vlaneseq
        %v3700 = vshrl.u32 %v3699, 7
        %v3701 = vsub.s32 %v3698, %v3700
        %v3702 = vrot.slane %v3694, %v3701
        %v3704 = vunpack.c.l.s4 1983009808
        %v3705 = vunpack.c.0.s8 %v3704
        %v3706 = vlaneseq
        %v3707 = vshrl.u32 %v3706, 7
        %v3708 = vsub.s32 %v3705, %v3707
        %v3709 = vrot.slane %v3695, %v3708
        %v3710 = vcombine.low %v3663, %v3667
        %v3711 = vcombine.high %v3663, %v3667
        %v3713 = vunpack.c.l.s4 1983009808
        %v3714 = vunpack.c.0.s8 %v3713
        %v3715 = vlaneseq
        %v3716 = vshrl.u32 %v3715, 7
        %v3717 = vsub.s32 %v3714, %v3716
        %v3718 = vrot.slane %v3710, %v3717
        %v3720 = vunpack.c.l.s4 1983009808
        %v3721 = vunpack.c.0.s8 %v3720
        %v3722 = vlaneseq
        %v3723 = vshrl.u32 %v3722, 7
        %v3724 = vsub.s32 %v3721, %v3723
        %v3725 = vrot.slane %v3711, %v3724
        %v3726 = vcombine.low %v3665, %v3669
        %v3727 = vcombine.high %v3665, %v3669
        %v3729 = vunpack.c.l.s4 1983009808
        %v3730 = vunpack.c.0.s8 %v3729
        %v3731 = vlaneseq
        %v3732 = vshrl.u32 %v3731, 7
        %v3733 = vsub.s32 %v3730, %v3732
        %v3734 = vrot.slane %v3726, %v3733
        %v3736 = vunpack.c.l.s4 1983009808
        %v3737 = vunpack.c.0.s8 %v3736
        %v3738 = vlaneseq
        %v3739 = vshrl.u32 %v3738, 7
        %v3740 = vsub.s32 %v3737, %v3739
        %v3741 = vrot.slane %v3727, %v3740
        %v3742 = vcombine.low %v3686, %v3702
        %v3743 = vcombine.high %v3686, %v3702
        %v3745 = vunpack.c.l.s4 1934713408
        %v3746 = vunpack.c.0.s8 %v3745
        %v3747 = vlaneseq
        %v3748 = vshrl.u32 %v3747, 7
        %v3749 = vsub.s32 %v3746, %v3748
        %v3750 = vrot.slane %v3742, %v3749
        %v3752 = vunpack.c.l.s4 1934713408
        %v3753 = vunpack.c.0.s8 %v3752
        %v3754 = vlaneseq
        %v3755 = vshrl.u32 %v3754, 7
        %v3756 = vsub.s32 %v3753, %v3755
        %v3757 = vrot.slane %v3743, %v3756
        %v3758 = vcombine.low %v3693, %v3709
        %v3759 = vcombine.high %v3693, %v3709
        %v3761 = vunpack.c.l.s4 1934713408
        %v3762 = vunpack.c.0.s8 %v3761
        %v3763 = vlaneseq
        %v3764 = vshrl.u32 %v3763, 7
        %v3765 = vsub.s32 %v3762, %v3764
        %v3766 = vrot.slane %v3758, %v3765
        %v3768 = vunpack.c.l.s4 1934713408
        %v3769 = vunpack.c.0.s8 %v3768
        %v3770 = vlaneseq
        %v3771 = vshrl.u32 %v3770, 7
        %v3772 = vsub.s32 %v3769, %v3771
        %v3773 = vrot.slane %v3759, %v3772
        %v3774 = vcombine.low %v3718, %v3734
        %v3775 = vcombine.high %v3718, %v3734
        %v3777 = vunpack.c.l.s4 1934713408
        %v3778 = vunpack.c.0.s8 %v3777
        %v3779 = vlaneseq
        %v3780 = vshrl.u32 %v3779, 7
        %v3781 = vsub.s32 %v3778, %v3780
        %v3782 = vrot.slane %v3774, %v3781
        %v3784 = vunpack.c.l.s4 1934713408
        %v3785 = vunpack.c.0.s8 %v3784
        %v3786 = vlaneseq
        %v3787 = vshrl.u32 %v3786, 7
        %v3788 = vsub.s32 %v3785, %v3787
        %v3789 = vrot.slane %v3775, %v3788
        %v3790 = vcombine.low %v3725, %v3741
        %v3791 = vcombine.high %v3725, %v3741
        %v3793 = vunpack.c.l.s4 1934713408
        %v3794 = vunpack.c.0.s8 %v3793
        %v3795 = vlaneseq
        %v3796 = vshrl.u32 %v3795, 7
        %v3797 = vsub.s32 %v3794, %v3796
        %v3798 = vrot.slane %v3790, %v3797
        %v3800 = vunpack.c.l.s4 1934713408
        %v3801 = vunpack.c.0.s8 %v3800
        %v3802 = vlaneseq
        %v3803 = vshrl.u32 %v3802, 7
        %v3804 = vsub.s32 %v3801, %v3803
        %v3805 = vrot.slane %v3791, %v3804
        %v3806 = vcombine.low %v3750, %v3782
        %v3807 = vcombine.high %v3750, %v3782
        %v3808 = vcombine.low %v3757, %v3789
        %v3809 = vcombine.high %v3757, %v3789
        %v3810 = vcombine.low %v3766, %v3798
        %v3811 = vcombine.high %v3766, %v3798
        %v3812 = vcombine.low %v3773, %v3805
        %v3813 = vcombine.high %v3773, %v3805
        %3815 = vrot.lane.b32.xlu0 %v3807, 8
        %v3816 = vpop.permute.xlu0 %3815
        %3819 = vrot.lane.b32.xlu0 %v3808, 16
        %v3820 = vpop.permute.xlu0 %3819
        %3823 = vrot.lane.b32.xlu0 %v3809, 24
        %v3824 = vpop.permute.xlu0 %3823
        %3827 = vrot.lane.b32.xlu0 %v3810, 32
        %v3828 = vpop.permute.xlu0 %3827
        %3831 = vrot.lane.b32.xlu0 %v3811, 40
        %v3832 = vpop.permute.xlu0 %3831
        %3835 = vrot.lane.b32.xlu0 %v3812, 48
        %v3836 = vpop.permute.xlu0 %3835
        %3839 = vrot.lane.b32.xlu0 %v3813, 56
        %v3840 = vpop.permute.xlu0 %3839
        %v3842 = vsel %vm3635, %v3806, %v3816
        %v3843 = vsel %vm987, %v3842, %v3820
        %v3844 = vsel %vm3638, %v3843, %v3824
        %v3845 = vsel %vm989, %v3844, %v3828
        %v3846 = vsel %vm3641, %v3845, %v3832
        %v3847 = vsel %vm991, %v3846, %v3836
        %v3848 = vsel %vm3644, %v3847, %v3840
        %3849 = vrot.lane.b32.xlu0 %v3455, 126
        %v3850 = vpop.permute.xlu0 %3849
        %3851 = vrot.lane.b32.xlu0 %v3457, 126
        %v3852 = vpop.permute.xlu0 %3851
        %3853 = vrot.lane.b32.xlu0 %v3459, 126
        %v3854 = vpop.permute.xlu0 %3853
        %3855 = vrot.lane.b32.xlu0 %v3461, 126
        %v3856 = vpop.permute.xlu0 %3855
        %3857 = vrot.lane.b32.xlu0 %v3463, 126
        %v3858 = vpop.permute.xlu0 %3857
        %3859 = vrot.lane.b32.xlu0 %v3465, 126
        %v3860 = vpop.permute.xlu0 %3859
        %3861 = vrot.lane.b32.xlu0 %v3467, 126
        %v3862 = vpop.permute.xlu0 %3861
        %3863 = vrot.lane.b32.xlu0 %v3469, 126
        %v3864 = vpop.permute.xlu0 %3863
        %v3873 = vcombine.low %v3850, %v3854
        %v3874 = vcombine.high %v3850, %v3854
        %v3876 = vunpack.c.l.s4 1983009808
        %v3877 = vunpack.c.0.s8 %v3876
        %v3878 = vlaneseq
        %v3879 = vshrl.u32 %v3878, 7
        %v3880 = vsub.s32 %v3877, %v3879
        %v3881 = vrot.slane %v3873, %v3880
        %v3883 = vunpack.c.l.s4 1983009808
        %v3884 = vunpack.c.0.s8 %v3883
        %v3885 = vlaneseq
        %v3886 = vshrl.u32 %v3885, 7
        %v3887 = vsub.s32 %v3884, %v3886
        %v3888 = vrot.slane %v3874, %v3887
        %v3889 = vcombine.low %v3852, %v3856
        %v3890 = vcombine.high %v3852, %v3856
        %v3892 = vunpack.c.l.s4 1983009808
        %v3893 = vunpack.c.0.s8 %v3892
        %v3894 = vlaneseq
        %v3895 = vshrl.u32 %v3894, 7
        %v3896 = vsub.s32 %v3893, %v3895
        %v3897 = vrot.slane %v3889, %v3896
        %v3899 = vunpack.c.l.s4 1983009808
        %v3900 = vunpack.c.0.s8 %v3899
        %v3901 = vlaneseq
        %v3902 = vshrl.u32 %v3901, 7
        %v3903 = vsub.s32 %v3900, %v3902
        %v3904 = vrot.slane %v3890, %v3903
        %v3905 = vcombine.low %v3858, %v3862
        %v3906 = vcombine.high %v3858, %v3862
        %v3908 = vunpack.c.l.s4 1983009808
        %v3909 = vunpack.c.0.s8 %v3908
        %v3910 = vlaneseq
        %v3911 = vshrl.u32 %v3910, 7
        %v3912 = vsub.s32 %v3909, %v3911
        %v3913 = vrot.slane %v3905, %v3912
        %v3915 = vunpack.c.l.s4 1983009808
        %v3916 = vunpack.c.0.s8 %v3915
        %v3917 = vlaneseq
        %v3918 = vshrl.u32 %v3917, 7
        %v3919 = vsub.s32 %v3916, %v3918
        %v3920 = vrot.slane %v3906, %v3919
        %v3921 = vcombine.low %v3860, %v3864
        %v3922 = vcombine.high %v3860, %v3864
        %v3924 = vunpack.c.l.s4 1983009808
        %v3925 = vunpack.c.0.s8 %v3924
        %v3926 = vlaneseq
        %v3927 = vshrl.u32 %v3926, 7
        %v3928 = vsub.s32 %v3925, %v3927
        %v3929 = vrot.slane %v3921, %v3928
        %v3931 = vunpack.c.l.s4 1983009808
        %v3932 = vunpack.c.0.s8 %v3931
        %v3933 = vlaneseq
        %v3934 = vshrl.u32 %v3933, 7
        %v3935 = vsub.s32 %v3932, %v3934
        %v3936 = vrot.slane %v3922, %v3935
        %v3937 = vcombine.low %v3881, %v3897
        %v3938 = vcombine.high %v3881, %v3897
        %v3940 = vunpack.c.l.s4 1934713408
        %v3941 = vunpack.c.0.s8 %v3940
        %v3942 = vlaneseq
        %v3943 = vshrl.u32 %v3942, 7
        %v3944 = vsub.s32 %v3941, %v3943
        %v3945 = vrot.slane %v3937, %v3944
        %v3947 = vunpack.c.l.s4 1934713408
        %v3948 = vunpack.c.0.s8 %v3947
        %v3949 = vlaneseq
        %v3950 = vshrl.u32 %v3949, 7
        %v3951 = vsub.s32 %v3948, %v3950
        %v3952 = vrot.slane %v3938, %v3951
        %v3953 = vcombine.low %v3888, %v3904
        %v3954 = vcombine.high %v3888, %v3904
        %v3956 = vunpack.c.l.s4 1934713408
        %v3957 = vunpack.c.0.s8 %v3956
        %v3958 = vlaneseq
        %v3959 = vshrl.u32 %v3958, 7
        %v3960 = vsub.s32 %v3957, %v3959
        %v3961 = vrot.slane %v3953, %v3960
        %v3963 = vunpack.c.l.s4 1934713408
        %v3964 = vunpack.c.0.s8 %v3963
        %v3965 = vlaneseq
        %v3966 = vshrl.u32 %v3965, 7
        %v3967 = vsub.s32 %v3964, %v3966
        %v3968 = vrot.slane %v3954, %v3967
        %v3969 = vcombine.low %v3913, %v3929
        %v3970 = vcombine.high %v3913, %v3929
        %v3972 = vunpack.c.l.s4 1934713408
        %v3973 = vunpack.c.0.s8 %v3972
        %v3974 = vlaneseq
        %v3975 = vshrl.u32 %v3974, 7
        %v3976 = vsub.s32 %v3973, %v3975
        %v3977 = vrot.slane %v3969, %v3976
        %v3979 = vunpack.c.l.s4 1934713408
        %v3980 = vunpack.c.0.s8 %v3979
        %v3981 = vlaneseq
        %v3982 = vshrl.u32 %v3981, 7
        %v3983 = vsub.s32 %v3980, %v3982
        %v3984 = vrot.slane %v3970, %v3983
        %v3985 = vcombine.low %v3920, %v3936
        %v3986 = vcombine.high %v3920, %v3936
        %v3988 = vunpack.c.l.s4 1934713408
        %v3989 = vunpack.c.0.s8 %v3988
        %v3990 = vlaneseq
        %v3991 = vshrl.u32 %v3990, 7
        %v3992 = vsub.s32 %v3989, %v3991
        %v3993 = vrot.slane %v3985, %v3992
        %v3995 = vunpack.c.l.s4 1934713408
        %v3996 = vunpack.c.0.s8 %v3995
        %v3997 = vlaneseq
        %v3998 = vshrl.u32 %v3997, 7
        %v3999 = vsub.s32 %v3996, %v3998
        %v4000 = vrot.slane %v3986, %v3999
        %v4001 = vcombine.low %v3945, %v3977
        %v4002 = vcombine.high %v3945, %v3977
        %v4003 = vcombine.low %v3952, %v3984
        %v4004 = vcombine.high %v3952, %v3984
        %v4005 = vcombine.low %v3961, %v3993
        %v4006 = vcombine.high %v3961, %v3993
        %v4007 = vcombine.low %v3968, %v4000
        %v4008 = vcombine.high %v3968, %v4000
        %4010 = vrot.lane.b32.xlu0 %v4002, 8
        %v4011 = vpop.permute.xlu0 %4010
        %4014 = vrot.lane.b32.xlu0 %v4003, 16
        %v4015 = vpop.permute.xlu0 %4014
        %4018 = vrot.lane.b32.xlu0 %v4004, 24
        %v4019 = vpop.permute.xlu0 %4018
        %4022 = vrot.lane.b32.xlu0 %v4005, 32
        %v4023 = vpop.permute.xlu0 %4022
        %4026 = vrot.lane.b32.xlu0 %v4006, 40
        %v4027 = vpop.permute.xlu0 %4026
        %4030 = vrot.lane.b32.xlu0 %v4007, 48
        %v4031 = vpop.permute.xlu0 %4030
        %4034 = vrot.lane.b32.xlu0 %v4008, 56
        %v4035 = vpop.permute.xlu0 %4034
        %v4037 = vsel %vm3635, %v4001, %v4011
        %v4038 = vsel %vm987, %v4037, %v4015
        %v4039 = vsel %vm3638, %v4038, %v4019
        %v4040 = vsel %vm989, %v4039, %v4023
        %v4041 = vsel %vm3641, %v4040, %v4027
        %v4042 = vsel %vm991, %v4041, %v4031
        %v4043 = vsel %vm3644, %v4042, %v4035
        %v4052 = vrot.slane %v3455, 1
        %v4053 = vrot.slane %v3456, 1
        %v4054 = vsel %vm1480, %v4052, %v4053
        %v4055 = vrot.slane %v3457, 1
        %v4056 = vrot.slane %v3458, 1
        %v4057 = vsel %vm1480, %v4055, %v4056
        %v4058 = vrot.slane %v3459, 1
        %v4059 = vrot.slane %v3460, 1
        %v4060 = vsel %vm1480, %v4058, %v4059
        %v4061 = vrot.slane %v3461, 1
        %v4062 = vrot.slane %v3462, 1
        %v4063 = vsel %vm1480, %v4061, %v4062
        %v4064 = vrot.slane %v3463, 1
        %v4065 = vrot.slane %v3464, 1
        %v4066 = vsel %vm1480, %v4064, %v4065
        %v4067 = vrot.slane %v3465, 1
        %v4068 = vrot.slane %v3466, 1
        %v4069 = vsel %vm1480, %v4067, %v4068
        %v4070 = vrot.slane %v3467, 1
        %v4071 = vrot.slane %v3468, 1
        %v4072 = vsel %vm1480, %v4070, %v4071
        %v4073 = vrot.slane %v3469, 1
        %v4074 = vrot.slane %v3470, 1
        %v4075 = vsel %vm1480, %v4073, %v4074
        %v4084 = vcombine.low %v4054, %v4060
        %v4085 = vcombine.high %v4054, %v4060
        %v4087 = vunpack.c.l.s4 1983009808
        %v4088 = vunpack.c.0.s8 %v4087
        %v4089 = vlaneseq
        %v4090 = vshrl.u32 %v4089, 7
        %v4091 = vsub.s32 %v4088, %v4090
        %v4092 = vrot.slane %v4084, %v4091
        %v4094 = vunpack.c.l.s4 1983009808
        %v4095 = vunpack.c.0.s8 %v4094
        %v4096 = vlaneseq
        %v4097 = vshrl.u32 %v4096, 7
        %v4098 = vsub.s32 %v4095, %v4097
        %v4099 = vrot.slane %v4085, %v4098
        %v4100 = vcombine.low %v4057, %v4063
        %v4101 = vcombine.high %v4057, %v4063
        %v4103 = vunpack.c.l.s4 1983009808
        %v4104 = vunpack.c.0.s8 %v4103
        %v4105 = vlaneseq
        %v4106 = vshrl.u32 %v4105, 7
        %v4107 = vsub.s32 %v4104, %v4106
        %v4108 = vrot.slane %v4100, %v4107
        %v4110 = vunpack.c.l.s4 1983009808
        %v4111 = vunpack.c.0.s8 %v4110
        %v4112 = vlaneseq
        %v4113 = vshrl.u32 %v4112, 7
        %v4114 = vsub.s32 %v4111, %v4113
        %v4115 = vrot.slane %v4101, %v4114
        %v4116 = vcombine.low %v4066, %v4072
        %v4117 = vcombine.high %v4066, %v4072
        %v4119 = vunpack.c.l.s4 1983009808
        %v4120 = vunpack.c.0.s8 %v4119
        %v4121 = vlaneseq
        %v4122 = vshrl.u32 %v4121, 7
        %v4123 = vsub.s32 %v4120, %v4122
        %v4124 = vrot.slane %v4116, %v4123
        %v4126 = vunpack.c.l.s4 1983009808
        %v4127 = vunpack.c.0.s8 %v4126
        %v4128 = vlaneseq
        %v4129 = vshrl.u32 %v4128, 7
        %v4130 = vsub.s32 %v4127, %v4129
        %v4131 = vrot.slane %v4117, %v4130
        %v4132 = vcombine.low %v4069, %v4075
        %v4133 = vcombine.high %v4069, %v4075
        %v4135 = vunpack.c.l.s4 1983009808
        %v4136 = vunpack.c.0.s8 %v4135
        %v4137 = vlaneseq
        %v4138 = vshrl.u32 %v4137, 7
        %v4139 = vsub.s32 %v4136, %v4138
        %v4140 = vrot.slane %v4132, %v4139
        %v4142 = vunpack.c.l.s4 1983009808
        %v4143 = vunpack.c.0.s8 %v4142
        %v4144 = vlaneseq
        %v4145 = vshrl.u32 %v4144, 7
        %v4146 = vsub.s32 %v4143, %v4145
        %v4147 = vrot.slane %v4133, %v4146
        %v4148 = vcombine.low %v4092, %v4108
        %v4149 = vcombine.high %v4092, %v4108
        %v4151 = vunpack.c.l.s4 1934713408
        %v4152 = vunpack.c.0.s8 %v4151
        %v4153 = vlaneseq
        %v4154 = vshrl.u32 %v4153, 7
        %v4155 = vsub.s32 %v4152, %v4154
        %v4156 = vrot.slane %v4148, %v4155
        %v4158 = vunpack.c.l.s4 1934713408
        %v4159 = vunpack.c.0.s8 %v4158
        %v4160 = vlaneseq
        %v4161 = vshrl.u32 %v4160, 7
        %v4162 = vsub.s32 %v4159, %v4161
        %v4163 = vrot.slane %v4149, %v4162
        %v4164 = vcombine.low %v4099, %v4115
        %v4165 = vcombine.high %v4099, %v4115
        %v4167 = vunpack.c.l.s4 1934713408
        %v4168 = vunpack.c.0.s8 %v4167
        %v4169 = vlaneseq
        %v4170 = vshrl.u32 %v4169, 7
        %v4171 = vsub.s32 %v4168, %v4170
        %v4172 = vrot.slane %v4164, %v4171
        %v4174 = vunpack.c.l.s4 1934713408
        %v4175 = vunpack.c.0.s8 %v4174
        %v4176 = vlaneseq
        %v4177 = vshrl.u32 %v4176, 7
        %v4178 = vsub.s32 %v4175, %v4177
        %v4179 = vrot.slane %v4165, %v4178
        %v4180 = vcombine.low %v4124, %v4140
        %v4181 = vcombine.high %v4124, %v4140
        %v4183 = vunpack.c.l.s4 1934713408
        %v4184 = vunpack.c.0.s8 %v4183
        %v4185 = vlaneseq
        %v4186 = vshrl.u32 %v4185, 7
        %v4187 = vsub.s32 %v4184, %v4186
        %v4188 = vrot.slane %v4180, %v4187
        %v4190 = vunpack.c.l.s4 1934713408
        %v4191 = vunpack.c.0.s8 %v4190
        %v4192 = vlaneseq
        %v4193 = vshrl.u32 %v4192, 7
        %v4194 = vsub.s32 %v4191, %v4193
        %v4195 = vrot.slane %v4181, %v4194
        %v4196 = vcombine.low %v4131, %v4147
        %v4197 = vcombine.high %v4131, %v4147
        %v4199 = vunpack.c.l.s4 1934713408
        %v4200 = vunpack.c.0.s8 %v4199
        %v4201 = vlaneseq
        %v4202 = vshrl.u32 %v4201, 7
        %v4203 = vsub.s32 %v4200, %v4202
        %v4204 = vrot.slane %v4196, %v4203
        %v4206 = vunpack.c.l.s4 1934713408
        %v4207 = vunpack.c.0.s8 %v4206
        %v4208 = vlaneseq
        %v4209 = vshrl.u32 %v4208, 7
        %v4210 = vsub.s32 %v4207, %v4209
        %v4211 = vrot.slane %v4197, %v4210
        %v4212 = vcombine.low %v4156, %v4188
        %v4213 = vcombine.high %v4156, %v4188
        %v4214 = vcombine.low %v4163, %v4195
        %v4215 = vcombine.high %v4163, %v4195
        %v4216 = vcombine.low %v4172, %v4204
        %v4217 = vcombine.high %v4172, %v4204
        %v4218 = vcombine.low %v4179, %v4211
        %v4219 = vcombine.high %v4179, %v4211
        %4221 = vrot.lane.b32.xlu0 %v4213, 8
        %v4222 = vpop.permute.xlu0 %4221
        %4225 = vrot.lane.b32.xlu0 %v4214, 16
        %v4226 = vpop.permute.xlu0 %4225
        %4229 = vrot.lane.b32.xlu0 %v4215, 24
        %v4230 = vpop.permute.xlu0 %4229
        %4233 = vrot.lane.b32.xlu0 %v4216, 32
        %v4234 = vpop.permute.xlu0 %4233
        %4237 = vrot.lane.b32.xlu0 %v4217, 40
        %v4238 = vpop.permute.xlu0 %4237
        %4241 = vrot.lane.b32.xlu0 %v4218, 48
        %v4242 = vpop.permute.xlu0 %4241
        %4245 = vrot.lane.b32.xlu0 %v4219, 56
        %v4246 = vpop.permute.xlu0 %4245
        %v4248 = vsel %vm3635, %v4212, %v4222
        %v4249 = vsel %vm987, %v4248, %v4226
        %v4250 = vsel %vm3638, %v4249, %v4230
        %v4251 = vsel %vm989, %v4250, %v4234
        %v4252 = vsel %vm3641, %v4251, %v4238
        %v4253 = vsel %vm991, %v4252, %v4242
        %v4254 = vsel %vm3644, %v4253, %v4246
        %4255 = vrot.lane.b32.xlu0 %v4054, 127
        %v4256 = vpop.permute.xlu0 %4255
        %4257 = vrot.lane.b32.xlu0 %v4057, 127
        %v4258 = vpop.permute.xlu0 %4257
        %4259 = vrot.lane.b32.xlu0 %v4060, 127
        %v4260 = vpop.permute.xlu0 %4259
        %4261 = vrot.lane.b32.xlu0 %v4063, 127
        %v4262 = vpop.permute.xlu0 %4261
        %4263 = vrot.lane.b32.xlu0 %v4066, 127
        %v4264 = vpop.permute.xlu0 %4263
        %4265 = vrot.lane.b32.xlu0 %v4069, 127
        %v4266 = vpop.permute.xlu0 %4265
        %4267 = vrot.lane.b32.xlu0 %v4072, 127
        %v4268 = vpop.permute.xlu0 %4267
        %4269 = vrot.lane.b32.xlu0 %v4075, 127
        %v4270 = vpop.permute.xlu0 %4269
        %v4279 = vcombine.low %v4256, %v4260
        %v4280 = vcombine.high %v4256, %v4260
        %v4282 = vunpack.c.l.s4 1983009808
        %v4283 = vunpack.c.0.s8 %v4282
        %v4284 = vlaneseq
        %v4285 = vshrl.u32 %v4284, 7
        %v4286 = vsub.s32 %v4283, %v4285
        %v4287 = vrot.slane %v4279, %v4286
        %v4289 = vunpack.c.l.s4 1983009808
        %v4290 = vunpack.c.0.s8 %v4289
        %v4291 = vlaneseq
        %v4292 = vshrl.u32 %v4291, 7
        %v4293 = vsub.s32 %v4290, %v4292
        %v4294 = vrot.slane %v4280, %v4293
        %v4295 = vcombine.low %v4258, %v4262
        %v4296 = vcombine.high %v4258, %v4262
        %v4298 = vunpack.c.l.s4 1983009808
        %v4299 = vunpack.c.0.s8 %v4298
        %v4300 = vlaneseq
        %v4301 = vshrl.u32 %v4300, 7
        %v4302 = vsub.s32 %v4299, %v4301
        %v4303 = vrot.slane %v4295, %v4302
        %v4305 = vunpack.c.l.s4 1983009808
        %v4306 = vunpack.c.0.s8 %v4305
        %v4307 = vlaneseq
        %v4308 = vshrl.u32 %v4307, 7
        %v4309 = vsub.s32 %v4306, %v4308
        %v4310 = vrot.slane %v4296, %v4309
        %v4311 = vcombine.low %v4264, %v4268
        %v4312 = vcombine.high %v4264, %v4268
        %v4314 = vunpack.c.l.s4 1983009808
        %v4315 = vunpack.c.0.s8 %v4314
        %v4316 = vlaneseq
        %v4317 = vshrl.u32 %v4316, 7
        %v4318 = vsub.s32 %v4315, %v4317
        %v4319 = vrot.slane %v4311, %v4318
        %v4321 = vunpack.c.l.s4 1983009808
        %v4322 = vunpack.c.0.s8 %v4321
        %v4323 = vlaneseq
        %v4324 = vshrl.u32 %v4323, 7
        %v4325 = vsub.s32 %v4322, %v4324
        %v4326 = vrot.slane %v4312, %v4325
        %v4327 = vcombine.low %v4266, %v4270
        %v4328 = vcombine.high %v4266, %v4270
        %v4330 = vunpack.c.l.s4 1983009808
        %v4331 = vunpack.c.0.s8 %v4330
        %v4332 = vlaneseq
        %v4333 = vshrl.u32 %v4332, 7
        %v4334 = vsub.s32 %v4331, %v4333
        %v4335 = vrot.slane %v4327, %v4334
        %v4337 = vunpack.c.l.s4 1983009808
        %v4338 = vunpack.c.0.s8 %v4337
        %v4339 = vlaneseq
        %v4340 = vshrl.u32 %v4339, 7
        %v4341 = vsub.s32 %v4338, %v4340
        %v4342 = vrot.slane %v4328, %v4341
        %v4343 = vcombine.low %v4287, %v4303
        %v4344 = vcombine.high %v4287, %v4303
        %v4346 = vunpack.c.l.s4 1934713408
        %v4347 = vunpack.c.0.s8 %v4346
        %v4348 = vlaneseq
        %v4349 = vshrl.u32 %v4348, 7
        %v4350 = vsub.s32 %v4347, %v4349
        %v4351 = vrot.slane %v4343, %v4350
        %v4353 = vunpack.c.l.s4 1934713408
        %v4354 = vunpack.c.0.s8 %v4353
        %v4355 = vlaneseq
        %v4356 = vshrl.u32 %v4355, 7
        %v4357 = vsub.s32 %v4354, %v4356
        %v4358 = vrot.slane %v4344, %v4357
        %v4359 = vcombine.low %v4294, %v4310
        %v4360 = vcombine.high %v4294, %v4310
        %v4362 = vunpack.c.l.s4 1934713408
        %v4363 = vunpack.c.0.s8 %v4362
        %v4364 = vlaneseq
        %v4365 = vshrl.u32 %v4364, 7
        %v4366 = vsub.s32 %v4363, %v4365
        %v4367 = vrot.slane %v4359, %v4366
        %v4369 = vunpack.c.l.s4 1934713408
        %v4370 = vunpack.c.0.s8 %v4369
        %v4371 = vlaneseq
        %v4372 = vshrl.u32 %v4371, 7
        %v4373 = vsub.s32 %v4370, %v4372
        %v4374 = vrot.slane %v4360, %v4373
        %v4375 = vcombine.low %v4319, %v4335
        %v4376 = vcombine.high %v4319, %v4335
        %v4378 = vunpack.c.l.s4 1934713408
        %v4379 = vunpack.c.0.s8 %v4378
        %v4380 = vlaneseq
        %v4381 = vshrl.u32 %v4380, 7
        %v4382 = vsub.s32 %v4379, %v4381
        %v4383 = vrot.slane %v4375, %v4382
        %v4385 = vunpack.c.l.s4 1934713408
        %v4386 = vunpack.c.0.s8 %v4385
        %v4387 = vlaneseq
        %v4388 = vshrl.u32 %v4387, 7
        %v4389 = vsub.s32 %v4386, %v4388
        %v4390 = vrot.slane %v4376, %v4389
        %v4391 = vcombine.low %v4326, %v4342
        %v4392 = vcombine.high %v4326, %v4342
        %v4394 = vunpack.c.l.s4 1934713408
        %v4395 = vunpack.c.0.s8 %v4394
        %v4396 = vlaneseq
        %v4397 = vshrl.u32 %v4396, 7
        %v4398 = vsub.s32 %v4395, %v4397
        %v4399 = vrot.slane %v4391, %v4398
        %v4401 = vunpack.c.l.s4 1934713408
        %v4402 = vunpack.c.0.s8 %v4401
        %v4403 = vlaneseq
        %v4404 = vshrl.u32 %v4403, 7
        %v4405 = vsub.s32 %v4402, %v4404
        %v4406 = vrot.slane %v4392, %v4405
        %v4407 = vcombine.low %v4351, %v4383
        %v4408 = vcombine.high %v4351, %v4383
        %v4409 = vcombine.low %v4358, %v4390
        %v4410 = vcombine.high %v4358, %v4390
        %v4411 = vcombine.low %v4367, %v4399
        %v4412 = vcombine.high %v4367, %v4399
        %v4413 = vcombine.low %v4374, %v4406
        %v4414 = vcombine.high %v4374, %v4406
        %4416 = vrot.lane.b32.xlu0 %v4408, 8
        %v4417 = vpop.permute.xlu0 %4416
        %4420 = vrot.lane.b32.xlu0 %v4409, 16
        %v4421 = vpop.permute.xlu0 %4420
        %4424 = vrot.lane.b32.xlu0 %v4410, 24
        %v4425 = vpop.permute.xlu0 %4424
        %4428 = vrot.lane.b32.xlu0 %v4411, 32
        %v4429 = vpop.permute.xlu0 %4428
        %4432 = vrot.lane.b32.xlu0 %v4412, 40
        %v4433 = vpop.permute.xlu0 %4432
        %4436 = vrot.lane.b32.xlu0 %v4413, 48
        %v4437 = vpop.permute.xlu0 %4436
        %4440 = vrot.lane.b32.xlu0 %v4414, 56
        %v4441 = vpop.permute.xlu0 %4440
        %v4443 = vsel %vm3635, %v4407, %v4417
        %v4444 = vsel %vm987, %v4443, %v4421
        %v4445 = vsel %vm3638, %v4444, %v4425
        %v4446 = vsel %vm989, %v4445, %v4429
        %v4447 = vsel %vm3641, %v4446, %v4433
        %v4448 = vsel %vm991, %v4447, %v4437
        %v4449 = vsel %vm3644, %v4448, %v4441
        %4450 = vrot.lane.b32.xlu0 %v4054, 126
        %v4451 = vpop.permute.xlu0 %4450
        %4452 = vrot.lane.b32.xlu0 %v4057, 126
        %v4453 = vpop.permute.xlu0 %4452
        %4454 = vrot.lane.b32.xlu0 %v4060, 126
        %v4455 = vpop.permute.xlu0 %4454
        %4456 = vrot.lane.b32.xlu0 %v4063, 126
        %v4457 = vpop.permute.xlu0 %4456
        %4458 = vrot.lane.b32.xlu0 %v4066, 126
        %v4459 = vpop.permute.xlu0 %4458
        %4460 = vrot.lane.b32.xlu0 %v4069, 126
        %v4461 = vpop.permute.xlu0 %4460
        %4462 = vrot.lane.b32.xlu0 %v4072, 126
        %v4463 = vpop.permute.xlu0 %4462
        %4464 = vrot.lane.b32.xlu0 %v4075, 126
        %v4465 = vpop.permute.xlu0 %4464
        %v4474 = vcombine.low %v4451, %v4455
        %v4475 = vcombine.high %v4451, %v4455
        %v4477 = vunpack.c.l.s4 1983009808
        %v4478 = vunpack.c.0.s8 %v4477
        %v4479 = vlaneseq
        %v4480 = vshrl.u32 %v4479, 7
        %v4481 = vsub.s32 %v4478, %v4480
        %v4482 = vrot.slane %v4474, %v4481
        %v4484 = vunpack.c.l.s4 1983009808
        %v4485 = vunpack.c.0.s8 %v4484
        %v4486 = vlaneseq
        %v4487 = vshrl.u32 %v4486, 7
        %v4488 = vsub.s32 %v4485, %v4487
        %v4489 = vrot.slane %v4475, %v4488
        %v4490 = vcombine.low %v4453, %v4457
        %v4491 = vcombine.high %v4453, %v4457
        %v4493 = vunpack.c.l.s4 1983009808
        %v4494 = vunpack.c.0.s8 %v4493
        %v4495 = vlaneseq
        %v4496 = vshrl.u32 %v4495, 7
        %v4497 = vsub.s32 %v4494, %v4496
        %v4498 = vrot.slane %v4490, %v4497
        %v4500 = vunpack.c.l.s4 1983009808
        %v4501 = vunpack.c.0.s8 %v4500
        %v4502 = vlaneseq
        %v4503 = vshrl.u32 %v4502, 7
        %v4504 = vsub.s32 %v4501, %v4503
        %v4505 = vrot.slane %v4491, %v4504
        %v4506 = vcombine.low %v4459, %v4463
        %v4507 = vcombine.high %v4459, %v4463
        %v4509 = vunpack.c.l.s4 1983009808
        %v4510 = vunpack.c.0.s8 %v4509
        %v4511 = vlaneseq
        %v4512 = vshrl.u32 %v4511, 7
        %v4513 = vsub.s32 %v4510, %v4512
        %v4514 = vrot.slane %v4506, %v4513
        %v4516 = vunpack.c.l.s4 1983009808
        %v4517 = vunpack.c.0.s8 %v4516
        %v4518 = vlaneseq
        %v4519 = vshrl.u32 %v4518, 7
        %v4520 = vsub.s32 %v4517, %v4519
        %v4521 = vrot.slane %v4507, %v4520
        %v4522 = vcombine.low %v4461, %v4465
        %v4523 = vcombine.high %v4461, %v4465
        %v4525 = vunpack.c.l.s4 1983009808
        %v4526 = vunpack.c.0.s8 %v4525
        %v4527 = vlaneseq
        %v4528 = vshrl.u32 %v4527, 7
        %v4529 = vsub.s32 %v4526, %v4528
        %v4530 = vrot.slane %v4522, %v4529
        %v4532 = vunpack.c.l.s4 1983009808
        %v4533 = vunpack.c.0.s8 %v4532
        %v4534 = vlaneseq
        %v4535 = vshrl.u32 %v4534, 7
        %v4536 = vsub.s32 %v4533, %v4535
        %v4537 = vrot.slane %v4523, %v4536
        %v4538 = vcombine.low %v4482, %v4498
        %v4539 = vcombine.high %v4482, %v4498
        %v4541 = vunpack.c.l.s4 1934713408
        %v4542 = vunpack.c.0.s8 %v4541
        %v4543 = vlaneseq
        %v4544 = vshrl.u32 %v4543, 7
        %v4545 = vsub.s32 %v4542, %v4544
        %v4546 = vrot.slane %v4538, %v4545
        %v4548 = vunpack.c.l.s4 1934713408
        %v4549 = vunpack.c.0.s8 %v4548
        %v4550 = vlaneseq
        %v4551 = vshrl.u32 %v4550, 7
        %v4552 = vsub.s32 %v4549, %v4551
        %v4553 = vrot.slane %v4539, %v4552
        %v4554 = vcombine.low %v4489, %v4505
        %v4555 = vcombine.high %v4489, %v4505
        %v4557 = vunpack.c.l.s4 1934713408
        %v4558 = vunpack.c.0.s8 %v4557
        %v4559 = vlaneseq
        %v4560 = vshrl.u32 %v4559, 7
        %v4561 = vsub.s32 %v4558, %v4560
        %v4562 = vrot.slane %v4554, %v4561
        %v4564 = vunpack.c.l.s4 1934713408
        %v4565 = vunpack.c.0.s8 %v4564
        %v4566 = vlaneseq
        %v4567 = vshrl.u32 %v4566, 7
        %v4568 = vsub.s32 %v4565, %v4567
        %v4569 = vrot.slane %v4555, %v4568
        %v4570 = vcombine.low %v4514, %v4530
        %v4571 = vcombine.high %v4514, %v4530
        %v4573 = vunpack.c.l.s4 1934713408
        %v4574 = vunpack.c.0.s8 %v4573
        %v4575 = vlaneseq
        %v4576 = vshrl.u32 %v4575, 7
        %v4577 = vsub.s32 %v4574, %v4576
        %v4578 = vrot.slane %v4570, %v4577
        %v4580 = vunpack.c.l.s4 1934713408
        %v4581 = vunpack.c.0.s8 %v4580
        %v4582 = vlaneseq
        %v4583 = vshrl.u32 %v4582, 7
        %v4584 = vsub.s32 %v4581, %v4583
        %v4585 = vrot.slane %v4571, %v4584
        %v4586 = vcombine.low %v4521, %v4537
        %v4587 = vcombine.high %v4521, %v4537
        %v4589 = vunpack.c.l.s4 1934713408
        %v4590 = vunpack.c.0.s8 %v4589
        %v4591 = vlaneseq
        %v4592 = vshrl.u32 %v4591, 7
        %v4593 = vsub.s32 %v4590, %v4592
        %v4594 = vrot.slane %v4586, %v4593
        %v4596 = vunpack.c.l.s4 1934713408
        %v4597 = vunpack.c.0.s8 %v4596
        %v4598 = vlaneseq
        %v4599 = vshrl.u32 %v4598, 7
        %v4600 = vsub.s32 %v4597, %v4599
        %v4601 = vrot.slane %v4587, %v4600
        %v4602 = vcombine.low %v4546, %v4578
        %v4603 = vcombine.high %v4546, %v4578
        %v4604 = vcombine.low %v4553, %v4585
        %v4605 = vcombine.high %v4553, %v4585
        %v4606 = vcombine.low %v4562, %v4594
        %v4607 = vcombine.high %v4562, %v4594
        %v4608 = vcombine.low %v4569, %v4601
        %v4609 = vcombine.high %v4569, %v4601
        %4611 = vrot.lane.b32.xlu0 %v4603, 8
        %v4612 = vpop.permute.xlu0 %4611
        %4615 = vrot.lane.b32.xlu0 %v4604, 16
        %v4616 = vpop.permute.xlu0 %4615
        %4619 = vrot.lane.b32.xlu0 %v4605, 24
        %v4620 = vpop.permute.xlu0 %4619
        %4623 = vrot.lane.b32.xlu0 %v4606, 32
        %v4624 = vpop.permute.xlu0 %4623
        %4627 = vrot.lane.b32.xlu0 %v4607, 40
        %v4628 = vpop.permute.xlu0 %4627
        %4631 = vrot.lane.b32.xlu0 %v4608, 48
        %v4632 = vpop.permute.xlu0 %4631
        %4635 = vrot.lane.b32.xlu0 %v4609, 56
        %v4636 = vpop.permute.xlu0 %4635
        %v4638 = vsel %vm3635, %v4602, %v4612
        %v4639 = vsel %vm987, %v4638, %v4616
        %v4640 = vsel %vm3638, %v4639, %v4620
        %v4641 = vsel %vm989, %v4640, %v4624
        %v4642 = vsel %vm3641, %v4641, %v4628
        %v4643 = vsel %vm991, %v4642, %v4632
        %v4644 = vsel %vm3644, %v4643, %v4636
        %v4645 = vrot.slane %v3455, 2
        %v4646 = vrot.slane %v3456, 2
        %v4647 = vsel %vm2175, %v4645, %v4646
        %v4648 = vrot.slane %v3457, 2
        %v4649 = vrot.slane %v3458, 2
        %v4650 = vsel %vm2175, %v4648, %v4649
        %v4651 = vrot.slane %v3459, 2
        %v4652 = vrot.slane %v3460, 2
        %v4653 = vsel %vm2175, %v4651, %v4652
        %v4654 = vrot.slane %v3461, 2
        %v4655 = vrot.slane %v3462, 2
        %v4656 = vsel %vm2175, %v4654, %v4655
        %v4657 = vrot.slane %v3463, 2
        %v4658 = vrot.slane %v3464, 2
        %v4659 = vsel %vm2175, %v4657, %v4658
        %v4660 = vrot.slane %v3465, 2
        %v4661 = vrot.slane %v3466, 2
        %v4662 = vsel %vm2175, %v4660, %v4661
        %v4663 = vrot.slane %v3467, 2
        %v4664 = vrot.slane %v3468, 2
        %v4665 = vsel %vm2175, %v4663, %v4664
        %v4666 = vrot.slane %v3469, 2
        %v4667 = vrot.slane %v3470, 2
        %v4668 = vsel %vm2175, %v4666, %v4667
        %v4677 = vcombine.low %v4647, %v4653
        %v4678 = vcombine.high %v4647, %v4653
        %v4680 = vunpack.c.l.s4 1983009808
        %v4681 = vunpack.c.0.s8 %v4680
        %v4682 = vlaneseq
        %v4683 = vshrl.u32 %v4682, 7
        %v4684 = vsub.s32 %v4681, %v4683
        %v4685 = vrot.slane %v4677, %v4684
        %v4687 = vunpack.c.l.s4 1983009808
        %v4688 = vunpack.c.0.s8 %v4687
        %v4689 = vlaneseq
        %v4690 = vshrl.u32 %v4689, 7
        %v4691 = vsub.s32 %v4688, %v4690
        %v4692 = vrot.slane %v4678, %v4691
        %v4693 = vcombine.low %v4650, %v4656
        %v4694 = vcombine.high %v4650, %v4656
        %v4696 = vunpack.c.l.s4 1983009808
        %v4697 = vunpack.c.0.s8 %v4696
        %v4698 = vlaneseq
        %v4699 = vshrl.u32 %v4698, 7
        %v4700 = vsub.s32 %v4697, %v4699
        %v4701 = vrot.slane %v4693, %v4700
        %v4703 = vunpack.c.l.s4 1983009808
        %v4704 = vunpack.c.0.s8 %v4703
        %v4705 = vlaneseq
        %v4706 = vshrl.u32 %v4705, 7
        %v4707 = vsub.s32 %v4704, %v4706
        %v4708 = vrot.slane %v4694, %v4707
        %v4709 = vcombine.low %v4659, %v4665
        %v4710 = vcombine.high %v4659, %v4665
        %v4712 = vunpack.c.l.s4 1983009808
        %v4713 = vunpack.c.0.s8 %v4712
        %v4714 = vlaneseq
        %v4715 = vshrl.u32 %v4714, 7
        %v4716 = vsub.s32 %v4713, %v4715
        %v4717 = vrot.slane %v4709, %v4716
        %v4719 = vunpack.c.l.s4 1983009808
        %v4720 = vunpack.c.0.s8 %v4719
        %v4721 = vlaneseq
        %v4722 = vshrl.u32 %v4721, 7
        %v4723 = vsub.s32 %v4720, %v4722
        %v4724 = vrot.slane %v4710, %v4723
        %v4725 = vcombine.low %v4662, %v4668
        %v4726 = vcombine.high %v4662, %v4668
        %v4728 = vunpack.c.l.s4 1983009808
        %v4729 = vunpack.c.0.s8 %v4728
        %v4730 = vlaneseq
        %v4731 = vshrl.u32 %v4730, 7
        %v4732 = vsub.s32 %v4729, %v4731
        %v4733 = vrot.slane %v4725, %v4732
        %v4735 = vunpack.c.l.s4 1983009808
        %v4736 = vunpack.c.0.s8 %v4735
        %v4737 = vlaneseq
        %v4738 = vshrl.u32 %v4737, 7
        %v4739 = vsub.s32 %v4736, %v4738
        %v4740 = vrot.slane %v4726, %v4739
        %v4741 = vcombine.low %v4685, %v4701
        %v4742 = vcombine.high %v4685, %v4701
        %v4744 = vunpack.c.l.s4 1934713408
        %v4745 = vunpack.c.0.s8 %v4744
        %v4746 = vlaneseq
        %v4747 = vshrl.u32 %v4746, 7
        %v4748 = vsub.s32 %v4745, %v4747
        %v4749 = vrot.slane %v4741, %v4748
        %v4751 = vunpack.c.l.s4 1934713408
        %v4752 = vunpack.c.0.s8 %v4751
        %v4753 = vlaneseq
        %v4754 = vshrl.u32 %v4753, 7
        %v4755 = vsub.s32 %v4752, %v4754
        %v4756 = vrot.slane %v4742, %v4755
        %v4757 = vcombine.low %v4692, %v4708
        %v4758 = vcombine.high %v4692, %v4708
        %v4760 = vunpack.c.l.s4 1934713408
        %v4761 = vunpack.c.0.s8 %v4760
        %v4762 = vlaneseq
        %v4763 = vshrl.u32 %v4762, 7
        %v4764 = vsub.s32 %v4761, %v4763
        %v4765 = vrot.slane %v4757, %v4764
        %v4767 = vunpack.c.l.s4 1934713408
        %v4768 = vunpack.c.0.s8 %v4767
        %v4769 = vlaneseq
        %v4770 = vshrl.u32 %v4769, 7
        %v4771 = vsub.s32 %v4768, %v4770
        %v4772 = vrot.slane %v4758, %v4771
        %v4773 = vcombine.low %v4717, %v4733
        %v4774 = vcombine.high %v4717, %v4733
        %v4776 = vunpack.c.l.s4 1934713408
        %v4777 = vunpack.c.0.s8 %v4776
        %v4778 = vlaneseq
        %v4779 = vshrl.u32 %v4778, 7
        %v4780 = vsub.s32 %v4777, %v4779
        %v4781 = vrot.slane %v4773, %v4780
        %v4783 = vunpack.c.l.s4 1934713408
        %v4784 = vunpack.c.0.s8 %v4783
        %v4785 = vlaneseq
        %v4786 = vshrl.u32 %v4785, 7
        %v4787 = vsub.s32 %v4784, %v4786
        %v4788 = vrot.slane %v4774, %v4787
        %v4789 = vcombine.low %v4724, %v4740
        %v4790 = vcombine.high %v4724, %v4740
        %v4792 = vunpack.c.l.s4 1934713408
        %v4793 = vunpack.c.0.s8 %v4792
        %v4794 = vlaneseq
        %v4795 = vshrl.u32 %v4794, 7
        %v4796 = vsub.s32 %v4793, %v4795
        %v4797 = vrot.slane %v4789, %v4796
        %v4799 = vunpack.c.l.s4 1934713408
        %v4800 = vunpack.c.0.s8 %v4799
        %v4801 = vlaneseq
        %v4802 = vshrl.u32 %v4801, 7
        %v4803 = vsub.s32 %v4800, %v4802
        %v4804 = vrot.slane %v4790, %v4803
        %v4805 = vcombine.low %v4749, %v4781
        %v4806 = vcombine.high %v4749, %v4781
        %v4807 = vcombine.low %v4756, %v4788
        %v4808 = vcombine.high %v4756, %v4788
        %v4809 = vcombine.low %v4765, %v4797
        %v4810 = vcombine.high %v4765, %v4797
        %v4811 = vcombine.low %v4772, %v4804
        %v4812 = vcombine.high %v4772, %v4804
        %4814 = vrot.lane.b32.xlu0 %v4806, 8
        %v4815 = vpop.permute.xlu0 %4814
        %4818 = vrot.lane.b32.xlu0 %v4807, 16
        %v4819 = vpop.permute.xlu0 %4818
        %4822 = vrot.lane.b32.xlu0 %v4808, 24
        %v4823 = vpop.permute.xlu0 %4822
        %4826 = vrot.lane.b32.xlu0 %v4809, 32
        %v4827 = vpop.permute.xlu0 %4826
        %4830 = vrot.lane.b32.xlu0 %v4810, 40
        %v4831 = vpop.permute.xlu0 %4830
        %4834 = vrot.lane.b32.xlu0 %v4811, 48
        %v4835 = vpop.permute.xlu0 %4834
        %4838 = vrot.lane.b32.xlu0 %v4812, 56
        %v4839 = vpop.permute.xlu0 %4838
        %v4841 = vsel %vm3635, %v4805, %v4815
        %v4842 = vsel %vm987, %v4841, %v4819
        %v4843 = vsel %vm3638, %v4842, %v4823
        %v4844 = vsel %vm989, %v4843, %v4827
        %v4845 = vsel %vm3641, %v4844, %v4831
        %v4846 = vsel %vm991, %v4845, %v4835
        %v4847 = vsel %vm3644, %v4846, %v4839
        %4848 = vrot.lane.b32.xlu0 %v4647, 127
        %v4849 = vpop.permute.xlu0 %4848
        %4850 = vrot.lane.b32.xlu0 %v4650, 127
        %v4851 = vpop.permute.xlu0 %4850
        %4852 = vrot.lane.b32.xlu0 %v4653, 127
        %v4853 = vpop.permute.xlu0 %4852
        %4854 = vrot.lane.b32.xlu0 %v4656, 127
        %v4855 = vpop.permute.xlu0 %4854
        %4856 = vrot.lane.b32.xlu0 %v4659, 127
        %v4857 = vpop.permute.xlu0 %4856
        %4858 = vrot.lane.b32.xlu0 %v4662, 127
        %v4859 = vpop.permute.xlu0 %4858
        %4860 = vrot.lane.b32.xlu0 %v4665, 127
        %v4861 = vpop.permute.xlu0 %4860
        %4862 = vrot.lane.b32.xlu0 %v4668, 127
        %v4863 = vpop.permute.xlu0 %4862
        %v4872 = vcombine.low %v4849, %v4853
        %v4873 = vcombine.high %v4849, %v4853
        %v4875 = vunpack.c.l.s4 1983009808
        %v4876 = vunpack.c.0.s8 %v4875
        %v4877 = vlaneseq
        %v4878 = vshrl.u32 %v4877, 7
        %v4879 = vsub.s32 %v4876, %v4878
        %v4880 = vrot.slane %v4872, %v4879
        %v4882 = vunpack.c.l.s4 1983009808
        %v4883 = vunpack.c.0.s8 %v4882
        %v4884 = vlaneseq
        %v4885 = vshrl.u32 %v4884, 7
        %v4886 = vsub.s32 %v4883, %v4885
        %v4887 = vrot.slane %v4873, %v4886
        %v4888 = vcombine.low %v4851, %v4855
        %v4889 = vcombine.high %v4851, %v4855
        %v4891 = vunpack.c.l.s4 1983009808
        %v4892 = vunpack.c.0.s8 %v4891
        %v4893 = vlaneseq
        %v4894 = vshrl.u32 %v4893, 7
        %v4895 = vsub.s32 %v4892, %v4894
        %v4896 = vrot.slane %v4888, %v4895
        %v4898 = vunpack.c.l.s4 1983009808
        %v4899 = vunpack.c.0.s8 %v4898
        %v4900 = vlaneseq
        %v4901 = vshrl.u32 %v4900, 7
        %v4902 = vsub.s32 %v4899, %v4901
        %v4903 = vrot.slane %v4889, %v4902
        %v4904 = vcombine.low %v4857, %v4861
        %v4905 = vcombine.high %v4857, %v4861
        %v4907 = vunpack.c.l.s4 1983009808
        %v4908 = vunpack.c.0.s8 %v4907
        %v4909 = vlaneseq
        %v4910 = vshrl.u32 %v4909, 7
        %v4911 = vsub.s32 %v4908, %v4910
        %v4912 = vrot.slane %v4904, %v4911
        %v4914 = vunpack.c.l.s4 1983009808
        %v4915 = vunpack.c.0.s8 %v4914
        %v4916 = vlaneseq
        %v4917 = vshrl.u32 %v4916, 7
        %v4918 = vsub.s32 %v4915, %v4917
        %v4919 = vrot.slane %v4905, %v4918
        %v4920 = vcombine.low %v4859, %v4863
        %v4921 = vcombine.high %v4859, %v4863
        %v4923 = vunpack.c.l.s4 1983009808
        %v4924 = vunpack.c.0.s8 %v4923
        %v4925 = vlaneseq
        %v4926 = vshrl.u32 %v4925, 7
        %v4927 = vsub.s32 %v4924, %v4926
        %v4928 = vrot.slane %v4920, %v4927
        %v4930 = vunpack.c.l.s4 1983009808
        %v4931 = vunpack.c.0.s8 %v4930
        %v4932 = vlaneseq
        %v4933 = vshrl.u32 %v4932, 7
        %v4934 = vsub.s32 %v4931, %v4933
        %v4935 = vrot.slane %v4921, %v4934
        %v4936 = vcombine.low %v4880, %v4896
        %v4937 = vcombine.high %v4880, %v4896
        %v4939 = vunpack.c.l.s4 1934713408
        %v4940 = vunpack.c.0.s8 %v4939
        %v4941 = vlaneseq
        %v4942 = vshrl.u32 %v4941, 7
        %v4943 = vsub.s32 %v4940, %v4942
        %v4944 = vrot.slane %v4936, %v4943
        %v4946 = vunpack.c.l.s4 1934713408
        %v4947 = vunpack.c.0.s8 %v4946
        %v4948 = vlaneseq
        %v4949 = vshrl.u32 %v4948, 7
        %v4950 = vsub.s32 %v4947, %v4949
        %v4951 = vrot.slane %v4937, %v4950
        %v4952 = vcombine.low %v4887, %v4903
        %v4953 = vcombine.high %v4887, %v4903
        %v4955 = vunpack.c.l.s4 1934713408
        %v4956 = vunpack.c.0.s8 %v4955
        %v4957 = vlaneseq
        %v4958 = vshrl.u32 %v4957, 7
        %v4959 = vsub.s32 %v4956, %v4958
        %v4960 = vrot.slane %v4952, %v4959
        %v4962 = vunpack.c.l.s4 1934713408
        %v4963 = vunpack.c.0.s8 %v4962
        %v4964 = vlaneseq
        %v4965 = vshrl.u32 %v4964, 7
        %v4966 = vsub.s32 %v4963, %v4965
        %v4967 = vrot.slane %v4953, %v4966
        %v4968 = vcombine.low %v4912, %v4928
        %v4969 = vcombine.high %v4912, %v4928
        %v4971 = vunpack.c.l.s4 1934713408
        %v4972 = vunpack.c.0.s8 %v4971
        %v4973 = vlaneseq
        %v4974 = vshrl.u32 %v4973, 7
        %v4975 = vsub.s32 %v4972, %v4974
        %v4976 = vrot.slane %v4968, %v4975
        %v4978 = vunpack.c.l.s4 1934713408
        %v4979 = vunpack.c.0.s8 %v4978
        %v4980 = vlaneseq
        %v4981 = vshrl.u32 %v4980, 7
        %v4982 = vsub.s32 %v4979, %v4981
        %v4983 = vrot.slane %v4969, %v4982
        %v4984 = vcombine.low %v4919, %v4935
        %v4985 = vcombine.high %v4919, %v4935
        %v4987 = vunpack.c.l.s4 1934713408
        %v4988 = vunpack.c.0.s8 %v4987
        %v4989 = vlaneseq
        %v4990 = vshrl.u32 %v4989, 7
        %v4991 = vsub.s32 %v4988, %v4990
        %v4992 = vrot.slane %v4984, %v4991
        %v4994 = vunpack.c.l.s4 1934713408
        %v4995 = vunpack.c.0.s8 %v4994
        %v4996 = vlaneseq
        %v4997 = vshrl.u32 %v4996, 7
        %v4998 = vsub.s32 %v4995, %v4997
        %v4999 = vrot.slane %v4985, %v4998
        %v5000 = vcombine.low %v4944, %v4976
        %v5001 = vcombine.high %v4944, %v4976
        %v5002 = vcombine.low %v4951, %v4983
        %v5003 = vcombine.high %v4951, %v4983
        %v5004 = vcombine.low %v4960, %v4992
        %v5005 = vcombine.high %v4960, %v4992
        %v5006 = vcombine.low %v4967, %v4999
        %v5007 = vcombine.high %v4967, %v4999
        %5009 = vrot.lane.b32.xlu0 %v5001, 8
        %v5010 = vpop.permute.xlu0 %5009
        %5013 = vrot.lane.b32.xlu0 %v5002, 16
        %v5014 = vpop.permute.xlu0 %5013
        %5017 = vrot.lane.b32.xlu0 %v5003, 24
        %v5018 = vpop.permute.xlu0 %5017
        %5021 = vrot.lane.b32.xlu0 %v5004, 32
        %v5022 = vpop.permute.xlu0 %5021
        %5025 = vrot.lane.b32.xlu0 %v5005, 40
        %v5026 = vpop.permute.xlu0 %5025
        %5029 = vrot.lane.b32.xlu0 %v5006, 48
        %v5030 = vpop.permute.xlu0 %5029
        %5033 = vrot.lane.b32.xlu0 %v5007, 56
        %v5034 = vpop.permute.xlu0 %5033
        %v5036 = vsel %vm3635, %v5000, %v5010
        %v5037 = vsel %vm987, %v5036, %v5014
        %v5038 = vsel %vm3638, %v5037, %v5018
        %v5039 = vsel %vm989, %v5038, %v5022
        %v5040 = vsel %vm3641, %v5039, %v5026
        %v5041 = vsel %vm991, %v5040, %v5030
        %v5042 = vsel %vm3644, %v5041, %v5034
        %5043 = vrot.lane.b32.xlu0 %v4647, 126
        %v5044 = vpop.permute.xlu0 %5043
        %5045 = vrot.lane.b32.xlu0 %v4650, 126
        %v5046 = vpop.permute.xlu0 %5045
        %5047 = vrot.lane.b32.xlu0 %v4653, 126
        %v5048 = vpop.permute.xlu0 %5047
        %5049 = vrot.lane.b32.xlu0 %v4656, 126
        %v5050 = vpop.permute.xlu0 %5049
        %5051 = vrot.lane.b32.xlu0 %v4659, 126
        %v5052 = vpop.permute.xlu0 %5051
        %5053 = vrot.lane.b32.xlu0 %v4662, 126
        %v5054 = vpop.permute.xlu0 %5053
        %5055 = vrot.lane.b32.xlu0 %v4665, 126
        %v5056 = vpop.permute.xlu0 %5055
        %5057 = vrot.lane.b32.xlu0 %v4668, 126
        %v5058 = vpop.permute.xlu0 %5057
        %v5067 = vcombine.low %v5044, %v5048
        %v5068 = vcombine.high %v5044, %v5048
        %v5070 = vunpack.c.l.s4 1983009808
        %v5071 = vunpack.c.0.s8 %v5070
        %v5072 = vlaneseq
        %v5073 = vshrl.u32 %v5072, 7
        %v5074 = vsub.s32 %v5071, %v5073
        %v5075 = vrot.slane %v5067, %v5074
        %v5077 = vunpack.c.l.s4 1983009808
        %v5078 = vunpack.c.0.s8 %v5077
        %v5079 = vlaneseq
        %v5080 = vshrl.u32 %v5079, 7
        %v5081 = vsub.s32 %v5078, %v5080
        %v5082 = vrot.slane %v5068, %v5081
        %v5083 = vcombine.low %v5046, %v5050
        %v5084 = vcombine.high %v5046, %v5050
        %v5086 = vunpack.c.l.s4 1983009808
        %v5087 = vunpack.c.0.s8 %v5086
        %v5088 = vlaneseq
        %v5089 = vshrl.u32 %v5088, 7
        %v5090 = vsub.s32 %v5087, %v5089
        %v5091 = vrot.slane %v5083, %v5090
        %v5093 = vunpack.c.l.s4 1983009808
        %v5094 = vunpack.c.0.s8 %v5093
        %v5095 = vlaneseq
        %v5096 = vshrl.u32 %v5095, 7
        %v5097 = vsub.s32 %v5094, %v5096
        %v5098 = vrot.slane %v5084, %v5097
        %v5099 = vcombine.low %v5052, %v5056
        %v5100 = vcombine.high %v5052, %v5056
        %v5102 = vunpack.c.l.s4 1983009808
        %v5103 = vunpack.c.0.s8 %v5102
        %v5104 = vlaneseq
        %v5105 = vshrl.u32 %v5104, 7
        %v5106 = vsub.s32 %v5103, %v5105
        %v5107 = vrot.slane %v5099, %v5106
        %v5109 = vunpack.c.l.s4 1983009808
        %v5110 = vunpack.c.0.s8 %v5109
        %v5111 = vlaneseq
        %v5112 = vshrl.u32 %v5111, 7
        %v5113 = vsub.s32 %v5110, %v5112
        %v5114 = vrot.slane %v5100, %v5113
        %v5115 = vcombine.low %v5054, %v5058
        %v5116 = vcombine.high %v5054, %v5058
        %v5118 = vunpack.c.l.s4 1983009808
        %v5119 = vunpack.c.0.s8 %v5118
        %v5120 = vlaneseq
        %v5121 = vshrl.u32 %v5120, 7
        %v5122 = vsub.s32 %v5119, %v5121
        %v5123 = vrot.slane %v5115, %v5122
        %v5125 = vunpack.c.l.s4 1983009808
        %v5126 = vunpack.c.0.s8 %v5125
        %v5127 = vlaneseq
        %v5128 = vshrl.u32 %v5127, 7
        %v5129 = vsub.s32 %v5126, %v5128
        %v5130 = vrot.slane %v5116, %v5129
        %v5131 = vcombine.low %v5075, %v5091
        %v5132 = vcombine.high %v5075, %v5091
        %v5134 = vunpack.c.l.s4 1934713408
        %v5135 = vunpack.c.0.s8 %v5134
        %v5136 = vlaneseq
        %v5137 = vshrl.u32 %v5136, 7
        %v5138 = vsub.s32 %v5135, %v5137
        %v5139 = vrot.slane %v5131, %v5138
        %v5141 = vunpack.c.l.s4 1934713408
        %v5142 = vunpack.c.0.s8 %v5141
        %v5143 = vlaneseq
        %v5144 = vshrl.u32 %v5143, 7
        %v5145 = vsub.s32 %v5142, %v5144
        %v5146 = vrot.slane %v5132, %v5145
        %v5147 = vcombine.low %v5082, %v5098
        %v5148 = vcombine.high %v5082, %v5098
        %v5150 = vunpack.c.l.s4 1934713408
        %v5151 = vunpack.c.0.s8 %v5150
        %v5152 = vlaneseq
        %v5153 = vshrl.u32 %v5152, 7
        %v5154 = vsub.s32 %v5151, %v5153
        %v5155 = vrot.slane %v5147, %v5154
        %v5157 = vunpack.c.l.s4 1934713408
        %v5158 = vunpack.c.0.s8 %v5157
        %v5159 = vlaneseq
        %v5160 = vshrl.u32 %v5159, 7
        %v5161 = vsub.s32 %v5158, %v5160
        %v5162 = vrot.slane %v5148, %v5161
        %v5163 = vcombine.low %v5107, %v5123
        %v5164 = vcombine.high %v5107, %v5123
        %v5166 = vunpack.c.l.s4 1934713408
        %v5167 = vunpack.c.0.s8 %v5166
        %v5168 = vlaneseq
        %v5169 = vshrl.u32 %v5168, 7
        %v5170 = vsub.s32 %v5167, %v5169
        %v5171 = vrot.slane %v5163, %v5170
        %v5173 = vunpack.c.l.s4 1934713408
        %v5174 = vunpack.c.0.s8 %v5173
        %v5175 = vlaneseq
        %v5176 = vshrl.u32 %v5175, 7
        %v5177 = vsub.s32 %v5174, %v5176
        %v5178 = vrot.slane %v5164, %v5177
        %v5179 = vcombine.low %v5114, %v5130
        %v5180 = vcombine.high %v5114, %v5130
        %v5182 = vunpack.c.l.s4 1934713408
        %v5183 = vunpack.c.0.s8 %v5182
        %v5184 = vlaneseq
        %v5185 = vshrl.u32 %v5184, 7
        %v5186 = vsub.s32 %v5183, %v5185
        %v5187 = vrot.slane %v5179, %v5186
        %v5189 = vunpack.c.l.s4 1934713408
        %v5190 = vunpack.c.0.s8 %v5189
        %v5191 = vlaneseq
        %v5192 = vshrl.u32 %v5191, 7
        %v5193 = vsub.s32 %v5190, %v5192
        %v5194 = vrot.slane %v5180, %v5193
        %v5195 = vcombine.low %v5139, %v5171
        %v5196 = vcombine.high %v5139, %v5171
        %v5197 = vcombine.low %v5146, %v5178
        %v5198 = vcombine.high %v5146, %v5178
        %v5199 = vcombine.low %v5155, %v5187
        %v5200 = vcombine.high %v5155, %v5187
        %v5201 = vcombine.low %v5162, %v5194
        %v5202 = vcombine.high %v5162, %v5194
        %5204 = vrot.lane.b32.xlu0 %v5196, 8
        %v5205 = vpop.permute.xlu0 %5204
        %5208 = vrot.lane.b32.xlu0 %v5197, 16
        %v5209 = vpop.permute.xlu0 %5208
        %5212 = vrot.lane.b32.xlu0 %v5198, 24
        %v5213 = vpop.permute.xlu0 %5212
        %5216 = vrot.lane.b32.xlu0 %v5199, 32
        %v5217 = vpop.permute.xlu0 %5216
        %5220 = vrot.lane.b32.xlu0 %v5200, 40
        %v5221 = vpop.permute.xlu0 %5220
        %5224 = vrot.lane.b32.xlu0 %v5201, 48
        %v5225 = vpop.permute.xlu0 %5224
        %5228 = vrot.lane.b32.xlu0 %v5202, 56
        %v5229 = vpop.permute.xlu0 %5228
        %v5231 = vsel %vm3635, %v5195, %v5205
        %v5232 = vsel %vm987, %v5231, %v5209
        %v5233 = vsel %vm3638, %v5232, %v5213
        %v5234 = vsel %vm989, %v5233, %v5217
        %v5235 = vsel %vm3641, %v5234, %v5221
        %v5236 = vsel %vm991, %v5235, %v5225
        %v5237 = vsel %vm3644, %v5236, %v5229
        %v5238 = vld [vmem:[%s6] sm:$0xff]
        %vm5239 = vcmask 621568
        %v5241 = vsel %vm5239, %v5238, 0
        %v5244 = vsel %vm2894, %v3156, 0
        %5246 = vmatprep.subr.mxu0 0.0
        %5247 = vmatpush1.msra.mxu0 %v3645
        %5248 = vmatprep.subr.mxu0 0.0
        %5249 = vmatpush1.msra.mxu0 %v3848
        %5250 = vmatprep.subr.mxu0 0.0
        %5251 = vmatpush1.msra.mxu0 %v4043
        %5252 = vmatprep.subr.mxu0 0.0
        %5253 = vmatpush1.msra.mxu0 %v4254
        %5254 = vmatprep.subr.mxu0 0.0
        %5255 = vmatpush1.msra.mxu0 %v4449
        %5256 = vmatprep.subr.mxu0 0.0
        %5257 = vmatpush1.msra.mxu0 %v4644
        %5258 = vmatprep.subr.mxu0 0.0
        %5259 = vmatpush1.msra.mxu0 %v4847
        %5260 = vmatprep.subr.mxu0 0.0
        %5261 = vmatpush1.msra.mxu0 %v5042
        %5262 = vmatprep.subr.mxu0 0.0
        %5263 = vmatpush1.msra.mxu0 %v5237
        %5264 = vmatprep.subr.mxu0 0.0
        %5265 = vmatpush1.msra.mxu0 %v5244
        %5266 = vmatprep.subr.mxu0 0.0
        %5267 = vmatpush1.msra.mxu0 0.0
        %5268 = vmatprep.subr.mxu0 0.0
        %5269 = vmatpush1.msra.mxu0 0.0
        %5270 = vmatprep.subr.mxu0 0.0
        %5271 = vmatpush1.msra.mxu0 0.0
        %5272 = vmatprep.subr.mxu0 0.0
        %5273 = vmatpush1.msra.mxu0 0.0
        %5274 = vmatprep.subr.mxu0 0.0
        %5275 = vmatpush1.msra.mxu0 0.0
        %5276 = vmatprep.subr.mxu0 0.0
        %5277 = vmatpush1.msra.mxu0 0.0
        %5278 = vmatprep.subr.mxu0 0.0
        %5279 = vmatpush1.msra.mxu0 0.0
        %5280 = vmatprep.subr.mxu0 0.0
        %5281 = vmatpush1.msra.mxu0 0.0
        %5282 = vmatprep.subr.mxu0 0.0
        %5283 = vmatpush1.msra.mxu0 0.0
        %5284 = vmatprep.subr.mxu0 0.0
        %5285 = vmatpush1.msra.mxu0 0.0
        %5286 = vmatprep.subr.mxu0 0.0
        %5287 = vmatpush1.msra.mxu0 0.0
        %5288 = vmatprep.subr.mxu0 0.0
        %5289 = vmatpush1.msra.mxu0 0.0
        %5290 = vmatprep.subr.mxu0 0.0
        %5291 = vmatpush1.msra.mxu0 0.0
        %5292 = vmatprep.subr.mxu0 0.0
        %5293 = vmatpush1.msra.mxu0 0.0
        %5294 = vmatprep.subr.mxu0 0.0
        %5295 = vmatpush1.msra.mxu0 0.0
        %5296 = vmatprep.subr.mxu0 0.0
        %5297 = vmatpush1.msra.mxu0 0.0
        %5298 = vmatprep.subr.mxu0 0.0
        %5299 = vmatpush1.msra.mxu0 0.0
        %5300 = vmatprep.subr.mxu0 0.0
        %5301 = vmatpush1.msra.mxu0 0.0
        %5302 = vmatprep.subr.mxu0 0.0
        %5303 = vmatpush1.msra.mxu0 0.0
        %5304 = vmatprep.subr.mxu0 0.0
        %5305 = vmatpush1.msra.mxu0 0.0
        %5306 = vmatprep.subr.mxu0 0.0
        %5307 = vmatpush1.msra.mxu0 0.0
        %5308 = vmatprep.subr.mxu0 0.0
        %5309 = vmatpush1.msra.mxu0 0.0
        %5310 = vmatprep.mubr.f32.mxu0 0.0
        %5311 = vmatmul.mubr.f32.gmra.mrb[0].mxu0 %v5241
        %v5312 = vpop.f32.mrb[0].mxu0
        %v5313 = vadd.f32 0.0, %v5312
        %v5314 = vpop.f32.mrb[0].mxu0
        %5315 = vdwg.mxu0
        %v5316 = vld [vmem:[%s8] sm:$0xff]
        %5318 = vset.pattern.permute.xlu0 0
        %5319 = vperm.xlu0 %5318, %v5316
        %v5320 = vpop.permute.xlu0 %5319
        %v5322 = vmul.f32 %v5313, %v5320
        %v5323 = vld [vmem:[%s9] sm:$0xff]
        %5325 = vset.pattern.permute.xlu0 0
        %5326 = vperm.xlu0 %5325, %v5323
        %v5327 = vpop.permute.xlu0 %5326
        %v5329 = vadd.f32 %v5322, %v5327
        %vm5330 = vcmp.gt.f32.partialorder %v5329, 0.0
        %v5331 = vmul.f32 %v5329, 0.1
        %v5332 = vsel %vm5330, %v5329, %v5331
        %5334 = vrot.lane.b32.xlu0 %v5332, 120
        %v5335 = vpop.permute.xlu0 %5334
        %5337 = vrot.lane.b32.xlu0 %v5332, 112
        %v5338 = vpop.permute.xlu0 %5337
        %5340 = vrot.lane.b32.xlu0 %v5332, 104
        %v5341 = vpop.permute.xlu0 %5340
        %5343 = vrot.lane.b32.xlu0 %v5332, 96
        %v5344 = vpop.permute.xlu0 %5343
        %5346 = vrot.lane.b32.xlu0 %v5332, 88
        %v5347 = vpop.permute.xlu0 %5346
        %5349 = vrot.lane.b32.xlu0 %v5332, 80
        %v5350 = vpop.permute.xlu0 %5349
        %5352 = vrot.lane.b32.xlu0 %v5332, 72
        %v5353 = vpop.permute.xlu0 %5352
        %v5355 = vcombine.low %v5332, %v5338
        %v5356 = vcombine.high %v5332, %v5338
        %v5358 = vunpack.c.l.s4 1983009808
        %v5359 = vunpack.c.0.s8 %v5358
        %v5360 = vlaneseq
        %v5361 = vshrl.u32 %v5360, 7
        %v5362 = vsub.s32 %v5359, %v5361
        %v5363 = vrot.slane %v5355, %v5362
        %v5365 = vunpack.c.l.s4 1983009808
        %v5366 = vunpack.c.0.s8 %v5365
        %v5367 = vlaneseq
        %v5368 = vshrl.u32 %v5367, 7
        %v5369 = vsub.s32 %v5366, %v5368
        %v5370 = vrot.slane %v5356, %v5369
        %v5371 = vcombine.low %v5335, %v5341
        %v5372 = vcombine.high %v5335, %v5341
        %v5374 = vunpack.c.l.s4 1983009808
        %v5375 = vunpack.c.0.s8 %v5374
        %v5376 = vlaneseq
        %v5377 = vshrl.u32 %v5376, 7
        %v5378 = vsub.s32 %v5375, %v5377
        %v5379 = vrot.slane %v5371, %v5378
        %v5381 = vunpack.c.l.s4 1983009808
        %v5382 = vunpack.c.0.s8 %v5381
        %v5383 = vlaneseq
        %v5384 = vshrl.u32 %v5383, 7
        %v5385 = vsub.s32 %v5382, %v5384
        %v5386 = vrot.slane %v5372, %v5385
        %v5387 = vcombine.low %v5344, %v5350
        %v5388 = vcombine.high %v5344, %v5350
        %v5390 = vunpack.c.l.s4 1983009808
        %v5391 = vunpack.c.0.s8 %v5390
        %v5392 = vlaneseq
        %v5393 = vshrl.u32 %v5392, 7
        %v5394 = vsub.s32 %v5391, %v5393
        %v5395 = vrot.slane %v5387, %v5394
        %v5397 = vunpack.c.l.s4 1983009808
        %v5398 = vunpack.c.0.s8 %v5397
        %v5399 = vlaneseq
        %v5400 = vshrl.u32 %v5399, 7
        %v5401 = vsub.s32 %v5398, %v5400
        %v5402 = vrot.slane %v5388, %v5401
        %v5403 = vcombine.low %v5347, %v5353
        %v5404 = vcombine.high %v5347, %v5353
        %v5406 = vunpack.c.l.s4 1983009808
        %v5407 = vunpack.c.0.s8 %v5406
        %v5408 = vlaneseq
        %v5409 = vshrl.u32 %v5408, 7
        %v5410 = vsub.s32 %v5407, %v5409
        %v5411 = vrot.slane %v5403, %v5410
        %v5413 = vunpack.c.l.s4 1983009808
        %v5414 = vunpack.c.0.s8 %v5413
        %v5415 = vlaneseq
        %v5416 = vshrl.u32 %v5415, 7
        %v5417 = vsub.s32 %v5414, %v5416
        %v5418 = vrot.slane %v5404, %v5417
        %v5419 = vcombine.low %v5363, %v5379
        %v5420 = vcombine.high %v5363, %v5379
        %v5422 = vunpack.c.l.s4 1934713408
        %v5423 = vunpack.c.0.s8 %v5422
        %v5424 = vlaneseq
        %v5425 = vshrl.u32 %v5424, 7
        %v5426 = vsub.s32 %v5423, %v5425
        %v5427 = vrot.slane %v5419, %v5426
        %v5429 = vunpack.c.l.s4 1934713408
        %v5430 = vunpack.c.0.s8 %v5429
        %v5431 = vlaneseq
        %v5432 = vshrl.u32 %v5431, 7
        %v5433 = vsub.s32 %v5430, %v5432
        %v5434 = vrot.slane %v5420, %v5433
        %v5435 = vcombine.low %v5370, %v5386
        %v5436 = vcombine.high %v5370, %v5386
        %v5438 = vunpack.c.l.s4 1934713408
        %v5439 = vunpack.c.0.s8 %v5438
        %v5440 = vlaneseq
        %v5441 = vshrl.u32 %v5440, 7
        %v5442 = vsub.s32 %v5439, %v5441
        %v5443 = vrot.slane %v5435, %v5442
        %v5445 = vunpack.c.l.s4 1934713408
        %v5446 = vunpack.c.0.s8 %v5445
        %v5447 = vlaneseq
        %v5448 = vshrl.u32 %v5447, 7
        %v5449 = vsub.s32 %v5446, %v5448
        %v5450 = vrot.slane %v5436, %v5449
        %v5451 = vcombine.low %v5395, %v5411
        %v5452 = vcombine.high %v5395, %v5411
        %v5454 = vunpack.c.l.s4 1934713408
        %v5455 = vunpack.c.0.s8 %v5454
        %v5456 = vlaneseq
        %v5457 = vshrl.u32 %v5456, 7
        %v5458 = vsub.s32 %v5455, %v5457
        %v5459 = vrot.slane %v5451, %v5458
        %v5461 = vunpack.c.l.s4 1934713408
        %v5462 = vunpack.c.0.s8 %v5461
        %v5463 = vlaneseq
        %v5464 = vshrl.u32 %v5463, 7
        %v5465 = vsub.s32 %v5462, %v5464
        %v5466 = vrot.slane %v5452, %v5465
        %v5467 = vcombine.low %v5402, %v5418
        %v5468 = vcombine.high %v5402, %v5418
        %v5470 = vunpack.c.l.s4 1934713408
        %v5471 = vunpack.c.0.s8 %v5470
        %v5472 = vlaneseq
        %v5473 = vshrl.u32 %v5472, 7
        %v5474 = vsub.s32 %v5471, %v5473
        %v5475 = vrot.slane %v5467, %v5474
        %v5477 = vunpack.c.l.s4 1934713408
        %v5478 = vunpack.c.0.s8 %v5477
        %v5479 = vlaneseq
        %v5480 = vshrl.u32 %v5479, 7
        %v5481 = vsub.s32 %v5478, %v5480
        %v5482 = vrot.slane %v5468, %v5481
        %v5483 = vcombine.low %v5427, %v5459
        %v5484 = vcombine.high %v5427, %v5459
        %v5485 = vcombine.low %v5434, %v5466
        %v5486 = vcombine.high %v5434, %v5466
        %v5487 = vcombine.low %v5443, %v5475
        %v5488 = vcombine.high %v5443, %v5475
        %v5489 = vcombine.low %v5450, %v5482
        %v5490 = vcombine.high %v5450, %v5482
        %v5499 = vrot.slane %v5483, 7
        %v5500 = vrot.slane %v5484, 7
        %v5501 = vrot.slane %v5485, 7
        %v5502 = vrot.slane %v5486, 7
        %v5503 = vrot.slane %v5487, 7
        %v5504 = vrot.slane %v5488, 7
        %v5505 = vrot.slane %v5489, 7
        %v5506 = vrot.slane %v5490, 7
        %v5515 = vsel %vm696, 0.0, %v5499
        %v5516 = vsel %vm696, 0.0, %v5500
        %v5517 = vsel %vm696, 0.0, %v5501
        %v5518 = vsel %vm696, 0.0, %v5502
        %v5519 = vsel %vm696, 0.0, %v5503
        %v5520 = vsel %vm696, 0.0, %v5504
        %v5521 = vsel %vm696, 0.0, %v5505
        %v5522 = vsel %vm696, 0.0, %v5506
        %v5523 = vsel %vm696, %v5499, 0.0
        %v5524 = vsel %vm696, %v5500, 0.0
        %v5525 = vsel %vm696, %v5501, 0.0
        %v5526 = vsel %vm696, %v5502, 0.0
        %v5527 = vsel %vm696, %v5503, 0.0
        %v5528 = vsel %vm696, %v5504, 0.0
        %v5529 = vsel %vm696, %v5505, 0.0
        %v5530 = vsel %vm696, %v5506, 0.0
        %5547 = vrot.lane.b32.xlu0 %v5515, 1
        %v5548 = vpop.permute.xlu0 %5547
        %5549 = vrot.lane.b32.xlu0 %v5523, 1
        %v5550 = vpop.permute.xlu0 %5549
        %5551 = vrot.lane.b32.xlu0 %v5516, 1
        %v5552 = vpop.permute.xlu0 %5551
        %5553 = vrot.lane.b32.xlu0 %v5524, 1
        %v5554 = vpop.permute.xlu0 %5553
        %5555 = vrot.lane.b32.xlu0 %v5517, 1
        %v5556 = vpop.permute.xlu0 %5555
        %5557 = vrot.lane.b32.xlu0 %v5525, 1
        %v5558 = vpop.permute.xlu0 %5557
        %5559 = vrot.lane.b32.xlu0 %v5518, 1
        %v5560 = vpop.permute.xlu0 %5559
        %5561 = vrot.lane.b32.xlu0 %v5526, 1
        %v5562 = vpop.permute.xlu0 %5561
        %5563 = vrot.lane.b32.xlu0 %v5519, 1
        %v5564 = vpop.permute.xlu0 %5563
        %5565 = vrot.lane.b32.xlu0 %v5527, 1
        %v5566 = vpop.permute.xlu0 %5565
        %5567 = vrot.lane.b32.xlu0 %v5520, 1
        %v5568 = vpop.permute.xlu0 %5567
        %5569 = vrot.lane.b32.xlu0 %v5528, 1
        %v5570 = vpop.permute.xlu0 %5569
        %5571 = vrot.lane.b32.xlu0 %v5521, 1
        %v5572 = vpop.permute.xlu0 %5571
        %5573 = vrot.lane.b32.xlu0 %v5529, 1
        %v5574 = vpop.permute.xlu0 %5573
        %5575 = vrot.lane.b32.xlu0 %v5522, 1
        %v5576 = vpop.permute.xlu0 %5575
        %5577 = vrot.lane.b32.xlu0 %v5530, 1
        %v5578 = vpop.permute.xlu0 %5577
        %v5595 = vsel %vm769, 0.0, %v5548
        %v5596 = vsel %vm769, 0.0, %v5550
        %v5597 = vsel %vm769, 0.0, %v5552
        %v5598 = vsel %vm769, 0.0, %v5554
        %v5599 = vsel %vm769, 0.0, %v5556
        %v5600 = vsel %vm769, 0.0, %v5558
        %v5601 = vsel %vm769, 0.0, %v5560
        %v5602 = vsel %vm769, 0.0, %v5562
        %v5603 = vsel %vm769, 0.0, %v5564
        %v5604 = vsel %vm769, 0.0, %v5566
        %v5605 = vsel %vm769, 0.0, %v5568
        %v5606 = vsel %vm769, 0.0, %v5570
        %v5607 = vsel %vm769, 0.0, %v5572
        %v5608 = vsel %vm769, 0.0, %v5574
        %v5609 = vsel %vm769, 0.0, %v5576
        %v5610 = vsel %vm769, 0.0, %v5578
        %v5611 = vsel %vm3454, %v5595, 0.0
        %v5612 = vsel %vm3454, %v5596, 0.0
        %v5613 = vsel %vm3454, %v5597, 0.0
        %v5614 = vsel %vm3454, %v5598, 0.0
        %v5615 = vsel %vm3454, %v5599, 0.0
        %v5616 = vsel %vm3454, %v5600, 0.0
        %v5617 = vsel %vm3454, %v5601, 0.0
        %v5618 = vsel %vm3454, %v5602, 0.0
        %v5619 = vsel %vm3454, %v5603, 0.0
        %v5620 = vsel %vm3454, %v5604, 0.0
        %v5621 = vsel %vm3454, %v5605, 0.0
        %v5622 = vsel %vm3454, %v5606, 0.0
        %v5623 = vsel %vm3454, %v5607, 0.0
        %v5624 = vsel %vm3454, %v5608, 0.0
        %v5625 = vsel %vm3454, %v5609, 0.0
        %v5626 = vsel %vm3454, %v5610, 0.0
        %v5627 = vcombine.low %v5611, %v5615
        %v5628 = vcombine.high %v5611, %v5615
        %v5630 = vunpack.c.l.s4 1983009808
        %v5631 = vunpack.c.0.s8 %v5630
        %v5632 = vlaneseq
        %v5633 = vshrl.u32 %v5632, 7
        %v5634 = vsub.s32 %v5631, %v5633
        %v5635 = vrot.slane %v5627, %v5634
        %v5637 = vunpack.c.l.s4 1983009808
        %v5638 = vunpack.c.0.s8 %v5637
        %v5639 = vlaneseq
        %v5640 = vshrl.u32 %v5639, 7
        %v5641 = vsub.s32 %v5638, %v5640
        %v5642 = vrot.slane %v5628, %v5641
        %v5643 = vcombine.low %v5613, %v5617
        %v5644 = vcombine.high %v5613, %v5617
        %v5646 = vunpack.c.l.s4 1983009808
        %v5647 = vunpack.c.0.s8 %v5646
        %v5648 = vlaneseq
        %v5649 = vshrl.u32 %v5648, 7
        %v5650 = vsub.s32 %v5647, %v5649
        %v5651 = vrot.slane %v5643, %v5650
        %v5653 = vunpack.c.l.s4 1983009808
        %v5654 = vunpack.c.0.s8 %v5653
        %v5655 = vlaneseq
        %v5656 = vshrl.u32 %v5655, 7
        %v5657 = vsub.s32 %v5654, %v5656
        %v5658 = vrot.slane %v5644, %v5657
        %v5659 = vcombine.low %v5619, %v5623
        %v5660 = vcombine.high %v5619, %v5623
        %v5662 = vunpack.c.l.s4 1983009808
        %v5663 = vunpack.c.0.s8 %v5662
        %v5664 = vlaneseq
        %v5665 = vshrl.u32 %v5664, 7
        %v5666 = vsub.s32 %v5663, %v5665
        %v5667 = vrot.slane %v5659, %v5666
        %v5669 = vunpack.c.l.s4 1983009808
        %v5670 = vunpack.c.0.s8 %v5669
        %v5671 = vlaneseq
        %v5672 = vshrl.u32 %v5671, 7
        %v5673 = vsub.s32 %v5670, %v5672
        %v5674 = vrot.slane %v5660, %v5673
        %v5675 = vcombine.low %v5621, %v5625
        %v5676 = vcombine.high %v5621, %v5625
        %v5678 = vunpack.c.l.s4 1983009808
        %v5679 = vunpack.c.0.s8 %v5678
        %v5680 = vlaneseq
        %v5681 = vshrl.u32 %v5680, 7
        %v5682 = vsub.s32 %v5679, %v5681
        %v5683 = vrot.slane %v5675, %v5682
        %v5685 = vunpack.c.l.s4 1983009808
        %v5686 = vunpack.c.0.s8 %v5685
        %v5687 = vlaneseq
        %v5688 = vshrl.u32 %v5687, 7
        %v5689 = vsub.s32 %v5686, %v5688
        %v5690 = vrot.slane %v5676, %v5689
        %v5691 = vcombine.low %v5635, %v5651
        %v5692 = vcombine.high %v5635, %v5651
        %v5694 = vunpack.c.l.s4 1934713408
        %v5695 = vunpack.c.0.s8 %v5694
        %v5696 = vlaneseq
        %v5697 = vshrl.u32 %v5696, 7
        %v5698 = vsub.s32 %v5695, %v5697
        %v5699 = vrot.slane %v5691, %v5698
        %v5701 = vunpack.c.l.s4 1934713408
        %v5702 = vunpack.c.0.s8 %v5701
        %v5703 = vlaneseq
        %v5704 = vshrl.u32 %v5703, 7
        %v5705 = vsub.s32 %v5702, %v5704
        %v5706 = vrot.slane %v5692, %v5705
        %v5707 = vcombine.low %v5642, %v5658
        %v5708 = vcombine.high %v5642, %v5658
        %v5710 = vunpack.c.l.s4 1934713408
        %v5711 = vunpack.c.0.s8 %v5710
        %v5712 = vlaneseq
        %v5713 = vshrl.u32 %v5712, 7
        %v5714 = vsub.s32 %v5711, %v5713
        %v5715 = vrot.slane %v5707, %v5714
        %v5717 = vunpack.c.l.s4 1934713408
        %v5718 = vunpack.c.0.s8 %v5717
        %v5719 = vlaneseq
        %v5720 = vshrl.u32 %v5719, 7
        %v5721 = vsub.s32 %v5718, %v5720
        %v5722 = vrot.slane %v5708, %v5721
        %v5723 = vcombine.low %v5667, %v5683
        %v5724 = vcombine.high %v5667, %v5683
        %v5726 = vunpack.c.l.s4 1934713408
        %v5727 = vunpack.c.0.s8 %v5726
        %v5728 = vlaneseq
        %v5729 = vshrl.u32 %v5728, 7
        %v5730 = vsub.s32 %v5727, %v5729
        %v5731 = vrot.slane %v5723, %v5730
        %v5733 = vunpack.c.l.s4 1934713408
        %v5734 = vunpack.c.0.s8 %v5733
        %v5735 = vlaneseq
        %v5736 = vshrl.u32 %v5735, 7
        %v5737 = vsub.s32 %v5734, %v5736
        %v5738 = vrot.slane %v5724, %v5737
        %v5739 = vcombine.low %v5674, %v5690
        %v5740 = vcombine.high %v5674, %v5690
        %v5742 = vunpack.c.l.s4 1934713408
        %v5743 = vunpack.c.0.s8 %v5742
        %v5744 = vlaneseq
        %v5745 = vshrl.u32 %v5744, 7
        %v5746 = vsub.s32 %v5743, %v5745
        %v5747 = vrot.slane %v5739, %v5746
        %v5749 = vunpack.c.l.s4 1934713408
        %v5750 = vunpack.c.0.s8 %v5749
        %v5751 = vlaneseq
        %v5752 = vshrl.u32 %v5751, 7
        %v5753 = vsub.s32 %v5750, %v5752
        %v5754 = vrot.slane %v5740, %v5753
        %v5755 = vcombine.low %v5699, %v5731
        %v5756 = vcombine.high %v5699, %v5731
        %v5757 = vcombine.low %v5706, %v5738
        %v5758 = vcombine.high %v5706, %v5738
        %v5759 = vcombine.low %v5715, %v5747
        %v5760 = vcombine.high %v5715, %v5747
        %v5761 = vcombine.low %v5722, %v5754
        %v5762 = vcombine.high %v5722, %v5754
        %5764 = vrot.lane.b32.xlu0 %v5756, 8
        %v5765 = vpop.permute.xlu0 %5764
        %5768 = vrot.lane.b32.xlu0 %v5757, 16
        %v5769 = vpop.permute.xlu0 %5768
        %5772 = vrot.lane.b32.xlu0 %v5758, 24
        %v5773 = vpop.permute.xlu0 %5772
        %5776 = vrot.lane.b32.xlu0 %v5759, 32
        %v5777 = vpop.permute.xlu0 %5776
        %5780 = vrot.lane.b32.xlu0 %v5760, 40
        %v5781 = vpop.permute.xlu0 %5780
        %5784 = vrot.lane.b32.xlu0 %v5761, 48
        %v5785 = vpop.permute.xlu0 %5784
        %5788 = vrot.lane.b32.xlu0 %v5762, 56
        %v5789 = vpop.permute.xlu0 %5788
        %v5791 = vsel %vm3635, %v5755, %v5765
        %v5792 = vsel %vm987, %v5791, %v5769
        %v5793 = vsel %vm3638, %v5792, %v5773
        %v5794 = vsel %vm989, %v5793, %v5777
        %v5795 = vsel %vm3641, %v5794, %v5781
        %v5796 = vsel %vm991, %v5795, %v5785
        %v5797 = vsel %vm3644, %v5796, %v5789
        %5806 = vrot.lane.b32.xlu0 %v5611, 127
        %v5807 = vpop.permute.xlu0 %5806
        %5808 = vrot.lane.b32.xlu0 %v5613, 127
        %v5809 = vpop.permute.xlu0 %5808
        %5810 = vrot.lane.b32.xlu0 %v5615, 127
        %v5811 = vpop.permute.xlu0 %5810
        %5812 = vrot.lane.b32.xlu0 %v5617, 127
        %v5813 = vpop.permute.xlu0 %5812
        %5814 = vrot.lane.b32.xlu0 %v5619, 127
        %v5815 = vpop.permute.xlu0 %5814
        %5816 = vrot.lane.b32.xlu0 %v5621, 127
        %v5817 = vpop.permute.xlu0 %5816
        %5818 = vrot.lane.b32.xlu0 %v5623, 127
        %v5819 = vpop.permute.xlu0 %5818
        %5820 = vrot.lane.b32.xlu0 %v5625, 127
        %v5821 = vpop.permute.xlu0 %5820
        %v5830 = vcombine.low %v5807, %v5811
        %v5831 = vcombine.high %v5807, %v5811
        %v5833 = vunpack.c.l.s4 1983009808
        %v5834 = vunpack.c.0.s8 %v5833
        %v5835 = vlaneseq
        %v5836 = vshrl.u32 %v5835, 7
        %v5837 = vsub.s32 %v5834, %v5836
        %v5838 = vrot.slane %v5830, %v5837
        %v5840 = vunpack.c.l.s4 1983009808
        %v5841 = vunpack.c.0.s8 %v5840
        %v5842 = vlaneseq
        %v5843 = vshrl.u32 %v5842, 7
        %v5844 = vsub.s32 %v5841, %v5843
        %v5845 = vrot.slane %v5831, %v5844
        %v5846 = vcombine.low %v5809, %v5813
        %v5847 = vcombine.high %v5809, %v5813
        %v5849 = vunpack.c.l.s4 1983009808
        %v5850 = vunpack.c.0.s8 %v5849
        %v5851 = vlaneseq
        %v5852 = vshrl.u32 %v5851, 7
        %v5853 = vsub.s32 %v5850, %v5852
        %v5854 = vrot.slane %v5846, %v5853
        %v5856 = vunpack.c.l.s4 1983009808
        %v5857 = vunpack.c.0.s8 %v5856
        %v5858 = vlaneseq
        %v5859 = vshrl.u32 %v5858, 7
        %v5860 = vsub.s32 %v5857, %v5859
        %v5861 = vrot.slane %v5847, %v5860
        %v5862 = vcombine.low %v5815, %v5819
        %v5863 = vcombine.high %v5815, %v5819
        %v5865 = vunpack.c.l.s4 1983009808
        %v5866 = vunpack.c.0.s8 %v5865
        %v5867 = vlaneseq
        %v5868 = vshrl.u32 %v5867, 7
        %v5869 = vsub.s32 %v5866, %v5868
        %v5870 = vrot.slane %v5862, %v5869
        %v5872 = vunpack.c.l.s4 1983009808
        %v5873 = vunpack.c.0.s8 %v5872
        %v5874 = vlaneseq
        %v5875 = vshrl.u32 %v5874, 7
        %v5876 = vsub.s32 %v5873, %v5875
        %v5877 = vrot.slane %v5863, %v5876
        %v5878 = vcombine.low %v5817, %v5821
        %v5879 = vcombine.high %v5817, %v5821
        %v5881 = vunpack.c.l.s4 1983009808
        %v5882 = vunpack.c.0.s8 %v5881
        %v5883 = vlaneseq
        %v5884 = vshrl.u32 %v5883, 7
        %v5885 = vsub.s32 %v5882, %v5884
        %v5886 = vrot.slane %v5878, %v5885
        %v5888 = vunpack.c.l.s4 1983009808
        %v5889 = vunpack.c.0.s8 %v5888
        %v5890 = vlaneseq
        %v5891 = vshrl.u32 %v5890, 7
        %v5892 = vsub.s32 %v5889, %v5891
        %v5893 = vrot.slane %v5879, %v5892
        %v5894 = vcombine.low %v5838, %v5854
        %v5895 = vcombine.high %v5838, %v5854
        %v5897 = vunpack.c.l.s4 1934713408
        %v5898 = vunpack.c.0.s8 %v5897
        %v5899 = vlaneseq
        %v5900 = vshrl.u32 %v5899, 7
        %v5901 = vsub.s32 %v5898, %v5900
        %v5902 = vrot.slane %v5894, %v5901
        %v5904 = vunpack.c.l.s4 1934713408
        %v5905 = vunpack.c.0.s8 %v5904
        %v5906 = vlaneseq
        %v5907 = vshrl.u32 %v5906, 7
        %v5908 = vsub.s32 %v5905, %v5907
        %v5909 = vrot.slane %v5895, %v5908
        %v5910 = vcombine.low %v5845, %v5861
        %v5911 = vcombine.high %v5845, %v5861
        %v5913 = vunpack.c.l.s4 1934713408
        %v5914 = vunpack.c.0.s8 %v5913
        %v5915 = vlaneseq
        %v5916 = vshrl.u32 %v5915, 7
        %v5917 = vsub.s32 %v5914, %v5916
        %v5918 = vrot.slane %v5910, %v5917
        %v5920 = vunpack.c.l.s4 1934713408
        %v5921 = vunpack.c.0.s8 %v5920
        %v5922 = vlaneseq
        %v5923 = vshrl.u32 %v5922, 7
        %v5924 = vsub.s32 %v5921, %v5923
        %v5925 = vrot.slane %v5911, %v5924
        %v5926 = vcombine.low %v5870, %v5886
        %v5927 = vcombine.high %v5870, %v5886
        %v5929 = vunpack.c.l.s4 1934713408
        %v5930 = vunpack.c.0.s8 %v5929
        %v5931 = vlaneseq
        %v5932 = vshrl.u32 %v5931, 7
        %v5933 = vsub.s32 %v5930, %v5932
        %v5934 = vrot.slane %v5926, %v5933
        %v5936 = vunpack.c.l.s4 1934713408
        %v5937 = vunpack.c.0.s8 %v5936
        %v5938 = vlaneseq
        %v5939 = vshrl.u32 %v5938, 7
        %v5940 = vsub.s32 %v5937, %v5939
        %v5941 = vrot.slane %v5927, %v5940
        %v5942 = vcombine.low %v5877, %v5893
        %v5943 = vcombine.high %v5877, %v5893
        %v5945 = vunpack.c.l.s4 1934713408
        %v5946 = vunpack.c.0.s8 %v5945
        %v5947 = vlaneseq
        %v5948 = vshrl.u32 %v5947, 7
        %v5949 = vsub.s32 %v5946, %v5948
        %v5950 = vrot.slane %v5942, %v5949
        %v5952 = vunpack.c.l.s4 1934713408
        %v5953 = vunpack.c.0.s8 %v5952
        %v5954 = vlaneseq
        %v5955 = vshrl.u32 %v5954, 7
        %v5956 = vsub.s32 %v5953, %v5955
        %v5957 = vrot.slane %v5943, %v5956
        %v5958 = vcombine.low %v5902, %v5934
        %v5959 = vcombine.high %v5902, %v5934
        %v5960 = vcombine.low %v5909, %v5941
        %v5961 = vcombine.high %v5909, %v5941
        %v5962 = vcombine.low %v5918, %v5950
        %v5963 = vcombine.high %v5918, %v5950
        %v5964 = vcombine.low %v5925, %v5957
        %v5965 = vcombine.high %v5925, %v5957
        %5967 = vrot.lane.b32.xlu0 %v5959, 8
        %v5968 = vpop.permute.xlu0 %5967
        %5971 = vrot.lane.b32.xlu0 %v5960, 16
        %v5972 = vpop.permute.xlu0 %5971
        %5975 = vrot.lane.b32.xlu0 %v5961, 24
        %v5976 = vpop.permute.xlu0 %5975
        %5979 = vrot.lane.b32.xlu0 %v5962, 32
        %v5980 = vpop.permute.xlu0 %5979
        %5983 = vrot.lane.b32.xlu0 %v5963, 40
        %v5984 = vpop.permute.xlu0 %5983
        %5987 = vrot.lane.b32.xlu0 %v5964, 48
        %v5988 = vpop.permute.xlu0 %5987
        %5991 = vrot.lane.b32.xlu0 %v5965, 56
        %v5992 = vpop.permute.xlu0 %5991
        %v5994 = vsel %vm3635, %v5958, %v5968
        %v5995 = vsel %vm987, %v5994, %v5972
        %v5996 = vsel %vm3638, %v5995, %v5976
        %v5997 = vsel %vm989, %v5996, %v5980
        %v5998 = vsel %vm3641, %v5997, %v5984
        %v5999 = vsel %vm991, %v5998, %v5988
        %v6000 = vsel %vm3644, %v5999, %v5992
        %6001 = vrot.lane.b32.xlu0 %v5611, 126
        %v6002 = vpop.permute.xlu0 %6001
        %6003 = vrot.lane.b32.xlu0 %v5613, 126
        %v6004 = vpop.permute.xlu0 %6003
        %6005 = vrot.lane.b32.xlu0 %v5615, 126
        %v6006 = vpop.permute.xlu0 %6005
        %6007 = vrot.lane.b32.xlu0 %v5617, 126
        %v6008 = vpop.permute.xlu0 %6007
        %6009 = vrot.lane.b32.xlu0 %v5619, 126
        %v6010 = vpop.permute.xlu0 %6009
        %6011 = vrot.lane.b32.xlu0 %v5621, 126
        %v6012 = vpop.permute.xlu0 %6011
        %6013 = vrot.lane.b32.xlu0 %v5623, 126
        %v6014 = vpop.permute.xlu0 %6013
        %6015 = vrot.lane.b32.xlu0 %v5625, 126
        %v6016 = vpop.permute.xlu0 %6015
        %v6025 = vcombine.low %v6002, %v6006
        %v6026 = vcombine.high %v6002, %v6006
        %v6028 = vunpack.c.l.s4 1983009808
        %v6029 = vunpack.c.0.s8 %v6028
        %v6030 = vlaneseq
        %v6031 = vshrl.u32 %v6030, 7
        %v6032 = vsub.s32 %v6029, %v6031
        %v6033 = vrot.slane %v6025, %v6032
        %v6035 = vunpack.c.l.s4 1983009808
        %v6036 = vunpack.c.0.s8 %v6035
        %v6037 = vlaneseq
        %v6038 = vshrl.u32 %v6037, 7
        %v6039 = vsub.s32 %v6036, %v6038
        %v6040 = vrot.slane %v6026, %v6039
        %v6041 = vcombine.low %v6004, %v6008
        %v6042 = vcombine.high %v6004, %v6008
        %v6044 = vunpack.c.l.s4 1983009808
        %v6045 = vunpack.c.0.s8 %v6044
        %v6046 = vlaneseq
        %v6047 = vshrl.u32 %v6046, 7
        %v6048 = vsub.s32 %v6045, %v6047
        %v6049 = vrot.slane %v6041, %v6048
        %v6051 = vunpack.c.l.s4 1983009808
        %v6052 = vunpack.c.0.s8 %v6051
        %v6053 = vlaneseq
        %v6054 = vshrl.u32 %v6053, 7
        %v6055 = vsub.s32 %v6052, %v6054
        %v6056 = vrot.slane %v6042, %v6055
        %v6057 = vcombine.low %v6010, %v6014
        %v6058 = vcombine.high %v6010, %v6014
        %v6060 = vunpack.c.l.s4 1983009808
        %v6061 = vunpack.c.0.s8 %v6060
        %v6062 = vlaneseq
        %v6063 = vshrl.u32 %v6062, 7
        %v6064 = vsub.s32 %v6061, %v6063
        %v6065 = vrot.slane %v6057, %v6064
        %v6067 = vunpack.c.l.s4 1983009808
        %v6068 = vunpack.c.0.s8 %v6067
        %v6069 = vlaneseq
        %v6070 = vshrl.u32 %v6069, 7
        %v6071 = vsub.s32 %v6068, %v6070
        %v6072 = vrot.slane %v6058, %v6071
        %v6073 = vcombine.low %v6012, %v6016
        %v6074 = vcombine.high %v6012, %v6016
        %v6076 = vunpack.c.l.s4 1983009808
        %v6077 = vunpack.c.0.s8 %v6076
        %v6078 = vlaneseq
        %v6079 = vshrl.u32 %v6078, 7
        %v6080 = vsub.s32 %v6077, %v6079
        %v6081 = vrot.slane %v6073, %v6080
        %v6083 = vunpack.c.l.s4 1983009808
        %v6084 = vunpack.c.0.s8 %v6083
        %v6085 = vlaneseq
        %v6086 = vshrl.u32 %v6085, 7
        %v6087 = vsub.s32 %v6084, %v6086
        %v6088 = vrot.slane %v6074, %v6087
        %v6089 = vcombine.low %v6033, %v6049
        %v6090 = vcombine.high %v6033, %v6049
        %v6092 = vunpack.c.l.s4 1934713408
        %v6093 = vunpack.c.0.s8 %v6092
        %v6094 = vlaneseq
        %v6095 = vshrl.u32 %v6094, 7
        %v6096 = vsub.s32 %v6093, %v6095
        %v6097 = vrot.slane %v6089, %v6096
        %v6099 = vunpack.c.l.s4 1934713408
        %v6100 = vunpack.c.0.s8 %v6099
        %v6101 = vlaneseq
        %v6102 = vshrl.u32 %v6101, 7
        %v6103 = vsub.s32 %v6100, %v6102
        %v6104 = vrot.slane %v6090, %v6103
        %v6105 = vcombine.low %v6040, %v6056
        %v6106 = vcombine.high %v6040, %v6056
        %v6108 = vunpack.c.l.s4 1934713408
        %v6109 = vunpack.c.0.s8 %v6108
        %v6110 = vlaneseq
        %v6111 = vshrl.u32 %v6110, 7
        %v6112 = vsub.s32 %v6109, %v6111
        %v6113 = vrot.slane %v6105, %v6112
        %v6115 = vunpack.c.l.s4 1934713408
        %v6116 = vunpack.c.0.s8 %v6115
        %v6117 = vlaneseq
        %v6118 = vshrl.u32 %v6117, 7
        %v6119 = vsub.s32 %v6116, %v6118
        %v6120 = vrot.slane %v6106, %v6119
        %v6121 = vcombine.low %v6065, %v6081
        %v6122 = vcombine.high %v6065, %v6081
        %v6124 = vunpack.c.l.s4 1934713408
        %v6125 = vunpack.c.0.s8 %v6124
        %v6126 = vlaneseq
        %v6127 = vshrl.u32 %v6126, 7
        %v6128 = vsub.s32 %v6125, %v6127
        %v6129 = vrot.slane %v6121, %v6128
        %v6131 = vunpack.c.l.s4 1934713408
        %v6132 = vunpack.c.0.s8 %v6131
        %v6133 = vlaneseq
        %v6134 = vshrl.u32 %v6133, 7
        %v6135 = vsub.s32 %v6132, %v6134
        %v6136 = vrot.slane %v6122, %v6135
        %v6137 = vcombine.low %v6072, %v6088
        %v6138 = vcombine.high %v6072, %v6088
        %v6140 = vunpack.c.l.s4 1934713408
        %v6141 = vunpack.c.0.s8 %v6140
        %v6142 = vlaneseq
        %v6143 = vshrl.u32 %v6142, 7
        %v6144 = vsub.s32 %v6141, %v6143
        %v6145 = vrot.slane %v6137, %v6144
        %v6147 = vunpack.c.l.s4 1934713408
        %v6148 = vunpack.c.0.s8 %v6147
        %v6149 = vlaneseq
        %v6150 = vshrl.u32 %v6149, 7
        %v6151 = vsub.s32 %v6148, %v6150
        %v6152 = vrot.slane %v6138, %v6151
        %v6153 = vcombine.low %v6097, %v6129
        %v6154 = vcombine.high %v6097, %v6129
        %v6155 = vcombine.low %v6104, %v6136
        %v6156 = vcombine.high %v6104, %v6136
        %v6157 = vcombine.low %v6113, %v6145
        %v6158 = vcombine.high %v6113, %v6145
        %v6159 = vcombine.low %v6120, %v6152
        %v6160 = vcombine.high %v6120, %v6152
        %6162 = vrot.lane.b32.xlu0 %v6154, 8
        %v6163 = vpop.permute.xlu0 %6162
        %6166 = vrot.lane.b32.xlu0 %v6155, 16
        %v6167 = vpop.permute.xlu0 %6166
        %6170 = vrot.lane.b32.xlu0 %v6156, 24
        %v6171 = vpop.permute.xlu0 %6170
        %6174 = vrot.lane.b32.xlu0 %v6157, 32
        %v6175 = vpop.permute.xlu0 %6174
        %6178 = vrot.lane.b32.xlu0 %v6158, 40
        %v6179 = vpop.permute.xlu0 %6178
        %6182 = vrot.lane.b32.xlu0 %v6159, 48
        %v6183 = vpop.permute.xlu0 %6182
        %6186 = vrot.lane.b32.xlu0 %v6160, 56
        %v6187 = vpop.permute.xlu0 %6186
        %v6189 = vsel %vm3635, %v6153, %v6163
        %v6190 = vsel %vm987, %v6189, %v6167
        %v6191 = vsel %vm3638, %v6190, %v6171
        %v6192 = vsel %vm989, %v6191, %v6175
        %v6193 = vsel %vm3641, %v6192, %v6179
        %v6194 = vsel %vm991, %v6193, %v6183
        %v6195 = vsel %vm3644, %v6194, %v6187
        %v6204 = vrot.slane %v5611, 1
        %v6205 = vrot.slane %v5612, 1
        %v6206 = vsel %vm1480, %v6204, %v6205
        %v6207 = vrot.slane %v5613, 1
        %v6208 = vrot.slane %v5614, 1
        %v6209 = vsel %vm1480, %v6207, %v6208
        %v6210 = vrot.slane %v5615, 1
        %v6211 = vrot.slane %v5616, 1
        %v6212 = vsel %vm1480, %v6210, %v6211
        %v6213 = vrot.slane %v5617, 1
        %v6214 = vrot.slane %v5618, 1
        %v6215 = vsel %vm1480, %v6213, %v6214
        %v6216 = vrot.slane %v5619, 1
        %v6217 = vrot.slane %v5620, 1
        %v6218 = vsel %vm1480, %v6216, %v6217
        %v6219 = vrot.slane %v5621, 1
        %v6220 = vrot.slane %v5622, 1
        %v6221 = vsel %vm1480, %v6219, %v6220
        %v6222 = vrot.slane %v5623, 1
        %v6223 = vrot.slane %v5624, 1
        %v6224 = vsel %vm1480, %v6222, %v6223
        %v6225 = vrot.slane %v5625, 1
        %v6226 = vrot.slane %v5626, 1
        %v6227 = vsel %vm1480, %v6225, %v6226
        %v6236 = vcombine.low %v6206, %v6212
        %v6237 = vcombine.high %v6206, %v6212
        %v6239 = vunpack.c.l.s4 1983009808
        %v6240 = vunpack.c.0.s8 %v6239
        %v6241 = vlaneseq
        %v6242 = vshrl.u32 %v6241, 7
        %v6243 = vsub.s32 %v6240, %v6242
        %v6244 = vrot.slane %v6236, %v6243
        %v6246 = vunpack.c.l.s4 1983009808
        %v6247 = vunpack.c.0.s8 %v6246
        %v6248 = vlaneseq
        %v6249 = vshrl.u32 %v6248, 7
        %v6250 = vsub.s32 %v6247, %v6249
        %v6251 = vrot.slane %v6237, %v6250
        %v6252 = vcombine.low %v6209, %v6215
        %v6253 = vcombine.high %v6209, %v6215
        %v6255 = vunpack.c.l.s4 1983009808
        %v6256 = vunpack.c.0.s8 %v6255
        %v6257 = vlaneseq
        %v6258 = vshrl.u32 %v6257, 7
        %v6259 = vsub.s32 %v6256, %v6258
        %v6260 = vrot.slane %v6252, %v6259
        %v6262 = vunpack.c.l.s4 1983009808
        %v6263 = vunpack.c.0.s8 %v6262
        %v6264 = vlaneseq
        %v6265 = vshrl.u32 %v6264, 7
        %v6266 = vsub.s32 %v6263, %v6265
        %v6267 = vrot.slane %v6253, %v6266
        %v6268 = vcombine.low %v6218, %v6224
        %v6269 = vcombine.high %v6218, %v6224
        %v6271 = vunpack.c.l.s4 1983009808
        %v6272 = vunpack.c.0.s8 %v6271
        %v6273 = vlaneseq
        %v6274 = vshrl.u32 %v6273, 7
        %v6275 = vsub.s32 %v6272, %v6274
        %v6276 = vrot.slane %v6268, %v6275
        %v6278 = vunpack.c.l.s4 1983009808
        %v6279 = vunpack.c.0.s8 %v6278
        %v6280 = vlaneseq
        %v6281 = vshrl.u32 %v6280, 7
        %v6282 = vsub.s32 %v6279, %v6281
        %v6283 = vrot.slane %v6269, %v6282
        %v6284 = vcombine.low %v6221, %v6227
        %v6285 = vcombine.high %v6221, %v6227
        %v6287 = vunpack.c.l.s4 1983009808
        %v6288 = vunpack.c.0.s8 %v6287
        %v6289 = vlaneseq
        %v6290 = vshrl.u32 %v6289, 7
        %v6291 = vsub.s32 %v6288, %v6290
        %v6292 = vrot.slane %v6284, %v6291
        %v6294 = vunpack.c.l.s4 1983009808
        %v6295 = vunpack.c.0.s8 %v6294
        %v6296 = vlaneseq
        %v6297 = vshrl.u32 %v6296, 7
        %v6298 = vsub.s32 %v6295, %v6297
        %v6299 = vrot.slane %v6285, %v6298
        %v6300 = vcombine.low %v6244, %v6260
        %v6301 = vcombine.high %v6244, %v6260
        %v6303 = vunpack.c.l.s4 1934713408
        %v6304 = vunpack.c.0.s8 %v6303
        %v6305 = vlaneseq
        %v6306 = vshrl.u32 %v6305, 7
        %v6307 = vsub.s32 %v6304, %v6306
        %v6308 = vrot.slane %v6300, %v6307
        %v6310 = vunpack.c.l.s4 1934713408
        %v6311 = vunpack.c.0.s8 %v6310
        %v6312 = vlaneseq
        %v6313 = vshrl.u32 %v6312, 7
        %v6314 = vsub.s32 %v6311, %v6313
        %v6315 = vrot.slane %v6301, %v6314
        %v6316 = vcombine.low %v6251, %v6267
        %v6317 = vcombine.high %v6251, %v6267
        %v6319 = vunpack.c.l.s4 1934713408
        %v6320 = vunpack.c.0.s8 %v6319
        %v6321 = vlaneseq
        %v6322 = vshrl.u32 %v6321, 7
        %v6323 = vsub.s32 %v6320, %v6322
        %v6324 = vrot.slane %v6316, %v6323
        %v6326 = vunpack.c.l.s4 1934713408
        %v6327 = vunpack.c.0.s8 %v6326
        %v6328 = vlaneseq
        %v6329 = vshrl.u32 %v6328, 7
        %v6330 = vsub.s32 %v6327, %v6329
        %v6331 = vrot.slane %v6317, %v6330
        %v6332 = vcombine.low %v6276, %v6292
        %v6333 = vcombine.high %v6276, %v6292
        %v6335 = vunpack.c.l.s4 1934713408
        %v6336 = vunpack.c.0.s8 %v6335
        %v6337 = vlaneseq
        %v6338 = vshrl.u32 %v6337, 7
        %v6339 = vsub.s32 %v6336, %v6338
        %v6340 = vrot.slane %v6332, %v6339
        %v6342 = vunpack.c.l.s4 1934713408
        %v6343 = vunpack.c.0.s8 %v6342
        %v6344 = vlaneseq
        %v6345 = vshrl.u32 %v6344, 7
        %v6346 = vsub.s32 %v6343, %v6345
        %v6347 = vrot.slane %v6333, %v6346
        %v6348 = vcombine.low %v6283, %v6299
        %v6349 = vcombine.high %v6283, %v6299
        %v6351 = vunpack.c.l.s4 1934713408
        %v6352 = vunpack.c.0.s8 %v6351
        %v6353 = vlaneseq
        %v6354 = vshrl.u32 %v6353, 7
        %v6355 = vsub.s32 %v6352, %v6354
        %v6356 = vrot.slane %v6348, %v6355
        %v6358 = vunpack.c.l.s4 1934713408
        %v6359 = vunpack.c.0.s8 %v6358
        %v6360 = vlaneseq
        %v6361 = vshrl.u32 %v6360, 7
        %v6362 = vsub.s32 %v6359, %v6361
        %v6363 = vrot.slane %v6349, %v6362
        %v6364 = vcombine.low %v6308, %v6340
        %v6365 = vcombine.high %v6308, %v6340
        %v6366 = vcombine.low %v6315, %v6347
        %v6367 = vcombine.high %v6315, %v6347
        %v6368 = vcombine.low %v6324, %v6356
        %v6369 = vcombine.high %v6324, %v6356
        %v6370 = vcombine.low %v6331, %v6363
        %v6371 = vcombine.high %v6331, %v6363
        %6373 = vrot.lane.b32.xlu0 %v6365, 8
        %v6374 = vpop.permute.xlu0 %6373
        %6377 = vrot.lane.b32.xlu0 %v6366, 16
        %v6378 = vpop.permute.xlu0 %6377
        %6381 = vrot.lane.b32.xlu0 %v6367, 24
        %v6382 = vpop.permute.xlu0 %6381
        %6385 = vrot.lane.b32.xlu0 %v6368, 32
        %v6386 = vpop.permute.xlu0 %6385
        %6389 = vrot.lane.b32.xlu0 %v6369, 40
        %v6390 = vpop.permute.xlu0 %6389
        %6393 = vrot.lane.b32.xlu0 %v6370, 48
        %v6394 = vpop.permute.xlu0 %6393
        %6397 = vrot.lane.b32.xlu0 %v6371, 56
        %v6398 = vpop.permute.xlu0 %6397
        %v6400 = vsel %vm3635, %v6364, %v6374
        %v6401 = vsel %vm987, %v6400, %v6378
        %v6402 = vsel %vm3638, %v6401, %v6382
        %v6403 = vsel %vm989, %v6402, %v6386
        %v6404 = vsel %vm3641, %v6403, %v6390
        %v6405 = vsel %vm991, %v6404, %v6394
        %v6406 = vsel %vm3644, %v6405, %v6398
        %6407 = vrot.lane.b32.xlu0 %v6206, 127
        %v6408 = vpop.permute.xlu0 %6407
        %6409 = vrot.lane.b32.xlu0 %v6209, 127
        %v6410 = vpop.permute.xlu0 %6409
        %6411 = vrot.lane.b32.xlu0 %v6212, 127
        %v6412 = vpop.permute.xlu0 %6411
        %6413 = vrot.lane.b32.xlu0 %v6215, 127
        %v6414 = vpop.permute.xlu0 %6413
        %6415 = vrot.lane.b32.xlu0 %v6218, 127
        %v6416 = vpop.permute.xlu0 %6415
        %6417 = vrot.lane.b32.xlu0 %v6221, 127
        %v6418 = vpop.permute.xlu0 %6417
        %6419 = vrot.lane.b32.xlu0 %v6224, 127
        %v6420 = vpop.permute.xlu0 %6419
        %6421 = vrot.lane.b32.xlu0 %v6227, 127
        %v6422 = vpop.permute.xlu0 %6421
        %v6431 = vcombine.low %v6408, %v6412
        %v6432 = vcombine.high %v6408, %v6412
        %v6434 = vunpack.c.l.s4 1983009808
        %v6435 = vunpack.c.0.s8 %v6434
        %v6436 = vlaneseq
        %v6437 = vshrl.u32 %v6436, 7
        %v6438 = vsub.s32 %v6435, %v6437
        %v6439 = vrot.slane %v6431, %v6438
        %v6441 = vunpack.c.l.s4 1983009808
        %v6442 = vunpack.c.0.s8 %v6441
        %v6443 = vlaneseq
        %v6444 = vshrl.u32 %v6443, 7
        %v6445 = vsub.s32 %v6442, %v6444
        %v6446 = vrot.slane %v6432, %v6445
        %v6447 = vcombine.low %v6410, %v6414
        %v6448 = vcombine.high %v6410, %v6414
        %v6450 = vunpack.c.l.s4 1983009808
        %v6451 = vunpack.c.0.s8 %v6450
        %v6452 = vlaneseq
        %v6453 = vshrl.u32 %v6452, 7
        %v6454 = vsub.s32 %v6451, %v6453
        %v6455 = vrot.slane %v6447, %v6454
        %v6457 = vunpack.c.l.s4 1983009808
        %v6458 = vunpack.c.0.s8 %v6457
        %v6459 = vlaneseq
        %v6460 = vshrl.u32 %v6459, 7
        %v6461 = vsub.s32 %v6458, %v6460
        %v6462 = vrot.slane %v6448, %v6461
        %v6463 = vcombine.low %v6416, %v6420
        %v6464 = vcombine.high %v6416, %v6420
        %v6466 = vunpack.c.l.s4 1983009808
        %v6467 = vunpack.c.0.s8 %v6466
        %v6468 = vlaneseq
        %v6469 = vshrl.u32 %v6468, 7
        %v6470 = vsub.s32 %v6467, %v6469
        %v6471 = vrot.slane %v6463, %v6470
        %v6473 = vunpack.c.l.s4 1983009808
        %v6474 = vunpack.c.0.s8 %v6473
        %v6475 = vlaneseq
        %v6476 = vshrl.u32 %v6475, 7
        %v6477 = vsub.s32 %v6474, %v6476
        %v6478 = vrot.slane %v6464, %v6477
        %v6479 = vcombine.low %v6418, %v6422
        %v6480 = vcombine.high %v6418, %v6422
        %v6482 = vunpack.c.l.s4 1983009808
        %v6483 = vunpack.c.0.s8 %v6482
        %v6484 = vlaneseq
        %v6485 = vshrl.u32 %v6484, 7
        %v6486 = vsub.s32 %v6483, %v6485
        %v6487 = vrot.slane %v6479, %v6486
        %v6489 = vunpack.c.l.s4 1983009808
        %v6490 = vunpack.c.0.s8 %v6489
        %v6491 = vlaneseq
        %v6492 = vshrl.u32 %v6491, 7
        %v6493 = vsub.s32 %v6490, %v6492
        %v6494 = vrot.slane %v6480, %v6493
        %v6495 = vcombine.low %v6439, %v6455
        %v6496 = vcombine.high %v6439, %v6455
        %v6498 = vunpack.c.l.s4 1934713408
        %v6499 = vunpack.c.0.s8 %v6498
        %v6500 = vlaneseq
        %v6501 = vshrl.u32 %v6500, 7
        %v6502 = vsub.s32 %v6499, %v6501
        %v6503 = vrot.slane %v6495, %v6502
        %v6505 = vunpack.c.l.s4 1934713408
        %v6506 = vunpack.c.0.s8 %v6505
        %v6507 = vlaneseq
        %v6508 = vshrl.u32 %v6507, 7
        %v6509 = vsub.s32 %v6506, %v6508
        %v6510 = vrot.slane %v6496, %v6509
        %v6511 = vcombine.low %v6446, %v6462
        %v6512 = vcombine.high %v6446, %v6462
        %v6514 = vunpack.c.l.s4 1934713408
        %v6515 = vunpack.c.0.s8 %v6514
        %v6516 = vlaneseq
        %v6517 = vshrl.u32 %v6516, 7
        %v6518 = vsub.s32 %v6515, %v6517
        %v6519 = vrot.slane %v6511, %v6518
        %v6521 = vunpack.c.l.s4 1934713408
        %v6522 = vunpack.c.0.s8 %v6521
        %v6523 = vlaneseq
        %v6524 = vshrl.u32 %v6523, 7
        %v6525 = vsub.s32 %v6522, %v6524
        %v6526 = vrot.slane %v6512, %v6525
        %v6527 = vcombine.low %v6471, %v6487
        %v6528 = vcombine.high %v6471, %v6487
        %v6530 = vunpack.c.l.s4 1934713408
        %v6531 = vunpack.c.0.s8 %v6530
        %v6532 = vlaneseq
        %v6533 = vshrl.u32 %v6532, 7
        %v6534 = vsub.s32 %v6531, %v6533
        %v6535 = vrot.slane %v6527, %v6534
        %v6537 = vunpack.c.l.s4 1934713408
        %v6538 = vunpack.c.0.s8 %v6537
        %v6539 = vlaneseq
        %v6540 = vshrl.u32 %v6539, 7
        %v6541 = vsub.s32 %v6538, %v6540
        %v6542 = vrot.slane %v6528, %v6541
        %v6543 = vcombine.low %v6478, %v6494
        %v6544 = vcombine.high %v6478, %v6494
        %v6546 = vunpack.c.l.s4 1934713408
        %v6547 = vunpack.c.0.s8 %v6546
        %v6548 = vlaneseq
        %v6549 = vshrl.u32 %v6548, 7
        %v6550 = vsub.s32 %v6547, %v6549
        %v6551 = vrot.slane %v6543, %v6550
        %v6553 = vunpack.c.l.s4 1934713408
        %v6554 = vunpack.c.0.s8 %v6553
        %v6555 = vlaneseq
        %v6556 = vshrl.u32 %v6555, 7
        %v6557 = vsub.s32 %v6554, %v6556
        %v6558 = vrot.slane %v6544, %v6557
        %v6559 = vcombine.low %v6503, %v6535
        %v6560 = vcombine.high %v6503, %v6535
        %v6561 = vcombine.low %v6510, %v6542
        %v6562 = vcombine.high %v6510, %v6542
        %v6563 = vcombine.low %v6519, %v6551
        %v6564 = vcombine.high %v6519, %v6551
        %v6565 = vcombine.low %v6526, %v6558
        %v6566 = vcombine.high %v6526, %v6558
        %6568 = vrot.lane.b32.xlu0 %v6560, 8
        %v6569 = vpop.permute.xlu0 %6568
        %6572 = vrot.lane.b32.xlu0 %v6561, 16
        %v6573 = vpop.permute.xlu0 %6572
        %6576 = vrot.lane.b32.xlu0 %v6562, 24
        %v6577 = vpop.permute.xlu0 %6576
        %6580 = vrot.lane.b32.xlu0 %v6563, 32
        %v6581 = vpop.permute.xlu0 %6580
        %6584 = vrot.lane.b32.xlu0 %v6564, 40
        %v6585 = vpop.permute.xlu0 %6584
        %6588 = vrot.lane.b32.xlu0 %v6565, 48
        %v6589 = vpop.permute.xlu0 %6588
        %6592 = vrot.lane.b32.xlu0 %v6566, 56
        %v6593 = vpop.permute.xlu0 %6592
        %v6595 = vsel %vm3635, %v6559, %v6569
        %v6596 = vsel %vm987, %v6595, %v6573
        %v6597 = vsel %vm3638, %v6596, %v6577
        %v6598 = vsel %vm989, %v6597, %v6581
        %v6599 = vsel %vm3641, %v6598, %v6585
        %v6600 = vsel %vm991, %v6599, %v6589
        %v6601 = vsel %vm3644, %v6600, %v6593
        %6602 = vrot.lane.b32.xlu0 %v6206, 126
        %v6603 = vpop.permute.xlu0 %6602
        %6604 = vrot.lane.b32.xlu0 %v6209, 126
        %v6605 = vpop.permute.xlu0 %6604
        %6606 = vrot.lane.b32.xlu0 %v6212, 126
        %v6607 = vpop.permute.xlu0 %6606
        %6608 = vrot.lane.b32.xlu0 %v6215, 126
        %v6609 = vpop.permute.xlu0 %6608
        %6610 = vrot.lane.b32.xlu0 %v6218, 126
        %v6611 = vpop.permute.xlu0 %6610
        %6612 = vrot.lane.b32.xlu0 %v6221, 126
        %v6613 = vpop.permute.xlu0 %6612
        %6614 = vrot.lane.b32.xlu0 %v6224, 126
        %v6615 = vpop.permute.xlu0 %6614
        %6616 = vrot.lane.b32.xlu0 %v6227, 126
        %v6617 = vpop.permute.xlu0 %6616
        %v6626 = vcombine.low %v6603, %v6607
        %v6627 = vcombine.high %v6603, %v6607
        %v6629 = vunpack.c.l.s4 1983009808
        %v6630 = vunpack.c.0.s8 %v6629
        %v6631 = vlaneseq
        %v6632 = vshrl.u32 %v6631, 7
        %v6633 = vsub.s32 %v6630, %v6632
        %v6634 = vrot.slane %v6626, %v6633
        %v6636 = vunpack.c.l.s4 1983009808
        %v6637 = vunpack.c.0.s8 %v6636
        %v6638 = vlaneseq
        %v6639 = vshrl.u32 %v6638, 7
        %v6640 = vsub.s32 %v6637, %v6639
        %v6641 = vrot.slane %v6627, %v6640
        %v6642 = vcombine.low %v6605, %v6609
        %v6643 = vcombine.high %v6605, %v6609
        %v6645 = vunpack.c.l.s4 1983009808
        %v6646 = vunpack.c.0.s8 %v6645
        %v6647 = vlaneseq
        %v6648 = vshrl.u32 %v6647, 7
        %v6649 = vsub.s32 %v6646, %v6648
        %v6650 = vrot.slane %v6642, %v6649
        %v6652 = vunpack.c.l.s4 1983009808
        %v6653 = vunpack.c.0.s8 %v6652
        %v6654 = vlaneseq
        %v6655 = vshrl.u32 %v6654, 7
        %v6656 = vsub.s32 %v6653, %v6655
        %v6657 = vrot.slane %v6643, %v6656
        %v6658 = vcombine.low %v6611, %v6615
        %v6659 = vcombine.high %v6611, %v6615
        %v6661 = vunpack.c.l.s4 1983009808
        %v6662 = vunpack.c.0.s8 %v6661
        %v6663 = vlaneseq
        %v6664 = vshrl.u32 %v6663, 7
        %v6665 = vsub.s32 %v6662, %v6664
        %v6666 = vrot.slane %v6658, %v6665
        %v6668 = vunpack.c.l.s4 1983009808
        %v6669 = vunpack.c.0.s8 %v6668
        %v6670 = vlaneseq
        %v6671 = vshrl.u32 %v6670, 7
        %v6672 = vsub.s32 %v6669, %v6671
        %v6673 = vrot.slane %v6659, %v6672
        %v6674 = vcombine.low %v6613, %v6617
        %v6675 = vcombine.high %v6613, %v6617
        %v6677 = vunpack.c.l.s4 1983009808
        %v6678 = vunpack.c.0.s8 %v6677
        %v6679 = vlaneseq
        %v6680 = vshrl.u32 %v6679, 7
        %v6681 = vsub.s32 %v6678, %v6680
        %v6682 = vrot.slane %v6674, %v6681
        %v6684 = vunpack.c.l.s4 1983009808
        %v6685 = vunpack.c.0.s8 %v6684
        %v6686 = vlaneseq
        %v6687 = vshrl.u32 %v6686, 7
        %v6688 = vsub.s32 %v6685, %v6687
        %v6689 = vrot.slane %v6675, %v6688
        %v6690 = vcombine.low %v6634, %v6650
        %v6691 = vcombine.high %v6634, %v6650
        %v6693 = vunpack.c.l.s4 1934713408
        %v6694 = vunpack.c.0.s8 %v6693
        %v6695 = vlaneseq
        %v6696 = vshrl.u32 %v6695, 7
        %v6697 = vsub.s32 %v6694, %v6696
        %v6698 = vrot.slane %v6690, %v6697
        %v6700 = vunpack.c.l.s4 1934713408
        %v6701 = vunpack.c.0.s8 %v6700
        %v6702 = vlaneseq
        %v6703 = vshrl.u32 %v6702, 7
        %v6704 = vsub.s32 %v6701, %v6703
        %v6705 = vrot.slane %v6691, %v6704
        %v6706 = vcombine.low %v6641, %v6657
        %v6707 = vcombine.high %v6641, %v6657
        %v6709 = vunpack.c.l.s4 1934713408
        %v6710 = vunpack.c.0.s8 %v6709
        %v6711 = vlaneseq
        %v6712 = vshrl.u32 %v6711, 7
        %v6713 = vsub.s32 %v6710, %v6712
        %v6714 = vrot.slane %v6706, %v6713
        %v6716 = vunpack.c.l.s4 1934713408
        %v6717 = vunpack.c.0.s8 %v6716
        %v6718 = vlaneseq
        %v6719 = vshrl.u32 %v6718, 7
        %v6720 = vsub.s32 %v6717, %v6719
        %v6721 = vrot.slane %v6707, %v6720
        %v6722 = vcombine.low %v6666, %v6682
        %v6723 = vcombine.high %v6666, %v6682
        %v6725 = vunpack.c.l.s4 1934713408
        %v6726 = vunpack.c.0.s8 %v6725
        %v6727 = vlaneseq
        %v6728 = vshrl.u32 %v6727, 7
        %v6729 = vsub.s32 %v6726, %v6728
        %v6730 = vrot.slane %v6722, %v6729
        %v6732 = vunpack.c.l.s4 1934713408
        %v6733 = vunpack.c.0.s8 %v6732
        %v6734 = vlaneseq
        %v6735 = vshrl.u32 %v6734, 7
        %v6736 = vsub.s32 %v6733, %v6735
        %v6737 = vrot.slane %v6723, %v6736
        %v6738 = vcombine.low %v6673, %v6689
        %v6739 = vcombine.high %v6673, %v6689
        %v6741 = vunpack.c.l.s4 1934713408
        %v6742 = vunpack.c.0.s8 %v6741
        %v6743 = vlaneseq
        %v6744 = vshrl.u32 %v6743, 7
        %v6745 = vsub.s32 %v6742, %v6744
        %v6746 = vrot.slane %v6738, %v6745
        %v6748 = vunpack.c.l.s4 1934713408
        %v6749 = vunpack.c.0.s8 %v6748
        %v6750 = vlaneseq
        %v6751 = vshrl.u32 %v6750, 7
        %v6752 = vsub.s32 %v6749, %v6751
        %v6753 = vrot.slane %v6739, %v6752
        %v6754 = vcombine.low %v6698, %v6730
        %v6755 = vcombine.high %v6698, %v6730
        %v6756 = vcombine.low %v6705, %v6737
        %v6757 = vcombine.high %v6705, %v6737
        %v6758 = vcombine.low %v6714, %v6746
        %v6759 = vcombine.high %v6714, %v6746
        %v6760 = vcombine.low %v6721, %v6753
        %v6761 = vcombine.high %v6721, %v6753
        %6763 = vrot.lane.b32.xlu0 %v6755, 8
        %v6764 = vpop.permute.xlu0 %6763
        %6767 = vrot.lane.b32.xlu0 %v6756, 16
        %v6768 = vpop.permute.xlu0 %6767
        %6771 = vrot.lane.b32.xlu0 %v6757, 24
        %v6772 = vpop.permute.xlu0 %6771
        %6775 = vrot.lane.b32.xlu0 %v6758, 32
        %v6776 = vpop.permute.xlu0 %6775
        %6779 = vrot.lane.b32.xlu0 %v6759, 40
        %v6780 = vpop.permute.xlu0 %6779
        %6783 = vrot.lane.b32.xlu0 %v6760, 48
        %v6784 = vpop.permute.xlu0 %6783
        %6787 = vrot.lane.b32.xlu0 %v6761, 56
        %v6788 = vpop.permute.xlu0 %6787
        %v6790 = vsel %vm3635, %v6754, %v6764
        %v6791 = vsel %vm987, %v6790, %v6768
        %v6792 = vsel %vm3638, %v6791, %v6772
        %v6793 = vsel %vm989, %v6792, %v6776
        %v6794 = vsel %vm3641, %v6793, %v6780
        %v6795 = vsel %vm991, %v6794, %v6784
        %v6796 = vsel %vm3644, %v6795, %v6788
        %v6797 = vrot.slane %v5611, 2
        %v6798 = vrot.slane %v5612, 2
        %v6799 = vsel %vm2175, %v6797, %v6798
        %v6800 = vrot.slane %v5613, 2
        %v6801 = vrot.slane %v5614, 2
        %v6802 = vsel %vm2175, %v6800, %v6801
        %v6803 = vrot.slane %v5615, 2
        %v6804 = vrot.slane %v5616, 2
        %v6805 = vsel %vm2175, %v6803, %v6804
        %v6806 = vrot.slane %v5617, 2
        %v6807 = vrot.slane %v5618, 2
        %v6808 = vsel %vm2175, %v6806, %v6807
        %v6809 = vrot.slane %v5619, 2
        %v6810 = vrot.slane %v5620, 2
        %v6811 = vsel %vm2175, %v6809, %v6810
        %v6812 = vrot.slane %v5621, 2
        %v6813 = vrot.slane %v5622, 2
        %v6814 = vsel %vm2175, %v6812, %v6813
        %v6815 = vrot.slane %v5623, 2
        %v6816 = vrot.slane %v5624, 2
        %v6817 = vsel %vm2175, %v6815, %v6816
        %v6818 = vrot.slane %v5625, 2
        %v6819 = vrot.slane %v5626, 2
        %v6820 = vsel %vm2175, %v6818, %v6819
        %v6829 = vcombine.low %v6799, %v6805
        %v6830 = vcombine.high %v6799, %v6805
        %v6832 = vunpack.c.l.s4 1983009808
        %v6833 = vunpack.c.0.s8 %v6832
        %v6834 = vlaneseq
        %v6835 = vshrl.u32 %v6834, 7
        %v6836 = vsub.s32 %v6833, %v6835
        %v6837 = vrot.slane %v6829, %v6836
        %v6839 = vunpack.c.l.s4 1983009808
        %v6840 = vunpack.c.0.s8 %v6839
        %v6841 = vlaneseq
        %v6842 = vshrl.u32 %v6841, 7
        %v6843 = vsub.s32 %v6840, %v6842
        %v6844 = vrot.slane %v6830, %v6843
        %v6845 = vcombine.low %v6802, %v6808
        %v6846 = vcombine.high %v6802, %v6808
        %v6848 = vunpack.c.l.s4 1983009808
        %v6849 = vunpack.c.0.s8 %v6848
        %v6850 = vlaneseq
        %v6851 = vshrl.u32 %v6850, 7
        %v6852 = vsub.s32 %v6849, %v6851
        %v6853 = vrot.slane %v6845, %v6852
        %v6855 = vunpack.c.l.s4 1983009808
        %v6856 = vunpack.c.0.s8 %v6855
        %v6857 = vlaneseq
        %v6858 = vshrl.u32 %v6857, 7
        %v6859 = vsub.s32 %v6856, %v6858
        %v6860 = vrot.slane %v6846, %v6859
        %v6861 = vcombine.low %v6811, %v6817
        %v6862 = vcombine.high %v6811, %v6817
        %v6864 = vunpack.c.l.s4 1983009808
        %v6865 = vunpack.c.0.s8 %v6864
        %v6866 = vlaneseq
        %v6867 = vshrl.u32 %v6866, 7
        %v6868 = vsub.s32 %v6865, %v6867
        %v6869 = vrot.slane %v6861, %v6868
        %v6871 = vunpack.c.l.s4 1983009808
        %v6872 = vunpack.c.0.s8 %v6871
        %v6873 = vlaneseq
        %v6874 = vshrl.u32 %v6873, 7
        %v6875 = vsub.s32 %v6872, %v6874
        %v6876 = vrot.slane %v6862, %v6875
        %v6877 = vcombine.low %v6814, %v6820
        %v6878 = vcombine.high %v6814, %v6820
        %v6880 = vunpack.c.l.s4 1983009808
        %v6881 = vunpack.c.0.s8 %v6880
        %v6882 = vlaneseq
        %v6883 = vshrl.u32 %v6882, 7
        %v6884 = vsub.s32 %v6881, %v6883
        %v6885 = vrot.slane %v6877, %v6884
        %v6887 = vunpack.c.l.s4 1983009808
        %v6888 = vunpack.c.0.s8 %v6887
        %v6889 = vlaneseq
        %v6890 = vshrl.u32 %v6889, 7
        %v6891 = vsub.s32 %v6888, %v6890
        %v6892 = vrot.slane %v6878, %v6891
        %v6893 = vcombine.low %v6837, %v6853
        %v6894 = vcombine.high %v6837, %v6853
        %v6896 = vunpack.c.l.s4 1934713408
        %v6897 = vunpack.c.0.s8 %v6896
        %v6898 = vlaneseq
        %v6899 = vshrl.u32 %v6898, 7
        %v6900 = vsub.s32 %v6897, %v6899
        %v6901 = vrot.slane %v6893, %v6900
        %v6903 = vunpack.c.l.s4 1934713408
        %v6904 = vunpack.c.0.s8 %v6903
        %v6905 = vlaneseq
        %v6906 = vshrl.u32 %v6905, 7
        %v6907 = vsub.s32 %v6904, %v6906
        %v6908 = vrot.slane %v6894, %v6907
        %v6909 = vcombine.low %v6844, %v6860
        %v6910 = vcombine.high %v6844, %v6860
        %v6912 = vunpack.c.l.s4 1934713408
        %v6913 = vunpack.c.0.s8 %v6912
        %v6914 = vlaneseq
        %v6915 = vshrl.u32 %v6914, 7
        %v6916 = vsub.s32 %v6913, %v6915
        %v6917 = vrot.slane %v6909, %v6916
        %v6919 = vunpack.c.l.s4 1934713408
        %v6920 = vunpack.c.0.s8 %v6919
        %v6921 = vlaneseq
        %v6922 = vshrl.u32 %v6921, 7
        %v6923 = vsub.s32 %v6920, %v6922
        %v6924 = vrot.slane %v6910, %v6923
        %v6925 = vcombine.low %v6869, %v6885
        %v6926 = vcombine.high %v6869, %v6885
        %v6928 = vunpack.c.l.s4 1934713408
        %v6929 = vunpack.c.0.s8 %v6928
        %v6930 = vlaneseq
        %v6931 = vshrl.u32 %v6930, 7
        %v6932 = vsub.s32 %v6929, %v6931
        %v6933 = vrot.slane %v6925, %v6932
        %v6935 = vunpack.c.l.s4 1934713408
        %v6936 = vunpack.c.0.s8 %v6935
        %v6937 = vlaneseq
        %v6938 = vshrl.u32 %v6937, 7
        %v6939 = vsub.s32 %v6936, %v6938
        %v6940 = vrot.slane %v6926, %v6939
        %v6941 = vcombine.low %v6876, %v6892
        %v6942 = vcombine.high %v6876, %v6892
        %v6944 = vunpack.c.l.s4 1934713408
        %v6945 = vunpack.c.0.s8 %v6944
        %v6946 = vlaneseq
        %v6947 = vshrl.u32 %v6946, 7
        %v6948 = vsub.s32 %v6945, %v6947
        %v6949 = vrot.slane %v6941, %v6948
        %v6951 = vunpack.c.l.s4 1934713408
        %v6952 = vunpack.c.0.s8 %v6951
        %v6953 = vlaneseq
        %v6954 = vshrl.u32 %v6953, 7
        %v6955 = vsub.s32 %v6952, %v6954
        %v6956 = vrot.slane %v6942, %v6955
        %v6957 = vcombine.low %v6901, %v6933
        %v6958 = vcombine.high %v6901, %v6933
        %v6959 = vcombine.low %v6908, %v6940
        %v6960 = vcombine.high %v6908, %v6940
        %v6961 = vcombine.low %v6917, %v6949
        %v6962 = vcombine.high %v6917, %v6949
        %v6963 = vcombine.low %v6924, %v6956
        %v6964 = vcombine.high %v6924, %v6956
        %6966 = vrot.lane.b32.xlu0 %v6958, 8
        %v6967 = vpop.permute.xlu0 %6966
        %6970 = vrot.lane.b32.xlu0 %v6959, 16
        %v6971 = vpop.permute.xlu0 %6970
        %6974 = vrot.lane.b32.xlu0 %v6960, 24
        %v6975 = vpop.permute.xlu0 %6974
        %6978 = vrot.lane.b32.xlu0 %v6961, 32
        %v6979 = vpop.permute.xlu0 %6978
        %6982 = vrot.lane.b32.xlu0 %v6962, 40
        %v6983 = vpop.permute.xlu0 %6982
        %6986 = vrot.lane.b32.xlu0 %v6963, 48
        %v6987 = vpop.permute.xlu0 %6986
        %6990 = vrot.lane.b32.xlu0 %v6964, 56
        %v6991 = vpop.permute.xlu0 %6990
        %v6993 = vsel %vm3635, %v6957, %v6967
        %v6994 = vsel %vm987, %v6993, %v6971
        %v6995 = vsel %vm3638, %v6994, %v6975
        %v6996 = vsel %vm989, %v6995, %v6979
        %v6997 = vsel %vm3641, %v6996, %v6983
        %v6998 = vsel %vm991, %v6997, %v6987
        %v6999 = vsel %vm3644, %v6998, %v6991
        %7000 = vrot.lane.b32.xlu0 %v6799, 127
        %v7001 = vpop.permute.xlu0 %7000
        %7002 = vrot.lane.b32.xlu0 %v6802, 127
        %v7003 = vpop.permute.xlu0 %7002
        %7004 = vrot.lane.b32.xlu0 %v6805, 127
        %v7005 = vpop.permute.xlu0 %7004
        %7006 = vrot.lane.b32.xlu0 %v6808, 127
        %v7007 = vpop.permute.xlu0 %7006
        %7008 = vrot.lane.b32.xlu0 %v6811, 127
        %v7009 = vpop.permute.xlu0 %7008
        %7010 = vrot.lane.b32.xlu0 %v6814, 127
        %v7011 = vpop.permute.xlu0 %7010
        %7012 = vrot.lane.b32.xlu0 %v6817, 127
        %v7013 = vpop.permute.xlu0 %7012
        %7014 = vrot.lane.b32.xlu0 %v6820, 127
        %v7015 = vpop.permute.xlu0 %7014
        %v7024 = vcombine.low %v7001, %v7005
        %v7025 = vcombine.high %v7001, %v7005
        %v7027 = vunpack.c.l.s4 1983009808
        %v7028 = vunpack.c.0.s8 %v7027
        %v7029 = vlaneseq
        %v7030 = vshrl.u32 %v7029, 7
        %v7031 = vsub.s32 %v7028, %v7030
        %v7032 = vrot.slane %v7024, %v7031
        %v7034 = vunpack.c.l.s4 1983009808
        %v7035 = vunpack.c.0.s8 %v7034
        %v7036 = vlaneseq
        %v7037 = vshrl.u32 %v7036, 7
        %v7038 = vsub.s32 %v7035, %v7037
        %v7039 = vrot.slane %v7025, %v7038
        %v7040 = vcombine.low %v7003, %v7007
        %v7041 = vcombine.high %v7003, %v7007
        %v7043 = vunpack.c.l.s4 1983009808
        %v7044 = vunpack.c.0.s8 %v7043
        %v7045 = vlaneseq
        %v7046 = vshrl.u32 %v7045, 7
        %v7047 = vsub.s32 %v7044, %v7046
        %v7048 = vrot.slane %v7040, %v7047
        %v7050 = vunpack.c.l.s4 1983009808
        %v7051 = vunpack.c.0.s8 %v7050
        %v7052 = vlaneseq
        %v7053 = vshrl.u32 %v7052, 7
        %v7054 = vsub.s32 %v7051, %v7053
        %v7055 = vrot.slane %v7041, %v7054
        %v7056 = vcombine.low %v7009, %v7013
        %v7057 = vcombine.high %v7009, %v7013
        %v7059 = vunpack.c.l.s4 1983009808
        %v7060 = vunpack.c.0.s8 %v7059
        %v7061 = vlaneseq
        %v7062 = vshrl.u32 %v7061, 7
        %v7063 = vsub.s32 %v7060, %v7062
        %v7064 = vrot.slane %v7056, %v7063
        %v7066 = vunpack.c.l.s4 1983009808
        %v7067 = vunpack.c.0.s8 %v7066
        %v7068 = vlaneseq
        %v7069 = vshrl.u32 %v7068, 7
        %v7070 = vsub.s32 %v7067, %v7069
        %v7071 = vrot.slane %v7057, %v7070
        %v7072 = vcombine.low %v7011, %v7015
        %v7073 = vcombine.high %v7011, %v7015
        %v7075 = vunpack.c.l.s4 1983009808
        %v7076 = vunpack.c.0.s8 %v7075
        %v7077 = vlaneseq
        %v7078 = vshrl.u32 %v7077, 7
        %v7079 = vsub.s32 %v7076, %v7078
        %v7080 = vrot.slane %v7072, %v7079
        %v7082 = vunpack.c.l.s4 1983009808
        %v7083 = vunpack.c.0.s8 %v7082
        %v7084 = vlaneseq
        %v7085 = vshrl.u32 %v7084, 7
        %v7086 = vsub.s32 %v7083, %v7085
        %v7087 = vrot.slane %v7073, %v7086
        %v7088 = vcombine.low %v7032, %v7048
        %v7089 = vcombine.high %v7032, %v7048
        %v7091 = vunpack.c.l.s4 1934713408
        %v7092 = vunpack.c.0.s8 %v7091
        %v7093 = vlaneseq
        %v7094 = vshrl.u32 %v7093, 7
        %v7095 = vsub.s32 %v7092, %v7094
        %v7096 = vrot.slane %v7088, %v7095
        %v7098 = vunpack.c.l.s4 1934713408
        %v7099 = vunpack.c.0.s8 %v7098
        %v7100 = vlaneseq
        %v7101 = vshrl.u32 %v7100, 7
        %v7102 = vsub.s32 %v7099, %v7101
        %v7103 = vrot.slane %v7089, %v7102
        %v7104 = vcombine.low %v7039, %v7055
        %v7105 = vcombine.high %v7039, %v7055
        %v7107 = vunpack.c.l.s4 1934713408
        %v7108 = vunpack.c.0.s8 %v7107
        %v7109 = vlaneseq
        %v7110 = vshrl.u32 %v7109, 7
        %v7111 = vsub.s32 %v7108, %v7110
        %v7112 = vrot.slane %v7104, %v7111
        %v7114 = vunpack.c.l.s4 1934713408
        %v7115 = vunpack.c.0.s8 %v7114
        %v7116 = vlaneseq
        %v7117 = vshrl.u32 %v7116, 7
        %v7118 = vsub.s32 %v7115, %v7117
        %v7119 = vrot.slane %v7105, %v7118
        %v7120 = vcombine.low %v7064, %v7080
        %v7121 = vcombine.high %v7064, %v7080
        %v7123 = vunpack.c.l.s4 1934713408
        %v7124 = vunpack.c.0.s8 %v7123
        %v7125 = vlaneseq
        %v7126 = vshrl.u32 %v7125, 7
        %v7127 = vsub.s32 %v7124, %v7126
        %v7128 = vrot.slane %v7120, %v7127
        %v7130 = vunpack.c.l.s4 1934713408
        %v7131 = vunpack.c.0.s8 %v7130
        %v7132 = vlaneseq
        %v7133 = vshrl.u32 %v7132, 7
        %v7134 = vsub.s32 %v7131, %v7133
        %v7135 = vrot.slane %v7121, %v7134
        %v7136 = vcombine.low %v7071, %v7087
        %v7137 = vcombine.high %v7071, %v7087
        %v7139 = vunpack.c.l.s4 1934713408
        %v7140 = vunpack.c.0.s8 %v7139
        %v7141 = vlaneseq
        %v7142 = vshrl.u32 %v7141, 7
        %v7143 = vsub.s32 %v7140, %v7142
        %v7144 = vrot.slane %v7136, %v7143
        %v7146 = vunpack.c.l.s4 1934713408
        %v7147 = vunpack.c.0.s8 %v7146
        %v7148 = vlaneseq
        %v7149 = vshrl.u32 %v7148, 7
        %v7150 = vsub.s32 %v7147, %v7149
        %v7151 = vrot.slane %v7137, %v7150
        %v7152 = vcombine.low %v7096, %v7128
        %v7153 = vcombine.high %v7096, %v7128
        %v7154 = vcombine.low %v7103, %v7135
        %v7155 = vcombine.high %v7103, %v7135
        %v7156 = vcombine.low %v7112, %v7144
        %v7157 = vcombine.high %v7112, %v7144
        %v7158 = vcombine.low %v7119, %v7151
        %v7159 = vcombine.high %v7119, %v7151
        %7161 = vrot.lane.b32.xlu0 %v7153, 8
        %v7162 = vpop.permute.xlu0 %7161
        %7165 = vrot.lane.b32.xlu0 %v7154, 16
        %v7166 = vpop.permute.xlu0 %7165
        %7169 = vrot.lane.b32.xlu0 %v7155, 24
        %v7170 = vpop.permute.xlu0 %7169
        %7173 = vrot.lane.b32.xlu0 %v7156, 32
        %v7174 = vpop.permute.xlu0 %7173
        %7177 = vrot.lane.b32.xlu0 %v7157, 40
        %v7178 = vpop.permute.xlu0 %7177
        %7181 = vrot.lane.b32.xlu0 %v7158, 48
        %v7182 = vpop.permute.xlu0 %7181
        %7185 = vrot.lane.b32.xlu0 %v7159, 56
        %v7186 = vpop.permute.xlu0 %7185
        %v7188 = vsel %vm3635, %v7152, %v7162
        %v7189 = vsel %vm987, %v7188, %v7166
        %v7190 = vsel %vm3638, %v7189, %v7170
        %v7191 = vsel %vm989, %v7190, %v7174
        %v7192 = vsel %vm3641, %v7191, %v7178
        %v7193 = vsel %vm991, %v7192, %v7182
        %v7194 = vsel %vm3644, %v7193, %v7186
        %7195 = vrot.lane.b32.xlu0 %v6799, 126
        %v7196 = vpop.permute.xlu0 %7195
        %7197 = vrot.lane.b32.xlu0 %v6802, 126
        %v7198 = vpop.permute.xlu0 %7197
        %7199 = vrot.lane.b32.xlu0 %v6805, 126
        %v7200 = vpop.permute.xlu0 %7199
        %7201 = vrot.lane.b32.xlu0 %v6808, 126
        %v7202 = vpop.permute.xlu0 %7201
        %7203 = vrot.lane.b32.xlu0 %v6811, 126
        %v7204 = vpop.permute.xlu0 %7203
        %7205 = vrot.lane.b32.xlu0 %v6814, 126
        %v7206 = vpop.permute.xlu0 %7205
        %7207 = vrot.lane.b32.xlu0 %v6817, 126
        %v7208 = vpop.permute.xlu0 %7207
        %7209 = vrot.lane.b32.xlu0 %v6820, 126
        %v7210 = vpop.permute.xlu0 %7209
        %v7219 = vcombine.low %v7196, %v7200
        %v7220 = vcombine.high %v7196, %v7200
        %v7222 = vunpack.c.l.s4 1983009808
        %v7223 = vunpack.c.0.s8 %v7222
        %v7224 = vlaneseq
        %v7225 = vshrl.u32 %v7224, 7
        %v7226 = vsub.s32 %v7223, %v7225
        %v7227 = vrot.slane %v7219, %v7226
        %v7229 = vunpack.c.l.s4 1983009808
        %v7230 = vunpack.c.0.s8 %v7229
        %v7231 = vlaneseq
        %v7232 = vshrl.u32 %v7231, 7
        %v7233 = vsub.s32 %v7230, %v7232
        %v7234 = vrot.slane %v7220, %v7233
        %v7235 = vcombine.low %v7198, %v7202
        %v7236 = vcombine.high %v7198, %v7202
        %v7238 = vunpack.c.l.s4 1983009808
        %v7239 = vunpack.c.0.s8 %v7238
        %v7240 = vlaneseq
        %v7241 = vshrl.u32 %v7240, 7
        %v7242 = vsub.s32 %v7239, %v7241
        %v7243 = vrot.slane %v7235, %v7242
        %v7245 = vunpack.c.l.s4 1983009808
        %v7246 = vunpack.c.0.s8 %v7245
        %v7247 = vlaneseq
        %v7248 = vshrl.u32 %v7247, 7
        %v7249 = vsub.s32 %v7246, %v7248
        %v7250 = vrot.slane %v7236, %v7249
        %v7251 = vcombine.low %v7204, %v7208
        %v7252 = vcombine.high %v7204, %v7208
        %v7254 = vunpack.c.l.s4 1983009808
        %v7255 = vunpack.c.0.s8 %v7254
        %v7256 = vlaneseq
        %v7257 = vshrl.u32 %v7256, 7
        %v7258 = vsub.s32 %v7255, %v7257
        %v7259 = vrot.slane %v7251, %v7258
        %v7261 = vunpack.c.l.s4 1983009808
        %v7262 = vunpack.c.0.s8 %v7261
        %v7263 = vlaneseq
        %v7264 = vshrl.u32 %v7263, 7
        %v7265 = vsub.s32 %v7262, %v7264
        %v7266 = vrot.slane %v7252, %v7265
        %v7267 = vcombine.low %v7206, %v7210
        %v7268 = vcombine.high %v7206, %v7210
        %v7270 = vunpack.c.l.s4 1983009808
        %v7271 = vunpack.c.0.s8 %v7270
        %v7272 = vlaneseq
        %v7273 = vshrl.u32 %v7272, 7
        %v7274 = vsub.s32 %v7271, %v7273
        %v7275 = vrot.slane %v7267, %v7274
        %v7277 = vunpack.c.l.s4 1983009808
        %v7278 = vunpack.c.0.s8 %v7277
        %v7279 = vlaneseq
        %v7280 = vshrl.u32 %v7279, 7
        %v7281 = vsub.s32 %v7278, %v7280
        %v7282 = vrot.slane %v7268, %v7281
        %v7283 = vcombine.low %v7227, %v7243
        %v7284 = vcombine.high %v7227, %v7243
        %v7286 = vunpack.c.l.s4 1934713408
        %v7287 = vunpack.c.0.s8 %v7286
        %v7288 = vlaneseq
        %v7289 = vshrl.u32 %v7288, 7
        %v7290 = vsub.s32 %v7287, %v7289
        %v7291 = vrot.slane %v7283, %v7290
        %v7293 = vunpack.c.l.s4 1934713408
        %v7294 = vunpack.c.0.s8 %v7293
        %v7295 = vlaneseq
        %v7296 = vshrl.u32 %v7295, 7
        %v7297 = vsub.s32 %v7294, %v7296
        %v7298 = vrot.slane %v7284, %v7297
        %v7299 = vcombine.low %v7234, %v7250
        %v7300 = vcombine.high %v7234, %v7250
        %v7302 = vunpack.c.l.s4 1934713408
        %v7303 = vunpack.c.0.s8 %v7302
        %v7304 = vlaneseq
        %v7305 = vshrl.u32 %v7304, 7
        %v7306 = vsub.s32 %v7303, %v7305
        %v7307 = vrot.slane %v7299, %v7306
        %v7309 = vunpack.c.l.s4 1934713408
        %v7310 = vunpack.c.0.s8 %v7309
        %v7311 = vlaneseq
        %v7312 = vshrl.u32 %v7311, 7
        %v7313 = vsub.s32 %v7310, %v7312
        %v7314 = vrot.slane %v7300, %v7313
        %v7315 = vcombine.low %v7259, %v7275
        %v7316 = vcombine.high %v7259, %v7275
        %v7318 = vunpack.c.l.s4 1934713408
        %v7319 = vunpack.c.0.s8 %v7318
        %v7320 = vlaneseq
        %v7321 = vshrl.u32 %v7320, 7
        %v7322 = vsub.s32 %v7319, %v7321
        %v7323 = vrot.slane %v7315, %v7322
        %v7325 = vunpack.c.l.s4 1934713408
        %v7326 = vunpack.c.0.s8 %v7325
        %v7327 = vlaneseq
        %v7328 = vshrl.u32 %v7327, 7
        %v7329 = vsub.s32 %v7326, %v7328
        %v7330 = vrot.slane %v7316, %v7329
        %v7331 = vcombine.low %v7266, %v7282
        %v7332 = vcombine.high %v7266, %v7282
        %v7334 = vunpack.c.l.s4 1934713408
        %v7335 = vunpack.c.0.s8 %v7334
        %v7336 = vlaneseq
        %v7337 = vshrl.u32 %v7336, 7
        %v7338 = vsub.s32 %v7335, %v7337
        %v7339 = vrot.slane %v7331, %v7338
        %v7341 = vunpack.c.l.s4 1934713408
        %v7342 = vunpack.c.0.s8 %v7341
        %v7343 = vlaneseq
        %v7344 = vshrl.u32 %v7343, 7
        %v7345 = vsub.s32 %v7342, %v7344
        %v7346 = vrot.slane %v7332, %v7345
        %v7347 = vcombine.low %v7291, %v7323
        %v7348 = vcombine.high %v7291, %v7323
        %v7349 = vcombine.low %v7298, %v7330
        %v7350 = vcombine.high %v7298, %v7330
        %v7351 = vcombine.low %v7307, %v7339
        %v7352 = vcombine.high %v7307, %v7339
        %v7353 = vcombine.low %v7314, %v7346
        %v7354 = vcombine.high %v7314, %v7346
        %7356 = vrot.lane.b32.xlu0 %v7348, 8
        %v7357 = vpop.permute.xlu0 %7356
        %7360 = vrot.lane.b32.xlu0 %v7349, 16
        %v7361 = vpop.permute.xlu0 %7360
        %7364 = vrot.lane.b32.xlu0 %v7350, 24
        %v7365 = vpop.permute.xlu0 %7364
        %7368 = vrot.lane.b32.xlu0 %v7351, 32
        %v7369 = vpop.permute.xlu0 %7368
        %7372 = vrot.lane.b32.xlu0 %v7352, 40
        %v7373 = vpop.permute.xlu0 %7372
        %7376 = vrot.lane.b32.xlu0 %v7353, 48
        %v7377 = vpop.permute.xlu0 %7376
        %7380 = vrot.lane.b32.xlu0 %v7354, 56
        %v7381 = vpop.permute.xlu0 %7380
        %v7383 = vsel %vm3635, %v7347, %v7357
        %v7384 = vsel %vm987, %v7383, %v7361
        %v7385 = vsel %vm3638, %v7384, %v7365
        %v7386 = vsel %vm989, %v7385, %v7369
        %v7387 = vsel %vm3641, %v7386, %v7373
        %v7388 = vsel %vm991, %v7387, %v7377
        %v7389 = vsel %vm3644, %v7388, %v7381
        %v7390 = vld [vmem:[%s10] sm:$0xff]
        %vm7391 = vcmask 588800
        %v7393 = vsel %vm7391, %v7390, 0
        %7395 = vmatprep.subr.mxu0 0.0
        %7396 = vmatpush1.msra.mxu0 %v5797
        %7397 = vmatprep.subr.mxu0 0.0
        %7398 = vmatpush1.msra.mxu0 %v6000
        %7399 = vmatprep.subr.mxu0 0.0
        %7400 = vmatpush1.msra.mxu0 %v6195
        %7401 = vmatprep.subr.mxu0 0.0
        %7402 = vmatpush1.msra.mxu0 %v6406
        %7403 = vmatprep.subr.mxu0 0.0
        %7404 = vmatpush1.msra.mxu0 %v6601
        %7405 = vmatprep.subr.mxu0 0.0
        %7406 = vmatpush1.msra.mxu0 %v6796
        %7407 = vmatprep.subr.mxu0 0.0
        %7408 = vmatpush1.msra.mxu0 %v6999
        %7409 = vmatprep.subr.mxu0 0.0
        %7410 = vmatpush1.msra.mxu0 %v7194
        %7411 = vmatprep.subr.mxu0 0.0
        %7412 = vmatpush1.msra.mxu0 %v7389
        %7413 = vmatprep.subr.mxu0 0.0
        %7414 = vmatpush1.msra.mxu0 0.0
        %7415 = vmatprep.subr.mxu0 0.0
        %7416 = vmatpush1.msra.mxu0 0.0
        %7417 = vmatprep.subr.mxu0 0.0
        %7418 = vmatpush1.msra.mxu0 0.0
        %7419 = vmatprep.subr.mxu0 0.0
        %7420 = vmatpush1.msra.mxu0 0.0
        %7421 = vmatprep.subr.mxu0 0.0
        %7422 = vmatpush1.msra.mxu0 0.0
        %7423 = vmatprep.subr.mxu0 0.0
        %7424 = vmatpush1.msra.mxu0 0.0
        %7425 = vmatprep.subr.mxu0 0.0
        %7426 = vmatpush1.msra.mxu0 0.0
        %7427 = vmatprep.subr.mxu0 0.0
        %7428 = vmatpush1.msra.mxu0 0.0
        %7429 = vmatprep.subr.mxu0 0.0
        %7430 = vmatpush1.msra.mxu0 0.0
        %7431 = vmatprep.subr.mxu0 0.0
        %7432 = vmatpush1.msra.mxu0 0.0
        %7433 = vmatprep.subr.mxu0 0.0
        %7434 = vmatpush1.msra.mxu0 0.0
        %7435 = vmatprep.subr.mxu0 0.0
        %7436 = vmatpush1.msra.mxu0 0.0
        %7437 = vmatprep.subr.mxu0 0.0
        %7438 = vmatpush1.msra.mxu0 0.0
        %7439 = vmatprep.subr.mxu0 0.0
        %7440 = vmatpush1.msra.mxu0 0.0
        %7441 = vmatprep.subr.mxu0 0.0
        %7442 = vmatpush1.msra.mxu0 0.0
        %7443 = vmatprep.subr.mxu0 0.0
        %7444 = vmatpush1.msra.mxu0 0.0
        %7445 = vmatprep.subr.mxu0 0.0
        %7446 = vmatpush1.msra.mxu0 0.0
        %7447 = vmatprep.subr.mxu0 0.0
        %7448 = vmatpush1.msra.mxu0 0.0
        %7449 = vmatprep.subr.mxu0 0.0
        %7450 = vmatpush1.msra.mxu0 0.0
        %7451 = vmatprep.subr.mxu0 0.0
        %7452 = vmatpush1.msra.mxu0 0.0
        %7453 = vmatprep.subr.mxu0 0.0
        %7454 = vmatpush1.msra.mxu0 0.0
        %7455 = vmatprep.subr.mxu0 0.0
        %7456 = vmatpush1.msra.mxu0 0.0
        %7457 = vmatprep.subr.mxu0 0.0
        %7458 = vmatpush1.msra.mxu0 0.0
        %7459 = vmatprep.mubr.f32.mxu0 0.0
        %7460 = vmatmul.mubr.f32.gmra.mrb[0].mxu0 %v7393
        %v7461 = vpop.f32.mrb[0].mxu0
        %v7462 = vadd.f32 0.0, %v7461
        %v7463 = vpop.f32.mrb[0].mxu0
        %7464 = vdwg.mxu0
        %v7465 = vld [vmem:[%s11] sm:$0xff]
        %7467 = vset.pattern.permute.xlu0 0
        %7468 = vperm.xlu0 %7467, %v7465
        %v7469 = vpop.permute.xlu0 %7468
        %v7471 = vmul.f32 %v7462, %v7469
        %v7472 = vld [vmem:[%s12] sm:$0xff]
        %7474 = vset.pattern.permute.xlu0 0
        %7475 = vperm.xlu0 %7474, %v7472
        %v7476 = vpop.permute.xlu0 %7475
        %v7478 = vadd.f32 %v7471, %v7476
        %vm7479 = vcmp.gt.f32.partialorder %v7478, 0.0
        %v7480 = vmul.f32 %v7478, 0.1
        %v7481 = vsel %vm7479, %v7478, %v7480
        %7483 = vrot.lane.b32.xlu0 %v7481, 120
        %v7484 = vpop.permute.xlu0 %7483
        %7486 = vrot.lane.b32.xlu0 %v7481, 112
        %v7487 = vpop.permute.xlu0 %7486
        %7489 = vrot.lane.b32.xlu0 %v7481, 104
        %v7490 = vpop.permute.xlu0 %7489
        %7492 = vrot.lane.b32.xlu0 %v7481, 96
        %v7493 = vpop.permute.xlu0 %7492
        %7495 = vrot.lane.b32.xlu0 %v7481, 88
        %v7496 = vpop.permute.xlu0 %7495
        %7498 = vrot.lane.b32.xlu0 %v7481, 80
        %v7499 = vpop.permute.xlu0 %7498
        %7501 = vrot.lane.b32.xlu0 %v7481, 72
        %v7502 = vpop.permute.xlu0 %7501
        %v7504 = vcombine.low %v7481, %v7487
        %v7505 = vcombine.high %v7481, %v7487
        %v7507 = vunpack.c.l.s4 1983009808
        %v7508 = vunpack.c.0.s8 %v7507
        %v7509 = vlaneseq
        %v7510 = vshrl.u32 %v7509, 7
        %v7511 = vsub.s32 %v7508, %v7510
        %v7512 = vrot.slane %v7504, %v7511
        %v7514 = vunpack.c.l.s4 1983009808
        %v7515 = vunpack.c.0.s8 %v7514
        %v7516 = vlaneseq
        %v7517 = vshrl.u32 %v7516, 7
        %v7518 = vsub.s32 %v7515, %v7517
        %v7519 = vrot.slane %v7505, %v7518
        %v7520 = vcombine.low %v7484, %v7490
        %v7521 = vcombine.high %v7484, %v7490
        %v7523 = vunpack.c.l.s4 1983009808
        %v7524 = vunpack.c.0.s8 %v7523
        %v7525 = vlaneseq
        %v7526 = vshrl.u32 %v7525, 7
        %v7527 = vsub.s32 %v7524, %v7526
        %v7528 = vrot.slane %v7520, %v7527
        %v7530 = vunpack.c.l.s4 1983009808
        %v7531 = vunpack.c.0.s8 %v7530
        %v7532 = vlaneseq
        %v7533 = vshrl.u32 %v7532, 7
        %v7534 = vsub.s32 %v7531, %v7533
        %v7535 = vrot.slane %v7521, %v7534
        %v7536 = vcombine.low %v7493, %v7499
        %v7537 = vcombine.high %v7493, %v7499
        %v7539 = vunpack.c.l.s4 1983009808
        %v7540 = vunpack.c.0.s8 %v7539
        %v7541 = vlaneseq
        %v7542 = vshrl.u32 %v7541, 7
        %v7543 = vsub.s32 %v7540, %v7542
        %v7544 = vrot.slane %v7536, %v7543
        %v7546 = vunpack.c.l.s4 1983009808
        %v7547 = vunpack.c.0.s8 %v7546
        %v7548 = vlaneseq
        %v7549 = vshrl.u32 %v7548, 7
        %v7550 = vsub.s32 %v7547, %v7549
        %v7551 = vrot.slane %v7537, %v7550
        %v7552 = vcombine.low %v7496, %v7502
        %v7553 = vcombine.high %v7496, %v7502
        %v7555 = vunpack.c.l.s4 1983009808
        %v7556 = vunpack.c.0.s8 %v7555
        %v7557 = vlaneseq
        %v7558 = vshrl.u32 %v7557, 7
        %v7559 = vsub.s32 %v7556, %v7558
        %v7560 = vrot.slane %v7552, %v7559
        %v7562 = vunpack.c.l.s4 1983009808
        %v7563 = vunpack.c.0.s8 %v7562
        %v7564 = vlaneseq
        %v7565 = vshrl.u32 %v7564, 7
        %v7566 = vsub.s32 %v7563, %v7565
        %v7567 = vrot.slane %v7553, %v7566
        %v7568 = vcombine.low %v7512, %v7528
        %v7569 = vcombine.high %v7512, %v7528
        %v7571 = vunpack.c.l.s4 1934713408
        %v7572 = vunpack.c.0.s8 %v7571
        %v7573 = vlaneseq
        %v7574 = vshrl.u32 %v7573, 7
        %v7575 = vsub.s32 %v7572, %v7574
        %v7576 = vrot.slane %v7568, %v7575
        %v7578 = vunpack.c.l.s4 1934713408
        %v7579 = vunpack.c.0.s8 %v7578
        %v7580 = vlaneseq
        %v7581 = vshrl.u32 %v7580, 7
        %v7582 = vsub.s32 %v7579, %v7581
        %v7583 = vrot.slane %v7569, %v7582
        %v7584 = vcombine.low %v7519, %v7535
        %v7585 = vcombine.high %v7519, %v7535
        %v7587 = vunpack.c.l.s4 1934713408
        %v7588 = vunpack.c.0.s8 %v7587
        %v7589 = vlaneseq
        %v7590 = vshrl.u32 %v7589, 7
        %v7591 = vsub.s32 %v7588, %v7590
        %v7592 = vrot.slane %v7584, %v7591
        %v7594 = vunpack.c.l.s4 1934713408
        %v7595 = vunpack.c.0.s8 %v7594
        %v7596 = vlaneseq
        %v7597 = vshrl.u32 %v7596, 7
        %v7598 = vsub.s32 %v7595, %v7597
        %v7599 = vrot.slane %v7585, %v7598
        %v7600 = vcombine.low %v7544, %v7560
        %v7601 = vcombine.high %v7544, %v7560
        %v7603 = vunpack.c.l.s4 1934713408
        %v7604 = vunpack.c.0.s8 %v7603
        %v7605 = vlaneseq
        %v7606 = vshrl.u32 %v7605, 7
        %v7607 = vsub.s32 %v7604, %v7606
        %v7608 = vrot.slane %v7600, %v7607
        %v7610 = vunpack.c.l.s4 1934713408
        %v7611 = vunpack.c.0.s8 %v7610
        %v7612 = vlaneseq
        %v7613 = vshrl.u32 %v7612, 7
        %v7614 = vsub.s32 %v7611, %v7613
        %v7615 = vrot.slane %v7601, %v7614
        %v7616 = vcombine.low %v7551, %v7567
        %v7617 = vcombine.high %v7551, %v7567
        %v7619 = vunpack.c.l.s4 1934713408
        %v7620 = vunpack.c.0.s8 %v7619
        %v7621 = vlaneseq
        %v7622 = vshrl.u32 %v7621, 7
        %v7623 = vsub.s32 %v7620, %v7622
        %v7624 = vrot.slane %v7616, %v7623
        %v7626 = vunpack.c.l.s4 1934713408
        %v7627 = vunpack.c.0.s8 %v7626
        %v7628 = vlaneseq
        %v7629 = vshrl.u32 %v7628, 7
        %v7630 = vsub.s32 %v7627, %v7629
        %v7631 = vrot.slane %v7617, %v7630
        %v7632 = vcombine.low %v7576, %v7608
        %v7633 = vcombine.high %v7576, %v7608
        %v7634 = vcombine.low %v7583, %v7615
        %v7635 = vcombine.high %v7583, %v7615
        %v7636 = vcombine.low %v7592, %v7624
        %v7637 = vcombine.high %v7592, %v7624
        %v7638 = vcombine.low %v7599, %v7631
        %v7639 = vcombine.high %v7599, %v7631
        %v7648 = vrot.slane %v7632, 7
        %v7649 = vrot.slane %v7633, 7
        %v7650 = vrot.slane %v7634, 7
        %v7651 = vrot.slane %v7635, 7
        %v7652 = vrot.slane %v7636, 7
        %v7653 = vrot.slane %v7637, 7
        %v7654 = vrot.slane %v7638, 7
        %v7655 = vrot.slane %v7639, 7
        %v7664 = vsel %vm696, 0.0, %v7648
        %v7665 = vsel %vm696, 0.0, %v7649
        %v7666 = vsel %vm696, 0.0, %v7650
        %v7667 = vsel %vm696, 0.0, %v7651
        %v7668 = vsel %vm696, 0.0, %v7652
        %v7669 = vsel %vm696, 0.0, %v7653
        %v7670 = vsel %vm696, 0.0, %v7654
        %v7671 = vsel %vm696, 0.0, %v7655
        %v7672 = vsel %vm696, %v7648, 0.0
        %v7673 = vsel %vm696, %v7649, 0.0
        %v7674 = vsel %vm696, %v7650, 0.0
        %v7675 = vsel %vm696, %v7651, 0.0
        %v7676 = vsel %vm696, %v7652, 0.0
        %v7677 = vsel %vm696, %v7653, 0.0
        %v7678 = vsel %vm696, %v7654, 0.0
        %v7679 = vsel %vm696, %v7655, 0.0
        %7696 = vrot.lane.b32.xlu0 %v7664, 1
        %v7697 = vpop.permute.xlu0 %7696
        %7698 = vrot.lane.b32.xlu0 %v7672, 1
        %v7699 = vpop.permute.xlu0 %7698
        %7700 = vrot.lane.b32.xlu0 %v7665, 1
        %v7701 = vpop.permute.xlu0 %7700
        %7702 = vrot.lane.b32.xlu0 %v7673, 1
        %v7703 = vpop.permute.xlu0 %7702
        %7704 = vrot.lane.b32.xlu0 %v7666, 1
        %v7705 = vpop.permute.xlu0 %7704
        %7706 = vrot.lane.b32.xlu0 %v7674, 1
        %v7707 = vpop.permute.xlu0 %7706
        %7708 = vrot.lane.b32.xlu0 %v7667, 1
        %v7709 = vpop.permute.xlu0 %7708
        %7710 = vrot.lane.b32.xlu0 %v7675, 1
        %v7711 = vpop.permute.xlu0 %7710
        %7712 = vrot.lane.b32.xlu0 %v7668, 1
        %v7713 = vpop.permute.xlu0 %7712
        %7714 = vrot.lane.b32.xlu0 %v7676, 1
        %v7715 = vpop.permute.xlu0 %7714
        %7716 = vrot.lane.b32.xlu0 %v7669, 1
        %v7717 = vpop.permute.xlu0 %7716
        %7718 = vrot.lane.b32.xlu0 %v7677, 1
        %v7719 = vpop.permute.xlu0 %7718
        %7720 = vrot.lane.b32.xlu0 %v7670, 1
        %v7721 = vpop.permute.xlu0 %7720
        %7722 = vrot.lane.b32.xlu0 %v7678, 1
        %v7723 = vpop.permute.xlu0 %7722
        %7724 = vrot.lane.b32.xlu0 %v7671, 1
        %v7725 = vpop.permute.xlu0 %7724
        %7726 = vrot.lane.b32.xlu0 %v7679, 1
        %v7727 = vpop.permute.xlu0 %7726
        %v7744 = vsel %vm769, 0.0, %v7697
        %v7745 = vsel %vm769, 0.0, %v7699
        %v7746 = vsel %vm769, 0.0, %v7701
        %v7747 = vsel %vm769, 0.0, %v7703
        %v7748 = vsel %vm769, 0.0, %v7705
        %v7749 = vsel %vm769, 0.0, %v7707
        %v7750 = vsel %vm769, 0.0, %v7709
        %v7751 = vsel %vm769, 0.0, %v7711
        %v7752 = vsel %vm769, 0.0, %v7713
        %v7753 = vsel %vm769, 0.0, %v7715
        %v7754 = vsel %vm769, 0.0, %v7717
        %v7755 = vsel %vm769, 0.0, %v7719
        %v7756 = vsel %vm769, 0.0, %v7721
        %v7757 = vsel %vm769, 0.0, %v7723
        %v7758 = vsel %vm769, 0.0, %v7725
        %v7759 = vsel %vm769, 0.0, %v7727
        %v7760 = vsel %vm3454, %v7744, 0.0
        %v7761 = vsel %vm3454, %v7745, 0.0
        %v7762 = vsel %vm3454, %v7746, 0.0
        %v7763 = vsel %vm3454, %v7747, 0.0
        %v7764 = vsel %vm3454, %v7748, 0.0
        %v7765 = vsel %vm3454, %v7749, 0.0
        %v7766 = vsel %vm3454, %v7750, 0.0
        %v7767 = vsel %vm3454, %v7751, 0.0
        %v7768 = vsel %vm3454, %v7752, 0.0
        %v7769 = vsel %vm3454, %v7753, 0.0
        %v7770 = vsel %vm3454, %v7754, 0.0
        %v7771 = vsel %vm3454, %v7755, 0.0
        %v7772 = vsel %vm3454, %v7756, 0.0
        %v7773 = vsel %vm3454, %v7757, 0.0
        %v7774 = vsel %vm3454, %v7758, 0.0
        %v7775 = vsel %vm3454, %v7759, 0.0
        %v7776 = vcombine.low %v7760, %v7764
        %v7777 = vcombine.high %v7760, %v7764
        %v7779 = vunpack.c.l.s4 1983009808
        %v7780 = vunpack.c.0.s8 %v7779
        %v7781 = vlaneseq
        %v7782 = vshrl.u32 %v7781, 7
        %v7783 = vsub.s32 %v7780, %v7782
        %v7784 = vrot.slane %v7776, %v7783
        %v7786 = vunpack.c.l.s4 1983009808
        %v7787 = vunpack.c.0.s8 %v7786
        %v7788 = vlaneseq
        %v7789 = vshrl.u32 %v7788, 7
        %v7790 = vsub.s32 %v7787, %v7789
        %v7791 = vrot.slane %v7777, %v7790
        %v7792 = vcombine.low %v7762, %v7766
        %v7793 = vcombine.high %v7762, %v7766
        %v7795 = vunpack.c.l.s4 1983009808
        %v7796 = vunpack.c.0.s8 %v7795
        %v7797 = vlaneseq
        %v7798 = vshrl.u32 %v7797, 7
        %v7799 = vsub.s32 %v7796, %v7798
        %v7800 = vrot.slane %v7792, %v7799
        %v7802 = vunpack.c.l.s4 1983009808
        %v7803 = vunpack.c.0.s8 %v7802
        %v7804 = vlaneseq
        %v7805 = vshrl.u32 %v7804, 7
        %v7806 = vsub.s32 %v7803, %v7805
        %v7807 = vrot.slane %v7793, %v7806
        %v7808 = vcombine.low %v7768, %v7772
        %v7809 = vcombine.high %v7768, %v7772
        %v7811 = vunpack.c.l.s4 1983009808
        %v7812 = vunpack.c.0.s8 %v7811
        %v7813 = vlaneseq
        %v7814 = vshrl.u32 %v7813, 7
        %v7815 = vsub.s32 %v7812, %v7814
        %v7816 = vrot.slane %v7808, %v7815
        %v7818 = vunpack.c.l.s4 1983009808
        %v7819 = vunpack.c.0.s8 %v7818
        %v7820 = vlaneseq
        %v7821 = vshrl.u32 %v7820, 7
        %v7822 = vsub.s32 %v7819, %v7821
        %v7823 = vrot.slane %v7809, %v7822
        %v7824 = vcombine.low %v7770, %v7774
        %v7825 = vcombine.high %v7770, %v7774
        %v7827 = vunpack.c.l.s4 1983009808
        %v7828 = vunpack.c.0.s8 %v7827
        %v7829 = vlaneseq
        %v7830 = vshrl.u32 %v7829, 7
        %v7831 = vsub.s32 %v7828, %v7830
        %v7832 = vrot.slane %v7824, %v7831
        %v7834 = vunpack.c.l.s4 1983009808
        %v7835 = vunpack.c.0.s8 %v7834
        %v7836 = vlaneseq
        %v7837 = vshrl.u32 %v7836, 7
        %v7838 = vsub.s32 %v7835, %v7837
        %v7839 = vrot.slane %v7825, %v7838
        %v7840 = vcombine.low %v7784, %v7800
        %v7841 = vcombine.high %v7784, %v7800
        %v7843 = vunpack.c.l.s4 1934713408
        %v7844 = vunpack.c.0.s8 %v7843
        %v7845 = vlaneseq
        %v7846 = vshrl.u32 %v7845, 7
        %v7847 = vsub.s32 %v7844, %v7846
        %v7848 = vrot.slane %v7840, %v7847
        %v7850 = vunpack.c.l.s4 1934713408
        %v7851 = vunpack.c.0.s8 %v7850
        %v7852 = vlaneseq
        %v7853 = vshrl.u32 %v7852, 7
        %v7854 = vsub.s32 %v7851, %v7853
        %v7855 = vrot.slane %v7841, %v7854
        %v7856 = vcombine.low %v7791, %v7807
        %v7857 = vcombine.high %v7791, %v7807
        %v7859 = vunpack.c.l.s4 1934713408
        %v7860 = vunpack.c.0.s8 %v7859
        %v7861 = vlaneseq
        %v7862 = vshrl.u32 %v7861, 7
        %v7863 = vsub.s32 %v7860, %v7862
        %v7864 = vrot.slane %v7856, %v7863
        %v7866 = vunpack.c.l.s4 1934713408
        %v7867 = vunpack.c.0.s8 %v7866
        %v7868 = vlaneseq
        %v7869 = vshrl.u32 %v7868, 7
        %v7870 = vsub.s32 %v7867, %v7869
        %v7871 = vrot.slane %v7857, %v7870
        %v7872 = vcombine.low %v7816, %v7832
        %v7873 = vcombine.high %v7816, %v7832
        %v7875 = vunpack.c.l.s4 1934713408
        %v7876 = vunpack.c.0.s8 %v7875
        %v7877 = vlaneseq
        %v7878 = vshrl.u32 %v7877, 7
        %v7879 = vsub.s32 %v7876, %v7878
        %v7880 = vrot.slane %v7872, %v7879
        %v7882 = vunpack.c.l.s4 1934713408
        %v7883 = vunpack.c.0.s8 %v7882
        %v7884 = vlaneseq
        %v7885 = vshrl.u32 %v7884, 7
        %v7886 = vsub.s32 %v7883, %v7885
        %v7887 = vrot.slane %v7873, %v7886
        %v7888 = vcombine.low %v7823, %v7839
        %v7889 = vcombine.high %v7823, %v7839
        %v7891 = vunpack.c.l.s4 1934713408
        %v7892 = vunpack.c.0.s8 %v7891
        %v7893 = vlaneseq
        %v7894 = vshrl.u32 %v7893, 7
        %v7895 = vsub.s32 %v7892, %v7894
        %v7896 = vrot.slane %v7888, %v7895
        %v7898 = vunpack.c.l.s4 1934713408
        %v7899 = vunpack.c.0.s8 %v7898
        %v7900 = vlaneseq
        %v7901 = vshrl.u32 %v7900, 7
        %v7902 = vsub.s32 %v7899, %v7901
        %v7903 = vrot.slane %v7889, %v7902
        %v7904 = vcombine.low %v7848, %v7880
        %v7905 = vcombine.high %v7848, %v7880
        %v7906 = vcombine.low %v7855, %v7887
        %v7907 = vcombine.high %v7855, %v7887
        %v7908 = vcombine.low %v7864, %v7896
        %v7909 = vcombine.high %v7864, %v7896
        %v7910 = vcombine.low %v7871, %v7903
        %v7911 = vcombine.high %v7871, %v7903
        %7913 = vrot.lane.b32.xlu0 %v7905, 8
        %v7914 = vpop.permute.xlu0 %7913
        %7917 = vrot.lane.b32.xlu0 %v7906, 16
        %v7918 = vpop.permute.xlu0 %7917
        %7921 = vrot.lane.b32.xlu0 %v7907, 24
        %v7922 = vpop.permute.xlu0 %7921
        %7925 = vrot.lane.b32.xlu0 %v7908, 32
        %v7926 = vpop.permute.xlu0 %7925
        %7929 = vrot.lane.b32.xlu0 %v7909, 40
        %v7930 = vpop.permute.xlu0 %7929
        %7933 = vrot.lane.b32.xlu0 %v7910, 48
        %v7934 = vpop.permute.xlu0 %7933
        %7937 = vrot.lane.b32.xlu0 %v7911, 56
        %v7938 = vpop.permute.xlu0 %7937
        %v7940 = vsel %vm3635, %v7904, %v7914
        %v7941 = vsel %vm987, %v7940, %v7918
        %v7942 = vsel %vm3638, %v7941, %v7922
        %v7943 = vsel %vm989, %v7942, %v7926
        %v7944 = vsel %vm3641, %v7943, %v7930
        %v7945 = vsel %vm991, %v7944, %v7934
        %v7946 = vsel %vm3644, %v7945, %v7938
        %7955 = vrot.lane.b32.xlu0 %v7760, 127
        %v7956 = vpop.permute.xlu0 %7955
        %7957 = vrot.lane.b32.xlu0 %v7762, 127
        %v7958 = vpop.permute.xlu0 %7957
        %7959 = vrot.lane.b32.xlu0 %v7764, 127
        %v7960 = vpop.permute.xlu0 %7959
        %7961 = vrot.lane.b32.xlu0 %v7766, 127
        %v7962 = vpop.permute.xlu0 %7961
        %7963 = vrot.lane.b32.xlu0 %v7768, 127
        %v7964 = vpop.permute.xlu0 %7963
        %7965 = vrot.lane.b32.xlu0 %v7770, 127
        %v7966 = vpop.permute.xlu0 %7965
        %7967 = vrot.lane.b32.xlu0 %v7772, 127
        %v7968 = vpop.permute.xlu0 %7967
        %7969 = vrot.lane.b32.xlu0 %v7774, 127
        %v7970 = vpop.permute.xlu0 %7969
        %v7979 = vcombine.low %v7956, %v7960
        %v7980 = vcombine.high %v7956, %v7960
        %v7982 = vunpack.c.l.s4 1983009808
        %v7983 = vunpack.c.0.s8 %v7982
        %v7984 = vlaneseq
        %v7985 = vshrl.u32 %v7984, 7
        %v7986 = vsub.s32 %v7983, %v7985
        %v7987 = vrot.slane %v7979, %v7986
        %v7989 = vunpack.c.l.s4 1983009808
        %v7990 = vunpack.c.0.s8 %v7989
        %v7991 = vlaneseq
        %v7992 = vshrl.u32 %v7991, 7
        %v7993 = vsub.s32 %v7990, %v7992
        %v7994 = vrot.slane %v7980, %v7993
        %v7995 = vcombine.low %v7958, %v7962
        %v7996 = vcombine.high %v7958, %v7962
        %v7998 = vunpack.c.l.s4 1983009808
        %v7999 = vunpack.c.0.s8 %v7998
        %v8000 = vlaneseq
        %v8001 = vshrl.u32 %v8000, 7
        %v8002 = vsub.s32 %v7999, %v8001
        %v8003 = vrot.slane %v7995, %v8002
        %v8005 = vunpack.c.l.s4 1983009808
        %v8006 = vunpack.c.0.s8 %v8005
        %v8007 = vlaneseq
        %v8008 = vshrl.u32 %v8007, 7
        %v8009 = vsub.s32 %v8006, %v8008
        %v8010 = vrot.slane %v7996, %v8009
        %v8011 = vcombine.low %v7964, %v7968
        %v8012 = vcombine.high %v7964, %v7968
        %v8014 = vunpack.c.l.s4 1983009808
        %v8015 = vunpack.c.0.s8 %v8014
        %v8016 = vlaneseq
        %v8017 = vshrl.u32 %v8016, 7
        %v8018 = vsub.s32 %v8015, %v8017
        %v8019 = vrot.slane %v8011, %v8018
        %v8021 = vunpack.c.l.s4 1983009808
        %v8022 = vunpack.c.0.s8 %v8021
        %v8023 = vlaneseq
        %v8024 = vshrl.u32 %v8023, 7
        %v8025 = vsub.s32 %v8022, %v8024
        %v8026 = vrot.slane %v8012, %v8025
        %v8027 = vcombine.low %v7966, %v7970
        %v8028 = vcombine.high %v7966, %v7970
        %v8030 = vunpack.c.l.s4 1983009808
        %v8031 = vunpack.c.0.s8 %v8030
        %v8032 = vlaneseq
        %v8033 = vshrl.u32 %v8032, 7
        %v8034 = vsub.s32 %v8031, %v8033
        %v8035 = vrot.slane %v8027, %v8034
        %v8037 = vunpack.c.l.s4 1983009808
        %v8038 = vunpack.c.0.s8 %v8037
        %v8039 = vlaneseq
        %v8040 = vshrl.u32 %v8039, 7
        %v8041 = vsub.s32 %v8038, %v8040
        %v8042 = vrot.slane %v8028, %v8041
        %v8043 = vcombine.low %v7987, %v8003
        %v8044 = vcombine.high %v7987, %v8003
        %v8046 = vunpack.c.l.s4 1934713408
        %v8047 = vunpack.c.0.s8 %v8046
        %v8048 = vlaneseq
        %v8049 = vshrl.u32 %v8048, 7
        %v8050 = vsub.s32 %v8047, %v8049
        %v8051 = vrot.slane %v8043, %v8050
        %v8053 = vunpack.c.l.s4 1934713408
        %v8054 = vunpack.c.0.s8 %v8053
        %v8055 = vlaneseq
        %v8056 = vshrl.u32 %v8055, 7
        %v8057 = vsub.s32 %v8054, %v8056
        %v8058 = vrot.slane %v8044, %v8057
        %v8059 = vcombine.low %v7994, %v8010
        %v8060 = vcombine.high %v7994, %v8010
        %v8062 = vunpack.c.l.s4 1934713408
        %v8063 = vunpack.c.0.s8 %v8062
        %v8064 = vlaneseq
        %v8065 = vshrl.u32 %v8064, 7
        %v8066 = vsub.s32 %v8063, %v8065
        %v8067 = vrot.slane %v8059, %v8066
        %v8069 = vunpack.c.l.s4 1934713408
        %v8070 = vunpack.c.0.s8 %v8069
        %v8071 = vlaneseq
        %v8072 = vshrl.u32 %v8071, 7
        %v8073 = vsub.s32 %v8070, %v8072
        %v8074 = vrot.slane %v8060, %v8073
        %v8075 = vcombine.low %v8019, %v8035
        %v8076 = vcombine.high %v8019, %v8035
        %v8078 = vunpack.c.l.s4 1934713408
        %v8079 = vunpack.c.0.s8 %v8078
        %v8080 = vlaneseq
        %v8081 = vshrl.u32 %v8080, 7
        %v8082 = vsub.s32 %v8079, %v8081
        %v8083 = vrot.slane %v8075, %v8082
        %v8085 = vunpack.c.l.s4 1934713408
        %v8086 = vunpack.c.0.s8 %v8085
        %v8087 = vlaneseq
        %v8088 = vshrl.u32 %v8087, 7
        %v8089 = vsub.s32 %v8086, %v8088
        %v8090 = vrot.slane %v8076, %v8089
        %v8091 = vcombine.low %v8026, %v8042
        %v8092 = vcombine.high %v8026, %v8042
        %v8094 = vunpack.c.l.s4 1934713408
        %v8095 = vunpack.c.0.s8 %v8094
        %v8096 = vlaneseq
        %v8097 = vshrl.u32 %v8096, 7
        %v8098 = vsub.s32 %v8095, %v8097
        %v8099 = vrot.slane %v8091, %v8098
        %v8101 = vunpack.c.l.s4 1934713408
        %v8102 = vunpack.c.0.s8 %v8101
        %v8103 = vlaneseq
        %v8104 = vshrl.u32 %v8103, 7
        %v8105 = vsub.s32 %v8102, %v8104
        %v8106 = vrot.slane %v8092, %v8105
        %v8107 = vcombine.low %v8051, %v8083
        %v8108 = vcombine.high %v8051, %v8083
        %v8109 = vcombine.low %v8058, %v8090
        %v8110 = vcombine.high %v8058, %v8090
        %v8111 = vcombine.low %v8067, %v8099
        %v8112 = vcombine.high %v8067, %v8099
        %v8113 = vcombine.low %v8074, %v8106
        %v8114 = vcombine.high %v8074, %v8106
        %8116 = vrot.lane.b32.xlu0 %v8108, 8
        %v8117 = vpop.permute.xlu0 %8116
        %8120 = vrot.lane.b32.xlu0 %v8109, 16
        %v8121 = vpop.permute.xlu0 %8120
        %8124 = vrot.lane.b32.xlu0 %v8110, 24
        %v8125 = vpop.permute.xlu0 %8124
        %8128 = vrot.lane.b32.xlu0 %v8111, 32
        %v8129 = vpop.permute.xlu0 %8128
        %8132 = vrot.lane.b32.xlu0 %v8112, 40
        %v8133 = vpop.permute.xlu0 %8132
        %8136 = vrot.lane.b32.xlu0 %v8113, 48
        %v8137 = vpop.permute.xlu0 %8136
        %8140 = vrot.lane.b32.xlu0 %v8114, 56
        %v8141 = vpop.permute.xlu0 %8140
        %v8143 = vsel %vm3635, %v8107, %v8117
        %v8144 = vsel %vm987, %v8143, %v8121
        %v8145 = vsel %vm3638, %v8144, %v8125
        %v8146 = vsel %vm989, %v8145, %v8129
        %v8147 = vsel %vm3641, %v8146, %v8133
        %v8148 = vsel %vm991, %v8147, %v8137
        %v8149 = vsel %vm3644, %v8148, %v8141
        %8150 = vrot.lane.b32.xlu0 %v7760, 126
        %v8151 = vpop.permute.xlu0 %8150
        %8152 = vrot.lane.b32.xlu0 %v7762, 126
        %v8153 = vpop.permute.xlu0 %8152
        %8154 = vrot.lane.b32.xlu0 %v7764, 126
        %v8155 = vpop.permute.xlu0 %8154
        %8156 = vrot.lane.b32.xlu0 %v7766, 126
        %v8157 = vpop.permute.xlu0 %8156
        %8158 = vrot.lane.b32.xlu0 %v7768, 126
        %v8159 = vpop.permute.xlu0 %8158
        %8160 = vrot.lane.b32.xlu0 %v7770, 126
        %v8161 = vpop.permute.xlu0 %8160
        %8162 = vrot.lane.b32.xlu0 %v7772, 126
        %v8163 = vpop.permute.xlu0 %8162
        %8164 = vrot.lane.b32.xlu0 %v7774, 126
        %v8165 = vpop.permute.xlu0 %8164
        %v8174 = vcombine.low %v8151, %v8155
        %v8175 = vcombine.high %v8151, %v8155
        %v8177 = vunpack.c.l.s4 1983009808
        %v8178 = vunpack.c.0.s8 %v8177
        %v8179 = vlaneseq
        %v8180 = vshrl.u32 %v8179, 7
        %v8181 = vsub.s32 %v8178, %v8180
        %v8182 = vrot.slane %v8174, %v8181
        %v8184 = vunpack.c.l.s4 1983009808
        %v8185 = vunpack.c.0.s8 %v8184
        %v8186 = vlaneseq
        %v8187 = vshrl.u32 %v8186, 7
        %v8188 = vsub.s32 %v8185, %v8187
        %v8189 = vrot.slane %v8175, %v8188
        %v8190 = vcombine.low %v8153, %v8157
        %v8191 = vcombine.high %v8153, %v8157
        %v8193 = vunpack.c.l.s4 1983009808
        %v8194 = vunpack.c.0.s8 %v8193
        %v8195 = vlaneseq
        %v8196 = vshrl.u32 %v8195, 7
        %v8197 = vsub.s32 %v8194, %v8196
        %v8198 = vrot.slane %v8190, %v8197
        %v8200 = vunpack.c.l.s4 1983009808
        %v8201 = vunpack.c.0.s8 %v8200
        %v8202 = vlaneseq
        %v8203 = vshrl.u32 %v8202, 7
        %v8204 = vsub.s32 %v8201, %v8203
        %v8205 = vrot.slane %v8191, %v8204
        %v8206 = vcombine.low %v8159, %v8163
        %v8207 = vcombine.high %v8159, %v8163
        %v8209 = vunpack.c.l.s4 1983009808
        %v8210 = vunpack.c.0.s8 %v8209
        %v8211 = vlaneseq
        %v8212 = vshrl.u32 %v8211, 7
        %v8213 = vsub.s32 %v8210, %v8212
        %v8214 = vrot.slane %v8206, %v8213
        %v8216 = vunpack.c.l.s4 1983009808
        %v8217 = vunpack.c.0.s8 %v8216
        %v8218 = vlaneseq
        %v8219 = vshrl.u32 %v8218, 7
        %v8220 = vsub.s32 %v8217, %v8219
        %v8221 = vrot.slane %v8207, %v8220
        %v8222 = vcombine.low %v8161, %v8165
        %v8223 = vcombine.high %v8161, %v8165
        %v8225 = vunpack.c.l.s4 1983009808
        %v8226 = vunpack.c.0.s8 %v8225
        %v8227 = vlaneseq
        %v8228 = vshrl.u32 %v8227, 7
        %v8229 = vsub.s32 %v8226, %v8228
        %v8230 = vrot.slane %v8222, %v8229
        %v8232 = vunpack.c.l.s4 1983009808
        %v8233 = vunpack.c.0.s8 %v8232
        %v8234 = vlaneseq
        %v8235 = vshrl.u32 %v8234, 7
        %v8236 = vsub.s32 %v8233, %v8235
        %v8237 = vrot.slane %v8223, %v8236
        %v8238 = vcombine.low %v8182, %v8198
        %v8239 = vcombine.high %v8182, %v8198
        %v8241 = vunpack.c.l.s4 1934713408
        %v8242 = vunpack.c.0.s8 %v8241
        %v8243 = vlaneseq
        %v8244 = vshrl.u32 %v8243, 7
        %v8245 = vsub.s32 %v8242, %v8244
        %v8246 = vrot.slane %v8238, %v8245
        %v8248 = vunpack.c.l.s4 1934713408
        %v8249 = vunpack.c.0.s8 %v8248
        %v8250 = vlaneseq
        %v8251 = vshrl.u32 %v8250, 7
        %v8252 = vsub.s32 %v8249, %v8251
        %v8253 = vrot.slane %v8239, %v8252
        %v8254 = vcombine.low %v8189, %v8205
        %v8255 = vcombine.high %v8189, %v8205
        %v8257 = vunpack.c.l.s4 1934713408
        %v8258 = vunpack.c.0.s8 %v8257
        %v8259 = vlaneseq
        %v8260 = vshrl.u32 %v8259, 7
        %v8261 = vsub.s32 %v8258, %v8260
        %v8262 = vrot.slane %v8254, %v8261
        %v8264 = vunpack.c.l.s4 1934713408
        %v8265 = vunpack.c.0.s8 %v8264
        %v8266 = vlaneseq
        %v8267 = vshrl.u32 %v8266, 7
        %v8268 = vsub.s32 %v8265, %v8267
        %v8269 = vrot.slane %v8255, %v8268
        %v8270 = vcombine.low %v8214, %v8230
        %v8271 = vcombine.high %v8214, %v8230
        %v8273 = vunpack.c.l.s4 1934713408
        %v8274 = vunpack.c.0.s8 %v8273
        %v8275 = vlaneseq
        %v8276 = vshrl.u32 %v8275, 7
        %v8277 = vsub.s32 %v8274, %v8276
        %v8278 = vrot.slane %v8270, %v8277
        %v8280 = vunpack.c.l.s4 1934713408
        %v8281 = vunpack.c.0.s8 %v8280
        %v8282 = vlaneseq
        %v8283 = vshrl.u32 %v8282, 7
        %v8284 = vsub.s32 %v8281, %v8283
        %v8285 = vrot.slane %v8271, %v8284
        %v8286 = vcombine.low %v8221, %v8237
        %v8287 = vcombine.high %v8221, %v8237
        %v8289 = vunpack.c.l.s4 1934713408
        %v8290 = vunpack.c.0.s8 %v8289
        %v8291 = vlaneseq
        %v8292 = vshrl.u32 %v8291, 7
        %v8293 = vsub.s32 %v8290, %v8292
        %v8294 = vrot.slane %v8286, %v8293
        %v8296 = vunpack.c.l.s4 1934713408
        %v8297 = vunpack.c.0.s8 %v8296
        %v8298 = vlaneseq
        %v8299 = vshrl.u32 %v8298, 7
        %v8300 = vsub.s32 %v8297, %v8299
        %v8301 = vrot.slane %v8287, %v8300
        %v8302 = vcombine.low %v8246, %v8278
        %v8303 = vcombine.high %v8246, %v8278
        %v8304 = vcombine.low %v8253, %v8285
        %v8305 = vcombine.high %v8253, %v8285
        %v8306 = vcombine.low %v8262, %v8294
        %v8307 = vcombine.high %v8262, %v8294
        %v8308 = vcombine.low %v8269, %v8301
        %v8309 = vcombine.high %v8269, %v8301
        %8311 = vrot.lane.b32.xlu0 %v8303, 8
        %v8312 = vpop.permute.xlu0 %8311
        %8315 = vrot.lane.b32.xlu0 %v8304, 16
        %v8316 = vpop.permute.xlu0 %8315
        %8319 = vrot.lane.b32.xlu0 %v8305, 24
        %v8320 = vpop.permute.xlu0 %8319
        %8323 = vrot.lane.b32.xlu0 %v8306, 32
        %v8324 = vpop.permute.xlu0 %8323
        %8327 = vrot.lane.b32.xlu0 %v8307, 40
        %v8328 = vpop.permute.xlu0 %8327
        %8331 = vrot.lane.b32.xlu0 %v8308, 48
        %v8332 = vpop.permute.xlu0 %8331
        %8335 = vrot.lane.b32.xlu0 %v8309, 56
        %v8336 = vpop.permute.xlu0 %8335
        %v8338 = vsel %vm3635, %v8302, %v8312
        %v8339 = vsel %vm987, %v8338, %v8316
        %v8340 = vsel %vm3638, %v8339, %v8320
        %v8341 = vsel %vm989, %v8340, %v8324
        %v8342 = vsel %vm3641, %v8341, %v8328
        %v8343 = vsel %vm991, %v8342, %v8332
        %v8344 = vsel %vm3644, %v8343, %v8336
        %v8353 = vrot.slane %v7760, 1
        %v8354 = vrot.slane %v7761, 1
        %v8355 = vsel %vm1480, %v8353, %v8354
        %v8356 = vrot.slane %v7762, 1
        %v8357 = vrot.slane %v7763, 1
        %v8358 = vsel %vm1480, %v8356, %v8357
        %v8359 = vrot.slane %v7764, 1
        %v8360 = vrot.slane %v7765, 1
        %v8361 = vsel %vm1480, %v8359, %v8360
        %v8362 = vrot.slane %v7766, 1
        %v8363 = vrot.slane %v7767, 1
        %v8364 = vsel %vm1480, %v8362, %v8363
        %v8365 = vrot.slane %v7768, 1
        %v8366 = vrot.slane %v7769, 1
        %v8367 = vsel %vm1480, %v8365, %v8366
        %v8368 = vrot.slane %v7770, 1
        %v8369 = vrot.slane %v7771, 1
        %v8370 = vsel %vm1480, %v8368, %v8369
        %v8371 = vrot.slane %v7772, 1
        %v8372 = vrot.slane %v7773, 1
        %v8373 = vsel %vm1480, %v8371, %v8372
        %v8374 = vrot.slane %v7774, 1
        %v8375 = vrot.slane %v7775, 1
        %v8376 = vsel %vm1480, %v8374, %v8375
        %v8385 = vcombine.low %v8355, %v8361
        %v8386 = vcombine.high %v8355, %v8361
        %v8388 = vunpack.c.l.s4 1983009808
        %v8389 = vunpack.c.0.s8 %v8388
        %v8390 = vlaneseq
        %v8391 = vshrl.u32 %v8390, 7
        %v8392 = vsub.s32 %v8389, %v8391
        %v8393 = vrot.slane %v8385, %v8392
        %v8395 = vunpack.c.l.s4 1983009808
        %v8396 = vunpack.c.0.s8 %v8395
        %v8397 = vlaneseq
        %v8398 = vshrl.u32 %v8397, 7
        %v8399 = vsub.s32 %v8396, %v8398
        %v8400 = vrot.slane %v8386, %v8399
        %v8401 = vcombine.low %v8358, %v8364
        %v8402 = vcombine.high %v8358, %v8364
        %v8404 = vunpack.c.l.s4 1983009808
        %v8405 = vunpack.c.0.s8 %v8404
        %v8406 = vlaneseq
        %v8407 = vshrl.u32 %v8406, 7
        %v8408 = vsub.s32 %v8405, %v8407
        %v8409 = vrot.slane %v8401, %v8408
        %v8411 = vunpack.c.l.s4 1983009808
        %v8412 = vunpack.c.0.s8 %v8411
        %v8413 = vlaneseq
        %v8414 = vshrl.u32 %v8413, 7
        %v8415 = vsub.s32 %v8412, %v8414
        %v8416 = vrot.slane %v8402, %v8415
        %v8417 = vcombine.low %v8367, %v8373
        %v8418 = vcombine.high %v8367, %v8373
        %v8420 = vunpack.c.l.s4 1983009808
        %v8421 = vunpack.c.0.s8 %v8420
        %v8422 = vlaneseq
        %v8423 = vshrl.u32 %v8422, 7
        %v8424 = vsub.s32 %v8421, %v8423
        %v8425 = vrot.slane %v8417, %v8424
        %v8427 = vunpack.c.l.s4 1983009808
        %v8428 = vunpack.c.0.s8 %v8427
        %v8429 = vlaneseq
        %v8430 = vshrl.u32 %v8429, 7
        %v8431 = vsub.s32 %v8428, %v8430
        %v8432 = vrot.slane %v8418, %v8431
        %v8433 = vcombine.low %v8370, %v8376
        %v8434 = vcombine.high %v8370, %v8376
        %v8436 = vunpack.c.l.s4 1983009808
        %v8437 = vunpack.c.0.s8 %v8436
        %v8438 = vlaneseq
        %v8439 = vshrl.u32 %v8438, 7
        %v8440 = vsub.s32 %v8437, %v8439
        %v8441 = vrot.slane %v8433, %v8440
        %v8443 = vunpack.c.l.s4 1983009808
        %v8444 = vunpack.c.0.s8 %v8443
        %v8445 = vlaneseq
        %v8446 = vshrl.u32 %v8445, 7
        %v8447 = vsub.s32 %v8444, %v8446
        %v8448 = vrot.slane %v8434, %v8447
        %v8449 = vcombine.low %v8393, %v8409
        %v8450 = vcombine.high %v8393, %v8409
        %v8452 = vunpack.c.l.s4 1934713408
        %v8453 = vunpack.c.0.s8 %v8452
        %v8454 = vlaneseq
        %v8455 = vshrl.u32 %v8454, 7
        %v8456 = vsub.s32 %v8453, %v8455
        %v8457 = vrot.slane %v8449, %v8456
        %v8459 = vunpack.c.l.s4 1934713408
        %v8460 = vunpack.c.0.s8 %v8459
        %v8461 = vlaneseq
        %v8462 = vshrl.u32 %v8461, 7
        %v8463 = vsub.s32 %v8460, %v8462
        %v8464 = vrot.slane %v8450, %v8463
        %v8465 = vcombine.low %v8400, %v8416
        %v8466 = vcombine.high %v8400, %v8416
        %v8468 = vunpack.c.l.s4 1934713408
        %v8469 = vunpack.c.0.s8 %v8468
        %v8470 = vlaneseq
        %v8471 = vshrl.u32 %v8470, 7
        %v8472 = vsub.s32 %v8469, %v8471
        %v8473 = vrot.slane %v8465, %v8472
        %v8475 = vunpack.c.l.s4 1934713408
        %v8476 = vunpack.c.0.s8 %v8475
        %v8477 = vlaneseq
        %v8478 = vshrl.u32 %v8477, 7
        %v8479 = vsub.s32 %v8476, %v8478
        %v8480 = vrot.slane %v8466, %v8479
        %v8481 = vcombine.low %v8425, %v8441
        %v8482 = vcombine.high %v8425, %v8441
        %v8484 = vunpack.c.l.s4 1934713408
        %v8485 = vunpack.c.0.s8 %v8484
        %v8486 = vlaneseq
        %v8487 = vshrl.u32 %v8486, 7
        %v8488 = vsub.s32 %v8485, %v8487
        %v8489 = vrot.slane %v8481, %v8488
        %v8491 = vunpack.c.l.s4 1934713408
        %v8492 = vunpack.c.0.s8 %v8491
        %v8493 = vlaneseq
        %v8494 = vshrl.u32 %v8493, 7
        %v8495 = vsub.s32 %v8492, %v8494
        %v8496 = vrot.slane %v8482, %v8495
        %v8497 = vcombine.low %v8432, %v8448
        %v8498 = vcombine.high %v8432, %v8448
        %v8500 = vunpack.c.l.s4 1934713408
        %v8501 = vunpack.c.0.s8 %v8500
        %v8502 = vlaneseq
        %v8503 = vshrl.u32 %v8502, 7
        %v8504 = vsub.s32 %v8501, %v8503
        %v8505 = vrot.slane %v8497, %v8504
        %v8507 = vunpack.c.l.s4 1934713408
        %v8508 = vunpack.c.0.s8 %v8507
        %v8509 = vlaneseq
        %v8510 = vshrl.u32 %v8509, 7
        %v8511 = vsub.s32 %v8508, %v8510
        %v8512 = vrot.slane %v8498, %v8511
        %v8513 = vcombine.low %v8457, %v8489
        %v8514 = vcombine.high %v8457, %v8489
        %v8515 = vcombine.low %v8464, %v8496
        %v8516 = vcombine.high %v8464, %v8496
        %v8517 = vcombine.low %v8473, %v8505
        %v8518 = vcombine.high %v8473, %v8505
        %v8519 = vcombine.low %v8480, %v8512
        %v8520 = vcombine.high %v8480, %v8512
        %8522 = vrot.lane.b32.xlu0 %v8514, 8
        %v8523 = vpop.permute.xlu0 %8522
        %8526 = vrot.lane.b32.xlu0 %v8515, 16
        %v8527 = vpop.permute.xlu0 %8526
        %8530 = vrot.lane.b32.xlu0 %v8516, 24
        %v8531 = vpop.permute.xlu0 %8530
        %8534 = vrot.lane.b32.xlu0 %v8517, 32
        %v8535 = vpop.permute.xlu0 %8534
        %8538 = vrot.lane.b32.xlu0 %v8518, 40
        %v8539 = vpop.permute.xlu0 %8538
        %8542 = vrot.lane.b32.xlu0 %v8519, 48
        %v8543 = vpop.permute.xlu0 %8542
        %8546 = vrot.lane.b32.xlu0 %v8520, 56
        %v8547 = vpop.permute.xlu0 %8546
        %v8549 = vsel %vm3635, %v8513, %v8523
        %v8550 = vsel %vm987, %v8549, %v8527
        %v8551 = vsel %vm3638, %v8550, %v8531
        %v8552 = vsel %vm989, %v8551, %v8535
        %v8553 = vsel %vm3641, %v8552, %v8539
        %v8554 = vsel %vm991, %v8553, %v8543
        %v8555 = vsel %vm3644, %v8554, %v8547
        %8556 = vrot.lane.b32.xlu0 %v8355, 127
        %v8557 = vpop.permute.xlu0 %8556
        %8558 = vrot.lane.b32.xlu0 %v8358, 127
        %v8559 = vpop.permute.xlu0 %8558
        %8560 = vrot.lane.b32.xlu0 %v8361, 127
        %v8561 = vpop.permute.xlu0 %8560
        %8562 = vrot.lane.b32.xlu0 %v8364, 127
        %v8563 = vpop.permute.xlu0 %8562
        %8564 = vrot.lane.b32.xlu0 %v8367, 127
        %v8565 = vpop.permute.xlu0 %8564
        %8566 = vrot.lane.b32.xlu0 %v8370, 127
        %v8567 = vpop.permute.xlu0 %8566
        %8568 = vrot.lane.b32.xlu0 %v8373, 127
        %v8569 = vpop.permute.xlu0 %8568
        %8570 = vrot.lane.b32.xlu0 %v8376, 127
        %v8571 = vpop.permute.xlu0 %8570
        %v8580 = vcombine.low %v8557, %v8561
        %v8581 = vcombine.high %v8557, %v8561
        %v8583 = vunpack.c.l.s4 1983009808
        %v8584 = vunpack.c.0.s8 %v8583
        %v8585 = vlaneseq
        %v8586 = vshrl.u32 %v8585, 7
        %v8587 = vsub.s32 %v8584, %v8586
        %v8588 = vrot.slane %v8580, %v8587
        %v8590 = vunpack.c.l.s4 1983009808
        %v8591 = vunpack.c.0.s8 %v8590
        %v8592 = vlaneseq
        %v8593 = vshrl.u32 %v8592, 7
        %v8594 = vsub.s32 %v8591, %v8593
        %v8595 = vrot.slane %v8581, %v8594
        %v8596 = vcombine.low %v8559, %v8563
        %v8597 = vcombine.high %v8559, %v8563
        %v8599 = vunpack.c.l.s4 1983009808
        %v8600 = vunpack.c.0.s8 %v8599
        %v8601 = vlaneseq
        %v8602 = vshrl.u32 %v8601, 7
        %v8603 = vsub.s32 %v8600, %v8602
        %v8604 = vrot.slane %v8596, %v8603
        %v8606 = vunpack.c.l.s4 1983009808
        %v8607 = vunpack.c.0.s8 %v8606
        %v8608 = vlaneseq
        %v8609 = vshrl.u32 %v8608, 7
        %v8610 = vsub.s32 %v8607, %v8609
        %v8611 = vrot.slane %v8597, %v8610
        %v8612 = vcombine.low %v8565, %v8569
        %v8613 = vcombine.high %v8565, %v8569
        %v8615 = vunpack.c.l.s4 1983009808
        %v8616 = vunpack.c.0.s8 %v8615
        %v8617 = vlaneseq
        %v8618 = vshrl.u32 %v8617, 7
        %v8619 = vsub.s32 %v8616, %v8618
        %v8620 = vrot.slane %v8612, %v8619
        %v8622 = vunpack.c.l.s4 1983009808
        %v8623 = vunpack.c.0.s8 %v8622
        %v8624 = vlaneseq
        %v8625 = vshrl.u32 %v8624, 7
        %v8626 = vsub.s32 %v8623, %v8625
        %v8627 = vrot.slane %v8613, %v8626
        %v8628 = vcombine.low %v8567, %v8571
        %v8629 = vcombine.high %v8567, %v8571
        %v8631 = vunpack.c.l.s4 1983009808
        %v8632 = vunpack.c.0.s8 %v8631
        %v8633 = vlaneseq
        %v8634 = vshrl.u32 %v8633, 7
        %v8635 = vsub.s32 %v8632, %v8634
        %v8636 = vrot.slane %v8628, %v8635
        %v8638 = vunpack.c.l.s4 1983009808
        %v8639 = vunpack.c.0.s8 %v8638
        %v8640 = vlaneseq
        %v8641 = vshrl.u32 %v8640, 7
        %v8642 = vsub.s32 %v8639, %v8641
        %v8643 = vrot.slane %v8629, %v8642
        %v8644 = vcombine.low %v8588, %v8604
        %v8645 = vcombine.high %v8588, %v8604
        %v8647 = vunpack.c.l.s4 1934713408
        %v8648 = vunpack.c.0.s8 %v8647
        %v8649 = vlaneseq
        %v8650 = vshrl.u32 %v8649, 7
        %v8651 = vsub.s32 %v8648, %v8650
        %v8652 = vrot.slane %v8644, %v8651
        %v8654 = vunpack.c.l.s4 1934713408
        %v8655 = vunpack.c.0.s8 %v8654
        %v8656 = vlaneseq
        %v8657 = vshrl.u32 %v8656, 7
        %v8658 = vsub.s32 %v8655, %v8657
        %v8659 = vrot.slane %v8645, %v8658
        %v8660 = vcombine.low %v8595, %v8611
        %v8661 = vcombine.high %v8595, %v8611
        %v8663 = vunpack.c.l.s4 1934713408
        %v8664 = vunpack.c.0.s8 %v8663
        %v8665 = vlaneseq
        %v8666 = vshrl.u32 %v8665, 7
        %v8667 = vsub.s32 %v8664, %v8666
        %v8668 = vrot.slane %v8660, %v8667
        %v8670 = vunpack.c.l.s4 1934713408
        %v8671 = vunpack.c.0.s8 %v8670
        %v8672 = vlaneseq
        %v8673 = vshrl.u32 %v8672, 7
        %v8674 = vsub.s32 %v8671, %v8673
        %v8675 = vrot.slane %v8661, %v8674
        %v8676 = vcombine.low %v8620, %v8636
        %v8677 = vcombine.high %v8620, %v8636
        %v8679 = vunpack.c.l.s4 1934713408
        %v8680 = vunpack.c.0.s8 %v8679
        %v8681 = vlaneseq
        %v8682 = vshrl.u32 %v8681, 7
        %v8683 = vsub.s32 %v8680, %v8682
        %v8684 = vrot.slane %v8676, %v8683
        %v8686 = vunpack.c.l.s4 1934713408
        %v8687 = vunpack.c.0.s8 %v8686
        %v8688 = vlaneseq
        %v8689 = vshrl.u32 %v8688, 7
        %v8690 = vsub.s32 %v8687, %v8689
        %v8691 = vrot.slane %v8677, %v8690
        %v8692 = vcombine.low %v8627, %v8643
        %v8693 = vcombine.high %v8627, %v8643
        %v8695 = vunpack.c.l.s4 1934713408
        %v8696 = vunpack.c.0.s8 %v8695
        %v8697 = vlaneseq
        %v8698 = vshrl.u32 %v8697, 7
        %v8699 = vsub.s32 %v8696, %v8698
        %v8700 = vrot.slane %v8692, %v8699
        %v8702 = vunpack.c.l.s4 1934713408
        %v8703 = vunpack.c.0.s8 %v8702
        %v8704 = vlaneseq
        %v8705 = vshrl.u32 %v8704, 7
        %v8706 = vsub.s32 %v8703, %v8705
        %v8707 = vrot.slane %v8693, %v8706
        %v8708 = vcombine.low %v8652, %v8684
        %v8709 = vcombine.high %v8652, %v8684
        %v8710 = vcombine.low %v8659, %v8691
        %v8711 = vcombine.high %v8659, %v8691
        %v8712 = vcombine.low %v8668, %v8700
        %v8713 = vcombine.high %v8668, %v8700
        %v8714 = vcombine.low %v8675, %v8707
        %v8715 = vcombine.high %v8675, %v8707
        %8717 = vrot.lane.b32.xlu0 %v8709, 8
        %v8718 = vpop.permute.xlu0 %8717
        %8721 = vrot.lane.b32.xlu0 %v8710, 16
        %v8722 = vpop.permute.xlu0 %8721
        %8725 = vrot.lane.b32.xlu0 %v8711, 24
        %v8726 = vpop.permute.xlu0 %8725
        %8729 = vrot.lane.b32.xlu0 %v8712, 32
        %v8730 = vpop.permute.xlu0 %8729
        %8733 = vrot.lane.b32.xlu0 %v8713, 40
        %v8734 = vpop.permute.xlu0 %8733
        %8737 = vrot.lane.b32.xlu0 %v8714, 48
        %v8738 = vpop.permute.xlu0 %8737
        %8741 = vrot.lane.b32.xlu0 %v8715, 56
        %v8742 = vpop.permute.xlu0 %8741
        %v8744 = vsel %vm3635, %v8708, %v8718
        %v8745 = vsel %vm987, %v8744, %v8722
        %v8746 = vsel %vm3638, %v8745, %v8726
        %v8747 = vsel %vm989, %v8746, %v8730
        %v8748 = vsel %vm3641, %v8747, %v8734
        %v8749 = vsel %vm991, %v8748, %v8738
        %v8750 = vsel %vm3644, %v8749, %v8742
        %8751 = vrot.lane.b32.xlu0 %v8355, 126
        %v8752 = vpop.permute.xlu0 %8751
        %8753 = vrot.lane.b32.xlu0 %v8358, 126
        %v8754 = vpop.permute.xlu0 %8753
        %8755 = vrot.lane.b32.xlu0 %v8361, 126
        %v8756 = vpop.permute.xlu0 %8755
        %8757 = vrot.lane.b32.xlu0 %v8364, 126
        %v8758 = vpop.permute.xlu0 %8757
        %8759 = vrot.lane.b32.xlu0 %v8367, 126
        %v8760 = vpop.permute.xlu0 %8759
        %8761 = vrot.lane.b32.xlu0 %v8370, 126
        %v8762 = vpop.permute.xlu0 %8761
        %8763 = vrot.lane.b32.xlu0 %v8373, 126
        %v8764 = vpop.permute.xlu0 %8763
        %8765 = vrot.lane.b32.xlu0 %v8376, 126
        %v8766 = vpop.permute.xlu0 %8765
        %v8775 = vcombine.low %v8752, %v8756
        %v8776 = vcombine.high %v8752, %v8756
        %v8778 = vunpack.c.l.s4 1983009808
        %v8779 = vunpack.c.0.s8 %v8778
        %v8780 = vlaneseq
        %v8781 = vshrl.u32 %v8780, 7
        %v8782 = vsub.s32 %v8779, %v8781
        %v8783 = vrot.slane %v8775, %v8782
        %v8785 = vunpack.c.l.s4 1983009808
        %v8786 = vunpack.c.0.s8 %v8785
        %v8787 = vlaneseq
        %v8788 = vshrl.u32 %v8787, 7
        %v8789 = vsub.s32 %v8786, %v8788
        %v8790 = vrot.slane %v8776, %v8789
        %v8791 = vcombine.low %v8754, %v8758
        %v8792 = vcombine.high %v8754, %v8758
        %v8794 = vunpack.c.l.s4 1983009808
        %v8795 = vunpack.c.0.s8 %v8794
        %v8796 = vlaneseq
        %v8797 = vshrl.u32 %v8796, 7
        %v8798 = vsub.s32 %v8795, %v8797
        %v8799 = vrot.slane %v8791, %v8798
        %v8801 = vunpack.c.l.s4 1983009808
        %v8802 = vunpack.c.0.s8 %v8801
        %v8803 = vlaneseq
        %v8804 = vshrl.u32 %v8803, 7
        %v8805 = vsub.s32 %v8802, %v8804
        %v8806 = vrot.slane %v8792, %v8805
        %v8807 = vcombine.low %v8760, %v8764
        %v8808 = vcombine.high %v8760, %v8764
        %v8810 = vunpack.c.l.s4 1983009808
        %v8811 = vunpack.c.0.s8 %v8810
        %v8812 = vlaneseq
        %v8813 = vshrl.u32 %v8812, 7
        %v8814 = vsub.s32 %v8811, %v8813
        %v8815 = vrot.slane %v8807, %v8814
        %v8817 = vunpack.c.l.s4 1983009808
        %v8818 = vunpack.c.0.s8 %v8817
        %v8819 = vlaneseq
        %v8820 = vshrl.u32 %v8819, 7
        %v8821 = vsub.s32 %v8818, %v8820
        %v8822 = vrot.slane %v8808, %v8821
        %v8823 = vcombine.low %v8762, %v8766
        %v8824 = vcombine.high %v8762, %v8766
        %v8826 = vunpack.c.l.s4 1983009808
        %v8827 = vunpack.c.0.s8 %v8826
        %v8828 = vlaneseq
        %v8829 = vshrl.u32 %v8828, 7
        %v8830 = vsub.s32 %v8827, %v8829
        %v8831 = vrot.slane %v8823, %v8830
        %v8833 = vunpack.c.l.s4 1983009808
        %v8834 = vunpack.c.0.s8 %v8833
        %v8835 = vlaneseq
        %v8836 = vshrl.u32 %v8835, 7
        %v8837 = vsub.s32 %v8834, %v8836
        %v8838 = vrot.slane %v8824, %v8837
        %v8839 = vcombine.low %v8783, %v8799
        %v8840 = vcombine.high %v8783, %v8799
        %v8842 = vunpack.c.l.s4 1934713408
        %v8843 = vunpack.c.0.s8 %v8842
        %v8844 = vlaneseq
        %v8845 = vshrl.u32 %v8844, 7
        %v8846 = vsub.s32 %v8843, %v8845
        %v8847 = vrot.slane %v8839, %v8846
        %v8849 = vunpack.c.l.s4 1934713408
        %v8850 = vunpack.c.0.s8 %v8849
        %v8851 = vlaneseq
        %v8852 = vshrl.u32 %v8851, 7
        %v8853 = vsub.s32 %v8850, %v8852
        %v8854 = vrot.slane %v8840, %v8853
        %v8855 = vcombine.low %v8790, %v8806
        %v8856 = vcombine.high %v8790, %v8806
        %v8858 = vunpack.c.l.s4 1934713408
        %v8859 = vunpack.c.0.s8 %v8858
        %v8860 = vlaneseq
        %v8861 = vshrl.u32 %v8860, 7
        %v8862 = vsub.s32 %v8859, %v8861
        %v8863 = vrot.slane %v8855, %v8862
        %v8865 = vunpack.c.l.s4 1934713408
        %v8866 = vunpack.c.0.s8 %v8865
        %v8867 = vlaneseq
        %v8868 = vshrl.u32 %v8867, 7
        %v8869 = vsub.s32 %v8866, %v8868
        %v8870 = vrot.slane %v8856, %v8869
        %v8871 = vcombine.low %v8815, %v8831
        %v8872 = vcombine.high %v8815, %v8831
        %v8874 = vunpack.c.l.s4 1934713408
        %v8875 = vunpack.c.0.s8 %v8874
        %v8876 = vlaneseq
        %v8877 = vshrl.u32 %v8876, 7
        %v8878 = vsub.s32 %v8875, %v8877
        %v8879 = vrot.slane %v8871, %v8878
        %v8881 = vunpack.c.l.s4 1934713408
        %v8882 = vunpack.c.0.s8 %v8881
        %v8883 = vlaneseq
        %v8884 = vshrl.u32 %v8883, 7
        %v8885 = vsub.s32 %v8882, %v8884
        %v8886 = vrot.slane %v8872, %v8885
        %v8887 = vcombine.low %v8822, %v8838
        %v8888 = vcombine.high %v8822, %v8838
        %v8890 = vunpack.c.l.s4 1934713408
        %v8891 = vunpack.c.0.s8 %v8890
        %v8892 = vlaneseq
        %v8893 = vshrl.u32 %v8892, 7
        %v8894 = vsub.s32 %v8891, %v8893
        %v8895 = vrot.slane %v8887, %v8894
        %v8897 = vunpack.c.l.s4 1934713408
        %v8898 = vunpack.c.0.s8 %v8897
        %v8899 = vlaneseq
        %v8900 = vshrl.u32 %v8899, 7
        %v8901 = vsub.s32 %v8898, %v8900
        %v8902 = vrot.slane %v8888, %v8901
        %v8903 = vcombine.low %v8847, %v8879
        %v8904 = vcombine.high %v8847, %v8879
        %v8905 = vcombine.low %v8854, %v8886
        %v8906 = vcombine.high %v8854, %v8886
        %v8907 = vcombine.low %v8863, %v8895
        %v8908 = vcombine.high %v8863, %v8895
        %v8909 = vcombine.low %v8870, %v8902
        %v8910 = vcombine.high %v8870, %v8902
        %8912 = vrot.lane.b32.xlu0 %v8904, 8
        %v8913 = vpop.permute.xlu0 %8912
        %8916 = vrot.lane.b32.xlu0 %v8905, 16
        %v8917 = vpop.permute.xlu0 %8916
        %8920 = vrot.lane.b32.xlu0 %v8906, 24
        %v8921 = vpop.permute.xlu0 %8920
        %8924 = vrot.lane.b32.xlu0 %v8907, 32
        %v8925 = vpop.permute.xlu0 %8924
        %8928 = vrot.lane.b32.xlu0 %v8908, 40
        %v8929 = vpop.permute.xlu0 %8928
        %8932 = vrot.lane.b32.xlu0 %v8909, 48
        %v8933 = vpop.permute.xlu0 %8932
        %8936 = vrot.lane.b32.xlu0 %v8910, 56
        %v8937 = vpop.permute.xlu0 %8936
        %v8939 = vsel %vm3635, %v8903, %v8913
        %v8940 = vsel %vm987, %v8939, %v8917
        %v8941 = vsel %vm3638, %v8940, %v8921
        %v8942 = vsel %vm989, %v8941, %v8925
        %v8943 = vsel %vm3641, %v8942, %v8929
        %v8944 = vsel %vm991, %v8943, %v8933
        %v8945 = vsel %vm3644, %v8944, %v8937
        %v8946 = vrot.slane %v7760, 2
        %v8947 = vrot.slane %v7761, 2
        %v8948 = vsel %vm2175, %v8946, %v8947
        %v8949 = vrot.slane %v7762, 2
        %v8950 = vrot.slane %v7763, 2
        %v8951 = vsel %vm2175, %v8949, %v8950
        %v8952 = vrot.slane %v7764, 2
        %v8953 = vrot.slane %v7765, 2
        %v8954 = vsel %vm2175, %v8952, %v8953
        %v8955 = vrot.slane %v7766, 2
        %v8956 = vrot.slane %v7767, 2
        %v8957 = vsel %vm2175, %v8955, %v8956
        %v8958 = vrot.slane %v7768, 2
        %v8959 = vrot.slane %v7769, 2
        %v8960 = vsel %vm2175, %v8958, %v8959
        %v8961 = vrot.slane %v7770, 2
        %v8962 = vrot.slane %v7771, 2
        %v8963 = vsel %vm2175, %v8961, %v8962
        %v8964 = vrot.slane %v7772, 2
        %v8965 = vrot.slane %v7773, 2
        %v8966 = vsel %vm2175, %v8964, %v8965
        %v8967 = vrot.slane %v7774, 2
        %v8968 = vrot.slane %v7775, 2
        %v8969 = vsel %vm2175, %v8967, %v8968
        %v8978 = vcombine.low %v8948, %v8954
        %v8979 = vcombine.high %v8948, %v8954
        %v8981 = vunpack.c.l.s4 1983009808
        %v8982 = vunpack.c.0.s8 %v8981
        %v8983 = vlaneseq
        %v8984 = vshrl.u32 %v8983, 7
        %v8985 = vsub.s32 %v8982, %v8984
        %v8986 = vrot.slane %v8978, %v8985
        %v8988 = vunpack.c.l.s4 1983009808
        %v8989 = vunpack.c.0.s8 %v8988
        %v8990 = vlaneseq
        %v8991 = vshrl.u32 %v8990, 7
        %v8992 = vsub.s32 %v8989, %v8991
        %v8993 = vrot.slane %v8979, %v8992
        %v8994 = vcombine.low %v8951, %v8957
        %v8995 = vcombine.high %v8951, %v8957
        %v8997 = vunpack.c.l.s4 1983009808
        %v8998 = vunpack.c.0.s8 %v8997
        %v8999 = vlaneseq
        %v9000 = vshrl.u32 %v8999, 7
        %v9001 = vsub.s32 %v8998, %v9000
        %v9002 = vrot.slane %v8994, %v9001
        %v9004 = vunpack.c.l.s4 1983009808
        %v9005 = vunpack.c.0.s8 %v9004
        %v9006 = vlaneseq
        %v9007 = vshrl.u32 %v9006, 7
        %v9008 = vsub.s32 %v9005, %v9007
        %v9009 = vrot.slane %v8995, %v9008
        %v9010 = vcombine.low %v8960, %v8966
        %v9011 = vcombine.high %v8960, %v8966
        %v9013 = vunpack.c.l.s4 1983009808
        %v9014 = vunpack.c.0.s8 %v9013
        %v9015 = vlaneseq
        %v9016 = vshrl.u32 %v9015, 7
        %v9017 = vsub.s32 %v9014, %v9016
        %v9018 = vrot.slane %v9010, %v9017
        %v9020 = vunpack.c.l.s4 1983009808
        %v9021 = vunpack.c.0.s8 %v9020
        %v9022 = vlaneseq
        %v9023 = vshrl.u32 %v9022, 7
        %v9024 = vsub.s32 %v9021, %v9023
        %v9025 = vrot.slane %v9011, %v9024
        %v9026 = vcombine.low %v8963, %v8969
        %v9027 = vcombine.high %v8963, %v8969
        %v9029 = vunpack.c.l.s4 1983009808
        %v9030 = vunpack.c.0.s8 %v9029
        %v9031 = vlaneseq
        %v9032 = vshrl.u32 %v9031, 7
        %v9033 = vsub.s32 %v9030, %v9032
        %v9034 = vrot.slane %v9026, %v9033
        %v9036 = vunpack.c.l.s4 1983009808
        %v9037 = vunpack.c.0.s8 %v9036
        %v9038 = vlaneseq
        %v9039 = vshrl.u32 %v9038, 7
        %v9040 = vsub.s32 %v9037, %v9039
        %v9041 = vrot.slane %v9027, %v9040
        %v9042 = vcombine.low %v8986, %v9002
        %v9043 = vcombine.high %v8986, %v9002
        %v9045 = vunpack.c.l.s4 1934713408
        %v9046 = vunpack.c.0.s8 %v9045
        %v9047 = vlaneseq
        %v9048 = vshrl.u32 %v9047, 7
        %v9049 = vsub.s32 %v9046, %v9048
        %v9050 = vrot.slane %v9042, %v9049
        %v9052 = vunpack.c.l.s4 1934713408
        %v9053 = vunpack.c.0.s8 %v9052
        %v9054 = vlaneseq
        %v9055 = vshrl.u32 %v9054, 7
        %v9056 = vsub.s32 %v9053, %v9055
        %v9057 = vrot.slane %v9043, %v9056
        %v9058 = vcombine.low %v8993, %v9009
        %v9059 = vcombine.high %v8993, %v9009
        %v9061 = vunpack.c.l.s4 1934713408
        %v9062 = vunpack.c.0.s8 %v9061
        %v9063 = vlaneseq
        %v9064 = vshrl.u32 %v9063, 7
        %v9065 = vsub.s32 %v9062, %v9064
        %v9066 = vrot.slane %v9058, %v9065
        %v9068 = vunpack.c.l.s4 1934713408
        %v9069 = vunpack.c.0.s8 %v9068
        %v9070 = vlaneseq
        %v9071 = vshrl.u32 %v9070, 7
        %v9072 = vsub.s32 %v9069, %v9071
        %v9073 = vrot.slane %v9059, %v9072
        %v9074 = vcombine.low %v9018, %v9034
        %v9075 = vcombine.high %v9018, %v9034
        %v9077 = vunpack.c.l.s4 1934713408
        %v9078 = vunpack.c.0.s8 %v9077
        %v9079 = vlaneseq
        %v9080 = vshrl.u32 %v9079, 7
        %v9081 = vsub.s32 %v9078, %v9080
        %v9082 = vrot.slane %v9074, %v9081
        %v9084 = vunpack.c.l.s4 1934713408
        %v9085 = vunpack.c.0.s8 %v9084
        %v9086 = vlaneseq
        %v9087 = vshrl.u32 %v9086, 7
        %v9088 = vsub.s32 %v9085, %v9087
        %v9089 = vrot.slane %v9075, %v9088
        %v9090 = vcombine.low %v9025, %v9041
        %v9091 = vcombine.high %v9025, %v9041
        %v9093 = vunpack.c.l.s4 1934713408
        %v9094 = vunpack.c.0.s8 %v9093
        %v9095 = vlaneseq
        %v9096 = vshrl.u32 %v9095, 7
        %v9097 = vsub.s32 %v9094, %v9096
        %v9098 = vrot.slane %v9090, %v9097
        %v9100 = vunpack.c.l.s4 1934713408
        %v9101 = vunpack.c.0.s8 %v9100
        %v9102 = vlaneseq
        %v9103 = vshrl.u32 %v9102, 7
        %v9104 = vsub.s32 %v9101, %v9103
        %v9105 = vrot.slane %v9091, %v9104
        %v9106 = vcombine.low %v9050, %v9082
        %v9107 = vcombine.high %v9050, %v9082
        %v9108 = vcombine.low %v9057, %v9089
        %v9109 = vcombine.high %v9057, %v9089
        %v9110 = vcombine.low %v9066, %v9098
        %v9111 = vcombine.high %v9066, %v9098
        %v9112 = vcombine.low %v9073, %v9105
        %v9113 = vcombine.high %v9073, %v9105
        %9115 = vrot.lane.b32.xlu0 %v9107, 8
        %v9116 = vpop.permute.xlu0 %9115
        %9119 = vrot.lane.b32.xlu0 %v9108, 16
        %v9120 = vpop.permute.xlu0 %9119
        %9123 = vrot.lane.b32.xlu0 %v9109, 24
        %v9124 = vpop.permute.xlu0 %9123
        %9127 = vrot.lane.b32.xlu0 %v9110, 32
        %v9128 = vpop.permute.xlu0 %9127
        %9131 = vrot.lane.b32.xlu0 %v9111, 40
        %v9132 = vpop.permute.xlu0 %9131
        %9135 = vrot.lane.b32.xlu0 %v9112, 48
        %v9136 = vpop.permute.xlu0 %9135
        %9139 = vrot.lane.b32.xlu0 %v9113, 56
        %v9140 = vpop.permute.xlu0 %9139
        %v9142 = vsel %vm3635, %v9106, %v9116
        %v9143 = vsel %vm987, %v9142, %v9120
        %v9144 = vsel %vm3638, %v9143, %v9124
        %v9145 = vsel %vm989, %v9144, %v9128
        %v9146 = vsel %vm3641, %v9145, %v9132
        %v9147 = vsel %vm991, %v9146, %v9136
        %v9148 = vsel %vm3644, %v9147, %v9140
        %9149 = vrot.lane.b32.xlu0 %v8948, 127
        %v9150 = vpop.permute.xlu0 %9149
        %9151 = vrot.lane.b32.xlu0 %v8951, 127
        %v9152 = vpop.permute.xlu0 %9151
        %9153 = vrot.lane.b32.xlu0 %v8954, 127
        %v9154 = vpop.permute.xlu0 %9153
        %9155 = vrot.lane.b32.xlu0 %v8957, 127
        %v9156 = vpop.permute.xlu0 %9155
        %9157 = vrot.lane.b32.xlu0 %v8960, 127
        %v9158 = vpop.permute.xlu0 %9157
        %9159 = vrot.lane.b32.xlu0 %v8963, 127
        %v9160 = vpop.permute.xlu0 %9159
        %9161 = vrot.lane.b32.xlu0 %v8966, 127
        %v9162 = vpop.permute.xlu0 %9161
        %9163 = vrot.lane.b32.xlu0 %v8969, 127
        %v9164 = vpop.permute.xlu0 %9163
        %v9173 = vcombine.low %v9150, %v9154
        %v9174 = vcombine.high %v9150, %v9154
        %v9176 = vunpack.c.l.s4 1983009808
        %v9177 = vunpack.c.0.s8 %v9176
        %v9178 = vlaneseq
        %v9179 = vshrl.u32 %v9178, 7
        %v9180 = vsub.s32 %v9177, %v9179
        %v9181 = vrot.slane %v9173, %v9180
        %v9183 = vunpack.c.l.s4 1983009808
        %v9184 = vunpack.c.0.s8 %v9183
        %v9185 = vlaneseq
        %v9186 = vshrl.u32 %v9185, 7
        %v9187 = vsub.s32 %v9184, %v9186
        %v9188 = vrot.slane %v9174, %v9187
        %v9189 = vcombine.low %v9152, %v9156
        %v9190 = vcombine.high %v9152, %v9156
        %v9192 = vunpack.c.l.s4 1983009808
        %v9193 = vunpack.c.0.s8 %v9192
        %v9194 = vlaneseq
        %v9195 = vshrl.u32 %v9194, 7
        %v9196 = vsub.s32 %v9193, %v9195
        %v9197 = vrot.slane %v9189, %v9196
        %v9199 = vunpack.c.l.s4 1983009808
        %v9200 = vunpack.c.0.s8 %v9199
        %v9201 = vlaneseq
        %v9202 = vshrl.u32 %v9201, 7
        %v9203 = vsub.s32 %v9200, %v9202
        %v9204 = vrot.slane %v9190, %v9203
        %v9205 = vcombine.low %v9158, %v9162
        %v9206 = vcombine.high %v9158, %v9162
        %v9208 = vunpack.c.l.s4 1983009808
        %v9209 = vunpack.c.0.s8 %v9208
        %v9210 = vlaneseq
        %v9211 = vshrl.u32 %v9210, 7
        %v9212 = vsub.s32 %v9209, %v9211
        %v9213 = vrot.slane %v9205, %v9212
        %v9215 = vunpack.c.l.s4 1983009808
        %v9216 = vunpack.c.0.s8 %v9215
        %v9217 = vlaneseq
        %v9218 = vshrl.u32 %v9217, 7
        %v9219 = vsub.s32 %v9216, %v9218
        %v9220 = vrot.slane %v9206, %v9219
        %v9221 = vcombine.low %v9160, %v9164
        %v9222 = vcombine.high %v9160, %v9164
        %v9224 = vunpack.c.l.s4 1983009808
        %v9225 = vunpack.c.0.s8 %v9224
        %v9226 = vlaneseq
        %v9227 = vshrl.u32 %v9226, 7
        %v9228 = vsub.s32 %v9225, %v9227
        %v9229 = vrot.slane %v9221, %v9228
        %v9231 = vunpack.c.l.s4 1983009808
        %v9232 = vunpack.c.0.s8 %v9231
        %v9233 = vlaneseq
        %v9234 = vshrl.u32 %v9233, 7
        %v9235 = vsub.s32 %v9232, %v9234
        %v9236 = vrot.slane %v9222, %v9235
        %v9237 = vcombine.low %v9181, %v9197
        %v9238 = vcombine.high %v9181, %v9197
        %v9240 = vunpack.c.l.s4 1934713408
        %v9241 = vunpack.c.0.s8 %v9240
        %v9242 = vlaneseq
        %v9243 = vshrl.u32 %v9242, 7
        %v9244 = vsub.s32 %v9241, %v9243
        %v9245 = vrot.slane %v9237, %v9244
        %v9247 = vunpack.c.l.s4 1934713408
        %v9248 = vunpack.c.0.s8 %v9247
        %v9249 = vlaneseq
        %v9250 = vshrl.u32 %v9249, 7
        %v9251 = vsub.s32 %v9248, %v9250
        %v9252 = vrot.slane %v9238, %v9251
        %v9253 = vcombine.low %v9188, %v9204
        %v9254 = vcombine.high %v9188, %v9204
        %v9256 = vunpack.c.l.s4 1934713408
        %v9257 = vunpack.c.0.s8 %v9256
        %v9258 = vlaneseq
        %v9259 = vshrl.u32 %v9258, 7
        %v9260 = vsub.s32 %v9257, %v9259
        %v9261 = vrot.slane %v9253, %v9260
        %v9263 = vunpack.c.l.s4 1934713408
        %v9264 = vunpack.c.0.s8 %v9263
        %v9265 = vlaneseq
        %v9266 = vshrl.u32 %v9265, 7
        %v9267 = vsub.s32 %v9264, %v9266
        %v9268 = vrot.slane %v9254, %v9267
        %v9269 = vcombine.low %v9213, %v9229
        %v9270 = vcombine.high %v9213, %v9229
        %v9272 = vunpack.c.l.s4 1934713408
        %v9273 = vunpack.c.0.s8 %v9272
        %v9274 = vlaneseq
        %v9275 = vshrl.u32 %v9274, 7
        %v9276 = vsub.s32 %v9273, %v9275
        %v9277 = vrot.slane %v9269, %v9276
        %v9279 = vunpack.c.l.s4 1934713408
        %v9280 = vunpack.c.0.s8 %v9279
        %v9281 = vlaneseq
        %v9282 = vshrl.u32 %v9281, 7
        %v9283 = vsub.s32 %v9280, %v9282
        %v9284 = vrot.slane %v9270, %v9283
        %v9285 = vcombine.low %v9220, %v9236
        %v9286 = vcombine.high %v9220, %v9236
        %v9288 = vunpack.c.l.s4 1934713408
        %v9289 = vunpack.c.0.s8 %v9288
        %v9290 = vlaneseq
        %v9291 = vshrl.u32 %v9290, 7
        %v9292 = vsub.s32 %v9289, %v9291
        %v9293 = vrot.slane %v9285, %v9292
        %v9295 = vunpack.c.l.s4 1934713408
        %v9296 = vunpack.c.0.s8 %v9295
        %v9297 = vlaneseq
        %v9298 = vshrl.u32 %v9297, 7
        %v9299 = vsub.s32 %v9296, %v9298
        %v9300 = vrot.slane %v9286, %v9299
        %v9301 = vcombine.low %v9245, %v9277
        %v9302 = vcombine.high %v9245, %v9277
        %v9303 = vcombine.low %v9252, %v9284
        %v9304 = vcombine.high %v9252, %v9284
        %v9305 = vcombine.low %v9261, %v9293
        %v9306 = vcombine.high %v9261, %v9293
        %v9307 = vcombine.low %v9268, %v9300
        %v9308 = vcombine.high %v9268, %v9300
        %9310 = vrot.lane.b32.xlu0 %v9302, 8
        %v9311 = vpop.permute.xlu0 %9310
        %9314 = vrot.lane.b32.xlu0 %v9303, 16
        %v9315 = vpop.permute.xlu0 %9314
        %9318 = vrot.lane.b32.xlu0 %v9304, 24
        %v9319 = vpop.permute.xlu0 %9318
        %9322 = vrot.lane.b32.xlu0 %v9305, 32
        %v9323 = vpop.permute.xlu0 %9322
        %9326 = vrot.lane.b32.xlu0 %v9306, 40
        %v9327 = vpop.permute.xlu0 %9326
        %9330 = vrot.lane.b32.xlu0 %v9307, 48
        %v9331 = vpop.permute.xlu0 %9330
        %9334 = vrot.lane.b32.xlu0 %v9308, 56
        %v9335 = vpop.permute.xlu0 %9334
        %v9337 = vsel %vm3635, %v9301, %v9311
        %v9338 = vsel %vm987, %v9337, %v9315
        %v9339 = vsel %vm3638, %v9338, %v9319
        %v9340 = vsel %vm989, %v9339, %v9323
        %v9341 = vsel %vm3641, %v9340, %v9327
        %v9342 = vsel %vm991, %v9341, %v9331
        %v9343 = vsel %vm3644, %v9342, %v9335
        %9344 = vrot.lane.b32.xlu0 %v8948, 126
        %v9345 = vpop.permute.xlu0 %9344
        %9346 = vrot.lane.b32.xlu0 %v8951, 126
        %v9347 = vpop.permute.xlu0 %9346
        %9348 = vrot.lane.b32.xlu0 %v8954, 126
        %v9349 = vpop.permute.xlu0 %9348
        %9350 = vrot.lane.b32.xlu0 %v8957, 126
        %v9351 = vpop.permute.xlu0 %9350
        %9352 = vrot.lane.b32.xlu0 %v8960, 126
        %v9353 = vpop.permute.xlu0 %9352
        %9354 = vrot.lane.b32.xlu0 %v8963, 126
        %v9355 = vpop.permute.xlu0 %9354
        %9356 = vrot.lane.b32.xlu0 %v8966, 126
        %v9357 = vpop.permute.xlu0 %9356
        %9358 = vrot.lane.b32.xlu0 %v8969, 126
        %v9359 = vpop.permute.xlu0 %9358
        %v9368 = vcombine.low %v9345, %v9349
        %v9369 = vcombine.high %v9345, %v9349
        %v9371 = vunpack.c.l.s4 1983009808
        %v9372 = vunpack.c.0.s8 %v9371
        %v9373 = vlaneseq
        %v9374 = vshrl.u32 %v9373, 7
        %v9375 = vsub.s32 %v9372, %v9374
        %v9376 = vrot.slane %v9368, %v9375
        %v9378 = vunpack.c.l.s4 1983009808
        %v9379 = vunpack.c.0.s8 %v9378
        %v9380 = vlaneseq
        %v9381 = vshrl.u32 %v9380, 7
        %v9382 = vsub.s32 %v9379, %v9381
        %v9383 = vrot.slane %v9369, %v9382
        %v9384 = vcombine.low %v9347, %v9351
        %v9385 = vcombine.high %v9347, %v9351
        %v9387 = vunpack.c.l.s4 1983009808
        %v9388 = vunpack.c.0.s8 %v9387
        %v9389 = vlaneseq
        %v9390 = vshrl.u32 %v9389, 7
        %v9391 = vsub.s32 %v9388, %v9390
        %v9392 = vrot.slane %v9384, %v9391
        %v9394 = vunpack.c.l.s4 1983009808
        %v9395 = vunpack.c.0.s8 %v9394
        %v9396 = vlaneseq
        %v9397 = vshrl.u32 %v9396, 7
        %v9398 = vsub.s32 %v9395, %v9397
        %v9399 = vrot.slane %v9385, %v9398
        %v9400 = vcombine.low %v9353, %v9357
        %v9401 = vcombine.high %v9353, %v9357
        %v9403 = vunpack.c.l.s4 1983009808
        %v9404 = vunpack.c.0.s8 %v9403
        %v9405 = vlaneseq
        %v9406 = vshrl.u32 %v9405, 7
        %v9407 = vsub.s32 %v9404, %v9406
        %v9408 = vrot.slane %v9400, %v9407
        %v9410 = vunpack.c.l.s4 1983009808
        %v9411 = vunpack.c.0.s8 %v9410
        %v9412 = vlaneseq
        %v9413 = vshrl.u32 %v9412, 7
        %v9414 = vsub.s32 %v9411, %v9413
        %v9415 = vrot.slane %v9401, %v9414
        %v9416 = vcombine.low %v9355, %v9359
        %v9417 = vcombine.high %v9355, %v9359
        %v9419 = vunpack.c.l.s4 1983009808
        %v9420 = vunpack.c.0.s8 %v9419
        %v9421 = vlaneseq
        %v9422 = vshrl.u32 %v9421, 7
        %v9423 = vsub.s32 %v9420, %v9422
        %v9424 = vrot.slane %v9416, %v9423
        %v9426 = vunpack.c.l.s4 1983009808
        %v9427 = vunpack.c.0.s8 %v9426
        %v9428 = vlaneseq
        %v9429 = vshrl.u32 %v9428, 7
        %v9430 = vsub.s32 %v9427, %v9429
        %v9431 = vrot.slane %v9417, %v9430
        %v9432 = vcombine.low %v9376, %v9392
        %v9433 = vcombine.high %v9376, %v9392
        %v9435 = vunpack.c.l.s4 1934713408
        %v9436 = vunpack.c.0.s8 %v9435
        %v9437 = vlaneseq
        %v9438 = vshrl.u32 %v9437, 7
        %v9439 = vsub.s32 %v9436, %v9438
        %v9440 = vrot.slane %v9432, %v9439
        %v9442 = vunpack.c.l.s4 1934713408
        %v9443 = vunpack.c.0.s8 %v9442
        %v9444 = vlaneseq
        %v9445 = vshrl.u32 %v9444, 7
        %v9446 = vsub.s32 %v9443, %v9445
        %v9447 = vrot.slane %v9433, %v9446
        %v9448 = vcombine.low %v9383, %v9399
        %v9449 = vcombine.high %v9383, %v9399
        %v9451 = vunpack.c.l.s4 1934713408
        %v9452 = vunpack.c.0.s8 %v9451
        %v9453 = vlaneseq
        %v9454 = vshrl.u32 %v9453, 7
        %v9455 = vsub.s32 %v9452, %v9454
        %v9456 = vrot.slane %v9448, %v9455
        %v9458 = vunpack.c.l.s4 1934713408
        %v9459 = vunpack.c.0.s8 %v9458
        %v9460 = vlaneseq
        %v9461 = vshrl.u32 %v9460, 7
        %v9462 = vsub.s32 %v9459, %v9461
        %v9463 = vrot.slane %v9449, %v9462
        %v9464 = vcombine.low %v9408, %v9424
        %v9465 = vcombine.high %v9408, %v9424
        %v9467 = vunpack.c.l.s4 1934713408
        %v9468 = vunpack.c.0.s8 %v9467
        %v9469 = vlaneseq
        %v9470 = vshrl.u32 %v9469, 7
        %v9471 = vsub.s32 %v9468, %v9470
        %v9472 = vrot.slane %v9464, %v9471
        %v9474 = vunpack.c.l.s4 1934713408
        %v9475 = vunpack.c.0.s8 %v9474
        %v9476 = vlaneseq
        %v9477 = vshrl.u32 %v9476, 7
        %v9478 = vsub.s32 %v9475, %v9477
        %v9479 = vrot.slane %v9465, %v9478
        %v9480 = vcombine.low %v9415, %v9431
        %v9481 = vcombine.high %v9415, %v9431
        %v9483 = vunpack.c.l.s4 1934713408
        %v9484 = vunpack.c.0.s8 %v9483
        %v9485 = vlaneseq
        %v9486 = vshrl.u32 %v9485, 7
        %v9487 = vsub.s32 %v9484, %v9486
        %v9488 = vrot.slane %v9480, %v9487
        %v9490 = vunpack.c.l.s4 1934713408
        %v9491 = vunpack.c.0.s8 %v9490
        %v9492 = vlaneseq
        %v9493 = vshrl.u32 %v9492, 7
        %v9494 = vsub.s32 %v9491, %v9493
        %v9495 = vrot.slane %v9481, %v9494
        %v9496 = vcombine.low %v9440, %v9472
        %v9497 = vcombine.high %v9440, %v9472
        %v9498 = vcombine.low %v9447, %v9479
        %v9499 = vcombine.high %v9447, %v9479
        %v9500 = vcombine.low %v9456, %v9488
        %v9501 = vcombine.high %v9456, %v9488
        %v9502 = vcombine.low %v9463, %v9495
        %v9503 = vcombine.high %v9463, %v9495
        %9505 = vrot.lane.b32.xlu0 %v9497, 8
        %v9506 = vpop.permute.xlu0 %9505
        %9509 = vrot.lane.b32.xlu0 %v9498, 16
        %v9510 = vpop.permute.xlu0 %9509
        %9513 = vrot.lane.b32.xlu0 %v9499, 24
        %v9514 = vpop.permute.xlu0 %9513
        %9517 = vrot.lane.b32.xlu0 %v9500, 32
        %v9518 = vpop.permute.xlu0 %9517
        %9521 = vrot.lane.b32.xlu0 %v9501, 40
        %v9522 = vpop.permute.xlu0 %9521
        %9525 = vrot.lane.b32.xlu0 %v9502, 48
        %v9526 = vpop.permute.xlu0 %9525
        %9529 = vrot.lane.b32.xlu0 %v9503, 56
        %v9530 = vpop.permute.xlu0 %9529
        %v9532 = vsel %vm3635, %v9496, %v9506
        %v9533 = vsel %vm987, %v9532, %v9510
        %v9534 = vsel %vm3638, %v9533, %v9514
        %v9535 = vsel %vm989, %v9534, %v9518
        %v9536 = vsel %vm3641, %v9535, %v9522
        %v9537 = vsel %vm991, %v9536, %v9526
        %v9538 = vsel %vm3644, %v9537, %v9530
        %v9539 = vld [vmem:[%s13] sm:$0xff]
        %v9541 = vsel %vm7391, %v9539, 0
        %9543 = vmatprep.subr.mxu0 0.0
        %9544 = vmatpush1.msra.mxu0 %v7946
        %9545 = vmatprep.subr.mxu0 0.0
        %9546 = vmatpush1.msra.mxu0 %v8149
        %9547 = vmatprep.subr.mxu0 0.0
        %9548 = vmatpush1.msra.mxu0 %v8344
        %9549 = vmatprep.subr.mxu0 0.0
        %9550 = vmatpush1.msra.mxu0 %v8555
        %9551 = vmatprep.subr.mxu0 0.0
        %9552 = vmatpush1.msra.mxu0 %v8750
        %9553 = vmatprep.subr.mxu0 0.0
        %9554 = vmatpush1.msra.mxu0 %v8945
        %9555 = vmatprep.subr.mxu0 0.0
        %9556 = vmatpush1.msra.mxu0 %v9148
        %9557 = vmatprep.subr.mxu0 0.0
        %9558 = vmatpush1.msra.mxu0 %v9343
        %9559 = vmatprep.subr.mxu0 0.0
        %9560 = vmatpush1.msra.mxu0 %v9538
        %9561 = vmatprep.subr.mxu0 0.0
        %9562 = vmatpush1.msra.mxu0 0.0
        %9563 = vmatprep.subr.mxu0 0.0
        %9564 = vmatpush1.msra.mxu0 0.0
        %9565 = vmatprep.subr.mxu0 0.0
        %9566 = vmatpush1.msra.mxu0 0.0
        %9567 = vmatprep.subr.mxu0 0.0
        %9568 = vmatpush1.msra.mxu0 0.0
        %9569 = vmatprep.subr.mxu0 0.0
        %9570 = vmatpush1.msra.mxu0 0.0
        %9571 = vmatprep.subr.mxu0 0.0
        %9572 = vmatpush1.msra.mxu0 0.0
        %9573 = vmatprep.subr.mxu0 0.0
        %9574 = vmatpush1.msra.mxu0 0.0
        %9575 = vmatprep.subr.mxu0 0.0
        %9576 = vmatpush1.msra.mxu0 0.0
        %9577 = vmatprep.subr.mxu0 0.0
        %9578 = vmatpush1.msra.mxu0 0.0
        %9579 = vmatprep.subr.mxu0 0.0
        %9580 = vmatpush1.msra.mxu0 0.0
        %9581 = vmatprep.subr.mxu0 0.0
        %9582 = vmatpush1.msra.mxu0 0.0
        %9583 = vmatprep.subr.mxu0 0.0
        %9584 = vmatpush1.msra.mxu0 0.0
        %9585 = vmatprep.subr.mxu0 0.0
        %9586 = vmatpush1.msra.mxu0 0.0
        %9587 = vmatprep.subr.mxu0 0.0
        %9588 = vmatpush1.msra.mxu0 0.0
        %9589 = vmatprep.subr.mxu0 0.0
        %9590 = vmatpush1.msra.mxu0 0.0
        %9591 = vmatprep.subr.mxu0 0.0
        %9592 = vmatpush1.msra.mxu0 0.0
        %9593 = vmatprep.subr.mxu0 0.0
        %9594 = vmatpush1.msra.mxu0 0.0
        %9595 = vmatprep.subr.mxu0 0.0
        %9596 = vmatpush1.msra.mxu0 0.0
        %9597 = vmatprep.subr.mxu0 0.0
        %9598 = vmatpush1.msra.mxu0 0.0
        %9599 = vmatprep.subr.mxu0 0.0
        %9600 = vmatpush1.msra.mxu0 0.0
        %9601 = vmatprep.subr.mxu0 0.0
        %9602 = vmatpush1.msra.mxu0 0.0
        %9603 = vmatprep.subr.mxu0 0.0
        %9604 = vmatpush1.msra.mxu0 0.0
        %9605 = vmatprep.subr.mxu0 0.0
        %9606 = vmatpush1.msra.mxu0 0.0
        %9607 = vmatprep.mubr.f32.mxu0 0.0
        %9608 = vmatmul.mubr.f32.gmra.mrb[0].mxu0 %v9541
        %v9609 = vpop.f32.mrb[0].mxu0
        %v9610 = vadd.f32 %v5313, %v9609
        %v9611 = vpop.f32.mrb[0].mxu0
        %9612 = vdwg.mxu0
        %9613 = vst.msk [vmem:[%s460] sm:$0xff] %vm993, %v9610
        %s9614 = sand.u32 %s335, 1
        %s9615 = scalar_lea.sflag [#allocation3], %s9614
        %s9616 = sand.u32 %s335, 1
        %s9617 = smul.addr %s9616, 8
        %s9618 = scalar_lea.vmem [#allocation2], %s9617
        // Predicated region
        $region77: #{tpu_custom_call.1} parent=75 // pred_check
          %p9619 = pneg %p345
        $region78: #{tpu_custom_call.1} parent=75 // pred_check_branch
          %9621 = sbr.rel (%p9619) target = $region80
        $region79: #{tpu_custom_call.1} parent=75 // pred_region
          %s9623 = ssub.s32 128, 128
          %9624 = vsyncadd %s9615, %s9623
          %s9625 = smul.addr %s28, 128
          %s9626 = scalar_lea.hbm %s14, %s9625
          %s9628 = sshll.u32 %s9618, 4
          %s9629 = int_to_ptr.vmem [resolvable:$true] %s9628
          %9631 = dma.vmem_to_hbm [thread:$0]  %s9629, 128, %s9626, %s9615
        $region80: #{tpu_custom_call.1} parent=75 // pred_fallthru
          _
      $region76: #{tpu_custom_call.1} parent=5 // pred_fallthru
        _
      %p9632 = scmp.le.s32.totalorder 2, %s23
      // Predicated region
      $region81: #{tpu_custom_call.1} parent=5 // pred_check
        %p9633 = pneg %p9632
      $region82: #{tpu_custom_call.1} parent=5 // pred_check_branch
        %9635 = sbr.rel (%p9633) target = $region84
      $region83: #{tpu_custom_call.1} parent=5 // pred_region
        %s9636 = ssub.s32 %s23, 2
        // Predicated region
        $region85: #{tpu_custom_call.1} parent=83 // pred_check
          %p9637 = pneg %p351
        $region86: #{tpu_custom_call.1} parent=83 // pred_check_branch
          %9639 = sbr.rel (%p9637) target = $region88
        $region87: #{tpu_custom_call.1} parent=83 // pred_region
          %s9640 = sand.u32 %s336, 1
          %s9641 = scalar_lea.sflag [#allocation3], %s9640
          %s9642 = sand.u32 %s336, 1
          %s9643 = smul.addr %s9642, 8
          %s9644 = scalar_lea.vmem [#allocation2], %s9643
          %9645 = dma.done %s9641, 128
        $region88: #{tpu_custom_call.1} parent=83 // pred_fallthru
          _
      $region84: #{tpu_custom_call.1} parent=5 // pred_fallthru
        _
    $region6: #{tpu_custom_call.1} parent=1 // loop_footer
      %s27 = sadd.s32 1, %s23
    $region7: #{tpu_custom_call.1} parent=1 // loop_footer_branch
      %22 = sbr.rel target = $region3
    $region8: #{tpu_custom_call.1} parent=1 // loop_exit
      _
    %9646 = vsyncpa [#allocation3], 1
    %s9647 = scalar_lea.sflag [#allocation3], 1
    %9648 = vsyncpa %s9647, 1

</llo_original>
